<compile_context>
chip_gen: v6e
topology: v6e:2x2x1
jax: 0.10.0
libtpu: 0.0.40
codegen_flags: <defaults>
</compile_context>

<pallas_src>
import functools

import jax
import jax.numpy as jnp
from jax.experimental import pallas as pl
from jax.experimental.pallas import tpu as pltpu


# ------------------------------ fused kernel -------------------------------- #

def _cnn_fused_kernel(x_ref, t1_ref, bt1_ref, t2_ref, bt2_ref,
                      wf1_ref, bf1_ref, wf2_ref, bf2_ref,
                      o_ref, a1_ref, *, bblk):
    """Whole CNN forward for one block of `bblk` samples.

    x_ref  : [28*bblk, 28]   input rows in (h, b) order (f32)
    t1_ref : [5, 28, 768]    conv1 banded weights (bf16), cols (w_parity, w, c)
    bt1_ref: [1, 384]        conv1 bias tiled over pooled W (f32)
    t2_ref : [5, 384, 512]   conv2 banded weights (bf16)
    bt2_ref: [1, 256]        conv2 bias tiled over pooled W (f32)
    wf1_ref: [4, 256, 512]   fc1 weight split per pooled-H row (bf16)
    bf1_ref: [1, 512]        fc1 bias (f32)
    wf2_ref: [512, 128]      fc2 weight zero-padded to 128 lanes (bf16)
    bf2_ref: [1, 128]        fc2 bias zero-padded (f32)
    o_ref  : [bblk, 128]     logits (first 10 lanes valid, f32)
    a1_ref : [12*bblk, 384]  VMEM scratch: pooled conv1 activations, (h, b) rows
    """
    f32, bf16 = jnp.float32, jnp.bfloat16

    # ---- conv1 (5x5, 1->32): banded matmuls, M = 24*bblk, K = 28, N = 768 ----
    acc = None
    for kh in range(5):
        rows = x_ref[pl.ds(kh * bblk, 24 * bblk), :].astype(bf16)
        part = jnp.dot(rows, t1_ref[kh], preferred_element_type=f32)
        acc = part if acc is None else acc + part              # [24*bblk, 768]

    # fused bias + ReLU + 2x2 max-pool (H partners are bblk-row blocks,
    # W partners are the two 384-lane halves); result -> a1 scratch, (h, b) rows.
    bt1 = bt1_ref[...]
    for hp in range(12):
        top = acc[(2 * hp) * bblk:(2 * hp + 1) * bblk, :]
        bot = acc[(2 * hp + 1) * bblk:(2 * hp + 2) * bblk, :]
        blk = jnp.maximum(top, bot)                            # H-pool [bblk, 768]
        blk = jnp.maximum(blk[:, :384], blk[:, 384:])          # W-pool [bblk, 384]
        a1_ref[pl.ds(hp * bblk, bblk), :] = jnp.maximum(blk + bt1, 0.0)

    # ---- conv2 (5x5, 32->64): M = 8*bblk, K = 384, N = 512 -------------------
    acc = None
    for kh in range(5):
        rows = a1_ref[pl.ds(kh * bblk, 8 * bblk), :].astype(bf16)
        part = jnp.dot(rows, t2_ref[kh], preferred_element_type=f32)
        acc = part if acc is None else acc + part              # [8*bblk, 512]

    # pooled conv2 blocks feed fc1 directly (fc1 K is split per pooled-H row).
    bt2 = bt2_ref[...]
    h = None
    for hp in range(4):
        top = acc[(2 * hp) * bblk:(2 * hp + 1) * bblk, :]
        bot = acc[(2 * hp + 1) * bblk:(2 * hp + 2) * bblk, :]
        blk = jnp.maximum(top, bot)                            # H-pool [bblk, 512]
        blk = jnp.maximum(blk[:, :256], blk[:, 256:])          # W-pool [bblk, 256]
        blk = jnp.maximum(blk + bt2, 0.0)                      # bias + ReLU
        part = jnp.dot(blk.astype(bf16), wf1_ref[hp],
                       preferred_element_type=f32)
        h = part if h is None else h + part                    # [bblk, 512]

    # ---- fc1 bias + ReLU, fc2 (lane-dense 128-wide output) -------------------
    h = jnp.maximum(h + bf1_ref[...], 0.0).astype(bf16)
    logits = jnp.dot(h, wf2_ref[...], preferred_element_type=f32) + bf2_ref[...]
    o_ref[...] = logits.astype(o_ref.dtype)


# --------------------------------- wrapper ----------------------------------- #

def _pick_block_b(batch, target):
    target = max(8, ((target + 7) // 8) * 8)
    if batch >= target:
        return target
    return max(8, ((batch + 7) // 8) * 8)


def cnn_forward(kp, x_nchw, *, block_b=32):
    """[B, 1, 28, 28] f32 images -> [B, 10] f32 logits."""
    B = x_nchw.shape[0]
    bblk = _pick_block_b(B, block_b)
    nblk = pl.cdiv(B, bblk)
    b_pad = nblk * bblk

    # Per batch block, rows are laid out (h, b): row = h*bblk + b.
    x = x_nchw.reshape(B, 28, 28)
    if b_pad != B:
        x = jnp.pad(x, ((0, b_pad - B), (0, 0), (0, 0)))
    x = x.reshape(nblk, bblk, 28, 28).transpose(0, 2, 1, 3)
    x = x.reshape(nblk * 28 * bblk, 28)

    out = pl.pallas_call(
        functools.partial(_cnn_fused_kernel, bblk=bblk),
        out_shape=jax.ShapeDtypeStruct((b_pad, 128), jnp.float32),
        grid=(nblk,),
        in_specs=[
            pl.BlockSpec((28 * bblk, 28), lambda i: (i, 0)),    # image rows
            pl.BlockSpec((5, 28, 768), lambda i: (0, 0, 0)),    # t1 (fetched once)
            pl.BlockSpec((1, 384), lambda i: (0, 0)),           # bt1
            pl.BlockSpec((5, 384, 512), lambda i: (0, 0, 0)),   # t2
            pl.BlockSpec((1, 256), lambda i: (0, 0)),           # bt2
            pl.BlockSpec((4, 256, 512), lambda i: (0, 0, 0)),   # wf1
            pl.BlockSpec((1, 512), lambda i: (0, 0)),           # bf1
            pl.BlockSpec((512, 128), lambda i: (0, 0)),         # wf2 (padded)
            pl.BlockSpec((1, 128), lambda i: (0, 0)),           # bf2 (padded)
        ],
        out_specs=pl.BlockSpec((bblk, 128), lambda i: (i, 0)),
        scratch_shapes=[pltpu.VMEM((12 * bblk, 384), jnp.float32)],
        compiler_params=pltpu.CompilerParams(
            dimension_semantics=("parallel",),
            vmem_limit_bytes=32 * 1024 * 1024),
    )(x, kp["t1"], kp["bt1"], kp["t2"], kp["bt2"],
      kp["wf1"], kp["bf1"], kp["wf2"], kp["bf2"])
    return out[:B, :10]


# --------------------- one-time parameter preparation ------------------------ #

def _conv_weight_to_banded(w_oihw, w_in):
    """[Cout,Cin,K,K] -> banded matrix [K, W_in*Cin, Wo*Cout].

    T[kh, w*Cin+cin, col] = w[co, cin, kh, w-wo] for 0 <= w-wo < K, with columns
    ordered (w_parity, w_pooled, co) so the in-kernel W max-pool is a contiguous
    half-lane maximum.
    """
    cout, cin, k, _ = w_oihw.shape
    wo = w_in - k + 1
    wp = wo // 2
    wk = jnp.transpose(w_oihw, (2, 3, 1, 0))                  # [K, K, Cin, Cout]
    kw = jnp.arange(w_in)[:, None] - jnp.arange(wo)[None, :]  # [W_in, Wo]
    valid = ((kw >= 0) & (kw < k)).astype(w_oihw.dtype)
    g = wk[:, jnp.clip(kw, 0, k - 1)]                         # [K, W_in, Wo, Cin, Cout]
    g = g * valid[None, :, :, None, None]
    g = jnp.transpose(g, (0, 1, 3, 2, 4))                     # [K, W_in, Cin, Wo, Cout]
    g = g.reshape(k, w_in, cin, wp, 2, cout)                  # wo -> (w_pooled, parity)
    g = jnp.transpose(g, (0, 1, 2, 4, 3, 5))                  # -> (parity, w_pooled)
    return g.reshape(k, w_in * cin, wo * cout)


def prepare_params(p):
    """Hoisted, one-time layout transforms + bf16 casts (outside the jitted fwd)."""
    # fc1: PyTorch weight [512, 1024] over (c,h,w) flatten -> [h, (w,c), out].
    f1 = p["fc1_w"].reshape(512, 64, 4, 4)                    # [out, c, h, w]
    f1 = jnp.transpose(f1, (2, 3, 1, 0)).reshape(4, 4 * 64, 512)
    wf2 = jnp.zeros((512, 128), jnp.float32).at[:, :10].set(jnp.transpose(p["fc2_w"]))
    bf2 = jnp.zeros((128,), jnp.float32).at[:10].set(p["fc2_b"])
    return {
        "t1": _conv_weight_to_banded(p["w1"], 28).astype(jnp.bfloat16),  # [5, 28, 768]
        "bt1": jnp.tile(p["b1"], 12)[None, :],                           # [1, 384] f32
        "t2": _conv_weight_to_banded(p["w2"], 12).astype(jnp.bfloat16),  # [5, 384, 512]
        "bt2": jnp.tile(p["b2"], 4)[None, :],                            # [1, 256] f32
        "wf1": f1.astype(jnp.bfloat16),                                  # [4, 256, 512]
        "bf1": p["fc1_b"][None, :],                                      # [1, 512] f32
        "wf2": wf2.astype(jnp.bfloat16),                                 # [512, 128]
        "bf2": bf2[None, :],                                             # [1, 128] f32
    }


def init_params(key):
    """PyTorch-layout params, uniform(-1/sqrt(fan_in), 1/sqrt(fan_in)) init."""
    ks = jax.random.split(key, 8)

    def u(k, shape, fan_in):
        bound = 1.0 / float(fan_in) ** 0.5
        return jax.random.uniform(k, shape, jnp.float32, -bound, bound)

    return {
        "w1": u(ks[0], (32, 1, 5, 5), 25),        # cov1 weight [Cout,Cin,Kh,Kw]
        "b1": u(ks[1], (32,), 25),
        "w2": u(ks[2], (64, 32, 5, 5), 800),      # cov2 weight
        "b2": u(ks[3], (64,), 800),
        "fc1_w": u(ks[4], (512, 1024), 1024),     # PyTorch [out, in], in = (c,h,w)
        "fc1_b": u(ks[5], (512,), 1024),
        "fc2_w": u(ks[6], (10, 512), 512),        # PyTorch [out, in]
        "fc2_b": u(ks[7], (512 and 10,), 512) if False else u(ks[7], (10,), 512),
    }


# ----------------------------- pure-JAX reference ---------------------------- #

def reference_forward(p, x_nchw):
    hi = jax.lax.Precision.HIGHEST
    dn = ("NCHW", "OIHW", "NCHW")
    y = jax.lax.conv_general_dilated(x_nchw, p["w1"], (1, 1), "VALID",
                                     dimension_numbers=dn, precision=hi)
    y = jnp.maximum(y + p["b1"][None, :, None, None], 0.0)
    y = jax.lax.reduce_window(y, -jnp.inf, jax.lax.max,
                              (1, 1, 2, 2), (1, 1, 2, 2), "VALID")
    y = jax.lax.conv_general_dilated(y, p["w2"], (1, 1), "VALID",
                                     dimension_numbers=dn, precision=hi)
    y = jnp.maximum(y + p["b2"][None, :, None, None], 0.0)
    y = jax.lax.reduce_window(y, -jnp.inf, jax.lax.max,
                              (1, 1, 2, 2), (1, 1, 2, 2), "VALID")
    y = y.reshape(y.shape[0], -1)                       # (c, h, w) flatten
    y = jnp.maximum(jnp.dot(y, p["fc1_w"].T, precision=hi) + p["fc1_b"], 0.0)
    return jnp.dot(y, p["fc2_w"].T, precision=hi) + p["fc2_b"]


# ----------------------------------- main ------------------------------------ #

if __name__ == "__main__":
    key = jax.random.PRNGKey(0)
    pkey, xkey = jax.random.split(key)
    torch_params = init_params(pkey)
    kparams = prepare_params(torch_params)   # one-time layout / bf16 prep
    x = jax.random.normal(xkey, (2, 1, 28, 28), jnp.float32)

    fwd = jax.jit(cnn_forward)
    out = jax.block_until_ready(fwd(kparams, x))
    assert out.shape == (2, 10) and out.dtype == jnp.float32

    ref = reference_forward(torch_params, x)
    err = float(jnp.max(jnp.abs(out - ref)))
    assert err < 0.1, f"kernel vs f32 reference max abs error too large: {err}"
    print("KERNEL_OK")
</pallas_src>

<mosaic_0001>
module attributes {stable_mosaic.version = 11 : i64} {
  func.func @_cnn_fused_kernel(%arg0: i32, %arg1: memref<224x28xf32, #tpu.memory_space<vmem>>, %arg2: memref<5x28x768xbf16, #tpu.memory_space<vmem>>, %arg3: memref<1x384xf32, #tpu.memory_space<vmem>>, %arg4: memref<5x384x512xbf16, #tpu.memory_space<vmem>>, %arg5: memref<1x256xf32, #tpu.memory_space<vmem>>, %arg6: memref<4x256x512xbf16, #tpu.memory_space<vmem>>, %arg7: memref<1x512xf32, #tpu.memory_space<vmem>>, %arg8: memref<512x128xbf16, #tpu.memory_space<vmem>>, %arg9: memref<1x128xf32, #tpu.memory_space<vmem>>, %arg10: memref<8x128xf32, #tpu.memory_space<vmem>>, %arg11: memref<96x384xf32, #tpu.memory_space<vmem>>) attributes {dimension_semantics = [#tpu.dimension_semantics<parallel>], iteration_bounds = array<i64: 1>, scalar_prefetch = 0 : i64, scratch_operands = 1 : i64, tpu.core_type = #tpu.core_type<tc>, window_params = [{transform_indices = @transform_0, window_bounds = array<i64: 224, 28>}, {pipeline_mode = #tpu.pipeline_mode<synchronous>, transform_indices = @transform_1, window_bounds = array<i64: 5, 28, 768>}, {pipeline_mode = #tpu.pipeline_mode<synchronous>, transform_indices = @transform_2, window_bounds = array<i64: 1, 384>}, {pipeline_mode = #tpu.pipeline_mode<synchronous>, transform_indices = @transform_3, window_bounds = array<i64: 5, 384, 512>}, {pipeline_mode = #tpu.pipeline_mode<synchronous>, transform_indices = @transform_4, window_bounds = array<i64: 1, 256>}, {pipeline_mode = #tpu.pipeline_mode<synchronous>, transform_indices = @transform_5, window_bounds = array<i64: 4, 256, 512>}, {pipeline_mode = #tpu.pipeline_mode<synchronous>, transform_indices = @transform_6, window_bounds = array<i64: 1, 512>}, {pipeline_mode = #tpu.pipeline_mode<synchronous>, transform_indices = @transform_7, window_bounds = array<i64: 512, 128>}, {pipeline_mode = #tpu.pipeline_mode<synchronous>, transform_indices = @transform_8, window_bounds = array<i64: 1, 128>}, {transform_indices = @transform_9, window_bounds = array<i64: 8, 128>}]} {
    %c0 = arith.constant 0 : index
    %c0_0 = arith.constant 0 : index
    %0 = vector.load %arg1[%c0, %c0_0] : memref<224x28xf32, #tpu.memory_space<vmem>>, vector<192x28xf32>
    %1 = arith.truncf %0 : vector<192x28xf32> to vector<192x28xbf16>
    %c0_1 = arith.constant 0 : index
    %c0_2 = arith.constant 0 : index
    %c0_3 = arith.constant 0 : index
    %2 = vector.load %arg2[%c0_1, %c0_2, %c0_3] : memref<5x28x768xbf16, #tpu.memory_space<vmem>>, vector<1x28x768xbf16>
    %3 = vector.shape_cast %2 : vector<1x28x768xbf16> to vector<28x768xbf16>
    %cst = arith.constant dense<0.000000e+00> : vector<192x768xf32>
    %4 = tpu.matmul %1, %3, %cst {dimension_numbers = #tpu.dot_dimension_numbers<[1], [0], [0], [1], [0, 0, 1, 1], [], []>} : vector<192x28xbf16>, vector<28x768xbf16>, vector<192x768xf32> -> vector<192x768xf32>
    %c8 = arith.constant 8 : index
    %c0_4 = arith.constant 0 : index
    %5 = vector.load %arg1[%c8, %c0_4] : memref<224x28xf32, #tpu.memory_space<vmem>>, vector<192x28xf32>
    %6 = arith.truncf %5 : vector<192x28xf32> to vector<192x28xbf16>
    %c1 = arith.constant 1 : index
    %c0_5 = arith.constant 0 : index
    %c0_6 = arith.constant 0 : index
    %7 = vector.load %arg2[%c1, %c0_5, %c0_6] : memref<5x28x768xbf16, #tpu.memory_space<vmem>>, vector<1x28x768xbf16>
    %8 = vector.shape_cast %7 : vector<1x28x768xbf16> to vector<28x768xbf16>
    %cst_7 = arith.constant dense<0.000000e+00> : vector<192x768xf32>
    %9 = tpu.matmul %6, %8, %cst_7 {dimension_numbers = #tpu.dot_dimension_numbers<[1], [0], [0], [1], [0, 0, 1, 1], [], []>} : vector<192x28xbf16>, vector<28x768xbf16>, vector<192x768xf32> -> vector<192x768xf32>
    %10 = arith.addf %4, %9 : vector<192x768xf32>
    %c16 = arith.constant 16 : index
    %c0_8 = arith.constant 0 : index
    %11 = vector.load %arg1[%c16, %c0_8] : memref<224x28xf32, #tpu.memory_space<vmem>>, vector<192x28xf32>
    %12 = arith.truncf %11 : vector<192x28xf32> to vector<192x28xbf16>
    %c2 = arith.constant 2 : index
    %c0_9 = arith.constant 0 : index
    %c0_10 = arith.constant 0 : index
    %13 = vector.load %arg2[%c2, %c0_9, %c0_10] : memref<5x28x768xbf16, #tpu.memory_space<vmem>>, vector<1x28x768xbf16>
    %14 = vector.shape_cast %13 : vector<1x28x768xbf16> to vector<28x768xbf16>
    %cst_11 = arith.constant dense<0.000000e+00> : vector<192x768xf32>
    %15 = tpu.matmul %12, %14, %cst_11 {dimension_numbers = #tpu.dot_dimension_numbers<[1], [0], [0], [1], [0, 0, 1, 1], [], []>} : vector<192x28xbf16>, vector<28x768xbf16>, vector<192x768xf32> -> vector<192x768xf32>
    %16 = arith.addf %10, %15 : vector<192x768xf32>
    %c24 = arith.constant 24 : index
    %c0_12 = arith.constant 0 : index
    %17 = vector.load %arg1[%c24, %c0_12] : memref<224x28xf32, #tpu.memory_space<vmem>>, vector<192x28xf32>
    %18 = arith.truncf %17 : vector<192x28xf32> to vector<192x28xbf16>
    %c3 = arith.constant 3 : index
    %c0_13 = arith.constant 0 : index
    %c0_14 = arith.constant 0 : index
    %19 = vector.load %arg2[%c3, %c0_13, %c0_14] : memref<5x28x768xbf16, #tpu.memory_space<vmem>>, vector<1x28x768xbf16>
    %20 = vector.shape_cast %19 : vector<1x28x768xbf16> to vector<28x768xbf16>
    %cst_15 = arith.constant dense<0.000000e+00> : vector<192x768xf32>
    %21 = tpu.matmul %18, %20, %cst_15 {dimension_numbers = #tpu.dot_dimension_numbers<[1], [0], [0], [1], [0, 0, 1, 1], [], []>} : vector<192x28xbf16>, vector<28x768xbf16>, vector<192x768xf32> -> vector<192x768xf32>
    %22 = arith.addf %16, %21 : vector<192x768xf32>
    %c32 = arith.constant 32 : index
    %c0_16 = arith.constant 0 : index
    %23 = vector.load %arg1[%c32, %c0_16] : memref<224x28xf32, #tpu.memory_space<vmem>>, vector<192x28xf32>
    %24 = arith.truncf %23 : vector<192x28xf32> to vector<192x28xbf16>
    %c4 = arith.constant 4 : index
    %c0_17 = arith.constant 0 : index
    %c0_18 = arith.constant 0 : index
    %25 = vector.load %arg2[%c4, %c0_17, %c0_18] : memref<5x28x768xbf16, #tpu.memory_space<vmem>>, vector<1x28x768xbf16>
    %26 = vector.shape_cast %25 : vector<1x28x768xbf16> to vector<28x768xbf16>
    %cst_19 = arith.constant dense<0.000000e+00> : vector<192x768xf32>
    %27 = tpu.matmul %24, %26, %cst_19 {dimension_numbers = #tpu.dot_dimension_numbers<[1], [0], [0], [1], [0, 0, 1, 1], [], []>} : vector<192x28xbf16>, vector<28x768xbf16>, vector<192x768xf32> -> vector<192x768xf32>
    %28 = arith.addf %22, %27 : vector<192x768xf32>
    %c0_20 = arith.constant 0 : index
    %c0_21 = arith.constant 0 : index
    %29 = vector.load %arg3[%c0_20, %c0_21] : memref<1x384xf32, #tpu.memory_space<vmem>>, vector<1x384xf32>
    %30 = vector.extract_strided_slice %28 {offsets = [0, 0], sizes = [8, 768], strides = [1, 1]} : vector<192x768xf32> to vector<8x768xf32>
    %31 = vector.extract_strided_slice %28 {offsets = [8, 0], sizes = [8, 768], strides = [1, 1]} : vector<192x768xf32> to vector<8x768xf32>
    %32 = arith.maximumf %30, %31 : vector<8x768xf32>
    %33 = vector.extract_strided_slice %32 {offsets = [0, 0], sizes = [8, 384], strides = [1, 1]} : vector<8x768xf32> to vector<8x384xf32>
    %34 = vector.extract_strided_slice %32 {offsets = [0, 384], sizes = [8, 384], strides = [1, 1]} : vector<8x768xf32> to vector<8x384xf32>
    %35 = arith.maximumf %33, %34 : vector<8x384xf32>
    %36 = vector.broadcast %29 : vector<1x384xf32> to vector<8x384xf32>
    %37 = arith.addf %35, %36 : vector<8x384xf32>
    %cst_22 = arith.constant 0.000000e+00 : f32
    %38 = vector.broadcast %cst_22 : f32 to vector<8x384xf32>
    %39 = arith.maximumf %37, %38 : vector<8x384xf32>
    %c0_23 = arith.constant 0 : index
    %c0_24 = arith.constant 0 : index
    %40 = vector.load %arg11[%c0_23, %c0_24] : memref<96x384xf32, #tpu.memory_space<vmem>>, vector<8x384xf32>
    tpu.vector_store %arg11[%c0_23, %c0_24], %39 {strides = array<i32>} : memref<96x384xf32, #tpu.memory_space<vmem>>, vector<8x384xf32>,
    %41 = vector.extract_strided_slice %28 {offsets = [16, 0], sizes = [8, 768], strides = [1, 1]} : vector<192x768xf32> to vector<8x768xf32>
    %42 = vector.extract_strided_slice %28 {offsets = [24, 0], sizes = [8, 768], strides = [1, 1]} : vector<192x768xf32> to vector<8x768xf32>
    %43 = arith.maximumf %41, %42 : vector<8x768xf32>
    %44 = vector.extract_strided_slice %43 {offsets = [0, 0], sizes = [8, 384], strides = [1, 1]} : vector<8x768xf32> to vector<8x384xf32>
    %45 = vector.extract_strided_slice %43 {offsets = [0, 384], sizes = [8, 384], strides = [1, 1]} : vector<8x768xf32> to vector<8x384xf32>
    %46 = arith.maximumf %44, %45 : vector<8x384xf32>
    %47 = vector.broadcast %29 : vector<1x384xf32> to vector<8x384xf32>
    %48 = arith.addf %46, %47 : vector<8x384xf32>
    %cst_25 = arith.constant 0.000000e+00 : f32
    %49 = vector.broadcast %cst_25 : f32 to vector<8x384xf32>
    %50 = arith.maximumf %48, %49 : vector<8x384xf32>
    %c8_26 = arith.constant 8 : index
    %c0_27 = arith.constant 0 : index
    %51 = vector.load %arg11[%c8_26, %c0_27] : memref<96x384xf32, #tpu.memory_space<vmem>>, vector<8x384xf32>
    tpu.vector_store %arg11[%c8_26, %c0_27], %50 {strides = array<i32>} : memref<96x384xf32, #tpu.memory_space<vmem>>, vector<8x384xf32>,
    %52 = vector.extract_strided_slice %28 {offsets = [32, 0], sizes = [8, 768], strides = [1, 1]} : vector<192x768xf32> to vector<8x768xf32>
    %53 = vector.extract_strided_slice %28 {offsets = [40, 0], sizes = [8, 768], strides = [1, 1]} : vector<192x768xf32> to vector<8x768xf32>
    %54 = arith.maximumf %52, %53 : vector<8x768xf32>
    %55 = vector.extract_strided_slice %54 {offsets = [0, 0], sizes = [8, 384], strides = [1, 1]} : vector<8x768xf32> to vector<8x384xf32>
    %56 = vector.extract_strided_slice %54 {offsets = [0, 384], sizes = [8, 384], strides = [1, 1]} : vector<8x768xf32> to vector<8x384xf32>
    %57 = arith.maximumf %55, %56 : vector<8x384xf32>
    %58 = vector.broadcast %29 : vector<1x384xf32> to vector<8x384xf32>
    %59 = arith.addf %57, %58 : vector<8x384xf32>
    %cst_28 = arith.constant 0.000000e+00 : f32
    %60 = vector.broadcast %cst_28 : f32 to vector<8x384xf32>
    %61 = arith.maximumf %59, %60 : vector<8x384xf32>
    %c16_29 = arith.constant 16 : index
    %c0_30 = arith.constant 0 : index
    %62 = vector.load %arg11[%c16_29, %c0_30] : memref<96x384xf32, #tpu.memory_space<vmem>>, vector<8x384xf32>
    tpu.vector_store %arg11[%c16_29, %c0_30], %61 {strides = array<i32>} : memref<96x384xf32, #tpu.memory_space<vmem>>, vector<8x384xf32>,
    %63 = vector.extract_strided_slice %28 {offsets = [48, 0], sizes = [8, 768], strides = [1, 1]} : vector<192x768xf32> to vector<8x768xf32>
    %64 = vector.extract_strided_slice %28 {offsets = [56, 0], sizes = [8, 768], strides = [1, 1]} : vector<192x768xf32> to vector<8x768xf32>
    %65 = arith.maximumf %63, %64 : vector<8x768xf32>
    %66 = vector.extract_strided_slice %65 {offsets = [0, 0], sizes = [8, 384], strides = [1, 1]} : vector<8x768xf32> to vector<8x384xf32>
    %67 = vector.extract_strided_slice %65 {offsets = [0, 384], sizes = [8, 384], strides = [1, 1]} : vector<8x768xf32> to vector<8x384xf32>
    %68 = arith.maximumf %66, %67 : vector<8x384xf32>
    %69 = vector.broadcast %29 : vector<1x384xf32> to vector<8x384xf32>
    %70 = arith.addf %68, %69 : vector<8x384xf32>
    %cst_31 = arith.constant 0.000000e+00 : f32
    %71 = vector.broadcast %cst_31 : f32 to vector<8x384xf32>
    %72 = arith.maximumf %70, %71 : vector<8x384xf32>
    %c24_32 = arith.constant 24 : index
    %c0_33 = arith.constant 0 : index
    %73 = vector.load %arg11[%c24_32, %c0_33] : memref<96x384xf32, #tpu.memory_space<vmem>>, vector<8x384xf32>
    tpu.vector_store %arg11[%c24_32, %c0_33], %72 {strides = array<i32>} : memref<96x384xf32, #tpu.memory_space<vmem>>, vector<8x384xf32>,
    %74 = vector.extract_strided_slice %28 {offsets = [64, 0], sizes = [8, 768], strides = [1, 1]} : vector<192x768xf32> to vector<8x768xf32>
    %75 = vector.extract_strided_slice %28 {offsets = [72, 0], sizes = [8, 768], strides = [1, 1]} : vector<192x768xf32> to vector<8x768xf32>
    %76 = arith.maximumf %74, %75 : vector<8x768xf32>
    %77 = vector.extract_strided_slice %76 {offsets = [0, 0], sizes = [8, 384], strides = [1, 1]} : vector<8x768xf32> to vector<8x384xf32>
    %78 = vector.extract_strided_slice %76 {offsets = [0, 384], sizes = [8, 384], strides = [1, 1]} : vector<8x768xf32> to vector<8x384xf32>
    %79 = arith.maximumf %77, %78 : vector<8x384xf32>
    %80 = vector.broadcast %29 : vector<1x384xf32> to vector<8x384xf32>
    %81 = arith.addf %79, %80 : vector<8x384xf32>
    %cst_34 = arith.constant 0.000000e+00 : f32
    %82 = vector.broadcast %cst_34 : f32 to vector<8x384xf32>
    %83 = arith.maximumf %81, %82 : vector<8x384xf32>
    %c32_35 = arith.constant 32 : index
    %c0_36 = arith.constant 0 : index
    %84 = vector.load %arg11[%c32_35, %c0_36] : memref<96x384xf32, #tpu.memory_space<vmem>>, vector<8x384xf32>
    tpu.vector_store %arg11[%c32_35, %c0_36], %83 {strides = array<i32>} : memref<96x384xf32, #tpu.memory_space<vmem>>, vector<8x384xf32>,
    %85 = vector.extract_strided_slice %28 {offsets = [80, 0], sizes = [8, 768], strides = [1, 1]} : vector<192x768xf32> to vector<8x768xf32>
    %86 = vector.extract_strided_slice %28 {offsets = [88, 0], sizes = [8, 768], strides = [1, 1]} : vector<192x768xf32> to vector<8x768xf32>
    %87 = arith.maximumf %85, %86 : vector<8x768xf32>
    %88 = vector.extract_strided_slice %87 {offsets = [0, 0], sizes = [8, 384], strides = [1, 1]} : vector<8x768xf32> to vector<8x384xf32>
    %89 = vector.extract_strided_slice %87 {offsets = [0, 384], sizes = [8, 384], strides = [1, 1]} : vector<8x768xf32> to vector<8x384xf32>
    %90 = arith.maximumf %88, %89 : vector<8x384xf32>
    %91 = vector.broadcast %29 : vector<1x384xf32> to vector<8x384xf32>
    %92 = arith.addf %90, %91 : vector<8x384xf32>
    %cst_37 = arith.constant 0.000000e+00 : f32
    %93 = vector.broadcast %cst_37 : f32 to vector<8x384xf32>
    %94 = arith.maximumf %92, %93 : vector<8x384xf32>
    %c40 = arith.constant 40 : index
    %c0_38 = arith.constant 0 : index
    %95 = vector.load %arg11[%c40, %c0_38] : memref<96x384xf32, #tpu.memory_space<vmem>>, vector<8x384xf32>
    tpu.vector_store %arg11[%c40, %c0_38], %94 {strides = array<i32>} : memref<96x384xf32, #tpu.memory_space<vmem>>, vector<8x384xf32>,
    %96 = vector.extract_strided_slice %28 {offsets = [96, 0], sizes = [8, 768], strides = [1, 1]} : vector<192x768xf32> to vector<8x768xf32>
    %97 = vector.extract_strided_slice %28 {offsets = [104, 0], sizes = [8, 768], strides = [1, 1]} : vector<192x768xf32> to vector<8x768xf32>
    %98 = arith.maximumf %96, %97 : vector<8x768xf32>
    %99 = vector.extract_strided_slice %98 {offsets = [0, 0], sizes = [8, 384], strides = [1, 1]} : vector<8x768xf32> to vector<8x384xf32>
    %100 = vector.extract_strided_slice %98 {offsets = [0, 384], sizes = [8, 384], strides = [1, 1]} : vector<8x768xf32> to vector<8x384xf32>
    %101 = arith.maximumf %99, %100 : vector<8x384xf32>
    %102 = vector.broadcast %29 : vector<1x384xf32> to vector<8x384xf32>
    %103 = arith.addf %101, %102 : vector<8x384xf32>
    %cst_39 = arith.constant 0.000000e+00 : f32
    %104 = vector.broadcast %cst_39 : f32 to vector<8x384xf32>
    %105 = arith.maximumf %103, %104 : vector<8x384xf32>
    %c48 = arith.constant 48 : index
    %c0_40 = arith.constant 0 : index
    %106 = vector.load %arg11[%c48, %c0_40] : memref<96x384xf32, #tpu.memory_space<vmem>>, vector<8x384xf32>
    tpu.vector_store %arg11[%c48, %c0_40], %105 {strides = array<i32>} : memref<96x384xf32, #tpu.memory_space<vmem>>, vector<8x384xf32>,
    %107 = vector.extract_strided_slice %28 {offsets = [112, 0], sizes = [8, 768], strides = [1, 1]} : vector<192x768xf32> to vector<8x768xf32>
    %108 = vector.extract_strided_slice %28 {offsets = [120, 0], sizes = [8, 768], strides = [1, 1]} : vector<192x768xf32> to vector<8x768xf32>
    %109 = arith.maximumf %107, %108 : vector<8x768xf32>
    %110 = vector.extract_strided_slice %109 {offsets = [0, 0], sizes = [8, 384], strides = [1, 1]} : vector<8x768xf32> to vector<8x384xf32>
    %111 = vector.extract_strided_slice %109 {offsets = [0, 384], sizes = [8, 384], strides = [1, 1]} : vector<8x768xf32> to vector<8x384xf32>
    %112 = arith.maximumf %110, %111 : vector<8x384xf32>
    %113 = vector.broadcast %29 : vector<1x384xf32> to vector<8x384xf32>
    %114 = arith.addf %112, %113 : vector<8x384xf32>
    %cst_41 = arith.constant 0.000000e+00 : f32
    %115 = vector.broadcast %cst_41 : f32 to vector<8x384xf32>
    %116 = arith.maximumf %114, %115 : vector<8x384xf32>
    %c56 = arith.constant 56 : index
    %c0_42 = arith.constant 0 : index
    %117 = vector.load %arg11[%c56, %c0_42] : memref<96x384xf32, #tpu.memory_space<vmem>>, vector<8x384xf32>
    tpu.vector_store %arg11[%c56, %c0_42], %116 {strides = array<i32>} : memref<96x384xf32, #tpu.memory_space<vmem>>, vector<8x384xf32>,
    %118 = vector.extract_strided_slice %28 {offsets = [128, 0], sizes = [8, 768], strides = [1, 1]} : vector<192x768xf32> to vector<8x768xf32>
    %119 = vector.extract_strided_slice %28 {offsets = [136, 0], sizes = [8, 768], strides = [1, 1]} : vector<192x768xf32> to vector<8x768xf32>
    %120 = arith.maximumf %118, %119 : vector<8x768xf32>
    %121 = vector.extract_strided_slice %120 {offsets = [0, 0], sizes = [8, 384], strides = [1, 1]} : vector<8x768xf32> to vector<8x384xf32>
    %122 = vector.extract_strided_slice %120 {offsets = [0, 384], sizes = [8, 384], strides = [1, 1]} : vector<8x768xf32> to vector<8x384xf32>
    %123 = arith.maximumf %121, %122 : vector<8x384xf32>
    %124 = vector.broadcast %29 : vector<1x384xf32> to vector<8x384xf32>
    %125 = arith.addf %123, %124 : vector<8x384xf32>
    %cst_43 = arith.constant 0.000000e+00 : f32
    %126 = vector.broadcast %cst_43 : f32 to vector<8x384xf32>
    %127 = arith.maximumf %125, %126 : vector<8x384xf32>
    %c64 = arith.constant 64 : index
    %c0_44 = arith.constant 0 : index
    %128 = vector.load %arg11[%c64, %c0_44] : memref<96x384xf32, #tpu.memory_space<vmem>>, vector<8x384xf32>
    tpu.vector_store %arg11[%c64, %c0_44], %127 {strides = array<i32>} : memref<96x384xf32, #tpu.memory_space<vmem>>, vector<8x384xf32>,
    %129 = vector.extract_strided_slice %28 {offsets = [144, 0], sizes = [8, 768], strides = [1, 1]} : vector<192x768xf32> to vector<8x768xf32>
    %130 = vector.extract_strided_slice %28 {offsets = [152, 0], sizes = [8, 768], strides = [1, 1]} : vector<192x768xf32> to vector<8x768xf32>
    %131 = arith.maximumf %129, %130 : vector<8x768xf32>
    %132 = vector.extract_strided_slice %131 {offsets = [0, 0], sizes = [8, 384], strides = [1, 1]} : vector<8x768xf32> to vector<8x384xf32>
    %133 = vector.extract_strided_slice %131 {offsets = [0, 384], sizes = [8, 384], strides = [1, 1]} : vector<8x768xf32> to vector<8x384xf32>
    %134 = arith.maximumf %132, %133 : vector<8x384xf32>
    %135 = vector.broadcast %29 : vector<1x384xf32> to vector<8x384xf32>
    %136 = arith.addf %134, %135 : vector<8x384xf32>
    %cst_45 = arith.constant 0.000000e+00 : f32
    %137 = vector.broadcast %cst_45 : f32 to vector<8x384xf32>
    %138 = arith.maximumf %136, %137 : vector<8x384xf32>
    %c72 = arith.constant 72 : index
    %c0_46 = arith.constant 0 : index
    %139 = vector.load %arg11[%c72, %c0_46] : memref<96x384xf32, #tpu.memory_space<vmem>>, vector<8x384xf32>
    tpu.vector_store %arg11[%c72, %c0_46], %138 {strides = array<i32>} : memref<96x384xf32, #tpu.memory_space<vmem>>, vector<8x384xf32>,
    %140 = vector.extract_strided_slice %28 {offsets = [160, 0], sizes = [8, 768], strides = [1, 1]} : vector<192x768xf32> to vector<8x768xf32>
    %141 = vector.extract_strided_slice %28 {offsets = [168, 0], sizes = [8, 768], strides = [1, 1]} : vector<192x768xf32> to vector<8x768xf32>
    %142 = arith.maximumf %140, %141 : vector<8x768xf32>
    %143 = vector.extract_strided_slice %142 {offsets = [0, 0], sizes = [8, 384], strides = [1, 1]} : vector<8x768xf32> to vector<8x384xf32>
    %144 = vector.extract_strided_slice %142 {offsets = [0, 384], sizes = [8, 384], strides = [1, 1]} : vector<8x768xf32> to vector<8x384xf32>
    %145 = arith.maximumf %143, %144 : vector<8x384xf32>
    %146 = vector.broadcast %29 : vector<1x384xf32> to vector<8x384xf32>
    %147 = arith.addf %145, %146 : vector<8x384xf32>
    %cst_47 = arith.constant 0.000000e+00 : f32
    %148 = vector.broadcast %cst_47 : f32 to vector<8x384xf32>
    %149 = arith.maximumf %147, %148 : vector<8x384xf32>
    %c80 = arith.constant 80 : index
    %c0_48 = arith.constant 0 : index
    %150 = vector.load %arg11[%c80, %c0_48] : memref<96x384xf32, #tpu.memory_space<vmem>>, vector<8x384xf32>
    tpu.vector_store %arg11[%c80, %c0_48], %149 {strides = array<i32>} : memref<96x384xf32, #tpu.memory_space<vmem>>, vector<8x384xf32>,
    %151 = vector.extract_strided_slice %28 {offsets = [176, 0], sizes = [8, 768], strides = [1, 1]} : vector<192x768xf32> to vector<8x768xf32>
    %152 = vector.extract_strided_slice %28 {offsets = [184, 0], sizes = [8, 768], strides = [1, 1]} : vector<192x768xf32> to vector<8x768xf32>
    %153 = arith.maximumf %151, %152 : vector<8x768xf32>
    %154 = vector.extract_strided_slice %153 {offsets = [0, 0], sizes = [8, 384], strides = [1, 1]} : vector<8x768xf32> to vector<8x384xf32>
    %155 = vector.extract_strided_slice %153 {offsets = [0, 384], sizes = [8, 384], strides = [1, 1]} : vector<8x768xf32> to vector<8x384xf32>
    %156 = arith.maximumf %154, %155 : vector<8x384xf32>
    %157 = vector.broadcast %29 : vector<1x384xf32> to vector<8x384xf32>
    %158 = arith.addf %156, %157 : vector<8x384xf32>
    %cst_49 = arith.constant 0.000000e+00 : f32
    %159 = vector.broadcast %cst_49 : f32 to vector<8x384xf32>
    %160 = arith.maximumf %158, %159 : vector<8x384xf32>
    %c88 = arith.constant 88 : index
    %c0_50 = arith.constant 0 : index
    %161 = vector.load %arg11[%c88, %c0_50] : memref<96x384xf32, #tpu.memory_space<vmem>>, vector<8x384xf32>
    tpu.vector_store %arg11[%c88, %c0_50], %160 {strides = array<i32>} : memref<96x384xf32, #tpu.memory_space<vmem>>, vector<8x384xf32>,
    %c0_51 = arith.constant 0 : index
    %c0_52 = arith.constant 0 : index
    %162 = vector.load %arg11[%c0_51, %c0_52] : memref<96x384xf32, #tpu.memory_space<vmem>>, vector<64x384xf32>
    %163 = arith.truncf %162 : vector<64x384xf32> to vector<64x384xbf16>
    %c0_53 = arith.constant 0 : index
    %c0_54 = arith.constant 0 : index
    %c0_55 = arith.constant 0 : index
    %164 = vector.load %arg4[%c0_53, %c0_54, %c0_55] : memref<5x384x512xbf16, #tpu.memory_space<vmem>>, vector<1x384x512xbf16>
    %165 = vector.shape_cast %164 : vector<1x384x512xbf16> to vector<384x512xbf16>
    %cst_56 = arith.constant dense<0.000000e+00> : vector<64x512xf32>
    %166 = tpu.matmul %163, %165, %cst_56 {dimension_numbers = #tpu.dot_dimension_numbers<[1], [0], [0], [1], [0, 0, 1, 1], [], []>} : vector<64x384xbf16>, vector<384x512xbf16>, vector<64x512xf32> -> vector<64x512xf32>
    %c8_57 = arith.constant 8 : index
    %c0_58 = arith.constant 0 : index
    %167 = vector.load %arg11[%c8_57, %c0_58] : memref<96x384xf32, #tpu.memory_space<vmem>>, vector<64x384xf32>
    %168 = arith.truncf %167 : vector<64x384xf32> to vector<64x384xbf16>
    %c1_59 = arith.constant 1 : index
    %c0_60 = arith.constant 0 : index
    %c0_61 = arith.constant 0 : index
    %169 = vector.load %arg4[%c1_59, %c0_60, %c0_61] : memref<5x384x512xbf16, #tpu.memory_space<vmem>>, vector<1x384x512xbf16>
    %170 = vector.shape_cast %169 : vector<1x384x512xbf16> to vector<384x512xbf16>
    %cst_62 = arith.constant dense<0.000000e+00> : vector<64x512xf32>
    %171 = tpu.matmul %168, %170, %cst_62 {dimension_numbers = #tpu.dot_dimension_numbers<[1], [0], [0], [1], [0, 0, 1, 1], [], []>} : vector<64x384xbf16>, vector<384x512xbf16>, vector<64x512xf32> -> vector<64x512xf32>
    %172 = arith.addf %166, %171 : vector<64x512xf32>
    %c16_63 = arith.constant 16 : index
    %c0_64 = arith.constant 0 : index
    %173 = vector.load %arg11[%c16_63, %c0_64] : memref<96x384xf32, #tpu.memory_space<vmem>>, vector<64x384xf32>
    %174 = arith.truncf %173 : vector<64x384xf32> to vector<64x384xbf16>
    %c2_65 = arith.constant 2 : index
    %c0_66 = arith.constant 0 : index
    %c0_67 = arith.constant 0 : index
    %175 = vector.load %arg4[%c2_65, %c0_66, %c0_67] : memref<5x384x512xbf16, #tpu.memory_space<vmem>>, vector<1x384x512xbf16>
    %176 = vector.shape_cast %175 : vector<1x384x512xbf16> to vector<384x512xbf16>
    %cst_68 = arith.constant dense<0.000000e+00> : vector<64x512xf32>
    %177 = tpu.matmul %174, %176, %cst_68 {dimension_numbers = #tpu.dot_dimension_numbers<[1], [0], [0], [1], [0, 0, 1, 1], [], []>} : vector<64x384xbf16>, vector<384x512xbf16>, vector<64x512xf32> -> vector<64x512xf32>
    %178 = arith.addf %172, %177 : vector<64x512xf32>
    %c24_69 = arith.constant 24 : index
    %c0_70 = arith.constant 0 : index
    %179 = vector.load %arg11[%c24_69, %c0_70] : memref<96x384xf32, #tpu.memory_space<vmem>>, vector<64x384xf32>
    %180 = arith.truncf %179 : vector<64x384xf32> to vector<64x384xbf16>
    %c3_71 = arith.constant 3 : index
    %c0_72 = arith.constant 0 : index
    %c0_73 = arith.constant 0 : index
    %181 = vector.load %arg4[%c3_71, %c0_72, %c0_73] : memref<5x384x512xbf16, #tpu.memory_space<vmem>>, vector<1x384x512xbf16>
    %182 = vector.shape_cast %181 : vector<1x384x512xbf16> to vector<384x512xbf16>
    %cst_74 = arith.constant dense<0.000000e+00> : vector<64x512xf32>
    %183 = tpu.matmul %180, %182, %cst_74 {dimension_numbers = #tpu.dot_dimension_numbers<[1], [0], [0], [1], [0, 0, 1, 1], [], []>} : vector<64x384xbf16>, vector<384x512xbf16>, vector<64x512xf32> -> vector<64x512xf32>
    %184 = arith.addf %178, %183 : vector<64x512xf32>
    %c32_75 = arith.constant 32 : index
    %c0_76 = arith.constant 0 : index
    %185 = vector.load %arg11[%c32_75, %c0_76] : memref<96x384xf32, #tpu.memory_space<vmem>>, vector<64x384xf32>
    %186 = arith.truncf %185 : vector<64x384xf32> to vector<64x384xbf16>
    %c4_77 = arith.constant 4 : index
    %c0_78 = arith.constant 0 : index
    %c0_79 = arith.constant 0 : index
    %187 = vector.load %arg4[%c4_77, %c0_78, %c0_79] : memref<5x384x512xbf16, #tpu.memory_space<vmem>>, vector<1x384x512xbf16>
    %188 = vector.shape_cast %187 : vector<1x384x512xbf16> to vector<384x512xbf16>
    %cst_80 = arith.constant dense<0.000000e+00> : vector<64x512xf32>
    %189 = tpu.matmul %186, %188, %cst_80 {dimension_numbers = #tpu.dot_dimension_numbers<[1], [0], [0], [1], [0, 0, 1, 1], [], []>} : vector<64x384xbf16>, vector<384x512xbf16>, vector<64x512xf32> -> vector<64x512xf32>
    %190 = arith.addf %184, %189 : vector<64x512xf32>
    %c0_81 = arith.constant 0 : index
    %c0_82 = arith.constant 0 : index
    %191 = vector.load %arg5[%c0_81, %c0_82] : memref<1x256xf32, #tpu.memory_space<vmem>>, vector<1x256xf32>
    %192 = vector.extract_strided_slice %190 {offsets = [0, 0], sizes = [8, 512], strides = [1, 1]} : vector<64x512xf32> to vector<8x512xf32>
    %193 = vector.extract_strided_slice %190 {offsets = [8, 0], sizes = [8, 512], strides = [1, 1]} : vector<64x512xf32> to vector<8x512xf32>
    %194 = arith.maximumf %192, %193 : vector<8x512xf32>
    %195 = vector.extract_strided_slice %194 {offsets = [0, 0], sizes = [8, 256], strides = [1, 1]} : vector<8x512xf32> to vector<8x256xf32>
    %196 = vector.extract_strided_slice %194 {offsets = [0, 256], sizes = [8, 256], strides = [1, 1]} : vector<8x512xf32> to vector<8x256xf32>
    %197 = arith.maximumf %195, %196 : vector<8x256xf32>
    %198 = vector.broadcast %191 : vector<1x256xf32> to vector<8x256xf32>
    %199 = arith.addf %197, %198 : vector<8x256xf32>
    %cst_83 = arith.constant 0.000000e+00 : f32
    %200 = vector.broadcast %cst_83 : f32 to vector<8x256xf32>
    %201 = arith.maximumf %199, %200 : vector<8x256xf32>
    %202 = arith.truncf %201 : vector<8x256xf32> to vector<8x256xbf16>
    %c0_84 = arith.constant 0 : index
    %c0_85 = arith.constant 0 : index
    %c0_86 = arith.constant 0 : index
    %203 = vector.load %arg6[%c0_84, %c0_85, %c0_86] : memref<4x256x512xbf16, #tpu.memory_space<vmem>>, vector<1x256x512xbf16>
    %204 = vector.shape_cast %203 : vector<1x256x512xbf16> to vector<256x512xbf16>
    %cst_87 = arith.constant dense<0.000000e+00> : vector<8x512xf32>
    %205 = tpu.matmul %202, %204, %cst_87 {dimension_numbers = #tpu.dot_dimension_numbers<[1], [0], [0], [1], [0, 0, 1, 1], [], []>} : vector<8x256xbf16>, vector<256x512xbf16>, vector<8x512xf32> -> vector<8x512xf32>
    %206 = vector.extract_strided_slice %190 {offsets = [16, 0], sizes = [8, 512], strides = [1, 1]} : vector<64x512xf32> to vector<8x512xf32>
    %207 = vector.extract_strided_slice %190 {offsets = [24, 0], sizes = [8, 512], strides = [1, 1]} : vector<64x512xf32> to vector<8x512xf32>
    %208 = arith.maximumf %206, %207 : vector<8x512xf32>
    %209 = vector.extract_strided_slice %208 {offsets = [0, 0], sizes = [8, 256], strides = [1, 1]} : vector<8x512xf32> to vector<8x256xf32>
    %210 = vector.extract_strided_slice %208 {offsets = [0, 256], sizes = [8, 256], strides = [1, 1]} : vector<8x512xf32> to vector<8x256xf32>
    %211 = arith.maximumf %209, %210 : vector<8x256xf32>
    %212 = vector.broadcast %191 : vector<1x256xf32> to vector<8x256xf32>
    %213 = arith.addf %211, %212 : vector<8x256xf32>
    %cst_88 = arith.constant 0.000000e+00 : f32
    %214 = vector.broadcast %cst_88 : f32 to vector<8x256xf32>
    %215 = arith.maximumf %213, %214 : vector<8x256xf32>
    %216 = arith.truncf %215 : vector<8x256xf32> to vector<8x256xbf16>
    %c1_89 = arith.constant 1 : index
    %c0_90 = arith.constant 0 : index
    %c0_91 = arith.constant 0 : index
    %217 = vector.load %arg6[%c1_89, %c0_90, %c0_91] : memref<4x256x512xbf16, #tpu.memory_space<vmem>>, vector<1x256x512xbf16>
    %218 = vector.shape_cast %217 : vector<1x256x512xbf16> to vector<256x512xbf16>
    %cst_92 = arith.constant dense<0.000000e+00> : vector<8x512xf32>
    %219 = tpu.matmul %216, %218, %cst_92 {dimension_numbers = #tpu.dot_dimension_numbers<[1], [0], [0], [1], [0, 0, 1, 1], [], []>} : vector<8x256xbf16>, vector<256x512xbf16>, vector<8x512xf32> -> vector<8x512xf32>
    %220 = arith.addf %205, %219 : vector<8x512xf32>
    %221 = vector.extract_strided_slice %190 {offsets = [32, 0], sizes = [8, 512], strides = [1, 1]} : vector<64x512xf32> to vector<8x512xf32>
    %222 = vector.extract_strided_slice %190 {offsets = [40, 0], sizes = [8, 512], strides = [1, 1]} : vector<64x512xf32> to vector<8x512xf32>
    %223 = arith.maximumf %221, %222 : vector<8x512xf32>
    %224 = vector.extract_strided_slice %223 {offsets = [0, 0], sizes = [8, 256], strides = [1, 1]} : vector<8x512xf32> to vector<8x256xf32>
    %225 = vector.extract_strided_slice %223 {offsets = [0, 256], sizes = [8, 256], strides = [1, 1]} : vector<8x512xf32> to vector<8x256xf32>
    %226 = arith.maximumf %224, %225 : vector<8x256xf32>
    %227 = vector.broadcast %191 : vector<1x256xf32> to vector<8x256xf32>
    %228 = arith.addf %226, %227 : vector<8x256xf32>
    %cst_93 = arith.constant 0.000000e+00 : f32
    %229 = vector.broadcast %cst_93 : f32 to vector<8x256xf32>
    %230 = arith.maximumf %228, %229 : vector<8x256xf32>
    %231 = arith.truncf %230 : vector<8x256xf32> to vector<8x256xbf16>
    %c2_94 = arith.constant 2 : index
    %c0_95 = arith.constant 0 : index
    %c0_96 = arith.constant 0 : index
    %232 = vector.load %arg6[%c2_94, %c0_95, %c0_96] : memref<4x256x512xbf16, #tpu.memory_space<vmem>>, vector<1x256x512xbf16>
    %233 = vector.shape_cast %232 : vector<1x256x512xbf16> to vector<256x512xbf16>
    %cst_97 = arith.constant dense<0.000000e+00> : vector<8x512xf32>
    %234 = tpu.matmul %231, %233, %cst_97 {dimension_numbers = #tpu.dot_dimension_numbers<[1], [0], [0], [1], [0, 0, 1, 1], [], []>} : vector<8x256xbf16>, vector<256x512xbf16>, vector<8x512xf32> -> vector<8x512xf32>
    %235 = arith.addf %220, %234 : vector<8x512xf32>
    %236 = vector.extract_strided_slice %190 {offsets = [48, 0], sizes = [8, 512], strides = [1, 1]} : vector<64x512xf32> to vector<8x512xf32>
    %237 = vector.extract_strided_slice %190 {offsets = [56, 0], sizes = [8, 512], strides = [1, 1]} : vector<64x512xf32> to vector<8x512xf32>
    %238 = arith.maximumf %236, %237 : vector<8x512xf32>
    %239 = vector.extract_strided_slice %238 {offsets = [0, 0], sizes = [8, 256], strides = [1, 1]} : vector<8x512xf32> to vector<8x256xf32>
    %240 = vector.extract_strided_slice %238 {offsets = [0, 256], sizes = [8, 256], strides = [1, 1]} : vector<8x512xf32> to vector<8x256xf32>
    %241 = arith.maximumf %239, %240 : vector<8x256xf32>
    %242 = vector.broadcast %191 : vector<1x256xf32> to vector<8x256xf32>
    %243 = arith.addf %241, %242 : vector<8x256xf32>
    %cst_98 = arith.constant 0.000000e+00 : f32
    %244 = vector.broadcast %cst_98 : f32 to vector<8x256xf32>
    %245 = arith.maximumf %243, %244 : vector<8x256xf32>
    %246 = arith.truncf %245 : vector<8x256xf32> to vector<8x256xbf16>
    %c3_99 = arith.constant 3 : index
    %c0_100 = arith.constant 0 : index
    %c0_101 = arith.constant 0 : index
    %247 = vector.load %arg6[%c3_99, %c0_100, %c0_101] : memref<4x256x512xbf16, #tpu.memory_space<vmem>>, vector<1x256x512xbf16>
    %248 = vector.shape_cast %247 : vector<1x256x512xbf16> to vector<256x512xbf16>
    %cst_102 = arith.constant dense<0.000000e+00> : vector<8x512xf32>
    %249 = tpu.matmul %246, %248, %cst_102 {dimension_numbers = #tpu.dot_dimension_numbers<[1], [0], [0], [1], [0, 0, 1, 1], [], []>} : vector<8x256xbf16>, vector<256x512xbf16>, vector<8x512xf32> -> vector<8x512xf32>
    %250 = arith.addf %235, %249 : vector<8x512xf32>
    %c0_103 = arith.constant 0 : index
    %c0_104 = arith.constant 0 : index
    %251 = vector.load %arg7[%c0_103, %c0_104] : memref<1x512xf32, #tpu.memory_space<vmem>>, vector<1x512xf32>
    %252 = vector.broadcast %251 : vector<1x512xf32> to vector<8x512xf32>
    %253 = arith.addf %250, %252 : vector<8x512xf32>
    %cst_105 = arith.constant 0.000000e+00 : f32
    %254 = vector.broadcast %cst_105 : f32 to vector<8x512xf32>
    %255 = arith.maximumf %253, %254 : vector<8x512xf32>
    %256 = arith.truncf %255 : vector<8x512xf32> to vector<8x512xbf16>
    %c0_106 = arith.constant 0 : index
    %c0_107 = arith.constant 0 : index
    %257 = vector.load %arg8[%c0_106, %c0_107] : memref<512x128xbf16, #tpu.memory_space<vmem>>, vector<512x128xbf16>
    %cst_108 = arith.constant dense<0.000000e+00> : vector<8x128xf32>
    %258 = tpu.matmul %256, %257, %cst_108 {dimension_numbers = #tpu.dot_dimension_numbers<[1], [0], [0], [1], [0, 0, 1, 1], [], []>} : vector<8x512xbf16>, vector<512x128xbf16>, vector<8x128xf32> -> vector<8x128xf32>
    %c0_109 = arith.constant 0 : index
    %c0_110 = arith.constant 0 : index
    %259 = vector.load %arg9[%c0_109, %c0_110] : memref<1x128xf32, #tpu.memory_space<vmem>>, vector<1x128xf32>
    %260 = vector.broadcast %259 : vector<1x128xf32> to vector<8x128xf32>
    %261 = arith.addf %258, %260 : vector<8x128xf32>
    %c0_111 = arith.constant 0 : index
    %c0_112 = arith.constant 0 : index
    %262 = vector.load %arg10[%c0_111, %c0_112] : memref<8x128xf32, #tpu.memory_space<vmem>>, vector<8x128xf32>
    tpu.vector_store %arg10[%c0_111, %c0_112], %261 {strides = array<i32>} : memref<8x128xf32, #tpu.memory_space<vmem>>, vector<8x128xf32>,
    return
  }
  func.func @transform_0(%arg0: i32) -> (i32, i32) {
    %c0_i32 = arith.constant 0 : i32
    %c0_i32_0 = arith.constant 0 : i32
    return %arg0, %c0_i32 : i32, i32
  }
  func.func @transform_1(%arg0: i32) -> (i32, i32, i32) {
    %c0_i32 = arith.constant 0 : i32
    %c0_i32_0 = arith.constant 0 : i32
    %c0_i32_1 = arith.constant 0 : i32
    %c0_i32_2 = arith.constant 0 : i32
    return %c0_i32, %c0_i32_0, %c0_i32_1 : i32, i32, i32
  }
  func.func @transform_2(%arg0: i32) -> (i32, i32) {
    %c0_i32 = arith.constant 0 : i32
    %c0_i32_0 = arith.constant 0 : i32
    %c0_i32_1 = arith.constant 0 : i32
    return %c0_i32, %c0_i32_0 : i32, i32
  }
  func.func @transform_3(%arg0: i32) -> (i32, i32, i32) {
    %c0_i32 = arith.constant 0 : i32
    %c0_i32_0 = arith.constant 0 : i32
    %c0_i32_1 = arith.constant 0 : i32
    %c0_i32_2 = arith.constant 0 : i32
    return %c0_i32, %c0_i32_0, %c0_i32_1 : i32, i32, i32
  }
  func.func @transform_4(%arg0: i32) -> (i32, i32) {
    %c0_i32 = arith.constant 0 : i32
    %c0_i32_0 = arith.constant 0 : i32
    %c0_i32_1 = arith.constant 0 : i32
    return %c0_i32, %c0_i32_0 : i32, i32
  }
  func.func @transform_5(%arg0: i32) -> (i32, i32, i32) {
    %c0_i32 = arith.constant 0 : i32
    %c0_i32_0 = arith.constant 0 : i32
    %c0_i32_1 = arith.constant 0 : i32
    %c0_i32_2 = arith.constant 0 : i32
    return %c0_i32, %c0_i32_0, %c0_i32_1 : i32, i32, i32
  }
  func.func @transform_6(%arg0: i32) -> (i32, i32) {
    %c0_i32 = arith.constant 0 : i32
    %c0_i32_0 = arith.constant 0 : i32
    %c0_i32_1 = arith.constant 0 : i32
    return %c0_i32, %c0_i32_0 : i32, i32
  }
  func.func @transform_7(%arg0: i32) -> (i32, i32) {
    %c0_i32 = arith.constant 0 : i32
    %c0_i32_0 = arith.constant 0 : i32
    %c0_i32_1 = arith.constant 0 : i32
    return %c0_i32, %c0_i32_0 : i32, i32
  }
  func.func @transform_8(%arg0: i32) -> (i32, i32) {
    %c0_i32 = arith.constant 0 : i32
    %c0_i32_0 = arith.constant 0 : i32
    %c0_i32_1 = arith.constant 0 : i32
    return %c0_i32, %c0_i32_0 : i32, i32
  }
  func.func @transform_9(%arg0: i32) -> (i32, i32) {
    %c0_i32 = arith.constant 0 : i32
    %c0_i32_0 = arith.constant 0 : i32
    return %arg0, %c0_i32 : i32, i32
  }
}

</mosaic_0001>

<llo_original>
// kernel: cnn_forward.1
$region0: #{cnn_forward.1}
  #allocation0 [shape = 'u32[]', space=smem, size = 0x4, offset = 0x4, fixed_abs, tag = 'smem constant byte address 0x4 - core index']
  #allocation1 [shape = 'u32[144,128]{1,0:T(1,128)}', space=vmem, size = 0x12000, scoped, tag = 'internal scratch']
  #allocation2 [shape = 'f32[96,384]{1,0:T(8,128)}', space=vmem, size = 0x24000, scoped, tag = 'scratch operand']
  %s0 = inlined_call_operand.vmem [shape: f32[224,28], index: 0, kind: input, shape index: {}]
  %s1 = inlined_call_operand.hbm [shape: bf16[5,28,768], index: 1, kind: input, shape index: {}]
  %s2 = inlined_call_operand.hbm [shape: f32[1,384], index: 2, kind: input, shape index: {}]
  %s3 = inlined_call_operand.hbm [shape: bf16[5,384,512], index: 3, kind: input, shape index: {}]
  %s4 = inlined_call_operand.hbm [shape: f32[1,256], index: 4, kind: input, shape index: {}]
  %s5 = inlined_call_operand.hbm [shape: bf16[4,256,512], index: 5, kind: input, shape index: {}]
  %s6 = inlined_call_operand.hbm [shape: f32[1,512], index: 6, kind: input, shape index: {}]
  %s7 = inlined_call_operand.hbm [shape: bf16[512,128], index: 7, kind: input, shape index: {}]
  %s8 = inlined_call_operand.hbm [shape: f32[1,128], index: 8, kind: input, shape index: {}]
  %s9 = inlined_call_operand.vmem [shape: f32[8,128], index: 9, kind: output, shape index: {}]
  %s10 = sld [smem:[#allocation0]]
  $region78: #{cnn_forward.1} parent=0
    _
  %s12 = ssub.s32 1, %s10
  %s13 = scalar_select 0, %s12, %s10
  $region1: #{cnn_forward.1} parent=0
    #allocation3 [shape = 'u8[245760]{0}', space=vmem, size = 0x3c000, scoped, tag = 'input window, operand 1, single buffered']
    #allocation4 [shape = 's32[1]{0}', space=sflag, size = 0x4, scoped, tag = 'scoped memory for cnn_forward.1']
    #allocation5 [shape = 'u8[1536]{0}', space=vmem, size = 0x800, scoped, tag = 'input window, operand 2, single buffered']
    #allocation6 [shape = 's32[1]{0}', space=sflag, size = 0x4, scoped, tag = 'scoped memory for cnn_forward.1']
    #allocation7 [shape = 'u8[1966080]{0}', space=vmem, size = 0x1e0000, scoped, tag = 'input window, operand 3, single buffered']
    #allocation8 [shape = 'u8[1024]{0}', space=vmem, size = 0x400, scoped, tag = 'input window, operand 4, single buffered']
    #allocation9 [shape = 's32[1]{0}', space=sflag, size = 0x4, scoped, tag = 'scoped memory for cnn_forward.1']
    #allocation10 [shape = 'u8[1048576]{0}', space=vmem, size = 0x100000, scoped, tag = 'input window, operand 5, single buffered']
    #allocation11 [shape = 'u8[2048]{0}', space=vmem, size = 0x800, scoped, tag = 'input window, operand 6, single buffered']
    #allocation12 [shape = 's32[1]{0}', space=sflag, size = 0x4, scoped, tag = 'scoped memory for cnn_forward.1']
    #allocation13 [shape = 'u8[131072]{0}', space=vmem, size = 0x20000, scoped, tag = 'input window, operand 7, single buffered']
    #allocation14 [shape = 'u8[512]{0}', space=vmem, size = 0x400, scoped, tag = 'input window, operand 8, single buffered']
    #allocation15 [shape = 's32[1]{0}', space=sflag, size = 0x4, scoped, tag = 'scoped memory for cnn_forward.1']
    %14 = vsyncpa [#allocation4], 0
    %15 = vsyncpa [#allocation6], 0
    %16 = vsyncpa [#allocation9], 0
    %17 = vsyncpa [#allocation12], 0
    %18 = vsyncpa [#allocation15], 0
    // Predicated region
    $region2: #{cnn_forward.1} parent=1 // pred_check
      _
    $region3: #{cnn_forward.1} parent=1 // pred_check_branch
      %20 = sbr.rel (0) target = $region5
    $region4: #{cnn_forward.1} parent=1 // pred_region
      _
    $region5: #{cnn_forward.1} parent=1 // pred_fallthru
      _
    // Predicated region
    $region6: #{cnn_forward.1} parent=1 // pred_check
      _
    $region7: #{cnn_forward.1} parent=1 // pred_check_branch
      %22 = sbr.rel (0) target = $region9
    $region8: #{cnn_forward.1} parent=1 // pred_region
      %s24 = ssub.s32 7680, 7680
      %25 = vsyncadd [#allocation4], %s24
      %s26 = sshll.u32 [#allocation3], 4
      %s27 = int_to_ptr.vmem [resolvable:$true] %s26
      %32 = dma.hbm_to_vmem [thread:$0]  %s1, 7680, %s27, [#allocation4], 384, 384, 24
    $region9: #{cnn_forward.1} parent=1 // pred_fallthru
      _
    // Predicated region
    $region10: #{cnn_forward.1} parent=1 // pred_check
      _
    $region11: #{cnn_forward.1} parent=1 // pred_check_branch
      %34 = sbr.rel (0) target = $region13
    $region12: #{cnn_forward.1} parent=1 // pred_region
      %s36 = ssub.s32 48, 48
      %37 = vsyncadd [#allocation6], %s36
      %s39 = sshll.u32 [#allocation5], 4
      %s40 = int_to_ptr.vmem [resolvable:$true] %s39
      %42 = dma.hbm_to_vmem [thread:$0]  %s2, 48, %s40, [#allocation6]
    $region13: #{cnn_forward.1} parent=1 // pred_fallthru
      _
    // Predicated region
    $region14: #{cnn_forward.1} parent=1 // pred_check
      _
    $region15: #{cnn_forward.1} parent=1 // pred_check_branch
      %44 = sbr.rel (0) target = $region17
    $region16: #{cnn_forward.1} parent=1 // pred_region
      %s46 = ssub.s32 61440, 61440
      %47 = vsyncadd [#allocation6], %s46
      %s48 = sshll.u32 [#allocation7], 4
      %s49 = int_to_ptr.vmem [resolvable:$true] %s48
      %54 = dma.hbm_to_vmem [thread:$0]  %s3, 61440, %s49, [#allocation6], 256, 256, 16
    $region17: #{cnn_forward.1} parent=1 // pred_fallthru
      _
    // Predicated region
    $region18: #{cnn_forward.1} parent=1 // pred_check
      _
    $region19: #{cnn_forward.1} parent=1 // pred_check_branch
      %56 = sbr.rel (0) target = $region21
    $region20: #{cnn_forward.1} parent=1 // pred_region
      %s58 = ssub.s32 32, 32
      %59 = vsyncadd [#allocation9], %s58
      %s61 = sshll.u32 [#allocation8], 4
      %s62 = int_to_ptr.vmem [resolvable:$true] %s61
      %64 = dma.hbm_to_vmem [thread:$0]  %s4, 32, %s62, [#allocation9]
    $region21: #{cnn_forward.1} parent=1 // pred_fallthru
      _
    // Predicated region
    $region22: #{cnn_forward.1} parent=1 // pred_check
      _
    $region23: #{cnn_forward.1} parent=1 // pred_check_branch
      %66 = sbr.rel (0) target = $region25
    $region24: #{cnn_forward.1} parent=1 // pred_region
      %s68 = ssub.s32 32768, 32768
      %69 = vsyncadd [#allocation9], %s68
      %s70 = sshll.u32 [#allocation10], 4
      %s71 = int_to_ptr.vmem [resolvable:$true] %s70
      %76 = dma.hbm_to_vmem [thread:$0]  %s5, 32768, %s71, [#allocation9], 256, 256, 16
    $region25: #{cnn_forward.1} parent=1 // pred_fallthru
      _
    // Predicated region
    $region26: #{cnn_forward.1} parent=1 // pred_check
      _
    $region27: #{cnn_forward.1} parent=1 // pred_check_branch
      %78 = sbr.rel (0) target = $region29
    $region28: #{cnn_forward.1} parent=1 // pred_region
      %s80 = ssub.s32 64, 64
      %81 = vsyncadd [#allocation12], %s80
      %s83 = sshll.u32 [#allocation11], 4
      %s84 = int_to_ptr.vmem [resolvable:$true] %s83
      %86 = dma.hbm_to_vmem [thread:$0]  %s6, 64, %s84, [#allocation12]
    $region29: #{cnn_forward.1} parent=1 // pred_fallthru
      _
    // Predicated region
    $region30: #{cnn_forward.1} parent=1 // pred_check
      _
    $region31: #{cnn_forward.1} parent=1 // pred_check_branch
      %88 = sbr.rel (0) target = $region33
    $region32: #{cnn_forward.1} parent=1 // pred_region
      %s90 = ssub.s32 4096, 4096
      %91 = vsyncadd [#allocation12], %s90
      %s92 = sshll.u32 [#allocation13], 4
      %s93 = int_to_ptr.vmem [resolvable:$true] %s92
      %98 = dma.hbm_to_vmem [thread:$0]  %s7, 4096, %s93, [#allocation12], 64, 64, 4
    $region33: #{cnn_forward.1} parent=1 // pred_fallthru
      _
    // Predicated region
    $region34: #{cnn_forward.1} parent=1 // pred_check
      _
    $region35: #{cnn_forward.1} parent=1 // pred_check_branch
      %100 = sbr.rel (0) target = $region37
    $region36: #{cnn_forward.1} parent=1 // pred_region
      %s102 = ssub.s32 16, 16
      %103 = vsyncadd [#allocation15], %s102
      %s105 = sshll.u32 [#allocation14], 4
      %s106 = int_to_ptr.vmem [resolvable:$true] %s105
      %108 = dma.hbm_to_vmem [thread:$0]  %s8, 16, %s106, [#allocation15]
    $region37: #{cnn_forward.1} parent=1 // pred_fallthru
      _
    // Predicated region
    $region38: #{cnn_forward.1} parent=1 // pred_check
      _
    $region39: #{cnn_forward.1} parent=1 // pred_check_branch
      %110 = sbr.rel (0) target = $region41
    $region40: #{cnn_forward.1} parent=1 // pred_region
      %111 = dma.done [#allocation4], 7680
    $region41: #{cnn_forward.1} parent=1 // pred_fallthru
      _
    // Predicated region
    $region42: #{cnn_forward.1} parent=1 // pred_check
      _
    $region43: #{cnn_forward.1} parent=1 // pred_check_branch
      %113 = sbr.rel (0) target = $region45
    $region44: #{cnn_forward.1} parent=1 // pred_region
      %114 = dma.done [#allocation6], 48
    $region45: #{cnn_forward.1} parent=1 // pred_fallthru
      _
    // Predicated region
    $region46: #{cnn_forward.1} parent=1 // pred_check
      _
    $region47: #{cnn_forward.1} parent=1 // pred_check_branch
      %116 = sbr.rel (0) target = $region49
    $region48: #{cnn_forward.1} parent=1 // pred_region
      %117 = dma.done [#allocation6], 61440
    $region49: #{cnn_forward.1} parent=1 // pred_fallthru
      _
    // Predicated region
    $region50: #{cnn_forward.1} parent=1 // pred_check
      _
    $region51: #{cnn_forward.1} parent=1 // pred_check_branch
      %119 = sbr.rel (0) target = $region53
    $region52: #{cnn_forward.1} parent=1 // pred_region
      %120 = dma.done [#allocation9], 32
    $region53: #{cnn_forward.1} parent=1 // pred_fallthru
      _
    // Predicated region
    $region54: #{cnn_forward.1} parent=1 // pred_check
      _
    $region55: #{cnn_forward.1} parent=1 // pred_check_branch
      %122 = sbr.rel (0) target = $region57
    $region56: #{cnn_forward.1} parent=1 // pred_region
      %123 = dma.done [#allocation9], 32768
    $region57: #{cnn_forward.1} parent=1 // pred_fallthru
      _
    // Predicated region
    $region58: #{cnn_forward.1} parent=1 // pred_check
      _
    $region59: #{cnn_forward.1} parent=1 // pred_check_branch
      %125 = sbr.rel (0) target = $region61
    $region60: #{cnn_forward.1} parent=1 // pred_region
      %126 = dma.done [#allocation12], 64
    $region61: #{cnn_forward.1} parent=1 // pred_fallthru
      _
    // Predicated region
    $region62: #{cnn_forward.1} parent=1 // pred_check
      _
    $region63: #{cnn_forward.1} parent=1 // pred_check_branch
      %128 = sbr.rel (0) target = $region65
    $region64: #{cnn_forward.1} parent=1 // pred_region
      %129 = dma.done [#allocation12], 4096
    $region65: #{cnn_forward.1} parent=1 // pred_fallthru
      _
    // Predicated region
    $region66: #{cnn_forward.1} parent=1 // pred_check
      _
    $region67: #{cnn_forward.1} parent=1 // pred_check_branch
      %131 = sbr.rel (0) target = $region69
    $region68: #{cnn_forward.1} parent=1 // pred_region
      %132 = dma.done [#allocation15], 16
    $region69: #{cnn_forward.1} parent=1 // pred_fallthru
      _
    %v134 = vld [vmem:[%s0] sm:$0xff]
    %v135 = vld [vmem:[%s0 + $0x8] sm:$0xff]
    %v136 = vld [vmem:[%s0 + $0x10] sm:$0xff]
    %v137 = vld [vmem:[%s0 + $0x18] sm:$0xff]
    %v138 = vld [vmem:[%s0 + $0x20] sm:$0xff]
    %v139 = vld [vmem:[%s0 + $0x28] sm:$0xff]
    %v140 = vld [vmem:[%s0 + $0x30] sm:$0xff]
    %v141 = vld [vmem:[%s0 + $0x38] sm:$0xff]
    %v142 = vld [vmem:[%s0 + $0x40] sm:$0xff]
    %v143 = vld [vmem:[%s0 + $0x48] sm:$0xff]
    %v144 = vld [vmem:[%s0 + $0x50] sm:$0xff]
    %v145 = vld [vmem:[%s0 + $0x58] sm:$0xff]
    %v146 = vld [vmem:[%s0 + $0x60] sm:$0xff]
    %v147 = vld [vmem:[%s0 + $0x68] sm:$0xff]
    %v148 = vld [vmem:[%s0 + $0x70] sm:$0xff]
    %v149 = vld [vmem:[%s0 + $0x78] sm:$0xff]
    %v150 = vld [vmem:[%s0 + $0x80] sm:$0xff]
    %v151 = vld [vmem:[%s0 + $0x88] sm:$0xff]
    %v152 = vld [vmem:[%s0 + $0x90] sm:$0xff]
    %v153 = vld [vmem:[%s0 + $0x98] sm:$0xff]
    %v154 = vld [vmem:[%s0 + $0xa0] sm:$0xff]
    %v155 = vld [vmem:[%s0 + $0xa8] sm:$0xff]
    %v156 = vld [vmem:[%s0 + $0xb0] sm:$0xff]
    %v157 = vld [vmem:[%s0 + $0xb8] sm:$0xff]
    %v158 = vpack.c.bf16 %v135, %v134
    %v159 = vpack.c.bf16 %v137, %v136
    %v160 = vpack.c.bf16 %v139, %v138
    %v161 = vpack.c.bf16 %v141, %v140
    %v162 = vpack.c.bf16 %v143, %v142
    %v163 = vpack.c.bf16 %v145, %v144
    %v164 = vpack.c.bf16 %v147, %v146
    %v165 = vpack.c.bf16 %v149, %v148
    %v166 = vpack.c.bf16 %v151, %v150
    %v167 = vpack.c.bf16 %v153, %v152
    %v168 = vpack.c.bf16 %v155, %v154
    %v169 = vpack.c.bf16 %v157, %v156
    %v170 = vld [vmem:[#allocation3] sm:$0xff]
    %v171 = vld [vmem:[#allocation3 + $0x8] sm:$0xff]
    %v172 = vld [vmem:[#allocation3 + $0x10] sm:$0xff]
    %v173 = vld [vmem:[#allocation3 + $0x18] sm:$0xff]
    %v174 = vld [vmem:[#allocation3 + $0x20] sm:$0xff]
    %v175 = vld [vmem:[#allocation3 + $0x28] sm:$0xff]
    %v176 = vld [vmem:[#allocation3 + $0x30] sm:$0xff]
    %v177 = vld [vmem:[#allocation3 + $0x38] sm:$0xff]
    %v178 = vld [vmem:[#allocation3 + $0x40] sm:$0xff]
    %v179 = vld [vmem:[#allocation3 + $0x48] sm:$0x33]
    %v180 = vld [vmem:[#allocation3 + $0x50] sm:$0x33]
    %v181 = vld [vmem:[#allocation3 + $0x58] sm:$0x33]
    %v182 = vld [vmem:[%s0 + $0xc0] sm:$0xff]
    %v183 = vpack.c.bf16 %v136, %v135
    %v184 = vpack.c.bf16 %v138, %v137
    %v185 = vpack.c.bf16 %v140, %v139
    %v186 = vpack.c.bf16 %v142, %v141
    %v187 = vpack.c.bf16 %v144, %v143
    %v188 = vpack.c.bf16 %v146, %v145
    %v189 = vpack.c.bf16 %v148, %v147
    %v190 = vpack.c.bf16 %v150, %v149
    %v191 = vpack.c.bf16 %v152, %v151
    %v192 = vpack.c.bf16 %v154, %v153
    %v193 = vpack.c.bf16 %v156, %v155
    %v194 = vpack.c.bf16 %v182, %v157
    %s195 = scalar_lea.vmem [#allocation3], 96
    %v196 = vld [vmem:[%s195] sm:$0xff]
    %v197 = vld [vmem:[%s195 + $0x8] sm:$0xff]
    %v198 = vld [vmem:[%s195 + $0x10] sm:$0xff]
    %v199 = vld [vmem:[%s195 + $0x18] sm:$0xff]
    %v200 = vld [vmem:[%s195 + $0x20] sm:$0xff]
    %v201 = vld [vmem:[%s195 + $0x28] sm:$0xff]
    %v202 = vld [vmem:[%s195 + $0x30] sm:$0xff]
    %v203 = vld [vmem:[%s195 + $0x38] sm:$0xff]
    %v204 = vld [vmem:[%s195 + $0x40] sm:$0xff]
    %v205 = vld [vmem:[%s195 + $0x48] sm:$0x33]
    %v206 = vld [vmem:[%s195 + $0x50] sm:$0x33]
    %v207 = vld [vmem:[%s195 + $0x58] sm:$0x33]
    %v220 = vunpack.c.l.b16 %v196
    %v221 = vunpack.c.h.b16 %v196
    %v222 = vunpack.c.l.b16 %v197
    %v223 = vunpack.c.h.b16 %v197
    %v224 = vunpack.c.l.b16 %v198
    %v225 = vunpack.c.h.b16 %v198
    %v226 = vunpack.c.l.b16 %v199
    %v227 = vunpack.c.h.b16 %v199
    %v228 = vunpack.c.l.b16 %v200
    %v229 = vunpack.c.h.b16 %v200
    %v230 = vunpack.c.l.b16 %v201
    %v231 = vunpack.c.h.b16 %v201
    %v232 = vunpack.c.l.b16 %v202
    %v233 = vunpack.c.h.b16 %v202
    %v234 = vunpack.c.l.b16 %v203
    %v235 = vunpack.c.h.b16 %v203
    %v236 = vunpack.c.l.b16 %v204
    %v237 = vunpack.c.h.b16 %v204
    %v238 = vunpack.c.l.b16 %v205
    %v239 = vunpack.c.h.b16 %v205
    %v240 = vunpack.c.l.b16 %v206
    %v241 = vunpack.c.h.b16 %v206
    %v242 = vunpack.c.l.b16 %v207
    %v243 = vunpack.c.h.b16 %v207
    %v244 = vpack.c.b16 %v226, %v220
    %v245 = vpack.c.b16 %v227, %v221
    %v246 = vpack.c.b16 %v228, %v222
    %v247 = vpack.c.b16 %v229, %v223
    %v248 = vpack.c.b16 %v230, %v224
    %v249 = vpack.c.b16 %v231, %v225
    %v250 = vpack.c.b16 %v238, %v232
    %v251 = vpack.c.b16 %v239, %v233
    %v252 = vpack.c.b16 %v240, %v234
    %v253 = vpack.c.b16 %v241, %v235
    %v254 = vpack.c.b16 %v242, %v236
    %v255 = vpack.c.b16 %v243, %v237
    %vm262 = vcmask 228352
    %v264 = vsel %vm262, %v183, 0
    %v267 = vsel %vm262, %v184, 0
    %v270 = vsel %vm262, %v185, 0
    %v273 = vsel %vm262, %v186, 0
    %v276 = vsel %vm262, %v187, 0
    %v279 = vsel %vm262, %v188, 0
    %v282 = vsel %vm262, %v189, 0
    %v285 = vsel %vm262, %v190, 0
    %v288 = vsel %vm262, %v191, 0
    %v291 = vsel %vm262, %v192, 0
    %v294 = vsel %vm262, %v193, 0
    %v297 = vsel %vm262, %v194, 0
    %vm299 = vcmask 1045504
    %v301 = vsel %vm299, %v250, 0
    %v304 = vsel %vm299, %v251, 0
    %v307 = vsel %vm299, %v252, 0
    %v310 = vsel %vm299, %v253, 0
    %v313 = vsel %vm299, %v254, 0
    %v316 = vsel %vm299, %v255, 0
    %318 = vmatprep.subr.bf16.mxu0 0
    %319 = vmatpush1.bf16.msra.mxu0 0
    %320 = vmatprep.subr.bf16.mxu0 0
    %321 = vmatpush1.bf16.msra.mxu0 0
    %322 = vmatprep.subr.bf16.mxu0 0
    %323 = vmatpush1.bf16.msra.mxu0 0
    %324 = vmatprep.subr.bf16.mxu0 0
    %325 = vmatpush1.bf16.msra.mxu0 0
    %326 = vmatprep.subr.bf16.mxu0 0
    %327 = vmatpush1.bf16.msra.mxu0 0
    %328 = vmatprep.subr.bf16.mxu0 0
    %329 = vmatpush1.bf16.msra.mxu0 0
    %330 = vmatprep.subr.bf16.mxu0 %v304
    %331 = vmatpush1.bf16.msra.mxu0 %v301
    %332 = vmatprep.subr.bf16.mxu0 %v245
    %333 = vmatpush1.bf16.msra.mxu0 %v244
    %334 = vmatprep.subr.bf16.mxu0 0
    %335 = vmatpush2.bf16.msra.mxu0 0
    %336 = vmatprep.subr.bf16.mxu0 0
    %337 = vmatpush2.bf16.msra.mxu0 0
    %338 = vmatprep.subr.bf16.mxu0 0
    %339 = vmatpush2.bf16.msra.mxu0 0
    %340 = vmatprep.subr.bf16.mxu0 0
    %341 = vmatpush2.bf16.msra.mxu0 0
    %342 = vmatprep.subr.bf16.mxu0 0
    %343 = vmatpush2.bf16.msra.mxu0 0
    %344 = vmatprep.subr.bf16.mxu0 0
    %345 = vmatpush2.bf16.msra.mxu0 0
    %346 = vmatprep.subr.bf16.mxu0 0
    %347 = vmatpush2.bf16.msra.mxu0 0
    %348 = vmatprep.subr.bf16.mxu0 0
    %349 = vmatpush2.bf16.msra.mxu0 0
    %350 = vmatprep.mubr.bf16.mxu0 0
    %351 = vmatmul.mubr.bf16.gmra.mxu0 %v264
    %v352 = vpop.f32.mrf.mxu0
    %v353 = vadd.f32 0.0, %v352
    %v354 = vpop.f32.mrf.mxu0
    %v355 = vadd.f32 0.0, %v354
    %v356 = vpop.f32.mrf.mxu0
    %v357 = vadd.f32 0.0, %v356
    %v358 = vpop.f32.mrf.mxu0
    %v359 = vadd.f32 0.0, %v358
    %360 = vmatprep.mubr.bf16.mxu0 0
    %361 = vmatmul.mubr.bf16.gmra.mxu0 %v267
    %v362 = vpop.f32.mrf.mxu0
    %v363 = vadd.f32 0.0, %v362
    %v364 = vpop.f32.mrf.mxu0
    %v365 = vadd.f32 0.0, %v364
    %v366 = vpop.f32.mrf.mxu0
    %v367 = vadd.f32 0.0, %v366
    %v368 = vpop.f32.mrf.mxu0
    %v369 = vadd.f32 0.0, %v368
    %370 = vmatprep.mubr.bf16.mxu0 0
    %371 = vmatmul.mubr.bf16.gmra.mxu0 %v270
    %v372 = vpop.f32.mrf.mxu0
    %v373 = vadd.f32 0.0, %v372
    %v374 = vpop.f32.mrf.mxu0
    %v375 = vadd.f32 0.0, %v374
    %v376 = vpop.f32.mrf.mxu0
    %v377 = vadd.f32 0.0, %v376
    %v378 = vpop.f32.mrf.mxu0
    %v379 = vadd.f32 0.0, %v378
    %380 = vmatprep.mubr.bf16.mxu0 0
    %381 = vmatmul.mubr.bf16.gmra.mxu0 %v273
    %v382 = vpop.f32.mrf.mxu0
    %v383 = vadd.f32 0.0, %v382
    %v384 = vpop.f32.mrf.mxu0
    %v385 = vadd.f32 0.0, %v384
    %v386 = vpop.f32.mrf.mxu0
    %v387 = vadd.f32 0.0, %v386
    %v388 = vpop.f32.mrf.mxu0
    %v389 = vadd.f32 0.0, %v388
    %390 = vmatprep.mubr.bf16.mxu0 0
    %391 = vmatmul.mubr.bf16.gmra.mxu0 %v276
    %v392 = vpop.f32.mrf.mxu0
    %v393 = vadd.f32 0.0, %v392
    %v394 = vpop.f32.mrf.mxu0
    %v395 = vadd.f32 0.0, %v394
    %v396 = vpop.f32.mrf.mxu0
    %v397 = vadd.f32 0.0, %v396
    %v398 = vpop.f32.mrf.mxu0
    %v399 = vadd.f32 0.0, %v398
    %400 = vmatprep.mubr.bf16.mxu0 0
    %401 = vmatmul.mubr.bf16.gmra.mxu0 %v279
    %v402 = vpop.f32.mrf.mxu0
    %v403 = vadd.f32 0.0, %v402
    %v404 = vpop.f32.mrf.mxu0
    %v405 = vadd.f32 0.0, %v404
    %v406 = vpop.f32.mrf.mxu0
    %v407 = vadd.f32 0.0, %v406
    %v408 = vpop.f32.mrf.mxu0
    %v409 = vadd.f32 0.0, %v408
    %410 = vmatprep.mubr.bf16.mxu0 0
    %411 = vmatmul.mubr.bf16.gmra.mxu0 %v282
    %v412 = vpop.f32.mrf.mxu0
    %v413 = vadd.f32 0.0, %v412
    %v414 = vpop.f32.mrf.mxu0
    %v415 = vadd.f32 0.0, %v414
    %v416 = vpop.f32.mrf.mxu0
    %v417 = vadd.f32 0.0, %v416
    %v418 = vpop.f32.mrf.mxu0
    %v419 = vadd.f32 0.0, %v418
    %420 = vmatprep.mubr.bf16.mxu0 0
    %421 = vmatmul.mubr.bf16.gmra.mxu0 %v285
    %v422 = vpop.f32.mrf.mxu0
    %v423 = vadd.f32 0.0, %v422
    %v424 = vpop.f32.mrf.mxu0
    %v425 = vadd.f32 0.0, %v424
    %v426 = vpop.f32.mrf.mxu0
    %v427 = vadd.f32 0.0, %v426
    %v428 = vpop.f32.mrf.mxu0
    %v429 = vadd.f32 0.0, %v428
    %430 = vmatprep.mubr.bf16.mxu0 0
    %431 = vmatmul.mubr.bf16.gmra.mxu0 %v288
    %v432 = vpop.f32.mrf.mxu0
    %v433 = vadd.f32 0.0, %v432
    %v434 = vpop.f32.mrf.mxu0
    %v435 = vadd.f32 0.0, %v434
    %v436 = vpop.f32.mrf.mxu0
    %v437 = vadd.f32 0.0, %v436
    %v438 = vpop.f32.mrf.mxu0
    %v439 = vadd.f32 0.0, %v438
    %440 = vmatprep.mubr.bf16.mxu0 0
    %441 = vmatmul.mubr.bf16.gmra.mxu0 %v291
    %v442 = vpop.f32.mrf.mxu0
    %v443 = vadd.f32 0.0, %v442
    %v444 = vpop.f32.mrf.mxu0
    %v445 = vadd.f32 0.0, %v444
    %v446 = vpop.f32.mrf.mxu0
    %v447 = vadd.f32 0.0, %v446
    %v448 = vpop.f32.mrf.mxu0
    %v449 = vadd.f32 0.0, %v448
    %450 = vmatprep.mubr.bf16.mxu0 0
    %451 = vmatmul.mubr.bf16.gmra.mxu0 %v294
    %v452 = vpop.f32.mrf.mxu0
    %v453 = vadd.f32 0.0, %v452
    %v454 = vpop.f32.mrf.mxu0
    %v455 = vadd.f32 0.0, %v454
    %v456 = vpop.f32.mrf.mxu0
    %v457 = vadd.f32 0.0, %v456
    %v458 = vpop.f32.mrf.mxu0
    %v459 = vadd.f32 0.0, %v458
    %460 = vmatprep.mubr.bf16.mxu0 0
    %461 = vmatmul.mubr.bf16.gmra.mxu0 %v297
    %v462 = vpop.f32.mrf.mxu0
    %v463 = vadd.f32 0.0, %v462
    %v464 = vpop.f32.mrf.mxu0
    %v465 = vadd.f32 0.0, %v464
    %v466 = vpop.f32.mrf.mxu0
    %v467 = vadd.f32 0.0, %v466
    %v468 = vpop.f32.mrf.mxu0
    %v469 = vadd.f32 0.0, %v468
    %470 = vdwg.mxu0
    %471 = vmatprep.subr.bf16.mxu0 0
    %472 = vmatpush1.bf16.msra.mxu0 0
    %473 = vmatprep.subr.bf16.mxu0 0
    %474 = vmatpush1.bf16.msra.mxu0 0
    %475 = vmatprep.subr.bf16.mxu0 0
    %476 = vmatpush1.bf16.msra.mxu0 0
    %477 = vmatprep.subr.bf16.mxu0 0
    %478 = vmatpush1.bf16.msra.mxu0 0
    %479 = vmatprep.subr.bf16.mxu0 0
    %480 = vmatpush1.bf16.msra.mxu0 0
    %481 = vmatprep.subr.bf16.mxu0 0
    %482 = vmatpush1.bf16.msra.mxu0 0
    %483 = vmatprep.subr.bf16.mxu0 %v310
    %484 = vmatpush1.bf16.msra.mxu0 %v307
    %485 = vmatprep.subr.bf16.mxu0 %v247
    %486 = vmatpush1.bf16.msra.mxu0 %v246
    %487 = vmatprep.subr.bf16.mxu0 0
    %488 = vmatpush2.bf16.msra.mxu0 0
    %489 = vmatprep.subr.bf16.mxu0 0
    %490 = vmatpush2.bf16.msra.mxu0 0
    %491 = vmatprep.subr.bf16.mxu0 0
    %492 = vmatpush2.bf16.msra.mxu0 0
    %493 = vmatprep.subr.bf16.mxu0 0
    %494 = vmatpush2.bf16.msra.mxu0 0
    %495 = vmatprep.subr.bf16.mxu0 0
    %496 = vmatpush2.bf16.msra.mxu0 0
    %497 = vmatprep.subr.bf16.mxu0 0
    %498 = vmatpush2.bf16.msra.mxu0 0
    %499 = vmatprep.subr.bf16.mxu0 0
    %500 = vmatpush2.bf16.msra.mxu0 0
    %501 = vmatprep.subr.bf16.mxu0 0
    %502 = vmatpush2.bf16.msra.mxu0 0
    %503 = vmatprep.mubr.bf16.mxu0 0
    %504 = vmatmul.mubr.bf16.gmra.mxu0 %v264
    %v505 = vpop.f32.mrf.mxu0
    %v506 = vadd.f32 0.0, %v505
    %v507 = vpop.f32.mrf.mxu0
    %v508 = vadd.f32 0.0, %v507
    %v509 = vpop.f32.mrf.mxu0
    %v510 = vadd.f32 0.0, %v509
    %v511 = vpop.f32.mrf.mxu0
    %v512 = vadd.f32 0.0, %v511
    %513 = vmatprep.mubr.bf16.mxu0 0
    %514 = vmatmul.mubr.bf16.gmra.mxu0 %v267
    %v515 = vpop.f32.mrf.mxu0
    %v516 = vadd.f32 0.0, %v515
    %v517 = vpop.f32.mrf.mxu0
    %v518 = vadd.f32 0.0, %v517
    %v519 = vpop.f32.mrf.mxu0
    %v520 = vadd.f32 0.0, %v519
    %v521 = vpop.f32.mrf.mxu0
    %v522 = vadd.f32 0.0, %v521
    %523 = vmatprep.mubr.bf16.mxu0 0
    %524 = vmatmul.mubr.bf16.gmra.mxu0 %v270
    %v525 = vpop.f32.mrf.mxu0
    %v526 = vadd.f32 0.0, %v525
    %v527 = vpop.f32.mrf.mxu0
    %v528 = vadd.f32 0.0, %v527
    %v529 = vpop.f32.mrf.mxu0
    %v530 = vadd.f32 0.0, %v529
    %v531 = vpop.f32.mrf.mxu0
    %v532 = vadd.f32 0.0, %v531
    %533 = vmatprep.mubr.bf16.mxu0 0
    %534 = vmatmul.mubr.bf16.gmra.mxu0 %v273
    %v535 = vpop.f32.mrf.mxu0
    %v536 = vadd.f32 0.0, %v535
    %v537 = vpop.f32.mrf.mxu0
    %v538 = vadd.f32 0.0, %v537
    %v539 = vpop.f32.mrf.mxu0
    %v540 = vadd.f32 0.0, %v539
    %v541 = vpop.f32.mrf.mxu0
    %v542 = vadd.f32 0.0, %v541
    %543 = vmatprep.mubr.bf16.mxu0 0
    %544 = vmatmul.mubr.bf16.gmra.mxu0 %v276
    %v545 = vpop.f32.mrf.mxu0
    %v546 = vadd.f32 0.0, %v545
    %v547 = vpop.f32.mrf.mxu0
    %v548 = vadd.f32 0.0, %v547
    %v549 = vpop.f32.mrf.mxu0
    %v550 = vadd.f32 0.0, %v549
    %v551 = vpop.f32.mrf.mxu0
    %v552 = vadd.f32 0.0, %v551
    %553 = vmatprep.mubr.bf16.mxu0 0
    %554 = vmatmul.mubr.bf16.gmra.mxu0 %v279
    %v555 = vpop.f32.mrf.mxu0
    %v556 = vadd.f32 0.0, %v555
    %v557 = vpop.f32.mrf.mxu0
    %v558 = vadd.f32 0.0, %v557
    %v559 = vpop.f32.mrf.mxu0
    %v560 = vadd.f32 0.0, %v559
    %v561 = vpop.f32.mrf.mxu0
    %v562 = vadd.f32 0.0, %v561
    %563 = vmatprep.mubr.bf16.mxu0 0
    %564 = vmatmul.mubr.bf16.gmra.mxu0 %v282
    %v565 = vpop.f32.mrf.mxu0
    %v566 = vadd.f32 0.0, %v565
    %v567 = vpop.f32.mrf.mxu0
    %v568 = vadd.f32 0.0, %v567
    %v569 = vpop.f32.mrf.mxu0
    %v570 = vadd.f32 0.0, %v569
    %v571 = vpop.f32.mrf.mxu0
    %v572 = vadd.f32 0.0, %v571
    %573 = vmatprep.mubr.bf16.mxu0 0
    %574 = vmatmul.mubr.bf16.gmra.mxu0 %v285
    %v575 = vpop.f32.mrf.mxu0
    %v576 = vadd.f32 0.0, %v575
    %v577 = vpop.f32.mrf.mxu0
    %v578 = vadd.f32 0.0, %v577
    %v579 = vpop.f32.mrf.mxu0
    %v580 = vadd.f32 0.0, %v579
    %v581 = vpop.f32.mrf.mxu0
    %v582 = vadd.f32 0.0, %v581
    %583 = vmatprep.mubr.bf16.mxu0 0
    %584 = vmatmul.mubr.bf16.gmra.mxu0 %v288
    %v585 = vpop.f32.mrf.mxu0
    %v586 = vadd.f32 0.0, %v585
    %v587 = vpop.f32.mrf.mxu0
    %v588 = vadd.f32 0.0, %v587
    %v589 = vpop.f32.mrf.mxu0
    %v590 = vadd.f32 0.0, %v589
    %v591 = vpop.f32.mrf.mxu0
    %v592 = vadd.f32 0.0, %v591
    %593 = vmatprep.mubr.bf16.mxu0 0
    %594 = vmatmul.mubr.bf16.gmra.mxu0 %v291
    %v595 = vpop.f32.mrf.mxu0
    %v596 = vadd.f32 0.0, %v595
    %v597 = vpop.f32.mrf.mxu0
    %v598 = vadd.f32 0.0, %v597
    %v599 = vpop.f32.mrf.mxu0
    %v600 = vadd.f32 0.0, %v599
    %v601 = vpop.f32.mrf.mxu0
    %v602 = vadd.f32 0.0, %v601
    %603 = vmatprep.mubr.bf16.mxu0 0
    %604 = vmatmul.mubr.bf16.gmra.mxu0 %v294
    %v605 = vpop.f32.mrf.mxu0
    %v606 = vadd.f32 0.0, %v605
    %v607 = vpop.f32.mrf.mxu0
    %v608 = vadd.f32 0.0, %v607
    %v609 = vpop.f32.mrf.mxu0
    %v610 = vadd.f32 0.0, %v609
    %v611 = vpop.f32.mrf.mxu0
    %v612 = vadd.f32 0.0, %v611
    %613 = vmatprep.mubr.bf16.mxu0 0
    %614 = vmatmul.mubr.bf16.gmra.mxu0 %v297
    %v615 = vpop.f32.mrf.mxu0
    %v616 = vadd.f32 0.0, %v615
    %v617 = vpop.f32.mrf.mxu0
    %v618 = vadd.f32 0.0, %v617
    %v619 = vpop.f32.mrf.mxu0
    %v620 = vadd.f32 0.0, %v619
    %v621 = vpop.f32.mrf.mxu0
    %v622 = vadd.f32 0.0, %v621
    %623 = vdwg.mxu0
    %624 = vmatprep.subr.bf16.mxu0 0
    %625 = vmatpush1.bf16.msra.mxu0 0
    %626 = vmatprep.subr.bf16.mxu0 0
    %627 = vmatpush1.bf16.msra.mxu0 0
    %628 = vmatprep.subr.bf16.mxu0 0
    %629 = vmatpush1.bf16.msra.mxu0 0
    %630 = vmatprep.subr.bf16.mxu0 0
    %631 = vmatpush1.bf16.msra.mxu0 0
    %632 = vmatprep.subr.bf16.mxu0 0
    %633 = vmatpush1.bf16.msra.mxu0 0
    %634 = vmatprep.subr.bf16.mxu0 0
    %635 = vmatpush1.bf16.msra.mxu0 0
    %636 = vmatprep.subr.bf16.mxu0 %v316
    %637 = vmatpush1.bf16.msra.mxu0 %v313
    %638 = vmatprep.subr.bf16.mxu0 %v249
    %639 = vmatpush1.bf16.msra.mxu0 %v248
    %640 = vmatprep.subr.bf16.mxu0 0
    %641 = vmatpush2.bf16.msra.mxu0 0
    %642 = vmatprep.subr.bf16.mxu0 0
    %643 = vmatpush2.bf16.msra.mxu0 0
    %644 = vmatprep.subr.bf16.mxu0 0
    %645 = vmatpush2.bf16.msra.mxu0 0
    %646 = vmatprep.subr.bf16.mxu0 0
    %647 = vmatpush2.bf16.msra.mxu0 0
    %648 = vmatprep.subr.bf16.mxu0 0
    %649 = vmatpush2.bf16.msra.mxu0 0
    %650 = vmatprep.subr.bf16.mxu0 0
    %651 = vmatpush2.bf16.msra.mxu0 0
    %652 = vmatprep.subr.bf16.mxu0 0
    %653 = vmatpush2.bf16.msra.mxu0 0
    %654 = vmatprep.subr.bf16.mxu0 0
    %655 = vmatpush2.bf16.msra.mxu0 0
    %656 = vmatprep.mubr.bf16.mxu0 0
    %657 = vmatmul.mubr.bf16.gmra.mxu0 %v264
    %v658 = vpop.f32.mrf.mxu0
    %v659 = vadd.f32 0.0, %v658
    %v660 = vpop.f32.mrf.mxu0
    %v661 = vadd.f32 0.0, %v660
    %v662 = vpop.f32.mrf.mxu0
    %v663 = vadd.f32 0.0, %v662
    %v664 = vpop.f32.mrf.mxu0
    %v665 = vadd.f32 0.0, %v664
    %666 = vmatprep.mubr.bf16.mxu0 0
    %667 = vmatmul.mubr.bf16.gmra.mxu0 %v267
    %v668 = vpop.f32.mrf.mxu0
    %v669 = vadd.f32 0.0, %v668
    %v670 = vpop.f32.mrf.mxu0
    %v671 = vadd.f32 0.0, %v670
    %v672 = vpop.f32.mrf.mxu0
    %v673 = vadd.f32 0.0, %v672
    %v674 = vpop.f32.mrf.mxu0
    %v675 = vadd.f32 0.0, %v674
    %676 = vmatprep.mubr.bf16.mxu0 0
    %677 = vmatmul.mubr.bf16.gmra.mxu0 %v270
    %v678 = vpop.f32.mrf.mxu0
    %v679 = vadd.f32 0.0, %v678
    %v680 = vpop.f32.mrf.mxu0
    %v681 = vadd.f32 0.0, %v680
    %v682 = vpop.f32.mrf.mxu0
    %v683 = vadd.f32 0.0, %v682
    %v684 = vpop.f32.mrf.mxu0
    %v685 = vadd.f32 0.0, %v684
    %686 = vmatprep.mubr.bf16.mxu0 0
    %687 = vmatmul.mubr.bf16.gmra.mxu0 %v273
    %v688 = vpop.f32.mrf.mxu0
    %v689 = vadd.f32 0.0, %v688
    %v690 = vpop.f32.mrf.mxu0
    %v691 = vadd.f32 0.0, %v690
    %v692 = vpop.f32.mrf.mxu0
    %v693 = vadd.f32 0.0, %v692
    %v694 = vpop.f32.mrf.mxu0
    %v695 = vadd.f32 0.0, %v694
    %696 = vmatprep.mubr.bf16.mxu0 0
    %697 = vmatmul.mubr.bf16.gmra.mxu0 %v276
    %v698 = vpop.f32.mrf.mxu0
    %v699 = vadd.f32 0.0, %v698
    %v700 = vpop.f32.mrf.mxu0
    %v701 = vadd.f32 0.0, %v700
    %v702 = vpop.f32.mrf.mxu0
    %v703 = vadd.f32 0.0, %v702
    %v704 = vpop.f32.mrf.mxu0
    %v705 = vadd.f32 0.0, %v704
    %706 = vmatprep.mubr.bf16.mxu0 0
    %707 = vmatmul.mubr.bf16.gmra.mxu0 %v279
    %v708 = vpop.f32.mrf.mxu0
    %v709 = vadd.f32 0.0, %v708
    %v710 = vpop.f32.mrf.mxu0
    %v711 = vadd.f32 0.0, %v710
    %v712 = vpop.f32.mrf.mxu0
    %v713 = vadd.f32 0.0, %v712
    %v714 = vpop.f32.mrf.mxu0
    %v715 = vadd.f32 0.0, %v714
    %716 = vmatprep.mubr.bf16.mxu0 0
    %717 = vmatmul.mubr.bf16.gmra.mxu0 %v282
    %v718 = vpop.f32.mrf.mxu0
    %v719 = vadd.f32 0.0, %v718
    %v720 = vpop.f32.mrf.mxu0
    %v721 = vadd.f32 0.0, %v720
    %v722 = vpop.f32.mrf.mxu0
    %v723 = vadd.f32 0.0, %v722
    %v724 = vpop.f32.mrf.mxu0
    %v725 = vadd.f32 0.0, %v724
    %726 = vmatprep.mubr.bf16.mxu0 0
    %727 = vmatmul.mubr.bf16.gmra.mxu0 %v285
    %v728 = vpop.f32.mrf.mxu0
    %v729 = vadd.f32 0.0, %v728
    %v730 = vpop.f32.mrf.mxu0
    %v731 = vadd.f32 0.0, %v730
    %v732 = vpop.f32.mrf.mxu0
    %v733 = vadd.f32 0.0, %v732
    %v734 = vpop.f32.mrf.mxu0
    %v735 = vadd.f32 0.0, %v734
    %736 = vmatprep.mubr.bf16.mxu0 0
    %737 = vmatmul.mubr.bf16.gmra.mxu0 %v288
    %v738 = vpop.f32.mrf.mxu0
    %v739 = vadd.f32 0.0, %v738
    %v740 = vpop.f32.mrf.mxu0
    %v741 = vadd.f32 0.0, %v740
    %v742 = vpop.f32.mrf.mxu0
    %v743 = vadd.f32 0.0, %v742
    %v744 = vpop.f32.mrf.mxu0
    %v745 = vadd.f32 0.0, %v744
    %746 = vmatprep.mubr.bf16.mxu0 0
    %747 = vmatmul.mubr.bf16.gmra.mxu0 %v291
    %v748 = vpop.f32.mrf.mxu0
    %v749 = vadd.f32 0.0, %v748
    %v750 = vpop.f32.mrf.mxu0
    %v751 = vadd.f32 0.0, %v750
    %v752 = vpop.f32.mrf.mxu0
    %v753 = vadd.f32 0.0, %v752
    %v754 = vpop.f32.mrf.mxu0
    %v755 = vadd.f32 0.0, %v754
    %756 = vmatprep.mubr.bf16.mxu0 0
    %757 = vmatmul.mubr.bf16.gmra.mxu0 %v294
    %v758 = vpop.f32.mrf.mxu0
    %v759 = vadd.f32 0.0, %v758
    %v760 = vpop.f32.mrf.mxu0
    %v761 = vadd.f32 0.0, %v760
    %v762 = vpop.f32.mrf.mxu0
    %v763 = vadd.f32 0.0, %v762
    %v764 = vpop.f32.mrf.mxu0
    %v765 = vadd.f32 0.0, %v764
    %766 = vmatprep.mubr.bf16.mxu0 0
    %767 = vmatmul.mubr.bf16.gmra.mxu0 %v297
    %v768 = vpop.f32.mrf.mxu0
    %v769 = vadd.f32 0.0, %v768
    %v770 = vpop.f32.mrf.mxu0
    %v771 = vadd.f32 0.0, %v770
    %v772 = vpop.f32.mrf.mxu0
    %v773 = vadd.f32 0.0, %v772
    %v774 = vpop.f32.mrf.mxu0
    %v775 = vadd.f32 0.0, %v774
    %776 = vdwg.mxu0
    %v789 = vunpack.c.l.b16 %v170
    %v790 = vunpack.c.h.b16 %v170
    %v791 = vunpack.c.l.b16 %v171
    %v792 = vunpack.c.h.b16 %v171
    %v793 = vunpack.c.l.b16 %v172
    %v794 = vunpack.c.h.b16 %v172
    %v795 = vunpack.c.l.b16 %v173
    %v796 = vunpack.c.h.b16 %v173
    %v797 = vunpack.c.l.b16 %v174
    %v798 = vunpack.c.h.b16 %v174
    %v799 = vunpack.c.l.b16 %v175
    %v800 = vunpack.c.h.b16 %v175
    %v801 = vunpack.c.l.b16 %v176
    %v802 = vunpack.c.h.b16 %v176
    %v803 = vunpack.c.l.b16 %v177
    %v804 = vunpack.c.h.b16 %v177
    %v805 = vunpack.c.l.b16 %v178
    %v806 = vunpack.c.h.b16 %v178
    %v807 = vunpack.c.l.b16 %v179
    %v808 = vunpack.c.h.b16 %v179
    %v809 = vunpack.c.l.b16 %v180
    %v810 = vunpack.c.h.b16 %v180
    %v811 = vunpack.c.l.b16 %v181
    %v812 = vunpack.c.h.b16 %v181
    %v813 = vpack.c.b16 %v795, %v789
    %v814 = vpack.c.b16 %v796, %v790
    %v815 = vpack.c.b16 %v797, %v791
    %v816 = vpack.c.b16 %v798, %v792
    %v817 = vpack.c.b16 %v799, %v793
    %v818 = vpack.c.b16 %v800, %v794
    %v819 = vpack.c.b16 %v807, %v801
    %v820 = vpack.c.b16 %v808, %v802
    %v821 = vpack.c.b16 %v809, %v803
    %v822 = vpack.c.b16 %v810, %v804
    %v823 = vpack.c.b16 %v811, %v805
    %v824 = vpack.c.b16 %v812, %v806
    %v832 = vsel %vm262, %v158, 0
    %v835 = vsel %vm262, %v159, 0
    %v838 = vsel %vm262, %v160, 0
    %v841 = vsel %vm262, %v161, 0
    %v844 = vsel %vm262, %v162, 0
    %v847 = vsel %vm262, %v163, 0
    %v850 = vsel %vm262, %v164, 0
    %v853 = vsel %vm262, %v165, 0
    %v856 = vsel %vm262, %v166, 0
    %v859 = vsel %vm262, %v167, 0
    %v862 = vsel %vm262, %v168, 0
    %v865 = vsel %vm262, %v169, 0
    %v868 = vsel %vm299, %v819, 0
    %v871 = vsel %vm299, %v820, 0
    %v874 = vsel %vm299, %v821, 0
    %v877 = vsel %vm299, %v822, 0
    %v880 = vsel %vm299, %v823, 0
    %v883 = vsel %vm299, %v824, 0
    %885 = vmatprep.subr.bf16.mxu0 0
    %886 = vmatpush1.bf16.msra.mxu0 0
    %887 = vmatprep.subr.bf16.mxu0 0
    %888 = vmatpush1.bf16.msra.mxu0 0
    %889 = vmatprep.subr.bf16.mxu0 0
    %890 = vmatpush1.bf16.msra.mxu0 0
    %891 = vmatprep.subr.bf16.mxu0 0
    %892 = vmatpush1.bf16.msra.mxu0 0
    %893 = vmatprep.subr.bf16.mxu0 0
    %894 = vmatpush1.bf16.msra.mxu0 0
    %895 = vmatprep.subr.bf16.mxu0 0
    %896 = vmatpush1.bf16.msra.mxu0 0
    %897 = vmatprep.subr.bf16.mxu0 %v871
    %898 = vmatpush1.bf16.msra.mxu0 %v868
    %899 = vmatprep.subr.bf16.mxu0 %v814
    %900 = vmatpush1.bf16.msra.mxu0 %v813
    %901 = vmatprep.subr.bf16.mxu0 0
    %902 = vmatpush2.bf16.msra.mxu0 0
    %903 = vmatprep.subr.bf16.mxu0 0
    %904 = vmatpush2.bf16.msra.mxu0 0
    %905 = vmatprep.subr.bf16.mxu0 0
    %906 = vmatpush2.bf16.msra.mxu0 0
    %907 = vmatprep.subr.bf16.mxu0 0
    %908 = vmatpush2.bf16.msra.mxu0 0
    %909 = vmatprep.subr.bf16.mxu0 0
    %910 = vmatpush2.bf16.msra.mxu0 0
    %911 = vmatprep.subr.bf16.mxu0 0
    %912 = vmatpush2.bf16.msra.mxu0 0
    %913 = vmatprep.subr.bf16.mxu0 0
    %914 = vmatpush2.bf16.msra.mxu0 0
    %915 = vmatprep.subr.bf16.mxu0 0
    %916 = vmatpush2.bf16.msra.mxu0 0
    %917 = vmatprep.mubr.bf16.mxu0 0
    %918 = vmatmul.mubr.bf16.gmra.mxu0 %v832
    %v919 = vpop.f32.mrf.mxu0
    %v920 = vadd.f32 %v353, %v919
    %v921 = vpop.f32.mrf.mxu0
    %v922 = vadd.f32 %v355, %v921
    %v923 = vpop.f32.mrf.mxu0
    %v924 = vadd.f32 %v357, %v923
    %v925 = vpop.f32.mrf.mxu0
    %v926 = vadd.f32 %v359, %v925
    %927 = vmatprep.mubr.bf16.mxu0 0
    %928 = vmatmul.mubr.bf16.gmra.mxu0 %v835
    %v929 = vpop.f32.mrf.mxu0
    %v930 = vadd.f32 %v363, %v929
    %v931 = vpop.f32.mrf.mxu0
    %v932 = vadd.f32 %v365, %v931
    %v933 = vpop.f32.mrf.mxu0
    %v934 = vadd.f32 %v367, %v933
    %v935 = vpop.f32.mrf.mxu0
    %v936 = vadd.f32 %v369, %v935
    %937 = vmatprep.mubr.bf16.mxu0 0
    %938 = vmatmul.mubr.bf16.gmra.mxu0 %v838
    %v939 = vpop.f32.mrf.mxu0
    %v940 = vadd.f32 %v373, %v939
    %v941 = vpop.f32.mrf.mxu0
    %v942 = vadd.f32 %v375, %v941
    %v943 = vpop.f32.mrf.mxu0
    %v944 = vadd.f32 %v377, %v943
    %v945 = vpop.f32.mrf.mxu0
    %v946 = vadd.f32 %v379, %v945
    %947 = vmatprep.mubr.bf16.mxu0 0
    %948 = vmatmul.mubr.bf16.gmra.mxu0 %v841
    %v949 = vpop.f32.mrf.mxu0
    %v950 = vadd.f32 %v383, %v949
    %v951 = vpop.f32.mrf.mxu0
    %v952 = vadd.f32 %v385, %v951
    %v953 = vpop.f32.mrf.mxu0
    %v954 = vadd.f32 %v387, %v953
    %v955 = vpop.f32.mrf.mxu0
    %v956 = vadd.f32 %v389, %v955
    %957 = vmatprep.mubr.bf16.mxu0 0
    %958 = vmatmul.mubr.bf16.gmra.mxu0 %v844
    %v959 = vpop.f32.mrf.mxu0
    %v960 = vadd.f32 %v393, %v959
    %v961 = vpop.f32.mrf.mxu0
    %v962 = vadd.f32 %v395, %v961
    %v963 = vpop.f32.mrf.mxu0
    %v964 = vadd.f32 %v397, %v963
    %v965 = vpop.f32.mrf.mxu0
    %v966 = vadd.f32 %v399, %v965
    %967 = vmatprep.mubr.bf16.mxu0 0
    %968 = vmatmul.mubr.bf16.gmra.mxu0 %v847
    %v969 = vpop.f32.mrf.mxu0
    %v970 = vadd.f32 %v403, %v969
    %v971 = vpop.f32.mrf.mxu0
    %v972 = vadd.f32 %v405, %v971
    %v973 = vpop.f32.mrf.mxu0
    %v974 = vadd.f32 %v407, %v973
    %v975 = vpop.f32.mrf.mxu0
    %v976 = vadd.f32 %v409, %v975
    %977 = vmatprep.mubr.bf16.mxu0 0
    %978 = vmatmul.mubr.bf16.gmra.mxu0 %v850
    %v979 = vpop.f32.mrf.mxu0
    %v980 = vadd.f32 %v413, %v979
    %v981 = vpop.f32.mrf.mxu0
    %v982 = vadd.f32 %v415, %v981
    %v983 = vpop.f32.mrf.mxu0
    %v984 = vadd.f32 %v417, %v983
    %v985 = vpop.f32.mrf.mxu0
    %v986 = vadd.f32 %v419, %v985
    %987 = vmatprep.mubr.bf16.mxu0 0
    %988 = vmatmul.mubr.bf16.gmra.mxu0 %v853
    %v989 = vpop.f32.mrf.mxu0
    %v990 = vadd.f32 %v423, %v989
    %v991 = vpop.f32.mrf.mxu0
    %v992 = vadd.f32 %v425, %v991
    %v993 = vpop.f32.mrf.mxu0
    %v994 = vadd.f32 %v427, %v993
    %v995 = vpop.f32.mrf.mxu0
    %v996 = vadd.f32 %v429, %v995
    %997 = vmatprep.mubr.bf16.mxu0 0
    %998 = vmatmul.mubr.bf16.gmra.mxu0 %v856
    %v999 = vpop.f32.mrf.mxu0
    %v1000 = vadd.f32 %v433, %v999
    %v1001 = vpop.f32.mrf.mxu0
    %v1002 = vadd.f32 %v435, %v1001
    %v1003 = vpop.f32.mrf.mxu0
    %v1004 = vadd.f32 %v437, %v1003
    %v1005 = vpop.f32.mrf.mxu0
    %v1006 = vadd.f32 %v439, %v1005
    %1007 = vmatprep.mubr.bf16.mxu0 0
    %1008 = vmatmul.mubr.bf16.gmra.mxu0 %v859
    %v1009 = vpop.f32.mrf.mxu0
    %v1010 = vadd.f32 %v443, %v1009
    %v1011 = vpop.f32.mrf.mxu0
    %v1012 = vadd.f32 %v445, %v1011
    %v1013 = vpop.f32.mrf.mxu0
    %v1014 = vadd.f32 %v447, %v1013
    %v1015 = vpop.f32.mrf.mxu0
    %v1016 = vadd.f32 %v449, %v1015
    %1017 = vmatprep.mubr.bf16.mxu0 0
    %1018 = vmatmul.mubr.bf16.gmra.mxu0 %v862
    %v1019 = vpop.f32.mrf.mxu0
    %v1020 = vadd.f32 %v453, %v1019
    %v1021 = vpop.f32.mrf.mxu0
    %v1022 = vadd.f32 %v455, %v1021
    %v1023 = vpop.f32.mrf.mxu0
    %v1024 = vadd.f32 %v457, %v1023
    %v1025 = vpop.f32.mrf.mxu0
    %v1026 = vadd.f32 %v459, %v1025
    %1027 = vmatprep.mubr.bf16.mxu0 0
    %1028 = vmatmul.mubr.bf16.gmra.mxu0 %v865
    %v1029 = vpop.f32.mrf.mxu0
    %v1030 = vadd.f32 %v463, %v1029
    %v1031 = vpop.f32.mrf.mxu0
    %v1032 = vadd.f32 %v465, %v1031
    %v1033 = vpop.f32.mrf.mxu0
    %v1034 = vadd.f32 %v467, %v1033
    %v1035 = vpop.f32.mrf.mxu0
    %v1036 = vadd.f32 %v469, %v1035
    %1037 = vdwg.mxu0
    %1038 = vmatprep.subr.bf16.mxu0 0
    %1039 = vmatpush1.bf16.msra.mxu0 0
    %1040 = vmatprep.subr.bf16.mxu0 0
    %1041 = vmatpush1.bf16.msra.mxu0 0
    %1042 = vmatprep.subr.bf16.mxu0 0
    %1043 = vmatpush1.bf16.msra.mxu0 0
    %1044 = vmatprep.subr.bf16.mxu0 0
    %1045 = vmatpush1.bf16.msra.mxu0 0
    %1046 = vmatprep.subr.bf16.mxu0 0
    %1047 = vmatpush1.bf16.msra.mxu0 0
    %1048 = vmatprep.subr.bf16.mxu0 0
    %1049 = vmatpush1.bf16.msra.mxu0 0
    %1050 = vmatprep.subr.bf16.mxu0 %v877
    %1051 = vmatpush1.bf16.msra.mxu0 %v874
    %1052 = vmatprep.subr.bf16.mxu0 %v816
    %1053 = vmatpush1.bf16.msra.mxu0 %v815
    %1054 = vmatprep.subr.bf16.mxu0 0
    %1055 = vmatpush2.bf16.msra.mxu0 0
    %1056 = vmatprep.subr.bf16.mxu0 0
    %1057 = vmatpush2.bf16.msra.mxu0 0
    %1058 = vmatprep.subr.bf16.mxu0 0
    %1059 = vmatpush2.bf16.msra.mxu0 0
    %1060 = vmatprep.subr.bf16.mxu0 0
    %1061 = vmatpush2.bf16.msra.mxu0 0
    %1062 = vmatprep.subr.bf16.mxu0 0
    %1063 = vmatpush2.bf16.msra.mxu0 0
    %1064 = vmatprep.subr.bf16.mxu0 0
    %1065 = vmatpush2.bf16.msra.mxu0 0
    %1066 = vmatprep.subr.bf16.mxu0 0
    %1067 = vmatpush2.bf16.msra.mxu0 0
    %1068 = vmatprep.subr.bf16.mxu0 0
    %1069 = vmatpush2.bf16.msra.mxu0 0
    %1070 = vmatprep.mubr.bf16.mxu0 0
    %1071 = vmatmul.mubr.bf16.gmra.mxu0 %v832
    %v1072 = vpop.f32.mrf.mxu0
    %v1073 = vadd.f32 %v506, %v1072
    %v1074 = vpop.f32.mrf.mxu0
    %v1075 = vadd.f32 %v508, %v1074
    %v1076 = vpop.f32.mrf.mxu0
    %v1077 = vadd.f32 %v510, %v1076
    %v1078 = vpop.f32.mrf.mxu0
    %v1079 = vadd.f32 %v512, %v1078
    %1080 = vmatprep.mubr.bf16.mxu0 0
    %1081 = vmatmul.mubr.bf16.gmra.mxu0 %v835
    %v1082 = vpop.f32.mrf.mxu0
    %v1083 = vadd.f32 %v516, %v1082
    %v1084 = vpop.f32.mrf.mxu0
    %v1085 = vadd.f32 %v518, %v1084
    %v1086 = vpop.f32.mrf.mxu0
    %v1087 = vadd.f32 %v520, %v1086
    %v1088 = vpop.f32.mrf.mxu0
    %v1089 = vadd.f32 %v522, %v1088
    %1090 = vmatprep.mubr.bf16.mxu0 0
    %1091 = vmatmul.mubr.bf16.gmra.mxu0 %v838
    %v1092 = vpop.f32.mrf.mxu0
    %v1093 = vadd.f32 %v526, %v1092
    %v1094 = vpop.f32.mrf.mxu0
    %v1095 = vadd.f32 %v528, %v1094
    %v1096 = vpop.f32.mrf.mxu0
    %v1097 = vadd.f32 %v530, %v1096
    %v1098 = vpop.f32.mrf.mxu0
    %v1099 = vadd.f32 %v532, %v1098
    %1100 = vmatprep.mubr.bf16.mxu0 0
    %1101 = vmatmul.mubr.bf16.gmra.mxu0 %v841
    %v1102 = vpop.f32.mrf.mxu0
    %v1103 = vadd.f32 %v536, %v1102
    %v1104 = vpop.f32.mrf.mxu0
    %v1105 = vadd.f32 %v538, %v1104
    %v1106 = vpop.f32.mrf.mxu0
    %v1107 = vadd.f32 %v540, %v1106
    %v1108 = vpop.f32.mrf.mxu0
    %v1109 = vadd.f32 %v542, %v1108
    %1110 = vmatprep.mubr.bf16.mxu0 0
    %1111 = vmatmul.mubr.bf16.gmra.mxu0 %v844
    %v1112 = vpop.f32.mrf.mxu0
    %v1113 = vadd.f32 %v546, %v1112
    %v1114 = vpop.f32.mrf.mxu0
    %v1115 = vadd.f32 %v548, %v1114
    %v1116 = vpop.f32.mrf.mxu0
    %v1117 = vadd.f32 %v550, %v1116
    %v1118 = vpop.f32.mrf.mxu0
    %v1119 = vadd.f32 %v552, %v1118
    %1120 = vmatprep.mubr.bf16.mxu0 0
    %1121 = vmatmul.mubr.bf16.gmra.mxu0 %v847
    %v1122 = vpop.f32.mrf.mxu0
    %v1123 = vadd.f32 %v556, %v1122
    %v1124 = vpop.f32.mrf.mxu0
    %v1125 = vadd.f32 %v558, %v1124
    %v1126 = vpop.f32.mrf.mxu0
    %v1127 = vadd.f32 %v560, %v1126
    %v1128 = vpop.f32.mrf.mxu0
    %v1129 = vadd.f32 %v562, %v1128
    %1130 = vmatprep.mubr.bf16.mxu0 0
    %1131 = vmatmul.mubr.bf16.gmra.mxu0 %v850
    %v1132 = vpop.f32.mrf.mxu0
    %v1133 = vadd.f32 %v566, %v1132
    %v1134 = vpop.f32.mrf.mxu0
    %v1135 = vadd.f32 %v568, %v1134
    %v1136 = vpop.f32.mrf.mxu0
    %v1137 = vadd.f32 %v570, %v1136
    %v1138 = vpop.f32.mrf.mxu0
    %v1139 = vadd.f32 %v572, %v1138
    %1140 = vmatprep.mubr.bf16.mxu0 0
    %1141 = vmatmul.mubr.bf16.gmra.mxu0 %v853
    %v1142 = vpop.f32.mrf.mxu0
    %v1143 = vadd.f32 %v576, %v1142
    %v1144 = vpop.f32.mrf.mxu0
    %v1145 = vadd.f32 %v578, %v1144
    %v1146 = vpop.f32.mrf.mxu0
    %v1147 = vadd.f32 %v580, %v1146
    %v1148 = vpop.f32.mrf.mxu0
    %v1149 = vadd.f32 %v582, %v1148
    %1150 = vmatprep.mubr.bf16.mxu0 0
    %1151 = vmatmul.mubr.bf16.gmra.mxu0 %v856
    %v1152 = vpop.f32.mrf.mxu0
    %v1153 = vadd.f32 %v586, %v1152
    %v1154 = vpop.f32.mrf.mxu0
    %v1155 = vadd.f32 %v588, %v1154
    %v1156 = vpop.f32.mrf.mxu0
    %v1157 = vadd.f32 %v590, %v1156
    %v1158 = vpop.f32.mrf.mxu0
    %v1159 = vadd.f32 %v592, %v1158
    %1160 = vmatprep.mubr.bf16.mxu0 0
    %1161 = vmatmul.mubr.bf16.gmra.mxu0 %v859
    %v1162 = vpop.f32.mrf.mxu0
    %v1163 = vadd.f32 %v596, %v1162
    %v1164 = vpop.f32.mrf.mxu0
    %v1165 = vadd.f32 %v598, %v1164
    %v1166 = vpop.f32.mrf.mxu0
    %v1167 = vadd.f32 %v600, %v1166
    %v1168 = vpop.f32.mrf.mxu0
    %v1169 = vadd.f32 %v602, %v1168
    %1170 = vmatprep.mubr.bf16.mxu0 0
    %1171 = vmatmul.mubr.bf16.gmra.mxu0 %v862
    %v1172 = vpop.f32.mrf.mxu0
    %v1173 = vadd.f32 %v606, %v1172
    %v1174 = vpop.f32.mrf.mxu0
    %v1175 = vadd.f32 %v608, %v1174
    %v1176 = vpop.f32.mrf.mxu0
    %v1177 = vadd.f32 %v610, %v1176
    %v1178 = vpop.f32.mrf.mxu0
    %v1179 = vadd.f32 %v612, %v1178
    %1180 = vmatprep.mubr.bf16.mxu0 0
    %1181 = vmatmul.mubr.bf16.gmra.mxu0 %v865
    %v1182 = vpop.f32.mrf.mxu0
    %v1183 = vadd.f32 %v616, %v1182
    %v1184 = vpop.f32.mrf.mxu0
    %v1185 = vadd.f32 %v618, %v1184
    %v1186 = vpop.f32.mrf.mxu0
    %v1187 = vadd.f32 %v620, %v1186
    %v1188 = vpop.f32.mrf.mxu0
    %v1189 = vadd.f32 %v622, %v1188
    %1190 = vdwg.mxu0
    %1191 = vmatprep.subr.bf16.mxu0 0
    %1192 = vmatpush1.bf16.msra.mxu0 0
    %1193 = vmatprep.subr.bf16.mxu0 0
    %1194 = vmatpush1.bf16.msra.mxu0 0
    %1195 = vmatprep.subr.bf16.mxu0 0
    %1196 = vmatpush1.bf16.msra.mxu0 0
    %1197 = vmatprep.subr.bf16.mxu0 0
    %1198 = vmatpush1.bf16.msra.mxu0 0
    %1199 = vmatprep.subr.bf16.mxu0 0
    %1200 = vmatpush1.bf16.msra.mxu0 0
    %1201 = vmatprep.subr.bf16.mxu0 0
    %1202 = vmatpush1.bf16.msra.mxu0 0
    %1203 = vmatprep.subr.bf16.mxu0 %v883
    %1204 = vmatpush1.bf16.msra.mxu0 %v880
    %1205 = vmatprep.subr.bf16.mxu0 %v818
    %1206 = vmatpush1.bf16.msra.mxu0 %v817
    %1207 = vmatprep.subr.bf16.mxu0 0
    %1208 = vmatpush2.bf16.msra.mxu0 0
    %1209 = vmatprep.subr.bf16.mxu0 0
    %1210 = vmatpush2.bf16.msra.mxu0 0
    %1211 = vmatprep.subr.bf16.mxu0 0
    %1212 = vmatpush2.bf16.msra.mxu0 0
    %1213 = vmatprep.subr.bf16.mxu0 0
    %1214 = vmatpush2.bf16.msra.mxu0 0
    %1215 = vmatprep.subr.bf16.mxu0 0
    %1216 = vmatpush2.bf16.msra.mxu0 0
    %1217 = vmatprep.subr.bf16.mxu0 0
    %1218 = vmatpush2.bf16.msra.mxu0 0
    %1219 = vmatprep.subr.bf16.mxu0 0
    %1220 = vmatpush2.bf16.msra.mxu0 0
    %1221 = vmatprep.subr.bf16.mxu0 0
    %1222 = vmatpush2.bf16.msra.mxu0 0
    %1223 = vmatprep.mubr.bf16.mxu0 0
    %1224 = vmatmul.mubr.bf16.gmra.mxu0 %v832
    %v1225 = vpop.f32.mrf.mxu0
    %v1226 = vadd.f32 %v659, %v1225
    %v1227 = vpop.f32.mrf.mxu0
    %v1228 = vadd.f32 %v661, %v1227
    %v1229 = vpop.f32.mrf.mxu0
    %v1230 = vadd.f32 %v663, %v1229
    %v1231 = vpop.f32.mrf.mxu0
    %v1232 = vadd.f32 %v665, %v1231
    %1233 = vmatprep.mubr.bf16.mxu0 0
    %1234 = vmatmul.mubr.bf16.gmra.mxu0 %v835
    %v1235 = vpop.f32.mrf.mxu0
    %v1236 = vadd.f32 %v669, %v1235
    %v1237 = vpop.f32.mrf.mxu0
    %v1238 = vadd.f32 %v671, %v1237
    %v1239 = vpop.f32.mrf.mxu0
    %v1240 = vadd.f32 %v673, %v1239
    %v1241 = vpop.f32.mrf.mxu0
    %v1242 = vadd.f32 %v675, %v1241
    %1243 = vmatprep.mubr.bf16.mxu0 0
    %1244 = vmatmul.mubr.bf16.gmra.mxu0 %v838
    %v1245 = vpop.f32.mrf.mxu0
    %v1246 = vadd.f32 %v679, %v1245
    %v1247 = vpop.f32.mrf.mxu0
    %v1248 = vadd.f32 %v681, %v1247
    %v1249 = vpop.f32.mrf.mxu0
    %v1250 = vadd.f32 %v683, %v1249
    %v1251 = vpop.f32.mrf.mxu0
    %v1252 = vadd.f32 %v685, %v1251
    %1253 = vmatprep.mubr.bf16.mxu0 0
    %1254 = vmatmul.mubr.bf16.gmra.mxu0 %v841
    %v1255 = vpop.f32.mrf.mxu0
    %v1256 = vadd.f32 %v689, %v1255
    %v1257 = vpop.f32.mrf.mxu0
    %v1258 = vadd.f32 %v691, %v1257
    %v1259 = vpop.f32.mrf.mxu0
    %v1260 = vadd.f32 %v693, %v1259
    %v1261 = vpop.f32.mrf.mxu0
    %v1262 = vadd.f32 %v695, %v1261
    %1263 = vmatprep.mubr.bf16.mxu0 0
    %1264 = vmatmul.mubr.bf16.gmra.mxu0 %v844
    %v1265 = vpop.f32.mrf.mxu0
    %v1266 = vadd.f32 %v699, %v1265
    %v1267 = vpop.f32.mrf.mxu0
    %v1268 = vadd.f32 %v701, %v1267
    %v1269 = vpop.f32.mrf.mxu0
    %v1270 = vadd.f32 %v703, %v1269
    %v1271 = vpop.f32.mrf.mxu0
    %v1272 = vadd.f32 %v705, %v1271
    %1273 = vmatprep.mubr.bf16.mxu0 0
    %1274 = vmatmul.mubr.bf16.gmra.mxu0 %v847
    %v1275 = vpop.f32.mrf.mxu0
    %v1276 = vadd.f32 %v709, %v1275
    %v1277 = vpop.f32.mrf.mxu0
    %v1278 = vadd.f32 %v711, %v1277
    %v1279 = vpop.f32.mrf.mxu0
    %v1280 = vadd.f32 %v713, %v1279
    %v1281 = vpop.f32.mrf.mxu0
    %v1282 = vadd.f32 %v715, %v1281
    %1283 = vmatprep.mubr.bf16.mxu0 0
    %1284 = vmatmul.mubr.bf16.gmra.mxu0 %v850
    %v1285 = vpop.f32.mrf.mxu0
    %v1286 = vadd.f32 %v719, %v1285
    %v1287 = vpop.f32.mrf.mxu0
    %v1288 = vadd.f32 %v721, %v1287
    %v1289 = vpop.f32.mrf.mxu0
    %v1290 = vadd.f32 %v723, %v1289
    %v1291 = vpop.f32.mrf.mxu0
    %v1292 = vadd.f32 %v725, %v1291
    %1293 = vmatprep.mubr.bf16.mxu0 0
    %1294 = vmatmul.mubr.bf16.gmra.mxu0 %v853
    %v1295 = vpop.f32.mrf.mxu0
    %v1296 = vadd.f32 %v729, %v1295
    %v1297 = vpop.f32.mrf.mxu0
    %v1298 = vadd.f32 %v731, %v1297
    %v1299 = vpop.f32.mrf.mxu0
    %v1300 = vadd.f32 %v733, %v1299
    %v1301 = vpop.f32.mrf.mxu0
    %v1302 = vadd.f32 %v735, %v1301
    %1303 = vmatprep.mubr.bf16.mxu0 0
    %1304 = vmatmul.mubr.bf16.gmra.mxu0 %v856
    %v1305 = vpop.f32.mrf.mxu0
    %v1306 = vadd.f32 %v739, %v1305
    %v1307 = vpop.f32.mrf.mxu0
    %v1308 = vadd.f32 %v741, %v1307
    %v1309 = vpop.f32.mrf.mxu0
    %v1310 = vadd.f32 %v743, %v1309
    %v1311 = vpop.f32.mrf.mxu0
    %v1312 = vadd.f32 %v745, %v1311
    %1313 = vmatprep.mubr.bf16.mxu0 0
    %1314 = vmatmul.mubr.bf16.gmra.mxu0 %v859
    %v1315 = vpop.f32.mrf.mxu0
    %v1316 = vadd.f32 %v749, %v1315
    %v1317 = vpop.f32.mrf.mxu0
    %v1318 = vadd.f32 %v751, %v1317
    %v1319 = vpop.f32.mrf.mxu0
    %v1320 = vadd.f32 %v753, %v1319
    %v1321 = vpop.f32.mrf.mxu0
    %v1322 = vadd.f32 %v755, %v1321
    %1323 = vmatprep.mubr.bf16.mxu0 0
    %1324 = vmatmul.mubr.bf16.gmra.mxu0 %v862
    %v1325 = vpop.f32.mrf.mxu0
    %v1326 = vadd.f32 %v759, %v1325
    %v1327 = vpop.f32.mrf.mxu0
    %v1328 = vadd.f32 %v761, %v1327
    %v1329 = vpop.f32.mrf.mxu0
    %v1330 = vadd.f32 %v763, %v1329
    %v1331 = vpop.f32.mrf.mxu0
    %v1332 = vadd.f32 %v765, %v1331
    %1333 = vmatprep.mubr.bf16.mxu0 0
    %1334 = vmatmul.mubr.bf16.gmra.mxu0 %v865
    %v1335 = vpop.f32.mrf.mxu0
    %v1336 = vadd.f32 %v769, %v1335
    %v1337 = vpop.f32.mrf.mxu0
    %v1338 = vadd.f32 %v771, %v1337
    %v1339 = vpop.f32.mrf.mxu0
    %v1340 = vadd.f32 %v773, %v1339
    %v1341 = vpop.f32.mrf.mxu0
    %v1342 = vadd.f32 %v775, %v1341
    %1343 = vdwg.mxu0
    %v1344 = vld [vmem:[%s0 + $0x10] sm:$0xff]
    %v1345 = vld [vmem:[%s0 + $0x18] sm:$0xff]
    %v1346 = vld [vmem:[%s0 + $0x20] sm:$0xff]
    %v1347 = vld [vmem:[%s0 + $0x28] sm:$0xff]
    %v1348 = vld [vmem:[%s0 + $0x30] sm:$0xff]
    %v1349 = vld [vmem:[%s0 + $0x38] sm:$0xff]
    %v1350 = vld [vmem:[%s0 + $0x40] sm:$0xff]
    %v1351 = vld [vmem:[%s0 + $0x48] sm:$0xff]
    %v1352 = vld [vmem:[%s0 + $0x50] sm:$0xff]
    %v1353 = vld [vmem:[%s0 + $0x58] sm:$0xff]
    %v1354 = vld [vmem:[%s0 + $0x60] sm:$0xff]
    %v1355 = vld [vmem:[%s0 + $0x68] sm:$0xff]
    %v1356 = vld [vmem:[%s0 + $0x70] sm:$0xff]
    %v1357 = vld [vmem:[%s0 + $0x78] sm:$0xff]
    %v1358 = vld [vmem:[%s0 + $0x80] sm:$0xff]
    %v1359 = vld [vmem:[%s0 + $0x88] sm:$0xff]
    %v1360 = vld [vmem:[%s0 + $0x90] sm:$0xff]
    %v1361 = vld [vmem:[%s0 + $0x98] sm:$0xff]
    %v1362 = vld [vmem:[%s0 + $0xa0] sm:$0xff]
    %v1363 = vld [vmem:[%s0 + $0xa8] sm:$0xff]
    %v1364 = vld [vmem:[%s0 + $0xb0] sm:$0xff]
    %v1365 = vld [vmem:[%s0 + $0xb8] sm:$0xff]
    %v1366 = vld [vmem:[%s0 + $0xc0] sm:$0xff]
    %v1367 = vld [vmem:[%s0 + $0xc8] sm:$0xff]
    %v1368 = vpack.c.bf16 %v1345, %v1344
    %v1369 = vpack.c.bf16 %v1347, %v1346
    %v1370 = vpack.c.bf16 %v1349, %v1348
    %v1371 = vpack.c.bf16 %v1351, %v1350
    %v1372 = vpack.c.bf16 %v1353, %v1352
    %v1373 = vpack.c.bf16 %v1355, %v1354
    %v1374 = vpack.c.bf16 %v1357, %v1356
    %v1375 = vpack.c.bf16 %v1359, %v1358
    %v1376 = vpack.c.bf16 %v1361, %v1360
    %v1377 = vpack.c.bf16 %v1363, %v1362
    %v1378 = vpack.c.bf16 %v1365, %v1364
    %v1379 = vpack.c.bf16 %v1367, %v1366
    %s1380 = scalar_lea.vmem [#allocation3], 192
    %v1381 = vld [vmem:[%s1380] sm:$0xff]
    %v1382 = vld [vmem:[%s1380 + $0x8] sm:$0xff]
    %v1383 = vld [vmem:[%s1380 + $0x10] sm:$0xff]
    %v1384 = vld [vmem:[%s1380 + $0x18] sm:$0xff]
    %v1385 = vld [vmem:[%s1380 + $0x20] sm:$0xff]
    %v1386 = vld [vmem:[%s1380 + $0x28] sm:$0xff]
    %v1387 = vld [vmem:[%s1380 + $0x30] sm:$0xff]
    %v1388 = vld [vmem:[%s1380 + $0x38] sm:$0xff]
    %v1389 = vld [vmem:[%s1380 + $0x40] sm:$0xff]
    %v1390 = vld [vmem:[%s1380 + $0x48] sm:$0x33]
    %v1391 = vld [vmem:[%s1380 + $0x50] sm:$0x33]
    %v1392 = vld [vmem:[%s1380 + $0x58] sm:$0x33]
    %v1405 = vunpack.c.l.b16 %v1381
    %v1406 = vunpack.c.h.b16 %v1381
    %v1407 = vunpack.c.l.b16 %v1382
    %v1408 = vunpack.c.h.b16 %v1382
    %v1409 = vunpack.c.l.b16 %v1383
    %v1410 = vunpack.c.h.b16 %v1383
    %v1411 = vunpack.c.l.b16 %v1384
    %v1412 = vunpack.c.h.b16 %v1384
    %v1413 = vunpack.c.l.b16 %v1385
    %v1414 = vunpack.c.h.b16 %v1385
    %v1415 = vunpack.c.l.b16 %v1386
    %v1416 = vunpack.c.h.b16 %v1386
    %v1417 = vunpack.c.l.b16 %v1387
    %v1418 = vunpack.c.h.b16 %v1387
    %v1419 = vunpack.c.l.b16 %v1388
    %v1420 = vunpack.c.h.b16 %v1388
    %v1421 = vunpack.c.l.b16 %v1389
    %v1422 = vunpack.c.h.b16 %v1389
    %v1423 = vunpack.c.l.b16 %v1390
    %v1424 = vunpack.c.h.b16 %v1390
    %v1425 = vunpack.c.l.b16 %v1391
    %v1426 = vunpack.c.h.b16 %v1391
    %v1427 = vunpack.c.l.b16 %v1392
    %v1428 = vunpack.c.h.b16 %v1392
    %v1429 = vpack.c.b16 %v1411, %v1405
    %v1430 = vpack.c.b16 %v1412, %v1406
    %v1431 = vpack.c.b16 %v1413, %v1407
    %v1432 = vpack.c.b16 %v1414, %v1408
    %v1433 = vpack.c.b16 %v1415, %v1409
    %v1434 = vpack.c.b16 %v1416, %v1410
    %v1435 = vpack.c.b16 %v1423, %v1417
    %v1436 = vpack.c.b16 %v1424, %v1418
    %v1437 = vpack.c.b16 %v1425, %v1419
    %v1438 = vpack.c.b16 %v1426, %v1420
    %v1439 = vpack.c.b16 %v1427, %v1421
    %v1440 = vpack.c.b16 %v1428, %v1422
    %v1448 = vsel %vm262, %v1368, 0
    %v1451 = vsel %vm262, %v1369, 0
    %v1454 = vsel %vm262, %v1370, 0
    %v1457 = vsel %vm262, %v1371, 0
    %v1460 = vsel %vm262, %v1372, 0
    %v1463 = vsel %vm262, %v1373, 0
    %v1466 = vsel %vm262, %v1374, 0
    %v1469 = vsel %vm262, %v1375, 0
    %v1472 = vsel %vm262, %v1376, 0
    %v1475 = vsel %vm262, %v1377, 0
    %v1478 = vsel %vm262, %v1378, 0
    %v1481 = vsel %vm262, %v1379, 0
    %v1484 = vsel %vm299, %v1435, 0
    %v1487 = vsel %vm299, %v1436, 0
    %v1490 = vsel %vm299, %v1437, 0
    %v1493 = vsel %vm299, %v1438, 0
    %v1496 = vsel %vm299, %v1439, 0
    %v1499 = vsel %vm299, %v1440, 0
    %1501 = vmatprep.subr.bf16.mxu0 0
    %1502 = vmatpush1.bf16.msra.mxu0 0
    %1503 = vmatprep.subr.bf16.mxu0 0
    %1504 = vmatpush1.bf16.msra.mxu0 0
    %1505 = vmatprep.subr.bf16.mxu0 0
    %1506 = vmatpush1.bf16.msra.mxu0 0
    %1507 = vmatprep.subr.bf16.mxu0 0
    %1508 = vmatpush1.bf16.msra.mxu0 0
    %1509 = vmatprep.subr.bf16.mxu0 0
    %1510 = vmatpush1.bf16.msra.mxu0 0
    %1511 = vmatprep.subr.bf16.mxu0 0
    %1512 = vmatpush1.bf16.msra.mxu0 0
    %1513 = vmatprep.subr.bf16.mxu0 %v1487
    %1514 = vmatpush1.bf16.msra.mxu0 %v1484
    %1515 = vmatprep.subr.bf16.mxu0 %v1430
    %1516 = vmatpush1.bf16.msra.mxu0 %v1429
    %1517 = vmatprep.subr.bf16.mxu0 0
    %1518 = vmatpush2.bf16.msra.mxu0 0
    %1519 = vmatprep.subr.bf16.mxu0 0
    %1520 = vmatpush2.bf16.msra.mxu0 0
    %1521 = vmatprep.subr.bf16.mxu0 0
    %1522 = vmatpush2.bf16.msra.mxu0 0
    %1523 = vmatprep.subr.bf16.mxu0 0
    %1524 = vmatpush2.bf16.msra.mxu0 0
    %1525 = vmatprep.subr.bf16.mxu0 0
    %1526 = vmatpush2.bf16.msra.mxu0 0
    %1527 = vmatprep.subr.bf16.mxu0 0
    %1528 = vmatpush2.bf16.msra.mxu0 0
    %1529 = vmatprep.subr.bf16.mxu0 0
    %1530 = vmatpush2.bf16.msra.mxu0 0
    %1531 = vmatprep.subr.bf16.mxu0 0
    %1532 = vmatpush2.bf16.msra.mxu0 0
    %1533 = vmatprep.mubr.bf16.mxu0 0
    %1534 = vmatmul.mubr.bf16.gmra.mxu0 %v1448
    %v1535 = vpop.f32.mrf.mxu0
    %v1536 = vadd.f32 0.0, %v1535
    %v1537 = vpop.f32.mrf.mxu0
    %v1538 = vadd.f32 0.0, %v1537
    %v1539 = vpop.f32.mrf.mxu0
    %v1540 = vadd.f32 0.0, %v1539
    %v1541 = vpop.f32.mrf.mxu0
    %v1542 = vadd.f32 0.0, %v1541
    %1543 = vmatprep.mubr.bf16.mxu0 0
    %1544 = vmatmul.mubr.bf16.gmra.mxu0 %v1451
    %v1545 = vpop.f32.mrf.mxu0
    %v1546 = vadd.f32 0.0, %v1545
    %v1547 = vpop.f32.mrf.mxu0
    %v1548 = vadd.f32 0.0, %v1547
    %v1549 = vpop.f32.mrf.mxu0
    %v1550 = vadd.f32 0.0, %v1549
    %v1551 = vpop.f32.mrf.mxu0
    %v1552 = vadd.f32 0.0, %v1551
    %1553 = vmatprep.mubr.bf16.mxu0 0
    %1554 = vmatmul.mubr.bf16.gmra.mxu0 %v1454
    %v1555 = vpop.f32.mrf.mxu0
    %v1556 = vadd.f32 0.0, %v1555
    %v1557 = vpop.f32.mrf.mxu0
    %v1558 = vadd.f32 0.0, %v1557
    %v1559 = vpop.f32.mrf.mxu0
    %v1560 = vadd.f32 0.0, %v1559
    %v1561 = vpop.f32.mrf.mxu0
    %v1562 = vadd.f32 0.0, %v1561
    %1563 = vmatprep.mubr.bf16.mxu0 0
    %1564 = vmatmul.mubr.bf16.gmra.mxu0 %v1457
    %v1565 = vpop.f32.mrf.mxu0
    %v1566 = vadd.f32 0.0, %v1565
    %v1567 = vpop.f32.mrf.mxu0
    %v1568 = vadd.f32 0.0, %v1567
    %v1569 = vpop.f32.mrf.mxu0
    %v1570 = vadd.f32 0.0, %v1569
    %v1571 = vpop.f32.mrf.mxu0
    %v1572 = vadd.f32 0.0, %v1571
    %1573 = vmatprep.mubr.bf16.mxu0 0
    %1574 = vmatmul.mubr.bf16.gmra.mxu0 %v1460
    %v1575 = vpop.f32.mrf.mxu0
    %v1576 = vadd.f32 0.0, %v1575
    %v1577 = vpop.f32.mrf.mxu0
    %v1578 = vadd.f32 0.0, %v1577
    %v1579 = vpop.f32.mrf.mxu0
    %v1580 = vadd.f32 0.0, %v1579
    %v1581 = vpop.f32.mrf.mxu0
    %v1582 = vadd.f32 0.0, %v1581
    %1583 = vmatprep.mubr.bf16.mxu0 0
    %1584 = vmatmul.mubr.bf16.gmra.mxu0 %v1463
    %v1585 = vpop.f32.mrf.mxu0
    %v1586 = vadd.f32 0.0, %v1585
    %v1587 = vpop.f32.mrf.mxu0
    %v1588 = vadd.f32 0.0, %v1587
    %v1589 = vpop.f32.mrf.mxu0
    %v1590 = vadd.f32 0.0, %v1589
    %v1591 = vpop.f32.mrf.mxu0
    %v1592 = vadd.f32 0.0, %v1591
    %1593 = vmatprep.mubr.bf16.mxu0 0
    %1594 = vmatmul.mubr.bf16.gmra.mxu0 %v1466
    %v1595 = vpop.f32.mrf.mxu0
    %v1596 = vadd.f32 0.0, %v1595
    %v1597 = vpop.f32.mrf.mxu0
    %v1598 = vadd.f32 0.0, %v1597
    %v1599 = vpop.f32.mrf.mxu0
    %v1600 = vadd.f32 0.0, %v1599
    %v1601 = vpop.f32.mrf.mxu0
    %v1602 = vadd.f32 0.0, %v1601
    %1603 = vmatprep.mubr.bf16.mxu0 0
    %1604 = vmatmul.mubr.bf16.gmra.mxu0 %v1469
    %v1605 = vpop.f32.mrf.mxu0
    %v1606 = vadd.f32 0.0, %v1605
    %v1607 = vpop.f32.mrf.mxu0
    %v1608 = vadd.f32 0.0, %v1607
    %v1609 = vpop.f32.mrf.mxu0
    %v1610 = vadd.f32 0.0, %v1609
    %v1611 = vpop.f32.mrf.mxu0
    %v1612 = vadd.f32 0.0, %v1611
    %1613 = vmatprep.mubr.bf16.mxu0 0
    %1614 = vmatmul.mubr.bf16.gmra.mxu0 %v1472
    %v1615 = vpop.f32.mrf.mxu0
    %v1616 = vadd.f32 0.0, %v1615
    %v1617 = vpop.f32.mrf.mxu0
    %v1618 = vadd.f32 0.0, %v1617
    %v1619 = vpop.f32.mrf.mxu0
    %v1620 = vadd.f32 0.0, %v1619
    %v1621 = vpop.f32.mrf.mxu0
    %v1622 = vadd.f32 0.0, %v1621
    %1623 = vmatprep.mubr.bf16.mxu0 0
    %1624 = vmatmul.mubr.bf16.gmra.mxu0 %v1475
    %v1625 = vpop.f32.mrf.mxu0
    %v1626 = vadd.f32 0.0, %v1625
    %v1627 = vpop.f32.mrf.mxu0
    %v1628 = vadd.f32 0.0, %v1627
    %v1629 = vpop.f32.mrf.mxu0
    %v1630 = vadd.f32 0.0, %v1629
    %v1631 = vpop.f32.mrf.mxu0
    %v1632 = vadd.f32 0.0, %v1631
    %1633 = vmatprep.mubr.bf16.mxu0 0
    %1634 = vmatmul.mubr.bf16.gmra.mxu0 %v1478
    %v1635 = vpop.f32.mrf.mxu0
    %v1636 = vadd.f32 0.0, %v1635
    %v1637 = vpop.f32.mrf.mxu0
    %v1638 = vadd.f32 0.0, %v1637
    %v1639 = vpop.f32.mrf.mxu0
    %v1640 = vadd.f32 0.0, %v1639
    %v1641 = vpop.f32.mrf.mxu0
    %v1642 = vadd.f32 0.0, %v1641
    %1643 = vmatprep.mubr.bf16.mxu0 0
    %1644 = vmatmul.mubr.bf16.gmra.mxu0 %v1481
    %v1645 = vpop.f32.mrf.mxu0
    %v1646 = vadd.f32 0.0, %v1645
    %v1647 = vpop.f32.mrf.mxu0
    %v1648 = vadd.f32 0.0, %v1647
    %v1649 = vpop.f32.mrf.mxu0
    %v1650 = vadd.f32 0.0, %v1649
    %v1651 = vpop.f32.mrf.mxu0
    %v1652 = vadd.f32 0.0, %v1651
    %1653 = vdwg.mxu0
    %1654 = vmatprep.subr.bf16.mxu0 0
    %1655 = vmatpush1.bf16.msra.mxu0 0
    %1656 = vmatprep.subr.bf16.mxu0 0
    %1657 = vmatpush1.bf16.msra.mxu0 0
    %1658 = vmatprep.subr.bf16.mxu0 0
    %1659 = vmatpush1.bf16.msra.mxu0 0
    %1660 = vmatprep.subr.bf16.mxu0 0
    %1661 = vmatpush1.bf16.msra.mxu0 0
    %1662 = vmatprep.subr.bf16.mxu0 0
    %1663 = vmatpush1.bf16.msra.mxu0 0
    %1664 = vmatprep.subr.bf16.mxu0 0
    %1665 = vmatpush1.bf16.msra.mxu0 0
    %1666 = vmatprep.subr.bf16.mxu0 %v1493
    %1667 = vmatpush1.bf16.msra.mxu0 %v1490
    %1668 = vmatprep.subr.bf16.mxu0 %v1432
    %1669 = vmatpush1.bf16.msra.mxu0 %v1431
    %1670 = vmatprep.subr.bf16.mxu0 0
    %1671 = vmatpush2.bf16.msra.mxu0 0
    %1672 = vmatprep.subr.bf16.mxu0 0
    %1673 = vmatpush2.bf16.msra.mxu0 0
    %1674 = vmatprep.subr.bf16.mxu0 0
    %1675 = vmatpush2.bf16.msra.mxu0 0
    %1676 = vmatprep.subr.bf16.mxu0 0
    %1677 = vmatpush2.bf16.msra.mxu0 0
    %1678 = vmatprep.subr.bf16.mxu0 0
    %1679 = vmatpush2.bf16.msra.mxu0 0
    %1680 = vmatprep.subr.bf16.mxu0 0
    %1681 = vmatpush2.bf16.msra.mxu0 0
    %1682 = vmatprep.subr.bf16.mxu0 0
    %1683 = vmatpush2.bf16.msra.mxu0 0
    %1684 = vmatprep.subr.bf16.mxu0 0
    %1685 = vmatpush2.bf16.msra.mxu0 0
    %1686 = vmatprep.mubr.bf16.mxu0 0
    %1687 = vmatmul.mubr.bf16.gmra.mxu0 %v1448
    %v1688 = vpop.f32.mrf.mxu0
    %v1689 = vadd.f32 0.0, %v1688
    %v1690 = vpop.f32.mrf.mxu0
    %v1691 = vadd.f32 0.0, %v1690
    %v1692 = vpop.f32.mrf.mxu0
    %v1693 = vadd.f32 0.0, %v1692
    %v1694 = vpop.f32.mrf.mxu0
    %v1695 = vadd.f32 0.0, %v1694
    %1696 = vmatprep.mubr.bf16.mxu0 0
    %1697 = vmatmul.mubr.bf16.gmra.mxu0 %v1451
    %v1698 = vpop.f32.mrf.mxu0
    %v1699 = vadd.f32 0.0, %v1698
    %v1700 = vpop.f32.mrf.mxu0
    %v1701 = vadd.f32 0.0, %v1700
    %v1702 = vpop.f32.mrf.mxu0
    %v1703 = vadd.f32 0.0, %v1702
    %v1704 = vpop.f32.mrf.mxu0
    %v1705 = vadd.f32 0.0, %v1704
    %1706 = vmatprep.mubr.bf16.mxu0 0
    %1707 = vmatmul.mubr.bf16.gmra.mxu0 %v1454
    %v1708 = vpop.f32.mrf.mxu0
    %v1709 = vadd.f32 0.0, %v1708
    %v1710 = vpop.f32.mrf.mxu0
    %v1711 = vadd.f32 0.0, %v1710
    %v1712 = vpop.f32.mrf.mxu0
    %v1713 = vadd.f32 0.0, %v1712
    %v1714 = vpop.f32.mrf.mxu0
    %v1715 = vadd.f32 0.0, %v1714
    %1716 = vmatprep.mubr.bf16.mxu0 0
    %1717 = vmatmul.mubr.bf16.gmra.mxu0 %v1457
    %v1718 = vpop.f32.mrf.mxu0
    %v1719 = vadd.f32 0.0, %v1718
    %v1720 = vpop.f32.mrf.mxu0
    %v1721 = vadd.f32 0.0, %v1720
    %v1722 = vpop.f32.mrf.mxu0
    %v1723 = vadd.f32 0.0, %v1722
    %v1724 = vpop.f32.mrf.mxu0
    %v1725 = vadd.f32 0.0, %v1724
    %1726 = vmatprep.mubr.bf16.mxu0 0
    %1727 = vmatmul.mubr.bf16.gmra.mxu0 %v1460
    %v1728 = vpop.f32.mrf.mxu0
    %v1729 = vadd.f32 0.0, %v1728
    %v1730 = vpop.f32.mrf.mxu0
    %v1731 = vadd.f32 0.0, %v1730
    %v1732 = vpop.f32.mrf.mxu0
    %v1733 = vadd.f32 0.0, %v1732
    %v1734 = vpop.f32.mrf.mxu0
    %v1735 = vadd.f32 0.0, %v1734
    %1736 = vmatprep.mubr.bf16.mxu0 0
    %1737 = vmatmul.mubr.bf16.gmra.mxu0 %v1463
    %v1738 = vpop.f32.mrf.mxu0
    %v1739 = vadd.f32 0.0, %v1738
    %v1740 = vpop.f32.mrf.mxu0
    %v1741 = vadd.f32 0.0, %v1740
    %v1742 = vpop.f32.mrf.mxu0
    %v1743 = vadd.f32 0.0, %v1742
    %v1744 = vpop.f32.mrf.mxu0
    %v1745 = vadd.f32 0.0, %v1744
    %1746 = vmatprep.mubr.bf16.mxu0 0
    %1747 = vmatmul.mubr.bf16.gmra.mxu0 %v1466
    %v1748 = vpop.f32.mrf.mxu0
    %v1749 = vadd.f32 0.0, %v1748
    %v1750 = vpop.f32.mrf.mxu0
    %v1751 = vadd.f32 0.0, %v1750
    %v1752 = vpop.f32.mrf.mxu0
    %v1753 = vadd.f32 0.0, %v1752
    %v1754 = vpop.f32.mrf.mxu0
    %v1755 = vadd.f32 0.0, %v1754
    %1756 = vmatprep.mubr.bf16.mxu0 0
    %1757 = vmatmul.mubr.bf16.gmra.mxu0 %v1469
    %v1758 = vpop.f32.mrf.mxu0
    %v1759 = vadd.f32 0.0, %v1758
    %v1760 = vpop.f32.mrf.mxu0
    %v1761 = vadd.f32 0.0, %v1760
    %v1762 = vpop.f32.mrf.mxu0
    %v1763 = vadd.f32 0.0, %v1762
    %v1764 = vpop.f32.mrf.mxu0
    %v1765 = vadd.f32 0.0, %v1764
    %1766 = vmatprep.mubr.bf16.mxu0 0
    %1767 = vmatmul.mubr.bf16.gmra.mxu0 %v1472
    %v1768 = vpop.f32.mrf.mxu0
    %v1769 = vadd.f32 0.0, %v1768
    %v1770 = vpop.f32.mrf.mxu0
    %v1771 = vadd.f32 0.0, %v1770
    %v1772 = vpop.f32.mrf.mxu0
    %v1773 = vadd.f32 0.0, %v1772
    %v1774 = vpop.f32.mrf.mxu0
    %v1775 = vadd.f32 0.0, %v1774
    %1776 = vmatprep.mubr.bf16.mxu0 0
    %1777 = vmatmul.mubr.bf16.gmra.mxu0 %v1475
    %v1778 = vpop.f32.mrf.mxu0
    %v1779 = vadd.f32 0.0, %v1778
    %v1780 = vpop.f32.mrf.mxu0
    %v1781 = vadd.f32 0.0, %v1780
    %v1782 = vpop.f32.mrf.mxu0
    %v1783 = vadd.f32 0.0, %v1782
    %v1784 = vpop.f32.mrf.mxu0
    %v1785 = vadd.f32 0.0, %v1784
    %1786 = vmatprep.mubr.bf16.mxu0 0
    %1787 = vmatmul.mubr.bf16.gmra.mxu0 %v1478
    %v1788 = vpop.f32.mrf.mxu0
    %v1789 = vadd.f32 0.0, %v1788
    %v1790 = vpop.f32.mrf.mxu0
    %v1791 = vadd.f32 0.0, %v1790
    %v1792 = vpop.f32.mrf.mxu0
    %v1793 = vadd.f32 0.0, %v1792
    %v1794 = vpop.f32.mrf.mxu0
    %v1795 = vadd.f32 0.0, %v1794
    %1796 = vmatprep.mubr.bf16.mxu0 0
    %1797 = vmatmul.mubr.bf16.gmra.mxu0 %v1481
    %v1798 = vpop.f32.mrf.mxu0
    %v1799 = vadd.f32 0.0, %v1798
    %v1800 = vpop.f32.mrf.mxu0
    %v1801 = vadd.f32 0.0, %v1800
    %v1802 = vpop.f32.mrf.mxu0
    %v1803 = vadd.f32 0.0, %v1802
    %v1804 = vpop.f32.mrf.mxu0
    %v1805 = vadd.f32 0.0, %v1804
    %1806 = vdwg.mxu0
    %1807 = vmatprep.subr.bf16.mxu0 0
    %1808 = vmatpush1.bf16.msra.mxu0 0
    %1809 = vmatprep.subr.bf16.mxu0 0
    %1810 = vmatpush1.bf16.msra.mxu0 0
    %1811 = vmatprep.subr.bf16.mxu0 0
    %1812 = vmatpush1.bf16.msra.mxu0 0
    %1813 = vmatprep.subr.bf16.mxu0 0
    %1814 = vmatpush1.bf16.msra.mxu0 0
    %1815 = vmatprep.subr.bf16.mxu0 0
    %1816 = vmatpush1.bf16.msra.mxu0 0
    %1817 = vmatprep.subr.bf16.mxu0 0
    %1818 = vmatpush1.bf16.msra.mxu0 0
    %1819 = vmatprep.subr.bf16.mxu0 %v1499
    %1820 = vmatpush1.bf16.msra.mxu0 %v1496
    %1821 = vmatprep.subr.bf16.mxu0 %v1434
    %1822 = vmatpush1.bf16.msra.mxu0 %v1433
    %1823 = vmatprep.subr.bf16.mxu0 0
    %1824 = vmatpush2.bf16.msra.mxu0 0
    %1825 = vmatprep.subr.bf16.mxu0 0
    %1826 = vmatpush2.bf16.msra.mxu0 0
    %1827 = vmatprep.subr.bf16.mxu0 0
    %1828 = vmatpush2.bf16.msra.mxu0 0
    %1829 = vmatprep.subr.bf16.mxu0 0
    %1830 = vmatpush2.bf16.msra.mxu0 0
    %1831 = vmatprep.subr.bf16.mxu0 0
    %1832 = vmatpush2.bf16.msra.mxu0 0
    %1833 = vmatprep.subr.bf16.mxu0 0
    %1834 = vmatpush2.bf16.msra.mxu0 0
    %1835 = vmatprep.subr.bf16.mxu0 0
    %1836 = vmatpush2.bf16.msra.mxu0 0
    %1837 = vmatprep.subr.bf16.mxu0 0
    %1838 = vmatpush2.bf16.msra.mxu0 0
    %1839 = vmatprep.mubr.bf16.mxu0 0
    %1840 = vmatmul.mubr.bf16.gmra.mxu0 %v1448
    %v1841 = vpop.f32.mrf.mxu0
    %v1842 = vadd.f32 0.0, %v1841
    %v1843 = vpop.f32.mrf.mxu0
    %v1844 = vadd.f32 0.0, %v1843
    %v1845 = vpop.f32.mrf.mxu0
    %v1846 = vadd.f32 0.0, %v1845
    %v1847 = vpop.f32.mrf.mxu0
    %v1848 = vadd.f32 0.0, %v1847
    %1849 = vmatprep.mubr.bf16.mxu0 0
    %1850 = vmatmul.mubr.bf16.gmra.mxu0 %v1451
    %v1851 = vpop.f32.mrf.mxu0
    %v1852 = vadd.f32 0.0, %v1851
    %v1853 = vpop.f32.mrf.mxu0
    %v1854 = vadd.f32 0.0, %v1853
    %v1855 = vpop.f32.mrf.mxu0
    %v1856 = vadd.f32 0.0, %v1855
    %v1857 = vpop.f32.mrf.mxu0
    %v1858 = vadd.f32 0.0, %v1857
    %1859 = vmatprep.mubr.bf16.mxu0 0
    %1860 = vmatmul.mubr.bf16.gmra.mxu0 %v1454
    %v1861 = vpop.f32.mrf.mxu0
    %v1862 = vadd.f32 0.0, %v1861
    %v1863 = vpop.f32.mrf.mxu0
    %v1864 = vadd.f32 0.0, %v1863
    %v1865 = vpop.f32.mrf.mxu0
    %v1866 = vadd.f32 0.0, %v1865
    %v1867 = vpop.f32.mrf.mxu0
    %v1868 = vadd.f32 0.0, %v1867
    %1869 = vmatprep.mubr.bf16.mxu0 0
    %1870 = vmatmul.mubr.bf16.gmra.mxu0 %v1457
    %v1871 = vpop.f32.mrf.mxu0
    %v1872 = vadd.f32 0.0, %v1871
    %v1873 = vpop.f32.mrf.mxu0
    %v1874 = vadd.f32 0.0, %v1873
    %v1875 = vpop.f32.mrf.mxu0
    %v1876 = vadd.f32 0.0, %v1875
    %v1877 = vpop.f32.mrf.mxu0
    %v1878 = vadd.f32 0.0, %v1877
    %1879 = vmatprep.mubr.bf16.mxu0 0
    %1880 = vmatmul.mubr.bf16.gmra.mxu0 %v1460
    %v1881 = vpop.f32.mrf.mxu0
    %v1882 = vadd.f32 0.0, %v1881
    %v1883 = vpop.f32.mrf.mxu0
    %v1884 = vadd.f32 0.0, %v1883
    %v1885 = vpop.f32.mrf.mxu0
    %v1886 = vadd.f32 0.0, %v1885
    %v1887 = vpop.f32.mrf.mxu0
    %v1888 = vadd.f32 0.0, %v1887
    %1889 = vmatprep.mubr.bf16.mxu0 0
    %1890 = vmatmul.mubr.bf16.gmra.mxu0 %v1463
    %v1891 = vpop.f32.mrf.mxu0
    %v1892 = vadd.f32 0.0, %v1891
    %v1893 = vpop.f32.mrf.mxu0
    %v1894 = vadd.f32 0.0, %v1893
    %v1895 = vpop.f32.mrf.mxu0
    %v1896 = vadd.f32 0.0, %v1895
    %v1897 = vpop.f32.mrf.mxu0
    %v1898 = vadd.f32 0.0, %v1897
    %1899 = vmatprep.mubr.bf16.mxu0 0
    %1900 = vmatmul.mubr.bf16.gmra.mxu0 %v1466
    %v1901 = vpop.f32.mrf.mxu0
    %v1902 = vadd.f32 0.0, %v1901
    %v1903 = vpop.f32.mrf.mxu0
    %v1904 = vadd.f32 0.0, %v1903
    %v1905 = vpop.f32.mrf.mxu0
    %v1906 = vadd.f32 0.0, %v1905
    %v1907 = vpop.f32.mrf.mxu0
    %v1908 = vadd.f32 0.0, %v1907
    %1909 = vmatprep.mubr.bf16.mxu0 0
    %1910 = vmatmul.mubr.bf16.gmra.mxu0 %v1469
    %v1911 = vpop.f32.mrf.mxu0
    %v1912 = vadd.f32 0.0, %v1911
    %v1913 = vpop.f32.mrf.mxu0
    %v1914 = vadd.f32 0.0, %v1913
    %v1915 = vpop.f32.mrf.mxu0
    %v1916 = vadd.f32 0.0, %v1915
    %v1917 = vpop.f32.mrf.mxu0
    %v1918 = vadd.f32 0.0, %v1917
    %1919 = vmatprep.mubr.bf16.mxu0 0
    %1920 = vmatmul.mubr.bf16.gmra.mxu0 %v1472
    %v1921 = vpop.f32.mrf.mxu0
    %v1922 = vadd.f32 0.0, %v1921
    %v1923 = vpop.f32.mrf.mxu0
    %v1924 = vadd.f32 0.0, %v1923
    %v1925 = vpop.f32.mrf.mxu0
    %v1926 = vadd.f32 0.0, %v1925
    %v1927 = vpop.f32.mrf.mxu0
    %v1928 = vadd.f32 0.0, %v1927
    %1929 = vmatprep.mubr.bf16.mxu0 0
    %1930 = vmatmul.mubr.bf16.gmra.mxu0 %v1475
    %v1931 = vpop.f32.mrf.mxu0
    %v1932 = vadd.f32 0.0, %v1931
    %v1933 = vpop.f32.mrf.mxu0
    %v1934 = vadd.f32 0.0, %v1933
    %v1935 = vpop.f32.mrf.mxu0
    %v1936 = vadd.f32 0.0, %v1935
    %v1937 = vpop.f32.mrf.mxu0
    %v1938 = vadd.f32 0.0, %v1937
    %1939 = vmatprep.mubr.bf16.mxu0 0
    %1940 = vmatmul.mubr.bf16.gmra.mxu0 %v1478
    %v1941 = vpop.f32.mrf.mxu0
    %v1942 = vadd.f32 0.0, %v1941
    %v1943 = vpop.f32.mrf.mxu0
    %v1944 = vadd.f32 0.0, %v1943
    %v1945 = vpop.f32.mrf.mxu0
    %v1946 = vadd.f32 0.0, %v1945
    %v1947 = vpop.f32.mrf.mxu0
    %v1948 = vadd.f32 0.0, %v1947
    %1949 = vmatprep.mubr.bf16.mxu0 0
    %1950 = vmatmul.mubr.bf16.gmra.mxu0 %v1481
    %v1951 = vpop.f32.mrf.mxu0
    %v1952 = vadd.f32 0.0, %v1951
    %v1953 = vpop.f32.mrf.mxu0
    %v1954 = vadd.f32 0.0, %v1953
    %v1955 = vpop.f32.mrf.mxu0
    %v1956 = vadd.f32 0.0, %v1955
    %v1957 = vpop.f32.mrf.mxu0
    %v1958 = vadd.f32 0.0, %v1957
    %1959 = vdwg.mxu0
    %v1960 = vadd.f32 %v920, %v1536
    %v1961 = vadd.f32 %v922, %v1538
    %v1962 = vadd.f32 %v1073, %v1689
    %v1963 = vadd.f32 %v1075, %v1691
    %v1964 = vadd.f32 %v1226, %v1842
    %v1965 = vadd.f32 %v1228, %v1844
    %v1966 = vadd.f32 %v924, %v1540
    %v1967 = vadd.f32 %v926, %v1542
    %v1968 = vadd.f32 %v1077, %v1693
    %v1969 = vadd.f32 %v1079, %v1695
    %v1970 = vadd.f32 %v1230, %v1846
    %v1971 = vadd.f32 %v1232, %v1848
    %v1972 = vadd.f32 %v930, %v1546
    %v1973 = vadd.f32 %v932, %v1548
    %v1974 = vadd.f32 %v1083, %v1699
    %v1975 = vadd.f32 %v1085, %v1701
    %v1976 = vadd.f32 %v1236, %v1852
    %v1977 = vadd.f32 %v1238, %v1854
    %v1978 = vadd.f32 %v934, %v1550
    %v1979 = vadd.f32 %v936, %v1552
    %v1980 = vadd.f32 %v1087, %v1703
    %v1981 = vadd.f32 %v1089, %v1705
    %v1982 = vadd.f32 %v1240, %v1856
    %v1983 = vadd.f32 %v1242, %v1858
    %v1984 = vadd.f32 %v940, %v1556
    %v1985 = vadd.f32 %v942, %v1558
    %v1986 = vadd.f32 %v1093, %v1709
    %v1987 = vadd.f32 %v1095, %v1711
    %v1988 = vadd.f32 %v1246, %v1862
    %v1989 = vadd.f32 %v1248, %v1864
    %v1990 = vadd.f32 %v944, %v1560
    %v1991 = vadd.f32 %v946, %v1562
    %v1992 = vadd.f32 %v1097, %v1713
    %v1993 = vadd.f32 %v1099, %v1715
    %v1994 = vadd.f32 %v1250, %v1866
    %v1995 = vadd.f32 %v1252, %v1868
    %v1996 = vadd.f32 %v950, %v1566
    %v1997 = vadd.f32 %v952, %v1568
    %v1998 = vadd.f32 %v1103, %v1719
    %v1999 = vadd.f32 %v1105, %v1721
    %v2000 = vadd.f32 %v1256, %v1872
    %v2001 = vadd.f32 %v1258, %v1874
    %v2002 = vadd.f32 %v954, %v1570
    %v2003 = vadd.f32 %v956, %v1572
    %v2004 = vadd.f32 %v1107, %v1723
    %v2005 = vadd.f32 %v1109, %v1725
    %v2006 = vadd.f32 %v1260, %v1876
    %v2007 = vadd.f32 %v1262, %v1878
    %v2008 = vadd.f32 %v960, %v1576
    %v2009 = vadd.f32 %v962, %v1578
    %v2010 = vadd.f32 %v1113, %v1729
    %v2011 = vadd.f32 %v1115, %v1731
    %v2012 = vadd.f32 %v1266, %v1882
    %v2013 = vadd.f32 %v1268, %v1884
    %v2014 = vadd.f32 %v964, %v1580
    %v2015 = vadd.f32 %v966, %v1582
    %v2016 = vadd.f32 %v1117, %v1733
    %v2017 = vadd.f32 %v1119, %v1735
    %v2018 = vadd.f32 %v1270, %v1886
    %v2019 = vadd.f32 %v1272, %v1888
    %v2020 = vadd.f32 %v970, %v1586
    %v2021 = vadd.f32 %v972, %v1588
    %v2022 = vadd.f32 %v1123, %v1739
    %v2023 = vadd.f32 %v1125, %v1741
    %v2024 = vadd.f32 %v1276, %v1892
    %v2025 = vadd.f32 %v1278, %v1894
    %v2026 = vadd.f32 %v974, %v1590
    %v2027 = vadd.f32 %v976, %v1592
    %v2028 = vadd.f32 %v1127, %v1743
    %v2029 = vadd.f32 %v1129, %v1745
    %v2030 = vadd.f32 %v1280, %v1896
    %v2031 = vadd.f32 %v1282, %v1898
    %v2032 = vadd.f32 %v980, %v1596
    %v2033 = vadd.f32 %v982, %v1598
    %v2034 = vadd.f32 %v1133, %v1749
    %v2035 = vadd.f32 %v1135, %v1751
    %v2036 = vadd.f32 %v1286, %v1902
    %v2037 = vadd.f32 %v1288, %v1904
    %v2038 = vadd.f32 %v984, %v1600
    %v2039 = vadd.f32 %v986, %v1602
    %v2040 = vadd.f32 %v1137, %v1753
    %v2041 = vadd.f32 %v1139, %v1755
    %v2042 = vadd.f32 %v1290, %v1906
    %v2043 = vadd.f32 %v1292, %v1908
    %v2044 = vadd.f32 %v990, %v1606
    %v2045 = vadd.f32 %v992, %v1608
    %v2046 = vadd.f32 %v1143, %v1759
    %v2047 = vadd.f32 %v1145, %v1761
    %v2048 = vadd.f32 %v1296, %v1912
    %v2049 = vadd.f32 %v1298, %v1914
    %v2050 = vadd.f32 %v994, %v1610
    %v2051 = vadd.f32 %v996, %v1612
    %v2052 = vadd.f32 %v1147, %v1763
    %v2053 = vadd.f32 %v1149, %v1765
    %v2054 = vadd.f32 %v1300, %v1916
    %v2055 = vadd.f32 %v1302, %v1918
    %v2056 = vadd.f32 %v1000, %v1616
    %v2057 = vadd.f32 %v1002, %v1618
    %v2058 = vadd.f32 %v1153, %v1769
    %v2059 = vadd.f32 %v1155, %v1771
    %v2060 = vadd.f32 %v1306, %v1922
    %v2061 = vadd.f32 %v1308, %v1924
    %v2062 = vadd.f32 %v1004, %v1620
    %v2063 = vadd.f32 %v1006, %v1622
    %v2064 = vadd.f32 %v1157, %v1773
    %v2065 = vadd.f32 %v1159, %v1775
    %v2066 = vadd.f32 %v1310, %v1926
    %v2067 = vadd.f32 %v1312, %v1928
    %v2068 = vadd.f32 %v1010, %v1626
    %v2069 = vadd.f32 %v1012, %v1628
    %v2070 = vadd.f32 %v1163, %v1779
    %v2071 = vadd.f32 %v1165, %v1781
    %v2072 = vadd.f32 %v1316, %v1932
    %v2073 = vadd.f32 %v1318, %v1934
    %v2074 = vadd.f32 %v1014, %v1630
    %v2075 = vadd.f32 %v1016, %v1632
    %v2076 = vadd.f32 %v1167, %v1783
    %v2077 = vadd.f32 %v1169, %v1785
    %v2078 = vadd.f32 %v1320, %v1936
    %v2079 = vadd.f32 %v1322, %v1938
    %v2080 = vadd.f32 %v1020, %v1636
    %v2081 = vadd.f32 %v1022, %v1638
    %v2082 = vadd.f32 %v1173, %v1789
    %v2083 = vadd.f32 %v1175, %v1791
    %v2084 = vadd.f32 %v1326, %v1942
    %v2085 = vadd.f32 %v1328, %v1944
    %v2086 = vadd.f32 %v1024, %v1640
    %v2087 = vadd.f32 %v1026, %v1642
    %v2088 = vadd.f32 %v1177, %v1793
    %v2089 = vadd.f32 %v1179, %v1795
    %v2090 = vadd.f32 %v1330, %v1946
    %v2091 = vadd.f32 %v1332, %v1948
    %v2092 = vadd.f32 %v1030, %v1646
    %v2093 = vadd.f32 %v1032, %v1648
    %v2094 = vadd.f32 %v1183, %v1799
    %v2095 = vadd.f32 %v1185, %v1801
    %v2096 = vadd.f32 %v1336, %v1952
    %v2097 = vadd.f32 %v1338, %v1954
    %v2098 = vadd.f32 %v1034, %v1650
    %v2099 = vadd.f32 %v1036, %v1652
    %v2100 = vadd.f32 %v1187, %v1803
    %v2101 = vadd.f32 %v1189, %v1805
    %v2102 = vadd.f32 %v1340, %v1956
    %v2103 = vadd.f32 %v1342, %v1958
    %v2104 = vld [vmem:[%s0 + $0x18] sm:$0xff]
    %v2105 = vld [vmem:[%s0 + $0x20] sm:$0xff]
    %v2106 = vld [vmem:[%s0 + $0x28] sm:$0xff]
    %v2107 = vld [vmem:[%s0 + $0x30] sm:$0xff]
    %v2108 = vld [vmem:[%s0 + $0x38] sm:$0xff]
    %v2109 = vld [vmem:[%s0 + $0x40] sm:$0xff]
    %v2110 = vld [vmem:[%s0 + $0x48] sm:$0xff]
    %v2111 = vld [vmem:[%s0 + $0x50] sm:$0xff]
    %v2112 = vld [vmem:[%s0 + $0x58] sm:$0xff]
    %v2113 = vld [vmem:[%s0 + $0x60] sm:$0xff]
    %v2114 = vld [vmem:[%s0 + $0x68] sm:$0xff]
    %v2115 = vld [vmem:[%s0 + $0x70] sm:$0xff]
    %v2116 = vld [vmem:[%s0 + $0x78] sm:$0xff]
    %v2117 = vld [vmem:[%s0 + $0x80] sm:$0xff]
    %v2118 = vld [vmem:[%s0 + $0x88] sm:$0xff]
    %v2119 = vld [vmem:[%s0 + $0x90] sm:$0xff]
    %v2120 = vld [vmem:[%s0 + $0x98] sm:$0xff]
    %v2121 = vld [vmem:[%s0 + $0xa0] sm:$0xff]
    %v2122 = vld [vmem:[%s0 + $0xa8] sm:$0xff]
    %v2123 = vld [vmem:[%s0 + $0xb0] sm:$0xff]
    %v2124 = vld [vmem:[%s0 + $0xb8] sm:$0xff]
    %v2125 = vld [vmem:[%s0 + $0xc0] sm:$0xff]
    %v2126 = vld [vmem:[%s0 + $0xc8] sm:$0xff]
    %v2127 = vld [vmem:[%s0 + $0xd0] sm:$0xff]
    %v2128 = vpack.c.bf16 %v2105, %v2104
    %v2129 = vpack.c.bf16 %v2107, %v2106
    %v2130 = vpack.c.bf16 %v2109, %v2108
    %v2131 = vpack.c.bf16 %v2111, %v2110
    %v2132 = vpack.c.bf16 %v2113, %v2112
    %v2133 = vpack.c.bf16 %v2115, %v2114
    %v2134 = vpack.c.bf16 %v2117, %v2116
    %v2135 = vpack.c.bf16 %v2119, %v2118
    %v2136 = vpack.c.bf16 %v2121, %v2120
    %v2137 = vpack.c.bf16 %v2123, %v2122
    %v2138 = vpack.c.bf16 %v2125, %v2124
    %v2139 = vpack.c.bf16 %v2127, %v2126
    %s2140 = scalar_lea.vmem [#allocation3], 288
    %v2141 = vld [vmem:[%s2140] sm:$0xff]
    %v2142 = vld [vmem:[%s2140 + $0x8] sm:$0xff]
    %v2143 = vld [vmem:[%s2140 + $0x10] sm:$0xff]
    %v2144 = vld [vmem:[%s2140 + $0x18] sm:$0xff]
    %v2145 = vld [vmem:[%s2140 + $0x20] sm:$0xff]
    %v2146 = vld [vmem:[%s2140 + $0x28] sm:$0xff]
    %v2147 = vld [vmem:[%s2140 + $0x30] sm:$0xff]
    %v2148 = vld [vmem:[%s2140 + $0x38] sm:$0xff]
    %v2149 = vld [vmem:[%s2140 + $0x40] sm:$0xff]
    %v2150 = vld [vmem:[%s2140 + $0x48] sm:$0x33]
    %v2151 = vld [vmem:[%s2140 + $0x50] sm:$0x33]
    %v2152 = vld [vmem:[%s2140 + $0x58] sm:$0x33]
    %v2165 = vunpack.c.l.b16 %v2141
    %v2166 = vunpack.c.h.b16 %v2141
    %v2167 = vunpack.c.l.b16 %v2142
    %v2168 = vunpack.c.h.b16 %v2142
    %v2169 = vunpack.c.l.b16 %v2143
    %v2170 = vunpack.c.h.b16 %v2143
    %v2171 = vunpack.c.l.b16 %v2144
    %v2172 = vunpack.c.h.b16 %v2144
    %v2173 = vunpack.c.l.b16 %v2145
    %v2174 = vunpack.c.h.b16 %v2145
    %v2175 = vunpack.c.l.b16 %v2146
    %v2176 = vunpack.c.h.b16 %v2146
    %v2177 = vunpack.c.l.b16 %v2147
    %v2178 = vunpack.c.h.b16 %v2147
    %v2179 = vunpack.c.l.b16 %v2148
    %v2180 = vunpack.c.h.b16 %v2148
    %v2181 = vunpack.c.l.b16 %v2149
    %v2182 = vunpack.c.h.b16 %v2149
    %v2183 = vunpack.c.l.b16 %v2150
    %v2184 = vunpack.c.h.b16 %v2150
    %v2185 = vunpack.c.l.b16 %v2151
    %v2186 = vunpack.c.h.b16 %v2151
    %v2187 = vunpack.c.l.b16 %v2152
    %v2188 = vunpack.c.h.b16 %v2152
    %v2189 = vpack.c.b16 %v2171, %v2165
    %v2190 = vpack.c.b16 %v2172, %v2166
    %v2191 = vpack.c.b16 %v2173, %v2167
    %v2192 = vpack.c.b16 %v2174, %v2168
    %v2193 = vpack.c.b16 %v2175, %v2169
    %v2194 = vpack.c.b16 %v2176, %v2170
    %v2195 = vpack.c.b16 %v2183, %v2177
    %v2196 = vpack.c.b16 %v2184, %v2178
    %v2197 = vpack.c.b16 %v2185, %v2179
    %v2198 = vpack.c.b16 %v2186, %v2180
    %v2199 = vpack.c.b16 %v2187, %v2181
    %v2200 = vpack.c.b16 %v2188, %v2182
    %v2208 = vsel %vm262, %v2128, 0
    %v2211 = vsel %vm262, %v2129, 0
    %v2214 = vsel %vm262, %v2130, 0
    %v2217 = vsel %vm262, %v2131, 0
    %v2220 = vsel %vm262, %v2132, 0
    %v2223 = vsel %vm262, %v2133, 0
    %v2226 = vsel %vm262, %v2134, 0
    %v2229 = vsel %vm262, %v2135, 0
    %v2232 = vsel %vm262, %v2136, 0
    %v2235 = vsel %vm262, %v2137, 0
    %v2238 = vsel %vm262, %v2138, 0
    %v2241 = vsel %vm262, %v2139, 0
    %v2244 = vsel %vm299, %v2195, 0
    %v2247 = vsel %vm299, %v2196, 0
    %v2250 = vsel %vm299, %v2197, 0
    %v2253 = vsel %vm299, %v2198, 0
    %v2256 = vsel %vm299, %v2199, 0
    %v2259 = vsel %vm299, %v2200, 0
    %2261 = vmatprep.subr.bf16.mxu0 0
    %2262 = vmatpush1.bf16.msra.mxu0 0
    %2263 = vmatprep.subr.bf16.mxu0 0
    %2264 = vmatpush1.bf16.msra.mxu0 0
    %2265 = vmatprep.subr.bf16.mxu0 0
    %2266 = vmatpush1.bf16.msra.mxu0 0
    %2267 = vmatprep.subr.bf16.mxu0 0
    %2268 = vmatpush1.bf16.msra.mxu0 0
    %2269 = vmatprep.subr.bf16.mxu0 0
    %2270 = vmatpush1.bf16.msra.mxu0 0
    %2271 = vmatprep.subr.bf16.mxu0 0
    %2272 = vmatpush1.bf16.msra.mxu0 0
    %2273 = vmatprep.subr.bf16.mxu0 %v2247
    %2274 = vmatpush1.bf16.msra.mxu0 %v2244
    %2275 = vmatprep.subr.bf16.mxu0 %v2190
    %2276 = vmatpush1.bf16.msra.mxu0 %v2189
    %2277 = vmatprep.subr.bf16.mxu0 0
    %2278 = vmatpush2.bf16.msra.mxu0 0
    %2279 = vmatprep.subr.bf16.mxu0 0
    %2280 = vmatpush2.bf16.msra.mxu0 0
    %2281 = vmatprep.subr.bf16.mxu0 0
    %2282 = vmatpush2.bf16.msra.mxu0 0
    %2283 = vmatprep.subr.bf16.mxu0 0
    %2284 = vmatpush2.bf16.msra.mxu0 0
    %2285 = vmatprep.subr.bf16.mxu0 0
    %2286 = vmatpush2.bf16.msra.mxu0 0
    %2287 = vmatprep.subr.bf16.mxu0 0
    %2288 = vmatpush2.bf16.msra.mxu0 0
    %2289 = vmatprep.subr.bf16.mxu0 0
    %2290 = vmatpush2.bf16.msra.mxu0 0
    %2291 = vmatprep.subr.bf16.mxu0 0
    %2292 = vmatpush2.bf16.msra.mxu0 0
    %2293 = vmatprep.mubr.bf16.mxu0 0
    %2294 = vmatmul.mubr.bf16.gmra.mxu0 %v2208
    %v2295 = vpop.f32.mrf.mxu0
    %v2296 = vadd.f32 0.0, %v2295
    %v2297 = vpop.f32.mrf.mxu0
    %v2298 = vadd.f32 0.0, %v2297
    %v2299 = vpop.f32.mrf.mxu0
    %v2300 = vadd.f32 0.0, %v2299
    %v2301 = vpop.f32.mrf.mxu0
    %v2302 = vadd.f32 0.0, %v2301
    %2303 = vmatprep.mubr.bf16.mxu0 0
    %2304 = vmatmul.mubr.bf16.gmra.mxu0 %v2211
    %v2305 = vpop.f32.mrf.mxu0
    %v2306 = vadd.f32 0.0, %v2305
    %v2307 = vpop.f32.mrf.mxu0
    %v2308 = vadd.f32 0.0, %v2307
    %v2309 = vpop.f32.mrf.mxu0
    %v2310 = vadd.f32 0.0, %v2309
    %v2311 = vpop.f32.mrf.mxu0
    %v2312 = vadd.f32 0.0, %v2311
    %2313 = vmatprep.mubr.bf16.mxu0 0
    %2314 = vmatmul.mubr.bf16.gmra.mxu0 %v2214
    %v2315 = vpop.f32.mrf.mxu0
    %v2316 = vadd.f32 0.0, %v2315
    %v2317 = vpop.f32.mrf.mxu0
    %v2318 = vadd.f32 0.0, %v2317
    %v2319 = vpop.f32.mrf.mxu0
    %v2320 = vadd.f32 0.0, %v2319
    %v2321 = vpop.f32.mrf.mxu0
    %v2322 = vadd.f32 0.0, %v2321
    %2323 = vmatprep.mubr.bf16.mxu0 0
    %2324 = vmatmul.mubr.bf16.gmra.mxu0 %v2217
    %v2325 = vpop.f32.mrf.mxu0
    %v2326 = vadd.f32 0.0, %v2325
    %v2327 = vpop.f32.mrf.mxu0
    %v2328 = vadd.f32 0.0, %v2327
    %v2329 = vpop.f32.mrf.mxu0
    %v2330 = vadd.f32 0.0, %v2329
    %v2331 = vpop.f32.mrf.mxu0
    %v2332 = vadd.f32 0.0, %v2331
    %2333 = vmatprep.mubr.bf16.mxu0 0
    %2334 = vmatmul.mubr.bf16.gmra.mxu0 %v2220
    %v2335 = vpop.f32.mrf.mxu0
    %v2336 = vadd.f32 0.0, %v2335
    %v2337 = vpop.f32.mrf.mxu0
    %v2338 = vadd.f32 0.0, %v2337
    %v2339 = vpop.f32.mrf.mxu0
    %v2340 = vadd.f32 0.0, %v2339
    %v2341 = vpop.f32.mrf.mxu0
    %v2342 = vadd.f32 0.0, %v2341
    %2343 = vmatprep.mubr.bf16.mxu0 0
    %2344 = vmatmul.mubr.bf16.gmra.mxu0 %v2223
    %v2345 = vpop.f32.mrf.mxu0
    %v2346 = vadd.f32 0.0, %v2345
    %v2347 = vpop.f32.mrf.mxu0
    %v2348 = vadd.f32 0.0, %v2347
    %v2349 = vpop.f32.mrf.mxu0
    %v2350 = vadd.f32 0.0, %v2349
    %v2351 = vpop.f32.mrf.mxu0
    %v2352 = vadd.f32 0.0, %v2351
    %2353 = vmatprep.mubr.bf16.mxu0 0
    %2354 = vmatmul.mubr.bf16.gmra.mxu0 %v2226
    %v2355 = vpop.f32.mrf.mxu0
    %v2356 = vadd.f32 0.0, %v2355
    %v2357 = vpop.f32.mrf.mxu0
    %v2358 = vadd.f32 0.0, %v2357
    %v2359 = vpop.f32.mrf.mxu0
    %v2360 = vadd.f32 0.0, %v2359
    %v2361 = vpop.f32.mrf.mxu0
    %v2362 = vadd.f32 0.0, %v2361
    %2363 = vmatprep.mubr.bf16.mxu0 0
    %2364 = vmatmul.mubr.bf16.gmra.mxu0 %v2229
    %v2365 = vpop.f32.mrf.mxu0
    %v2366 = vadd.f32 0.0, %v2365
    %v2367 = vpop.f32.mrf.mxu0
    %v2368 = vadd.f32 0.0, %v2367
    %v2369 = vpop.f32.mrf.mxu0
    %v2370 = vadd.f32 0.0, %v2369
    %v2371 = vpop.f32.mrf.mxu0
    %v2372 = vadd.f32 0.0, %v2371
    %2373 = vmatprep.mubr.bf16.mxu0 0
    %2374 = vmatmul.mubr.bf16.gmra.mxu0 %v2232
    %v2375 = vpop.f32.mrf.mxu0
    %v2376 = vadd.f32 0.0, %v2375
    %v2377 = vpop.f32.mrf.mxu0
    %v2378 = vadd.f32 0.0, %v2377
    %v2379 = vpop.f32.mrf.mxu0
    %v2380 = vadd.f32 0.0, %v2379
    %v2381 = vpop.f32.mrf.mxu0
    %v2382 = vadd.f32 0.0, %v2381
    %2383 = vmatprep.mubr.bf16.mxu0 0
    %2384 = vmatmul.mubr.bf16.gmra.mxu0 %v2235
    %v2385 = vpop.f32.mrf.mxu0
    %v2386 = vadd.f32 0.0, %v2385
    %v2387 = vpop.f32.mrf.mxu0
    %v2388 = vadd.f32 0.0, %v2387
    %v2389 = vpop.f32.mrf.mxu0
    %v2390 = vadd.f32 0.0, %v2389
    %v2391 = vpop.f32.mrf.mxu0
    %v2392 = vadd.f32 0.0, %v2391
    %2393 = vmatprep.mubr.bf16.mxu0 0
    %2394 = vmatmul.mubr.bf16.gmra.mxu0 %v2238
    %v2395 = vpop.f32.mrf.mxu0
    %v2396 = vadd.f32 0.0, %v2395
    %v2397 = vpop.f32.mrf.mxu0
    %v2398 = vadd.f32 0.0, %v2397
    %v2399 = vpop.f32.mrf.mxu0
    %v2400 = vadd.f32 0.0, %v2399
    %v2401 = vpop.f32.mrf.mxu0
    %v2402 = vadd.f32 0.0, %v2401
    %2403 = vmatprep.mubr.bf16.mxu0 0
    %2404 = vmatmul.mubr.bf16.gmra.mxu0 %v2241
    %v2405 = vpop.f32.mrf.mxu0
    %v2406 = vadd.f32 0.0, %v2405
    %v2407 = vpop.f32.mrf.mxu0
    %v2408 = vadd.f32 0.0, %v2407
    %v2409 = vpop.f32.mrf.mxu0
    %v2410 = vadd.f32 0.0, %v2409
    %v2411 = vpop.f32.mrf.mxu0
    %v2412 = vadd.f32 0.0, %v2411
    %2413 = vdwg.mxu0
    %2414 = vmatprep.subr.bf16.mxu0 0
    %2415 = vmatpush1.bf16.msra.mxu0 0
    %2416 = vmatprep.subr.bf16.mxu0 0
    %2417 = vmatpush1.bf16.msra.mxu0 0
    %2418 = vmatprep.subr.bf16.mxu0 0
    %2419 = vmatpush1.bf16.msra.mxu0 0
    %2420 = vmatprep.subr.bf16.mxu0 0
    %2421 = vmatpush1.bf16.msra.mxu0 0
    %2422 = vmatprep.subr.bf16.mxu0 0
    %2423 = vmatpush1.bf16.msra.mxu0 0
    %2424 = vmatprep.subr.bf16.mxu0 0
    %2425 = vmatpush1.bf16.msra.mxu0 0
    %2426 = vmatprep.subr.bf16.mxu0 %v2253
    %2427 = vmatpush1.bf16.msra.mxu0 %v2250
    %2428 = vmatprep.subr.bf16.mxu0 %v2192
    %2429 = vmatpush1.bf16.msra.mxu0 %v2191
    %2430 = vmatprep.subr.bf16.mxu0 0
    %2431 = vmatpush2.bf16.msra.mxu0 0
    %2432 = vmatprep.subr.bf16.mxu0 0
    %2433 = vmatpush2.bf16.msra.mxu0 0
    %2434 = vmatprep.subr.bf16.mxu0 0
    %2435 = vmatpush2.bf16.msra.mxu0 0
    %2436 = vmatprep.subr.bf16.mxu0 0
    %2437 = vmatpush2.bf16.msra.mxu0 0
    %2438 = vmatprep.subr.bf16.mxu0 0
    %2439 = vmatpush2.bf16.msra.mxu0 0
    %2440 = vmatprep.subr.bf16.mxu0 0
    %2441 = vmatpush2.bf16.msra.mxu0 0
    %2442 = vmatprep.subr.bf16.mxu0 0
    %2443 = vmatpush2.bf16.msra.mxu0 0
    %2444 = vmatprep.subr.bf16.mxu0 0
    %2445 = vmatpush2.bf16.msra.mxu0 0
    %2446 = vmatprep.mubr.bf16.mxu0 0
    %2447 = vmatmul.mubr.bf16.gmra.mxu0 %v2208
    %v2448 = vpop.f32.mrf.mxu0
    %v2449 = vadd.f32 0.0, %v2448
    %v2450 = vpop.f32.mrf.mxu0
    %v2451 = vadd.f32 0.0, %v2450
    %v2452 = vpop.f32.mrf.mxu0
    %v2453 = vadd.f32 0.0, %v2452
    %v2454 = vpop.f32.mrf.mxu0
    %v2455 = vadd.f32 0.0, %v2454
    %2456 = vmatprep.mubr.bf16.mxu0 0
    %2457 = vmatmul.mubr.bf16.gmra.mxu0 %v2211
    %v2458 = vpop.f32.mrf.mxu0
    %v2459 = vadd.f32 0.0, %v2458
    %v2460 = vpop.f32.mrf.mxu0
    %v2461 = vadd.f32 0.0, %v2460
    %v2462 = vpop.f32.mrf.mxu0
    %v2463 = vadd.f32 0.0, %v2462
    %v2464 = vpop.f32.mrf.mxu0
    %v2465 = vadd.f32 0.0, %v2464
    %2466 = vmatprep.mubr.bf16.mxu0 0
    %2467 = vmatmul.mubr.bf16.gmra.mxu0 %v2214
    %v2468 = vpop.f32.mrf.mxu0
    %v2469 = vadd.f32 0.0, %v2468
    %v2470 = vpop.f32.mrf.mxu0
    %v2471 = vadd.f32 0.0, %v2470
    %v2472 = vpop.f32.mrf.mxu0
    %v2473 = vadd.f32 0.0, %v2472
    %v2474 = vpop.f32.mrf.mxu0
    %v2475 = vadd.f32 0.0, %v2474
    %2476 = vmatprep.mubr.bf16.mxu0 0
    %2477 = vmatmul.mubr.bf16.gmra.mxu0 %v2217
    %v2478 = vpop.f32.mrf.mxu0
    %v2479 = vadd.f32 0.0, %v2478
    %v2480 = vpop.f32.mrf.mxu0
    %v2481 = vadd.f32 0.0, %v2480
    %v2482 = vpop.f32.mrf.mxu0
    %v2483 = vadd.f32 0.0, %v2482
    %v2484 = vpop.f32.mrf.mxu0
    %v2485 = vadd.f32 0.0, %v2484
    %2486 = vmatprep.mubr.bf16.mxu0 0
    %2487 = vmatmul.mubr.bf16.gmra.mxu0 %v2220
    %v2488 = vpop.f32.mrf.mxu0
    %v2489 = vadd.f32 0.0, %v2488
    %v2490 = vpop.f32.mrf.mxu0
    %v2491 = vadd.f32 0.0, %v2490
    %v2492 = vpop.f32.mrf.mxu0
    %v2493 = vadd.f32 0.0, %v2492
    %v2494 = vpop.f32.mrf.mxu0
    %v2495 = vadd.f32 0.0, %v2494
    %2496 = vmatprep.mubr.bf16.mxu0 0
    %2497 = vmatmul.mubr.bf16.gmra.mxu0 %v2223
    %v2498 = vpop.f32.mrf.mxu0
    %v2499 = vadd.f32 0.0, %v2498
    %v2500 = vpop.f32.mrf.mxu0
    %v2501 = vadd.f32 0.0, %v2500
    %v2502 = vpop.f32.mrf.mxu0
    %v2503 = vadd.f32 0.0, %v2502
    %v2504 = vpop.f32.mrf.mxu0
    %v2505 = vadd.f32 0.0, %v2504
    %2506 = vmatprep.mubr.bf16.mxu0 0
    %2507 = vmatmul.mubr.bf16.gmra.mxu0 %v2226
    %v2508 = vpop.f32.mrf.mxu0
    %v2509 = vadd.f32 0.0, %v2508
    %v2510 = vpop.f32.mrf.mxu0
    %v2511 = vadd.f32 0.0, %v2510
    %v2512 = vpop.f32.mrf.mxu0
    %v2513 = vadd.f32 0.0, %v2512
    %v2514 = vpop.f32.mrf.mxu0
    %v2515 = vadd.f32 0.0, %v2514
    %2516 = vmatprep.mubr.bf16.mxu0 0
    %2517 = vmatmul.mubr.bf16.gmra.mxu0 %v2229
    %v2518 = vpop.f32.mrf.mxu0
    %v2519 = vadd.f32 0.0, %v2518
    %v2520 = vpop.f32.mrf.mxu0
    %v2521 = vadd.f32 0.0, %v2520
    %v2522 = vpop.f32.mrf.mxu0
    %v2523 = vadd.f32 0.0, %v2522
    %v2524 = vpop.f32.mrf.mxu0
    %v2525 = vadd.f32 0.0, %v2524
    %2526 = vmatprep.mubr.bf16.mxu0 0
    %2527 = vmatmul.mubr.bf16.gmra.mxu0 %v2232
    %v2528 = vpop.f32.mrf.mxu0
    %v2529 = vadd.f32 0.0, %v2528
    %v2530 = vpop.f32.mrf.mxu0
    %v2531 = vadd.f32 0.0, %v2530
    %v2532 = vpop.f32.mrf.mxu0
    %v2533 = vadd.f32 0.0, %v2532
    %v2534 = vpop.f32.mrf.mxu0
    %v2535 = vadd.f32 0.0, %v2534
    %2536 = vmatprep.mubr.bf16.mxu0 0
    %2537 = vmatmul.mubr.bf16.gmra.mxu0 %v2235
    %v2538 = vpop.f32.mrf.mxu0
    %v2539 = vadd.f32 0.0, %v2538
    %v2540 = vpop.f32.mrf.mxu0
    %v2541 = vadd.f32 0.0, %v2540
    %v2542 = vpop.f32.mrf.mxu0
    %v2543 = vadd.f32 0.0, %v2542
    %v2544 = vpop.f32.mrf.mxu0
    %v2545 = vadd.f32 0.0, %v2544
    %2546 = vmatprep.mubr.bf16.mxu0 0
    %2547 = vmatmul.mubr.bf16.gmra.mxu0 %v2238
    %v2548 = vpop.f32.mrf.mxu0
    %v2549 = vadd.f32 0.0, %v2548
    %v2550 = vpop.f32.mrf.mxu0
    %v2551 = vadd.f32 0.0, %v2550
    %v2552 = vpop.f32.mrf.mxu0
    %v2553 = vadd.f32 0.0, %v2552
    %v2554 = vpop.f32.mrf.mxu0
    %v2555 = vadd.f32 0.0, %v2554
    %2556 = vmatprep.mubr.bf16.mxu0 0
    %2557 = vmatmul.mubr.bf16.gmra.mxu0 %v2241
    %v2558 = vpop.f32.mrf.mxu0
    %v2559 = vadd.f32 0.0, %v2558
    %v2560 = vpop.f32.mrf.mxu0
    %v2561 = vadd.f32 0.0, %v2560
    %v2562 = vpop.f32.mrf.mxu0
    %v2563 = vadd.f32 0.0, %v2562
    %v2564 = vpop.f32.mrf.mxu0
    %v2565 = vadd.f32 0.0, %v2564
    %2566 = vdwg.mxu0
    %2567 = vmatprep.subr.bf16.mxu0 0
    %2568 = vmatpush1.bf16.msra.mxu0 0
    %2569 = vmatprep.subr.bf16.mxu0 0
    %2570 = vmatpush1.bf16.msra.mxu0 0
    %2571 = vmatprep.subr.bf16.mxu0 0
    %2572 = vmatpush1.bf16.msra.mxu0 0
    %2573 = vmatprep.subr.bf16.mxu0 0
    %2574 = vmatpush1.bf16.msra.mxu0 0
    %2575 = vmatprep.subr.bf16.mxu0 0
    %2576 = vmatpush1.bf16.msra.mxu0 0
    %2577 = vmatprep.subr.bf16.mxu0 0
    %2578 = vmatpush1.bf16.msra.mxu0 0
    %2579 = vmatprep.subr.bf16.mxu0 %v2259
    %2580 = vmatpush1.bf16.msra.mxu0 %v2256
    %2581 = vmatprep.subr.bf16.mxu0 %v2194
    %2582 = vmatpush1.bf16.msra.mxu0 %v2193
    %2583 = vmatprep.subr.bf16.mxu0 0
    %2584 = vmatpush2.bf16.msra.mxu0 0
    %2585 = vmatprep.subr.bf16.mxu0 0
    %2586 = vmatpush2.bf16.msra.mxu0 0
    %2587 = vmatprep.subr.bf16.mxu0 0
    %2588 = vmatpush2.bf16.msra.mxu0 0
    %2589 = vmatprep.subr.bf16.mxu0 0
    %2590 = vmatpush2.bf16.msra.mxu0 0
    %2591 = vmatprep.subr.bf16.mxu0 0
    %2592 = vmatpush2.bf16.msra.mxu0 0
    %2593 = vmatprep.subr.bf16.mxu0 0
    %2594 = vmatpush2.bf16.msra.mxu0 0
    %2595 = vmatprep.subr.bf16.mxu0 0
    %2596 = vmatpush2.bf16.msra.mxu0 0
    %2597 = vmatprep.subr.bf16.mxu0 0
    %2598 = vmatpush2.bf16.msra.mxu0 0
    %2599 = vmatprep.mubr.bf16.mxu0 0
    %2600 = vmatmul.mubr.bf16.gmra.mxu0 %v2208
    %v2601 = vpop.f32.mrf.mxu0
    %v2602 = vadd.f32 0.0, %v2601
    %v2603 = vpop.f32.mrf.mxu0
    %v2604 = vadd.f32 0.0, %v2603
    %v2605 = vpop.f32.mrf.mxu0
    %v2606 = vadd.f32 0.0, %v2605
    %v2607 = vpop.f32.mrf.mxu0
    %v2608 = vadd.f32 0.0, %v2607
    %2609 = vmatprep.mubr.bf16.mxu0 0
    %2610 = vmatmul.mubr.bf16.gmra.mxu0 %v2211
    %v2611 = vpop.f32.mrf.mxu0
    %v2612 = vadd.f32 0.0, %v2611
    %v2613 = vpop.f32.mrf.mxu0
    %v2614 = vadd.f32 0.0, %v2613
    %v2615 = vpop.f32.mrf.mxu0
    %v2616 = vadd.f32 0.0, %v2615
    %v2617 = vpop.f32.mrf.mxu0
    %v2618 = vadd.f32 0.0, %v2617
    %2619 = vmatprep.mubr.bf16.mxu0 0
    %2620 = vmatmul.mubr.bf16.gmra.mxu0 %v2214
    %v2621 = vpop.f32.mrf.mxu0
    %v2622 = vadd.f32 0.0, %v2621
    %v2623 = vpop.f32.mrf.mxu0
    %v2624 = vadd.f32 0.0, %v2623
    %v2625 = vpop.f32.mrf.mxu0
    %v2626 = vadd.f32 0.0, %v2625
    %v2627 = vpop.f32.mrf.mxu0
    %v2628 = vadd.f32 0.0, %v2627
    %2629 = vmatprep.mubr.bf16.mxu0 0
    %2630 = vmatmul.mubr.bf16.gmra.mxu0 %v2217
    %v2631 = vpop.f32.mrf.mxu0
    %v2632 = vadd.f32 0.0, %v2631
    %v2633 = vpop.f32.mrf.mxu0
    %v2634 = vadd.f32 0.0, %v2633
    %v2635 = vpop.f32.mrf.mxu0
    %v2636 = vadd.f32 0.0, %v2635
    %v2637 = vpop.f32.mrf.mxu0
    %v2638 = vadd.f32 0.0, %v2637
    %2639 = vmatprep.mubr.bf16.mxu0 0
    %2640 = vmatmul.mubr.bf16.gmra.mxu0 %v2220
    %v2641 = vpop.f32.mrf.mxu0
    %v2642 = vadd.f32 0.0, %v2641
    %v2643 = vpop.f32.mrf.mxu0
    %v2644 = vadd.f32 0.0, %v2643
    %v2645 = vpop.f32.mrf.mxu0
    %v2646 = vadd.f32 0.0, %v2645
    %v2647 = vpop.f32.mrf.mxu0
    %v2648 = vadd.f32 0.0, %v2647
    %2649 = vmatprep.mubr.bf16.mxu0 0
    %2650 = vmatmul.mubr.bf16.gmra.mxu0 %v2223
    %v2651 = vpop.f32.mrf.mxu0
    %v2652 = vadd.f32 0.0, %v2651
    %v2653 = vpop.f32.mrf.mxu0
    %v2654 = vadd.f32 0.0, %v2653
    %v2655 = vpop.f32.mrf.mxu0
    %v2656 = vadd.f32 0.0, %v2655
    %v2657 = vpop.f32.mrf.mxu0
    %v2658 = vadd.f32 0.0, %v2657
    %2659 = vmatprep.mubr.bf16.mxu0 0
    %2660 = vmatmul.mubr.bf16.gmra.mxu0 %v2226
    %v2661 = vpop.f32.mrf.mxu0
    %v2662 = vadd.f32 0.0, %v2661
    %v2663 = vpop.f32.mrf.mxu0
    %v2664 = vadd.f32 0.0, %v2663
    %v2665 = vpop.f32.mrf.mxu0
    %v2666 = vadd.f32 0.0, %v2665
    %v2667 = vpop.f32.mrf.mxu0
    %v2668 = vadd.f32 0.0, %v2667
    %2669 = vmatprep.mubr.bf16.mxu0 0
    %2670 = vmatmul.mubr.bf16.gmra.mxu0 %v2229
    %v2671 = vpop.f32.mrf.mxu0
    %v2672 = vadd.f32 0.0, %v2671
    %v2673 = vpop.f32.mrf.mxu0
    %v2674 = vadd.f32 0.0, %v2673
    %v2675 = vpop.f32.mrf.mxu0
    %v2676 = vadd.f32 0.0, %v2675
    %v2677 = vpop.f32.mrf.mxu0
    %v2678 = vadd.f32 0.0, %v2677
    %2679 = vmatprep.mubr.bf16.mxu0 0
    %2680 = vmatmul.mubr.bf16.gmra.mxu0 %v2232
    %v2681 = vpop.f32.mrf.mxu0
    %v2682 = vadd.f32 0.0, %v2681
    %v2683 = vpop.f32.mrf.mxu0
    %v2684 = vadd.f32 0.0, %v2683
    %v2685 = vpop.f32.mrf.mxu0
    %v2686 = vadd.f32 0.0, %v2685
    %v2687 = vpop.f32.mrf.mxu0
    %v2688 = vadd.f32 0.0, %v2687
    %2689 = vmatprep.mubr.bf16.mxu0 0
    %2690 = vmatmul.mubr.bf16.gmra.mxu0 %v2235
    %v2691 = vpop.f32.mrf.mxu0
    %v2692 = vadd.f32 0.0, %v2691
    %v2693 = vpop.f32.mrf.mxu0
    %v2694 = vadd.f32 0.0, %v2693
    %v2695 = vpop.f32.mrf.mxu0
    %v2696 = vadd.f32 0.0, %v2695
    %v2697 = vpop.f32.mrf.mxu0
    %v2698 = vadd.f32 0.0, %v2697
    %2699 = vmatprep.mubr.bf16.mxu0 0
    %2700 = vmatmul.mubr.bf16.gmra.mxu0 %v2238
    %v2701 = vpop.f32.mrf.mxu0
    %v2702 = vadd.f32 0.0, %v2701
    %v2703 = vpop.f32.mrf.mxu0
    %v2704 = vadd.f32 0.0, %v2703
    %v2705 = vpop.f32.mrf.mxu0
    %v2706 = vadd.f32 0.0, %v2705
    %v2707 = vpop.f32.mrf.mxu0
    %v2708 = vadd.f32 0.0, %v2707
    %2709 = vmatprep.mubr.bf16.mxu0 0
    %2710 = vmatmul.mubr.bf16.gmra.mxu0 %v2241
    %v2711 = vpop.f32.mrf.mxu0
    %v2712 = vadd.f32 0.0, %v2711
    %v2713 = vpop.f32.mrf.mxu0
    %v2714 = vadd.f32 0.0, %v2713
    %v2715 = vpop.f32.mrf.mxu0
    %v2716 = vadd.f32 0.0, %v2715
    %v2717 = vpop.f32.mrf.mxu0
    %v2718 = vadd.f32 0.0, %v2717
    %2719 = vdwg.mxu0
    %v2720 = vadd.f32 %v1960, %v2296
    %v2721 = vadd.f32 %v1961, %v2298
    %v2722 = vadd.f32 %v1962, %v2449
    %v2723 = vadd.f32 %v1963, %v2451
    %v2724 = vadd.f32 %v1964, %v2602
    %v2725 = vadd.f32 %v1965, %v2604
    %v2726 = vadd.f32 %v1966, %v2300
    %v2727 = vadd.f32 %v1967, %v2302
    %v2728 = vadd.f32 %v1968, %v2453
    %v2729 = vadd.f32 %v1969, %v2455
    %v2730 = vadd.f32 %v1970, %v2606
    %v2731 = vadd.f32 %v1971, %v2608
    %v2732 = vadd.f32 %v1972, %v2306
    %v2733 = vadd.f32 %v1973, %v2308
    %v2734 = vadd.f32 %v1974, %v2459
    %v2735 = vadd.f32 %v1975, %v2461
    %v2736 = vadd.f32 %v1976, %v2612
    %v2737 = vadd.f32 %v1977, %v2614
    %v2738 = vadd.f32 %v1978, %v2310
    %v2739 = vadd.f32 %v1979, %v2312
    %v2740 = vadd.f32 %v1980, %v2463
    %v2741 = vadd.f32 %v1981, %v2465
    %v2742 = vadd.f32 %v1982, %v2616
    %v2743 = vadd.f32 %v1983, %v2618
    %v2744 = vadd.f32 %v1984, %v2316
    %v2745 = vadd.f32 %v1985, %v2318
    %v2746 = vadd.f32 %v1986, %v2469
    %v2747 = vadd.f32 %v1987, %v2471
    %v2748 = vadd.f32 %v1988, %v2622
    %v2749 = vadd.f32 %v1989, %v2624
    %v2750 = vadd.f32 %v1990, %v2320
    %v2751 = vadd.f32 %v1991, %v2322
    %v2752 = vadd.f32 %v1992, %v2473
    %v2753 = vadd.f32 %v1993, %v2475
    %v2754 = vadd.f32 %v1994, %v2626
    %v2755 = vadd.f32 %v1995, %v2628
    %v2756 = vadd.f32 %v1996, %v2326
    %v2757 = vadd.f32 %v1997, %v2328
    %v2758 = vadd.f32 %v1998, %v2479
    %v2759 = vadd.f32 %v1999, %v2481
    %v2760 = vadd.f32 %v2000, %v2632
    %v2761 = vadd.f32 %v2001, %v2634
    %v2762 = vadd.f32 %v2002, %v2330
    %v2763 = vadd.f32 %v2003, %v2332
    %v2764 = vadd.f32 %v2004, %v2483
    %v2765 = vadd.f32 %v2005, %v2485
    %v2766 = vadd.f32 %v2006, %v2636
    %v2767 = vadd.f32 %v2007, %v2638
    %v2768 = vadd.f32 %v2008, %v2336
    %v2769 = vadd.f32 %v2009, %v2338
    %v2770 = vadd.f32 %v2010, %v2489
    %v2771 = vadd.f32 %v2011, %v2491
    %v2772 = vadd.f32 %v2012, %v2642
    %v2773 = vadd.f32 %v2013, %v2644
    %v2774 = vadd.f32 %v2014, %v2340
    %v2775 = vadd.f32 %v2015, %v2342
    %v2776 = vadd.f32 %v2016, %v2493
    %v2777 = vadd.f32 %v2017, %v2495
    %v2778 = vadd.f32 %v2018, %v2646
    %v2779 = vadd.f32 %v2019, %v2648
    %v2780 = vadd.f32 %v2020, %v2346
    %v2781 = vadd.f32 %v2021, %v2348
    %v2782 = vadd.f32 %v2022, %v2499
    %v2783 = vadd.f32 %v2023, %v2501
    %v2784 = vadd.f32 %v2024, %v2652
    %v2785 = vadd.f32 %v2025, %v2654
    %v2786 = vadd.f32 %v2026, %v2350
    %v2787 = vadd.f32 %v2027, %v2352
    %v2788 = vadd.f32 %v2028, %v2503
    %v2789 = vadd.f32 %v2029, %v2505
    %v2790 = vadd.f32 %v2030, %v2656
    %v2791 = vadd.f32 %v2031, %v2658
    %v2792 = vadd.f32 %v2032, %v2356
    %v2793 = vadd.f32 %v2033, %v2358
    %v2794 = vadd.f32 %v2034, %v2509
    %v2795 = vadd.f32 %v2035, %v2511
    %v2796 = vadd.f32 %v2036, %v2662
    %v2797 = vadd.f32 %v2037, %v2664
    %v2798 = vadd.f32 %v2038, %v2360
    %v2799 = vadd.f32 %v2039, %v2362
    %v2800 = vadd.f32 %v2040, %v2513
    %v2801 = vadd.f32 %v2041, %v2515
    %v2802 = vadd.f32 %v2042, %v2666
    %v2803 = vadd.f32 %v2043, %v2668
    %v2804 = vadd.f32 %v2044, %v2366
    %v2805 = vadd.f32 %v2045, %v2368
    %v2806 = vadd.f32 %v2046, %v2519
    %v2807 = vadd.f32 %v2047, %v2521
    %v2808 = vadd.f32 %v2048, %v2672
    %v2809 = vadd.f32 %v2049, %v2674
    %v2810 = vadd.f32 %v2050, %v2370
    %v2811 = vadd.f32 %v2051, %v2372
    %v2812 = vadd.f32 %v2052, %v2523
    %v2813 = vadd.f32 %v2053, %v2525
    %v2814 = vadd.f32 %v2054, %v2676
    %v2815 = vadd.f32 %v2055, %v2678
    %v2816 = vadd.f32 %v2056, %v2376
    %v2817 = vadd.f32 %v2057, %v2378
    %v2818 = vadd.f32 %v2058, %v2529
    %v2819 = vadd.f32 %v2059, %v2531
    %v2820 = vadd.f32 %v2060, %v2682
    %v2821 = vadd.f32 %v2061, %v2684
    %v2822 = vadd.f32 %v2062, %v2380
    %v2823 = vadd.f32 %v2063, %v2382
    %v2824 = vadd.f32 %v2064, %v2533
    %v2825 = vadd.f32 %v2065, %v2535
    %v2826 = vadd.f32 %v2066, %v2686
    %v2827 = vadd.f32 %v2067, %v2688
    %v2828 = vadd.f32 %v2068, %v2386
    %v2829 = vadd.f32 %v2069, %v2388
    %v2830 = vadd.f32 %v2070, %v2539
    %v2831 = vadd.f32 %v2071, %v2541
    %v2832 = vadd.f32 %v2072, %v2692
    %v2833 = vadd.f32 %v2073, %v2694
    %v2834 = vadd.f32 %v2074, %v2390
    %v2835 = vadd.f32 %v2075, %v2392
    %v2836 = vadd.f32 %v2076, %v2543
    %v2837 = vadd.f32 %v2077, %v2545
    %v2838 = vadd.f32 %v2078, %v2696
    %v2839 = vadd.f32 %v2079, %v2698
    %v2840 = vadd.f32 %v2080, %v2396
    %v2841 = vadd.f32 %v2081, %v2398
    %v2842 = vadd.f32 %v2082, %v2549
    %v2843 = vadd.f32 %v2083, %v2551
    %v2844 = vadd.f32 %v2084, %v2702
    %v2845 = vadd.f32 %v2085, %v2704
    %v2846 = vadd.f32 %v2086, %v2400
    %v2847 = vadd.f32 %v2087, %v2402
    %v2848 = vadd.f32 %v2088, %v2553
    %v2849 = vadd.f32 %v2089, %v2555
    %v2850 = vadd.f32 %v2090, %v2706
    %v2851 = vadd.f32 %v2091, %v2708
    %v2852 = vadd.f32 %v2092, %v2406
    %v2853 = vadd.f32 %v2093, %v2408
    %v2854 = vadd.f32 %v2094, %v2559
    %v2855 = vadd.f32 %v2095, %v2561
    %v2856 = vadd.f32 %v2096, %v2712
    %v2857 = vadd.f32 %v2097, %v2714
    %v2858 = vadd.f32 %v2098, %v2410
    %v2859 = vadd.f32 %v2099, %v2412
    %v2860 = vadd.f32 %v2100, %v2563
    %v2861 = vadd.f32 %v2101, %v2565
    %v2862 = vadd.f32 %v2102, %v2716
    %v2863 = vadd.f32 %v2103, %v2718
    %v2864 = vld [vmem:[%s0 + $0x20] sm:$0xff]
    %v2865 = vld [vmem:[%s0 + $0x28] sm:$0xff]
    %v2866 = vld [vmem:[%s0 + $0x30] sm:$0xff]
    %v2867 = vld [vmem:[%s0 + $0x38] sm:$0xff]
    %v2868 = vld [vmem:[%s0 + $0x40] sm:$0xff]
    %v2869 = vld [vmem:[%s0 + $0x48] sm:$0xff]
    %v2870 = vld [vmem:[%s0 + $0x50] sm:$0xff]
    %v2871 = vld [vmem:[%s0 + $0x58] sm:$0xff]
    %v2872 = vld [vmem:[%s0 + $0x60] sm:$0xff]
    %v2873 = vld [vmem:[%s0 + $0x68] sm:$0xff]
    %v2874 = vld [vmem:[%s0 + $0x70] sm:$0xff]
    %v2875 = vld [vmem:[%s0 + $0x78] sm:$0xff]
    %v2876 = vld [vmem:[%s0 + $0x80] sm:$0xff]
    %v2877 = vld [vmem:[%s0 + $0x88] sm:$0xff]
    %v2878 = vld [vmem:[%s0 + $0x90] sm:$0xff]
    %v2879 = vld [vmem:[%s0 + $0x98] sm:$0xff]
    %v2880 = vld [vmem:[%s0 + $0xa0] sm:$0xff]
    %v2881 = vld [vmem:[%s0 + $0xa8] sm:$0xff]
    %v2882 = vld [vmem:[%s0 + $0xb0] sm:$0xff]
    %v2883 = vld [vmem:[%s0 + $0xb8] sm:$0xff]
    %v2884 = vld [vmem:[%s0 + $0xc0] sm:$0xff]
    %v2885 = vld [vmem:[%s0 + $0xc8] sm:$0xff]
    %v2886 = vld [vmem:[%s0 + $0xd0] sm:$0xff]
    %v2887 = vld [vmem:[%s0 + $0xd8] sm:$0xff]
    %v2888 = vpack.c.bf16 %v2865, %v2864
    %v2889 = vpack.c.bf16 %v2867, %v2866
    %v2890 = vpack.c.bf16 %v2869, %v2868
    %v2891 = vpack.c.bf16 %v2871, %v2870
    %v2892 = vpack.c.bf16 %v2873, %v2872
    %v2893 = vpack.c.bf16 %v2875, %v2874
    %v2894 = vpack.c.bf16 %v2877, %v2876
    %v2895 = vpack.c.bf16 %v2879, %v2878
    %v2896 = vpack.c.bf16 %v2881, %v2880
    %v2897 = vpack.c.bf16 %v2883, %v2882
    %v2898 = vpack.c.bf16 %v2885, %v2884
    %v2899 = vpack.c.bf16 %v2887, %v2886
    %s2900 = scalar_lea.vmem [#allocation3], 384
    %v2901 = vld [vmem:[%s2900] sm:$0xff]
    %v2902 = vld [vmem:[%s2900 + $0x8] sm:$0xff]
    %v2903 = vld [vmem:[%s2900 + $0x10] sm:$0xff]
    %v2904 = vld [vmem:[%s2900 + $0x18] sm:$0xff]
    %v2905 = vld [vmem:[%s2900 + $0x20] sm:$0xff]
    %v2906 = vld [vmem:[%s2900 + $0x28] sm:$0xff]
    %v2907 = vld [vmem:[%s2900 + $0x30] sm:$0xff]
    %v2908 = vld [vmem:[%s2900 + $0x38] sm:$0xff]
    %v2909 = vld [vmem:[%s2900 + $0x40] sm:$0xff]
    %v2910 = vld [vmem:[%s2900 + $0x48] sm:$0x33]
    %v2911 = vld [vmem:[%s2900 + $0x50] sm:$0x33]
    %v2912 = vld [vmem:[%s2900 + $0x58] sm:$0x33]
    %v2925 = vunpack.c.l.b16 %v2901
    %v2926 = vunpack.c.h.b16 %v2901
    %v2927 = vunpack.c.l.b16 %v2902
    %v2928 = vunpack.c.h.b16 %v2902
    %v2929 = vunpack.c.l.b16 %v2903
    %v2930 = vunpack.c.h.b16 %v2903
    %v2931 = vunpack.c.l.b16 %v2904
    %v2932 = vunpack.c.h.b16 %v2904
    %v2933 = vunpack.c.l.b16 %v2905
    %v2934 = vunpack.c.h.b16 %v2905
    %v2935 = vunpack.c.l.b16 %v2906
    %v2936 = vunpack.c.h.b16 %v2906
    %v2937 = vunpack.c.l.b16 %v2907
    %v2938 = vunpack.c.h.b16 %v2907
    %v2939 = vunpack.c.l.b16 %v2908
    %v2940 = vunpack.c.h.b16 %v2908
    %v2941 = vunpack.c.l.b16 %v2909
    %v2942 = vunpack.c.h.b16 %v2909
    %v2943 = vunpack.c.l.b16 %v2910
    %v2944 = vunpack.c.h.b16 %v2910
    %v2945 = vunpack.c.l.b16 %v2911
    %v2946 = vunpack.c.h.b16 %v2911
    %v2947 = vunpack.c.l.b16 %v2912
    %v2948 = vunpack.c.h.b16 %v2912
    %v2949 = vpack.c.b16 %v2931, %v2925
    %v2950 = vpack.c.b16 %v2932, %v2926
    %v2951 = vpack.c.b16 %v2933, %v2927
    %v2952 = vpack.c.b16 %v2934, %v2928
    %v2953 = vpack.c.b16 %v2935, %v2929
    %v2954 = vpack.c.b16 %v2936, %v2930
    %v2955 = vpack.c.b16 %v2943, %v2937
    %v2956 = vpack.c.b16 %v2944, %v2938
    %v2957 = vpack.c.b16 %v2945, %v2939
    %v2958 = vpack.c.b16 %v2946, %v2940
    %v2959 = vpack.c.b16 %v2947, %v2941
    %v2960 = vpack.c.b16 %v2948, %v2942
    %v2968 = vsel %vm262, %v2888, 0
    %v2971 = vsel %vm262, %v2889, 0
    %v2974 = vsel %vm262, %v2890, 0
    %v2977 = vsel %vm262, %v2891, 0
    %v2980 = vsel %vm262, %v2892, 0
    %v2983 = vsel %vm262, %v2893, 0
    %v2986 = vsel %vm262, %v2894, 0
    %v2989 = vsel %vm262, %v2895, 0
    %v2992 = vsel %vm262, %v2896, 0
    %v2995 = vsel %vm262, %v2897, 0
    %v2998 = vsel %vm262, %v2898, 0
    %v3001 = vsel %vm262, %v2899, 0
    %v3004 = vsel %vm299, %v2955, 0
    %v3007 = vsel %vm299, %v2956, 0
    %v3010 = vsel %vm299, %v2957, 0
    %v3013 = vsel %vm299, %v2958, 0
    %v3016 = vsel %vm299, %v2959, 0
    %v3019 = vsel %vm299, %v2960, 0
    %3021 = vmatprep.subr.bf16.mxu0 0
    %3022 = vmatpush1.bf16.msra.mxu0 0
    %3023 = vmatprep.subr.bf16.mxu0 0
    %3024 = vmatpush1.bf16.msra.mxu0 0
    %3025 = vmatprep.subr.bf16.mxu0 0
    %3026 = vmatpush1.bf16.msra.mxu0 0
    %3027 = vmatprep.subr.bf16.mxu0 0
    %3028 = vmatpush1.bf16.msra.mxu0 0
    %3029 = vmatprep.subr.bf16.mxu0 0
    %3030 = vmatpush1.bf16.msra.mxu0 0
    %3031 = vmatprep.subr.bf16.mxu0 0
    %3032 = vmatpush1.bf16.msra.mxu0 0
    %3033 = vmatprep.subr.bf16.mxu0 %v3007
    %3034 = vmatpush1.bf16.msra.mxu0 %v3004
    %3035 = vmatprep.subr.bf16.mxu0 %v2950
    %3036 = vmatpush1.bf16.msra.mxu0 %v2949
    %3037 = vmatprep.subr.bf16.mxu0 0
    %3038 = vmatpush2.bf16.msra.mxu0 0
    %3039 = vmatprep.subr.bf16.mxu0 0
    %3040 = vmatpush2.bf16.msra.mxu0 0
    %3041 = vmatprep.subr.bf16.mxu0 0
    %3042 = vmatpush2.bf16.msra.mxu0 0
    %3043 = vmatprep.subr.bf16.mxu0 0
    %3044 = vmatpush2.bf16.msra.mxu0 0
    %3045 = vmatprep.subr.bf16.mxu0 0
    %3046 = vmatpush2.bf16.msra.mxu0 0
    %3047 = vmatprep.subr.bf16.mxu0 0
    %3048 = vmatpush2.bf16.msra.mxu0 0
    %3049 = vmatprep.subr.bf16.mxu0 0
    %3050 = vmatpush2.bf16.msra.mxu0 0
    %3051 = vmatprep.subr.bf16.mxu0 0
    %3052 = vmatpush2.bf16.msra.mxu0 0
    %3053 = vmatprep.mubr.bf16.mxu0 0
    %3054 = vmatmul.mubr.bf16.gmra.mxu0 %v2968
    %v3055 = vpop.f32.mrf.mxu0
    %v3056 = vadd.f32 0.0, %v3055
    %v3057 = vpop.f32.mrf.mxu0
    %v3058 = vadd.f32 0.0, %v3057
    %v3059 = vpop.f32.mrf.mxu0
    %v3060 = vadd.f32 0.0, %v3059
    %v3061 = vpop.f32.mrf.mxu0
    %v3062 = vadd.f32 0.0, %v3061
    %3063 = vmatprep.mubr.bf16.mxu0 0
    %3064 = vmatmul.mubr.bf16.gmra.mxu0 %v2971
    %v3065 = vpop.f32.mrf.mxu0
    %v3066 = vadd.f32 0.0, %v3065
    %v3067 = vpop.f32.mrf.mxu0
    %v3068 = vadd.f32 0.0, %v3067
    %v3069 = vpop.f32.mrf.mxu0
    %v3070 = vadd.f32 0.0, %v3069
    %v3071 = vpop.f32.mrf.mxu0
    %v3072 = vadd.f32 0.0, %v3071
    %3073 = vmatprep.mubr.bf16.mxu0 0
    %3074 = vmatmul.mubr.bf16.gmra.mxu0 %v2974
    %v3075 = vpop.f32.mrf.mxu0
    %v3076 = vadd.f32 0.0, %v3075
    %v3077 = vpop.f32.mrf.mxu0
    %v3078 = vadd.f32 0.0, %v3077
    %v3079 = vpop.f32.mrf.mxu0
    %v3080 = vadd.f32 0.0, %v3079
    %v3081 = vpop.f32.mrf.mxu0
    %v3082 = vadd.f32 0.0, %v3081
    %3083 = vmatprep.mubr.bf16.mxu0 0
    %3084 = vmatmul.mubr.bf16.gmra.mxu0 %v2977
    %v3085 = vpop.f32.mrf.mxu0
    %v3086 = vadd.f32 0.0, %v3085
    %v3087 = vpop.f32.mrf.mxu0
    %v3088 = vadd.f32 0.0, %v3087
    %v3089 = vpop.f32.mrf.mxu0
    %v3090 = vadd.f32 0.0, %v3089
    %v3091 = vpop.f32.mrf.mxu0
    %v3092 = vadd.f32 0.0, %v3091
    %3093 = vmatprep.mubr.bf16.mxu0 0
    %3094 = vmatmul.mubr.bf16.gmra.mxu0 %v2980
    %v3095 = vpop.f32.mrf.mxu0
    %v3096 = vadd.f32 0.0, %v3095
    %v3097 = vpop.f32.mrf.mxu0
    %v3098 = vadd.f32 0.0, %v3097
    %v3099 = vpop.f32.mrf.mxu0
    %v3100 = vadd.f32 0.0, %v3099
    %v3101 = vpop.f32.mrf.mxu0
    %v3102 = vadd.f32 0.0, %v3101
    %3103 = vmatprep.mubr.bf16.mxu0 0
    %3104 = vmatmul.mubr.bf16.gmra.mxu0 %v2983
    %v3105 = vpop.f32.mrf.mxu0
    %v3106 = vadd.f32 0.0, %v3105
    %v3107 = vpop.f32.mrf.mxu0
    %v3108 = vadd.f32 0.0, %v3107
    %v3109 = vpop.f32.mrf.mxu0
    %v3110 = vadd.f32 0.0, %v3109
    %v3111 = vpop.f32.mrf.mxu0
    %v3112 = vadd.f32 0.0, %v3111
    %3113 = vmatprep.mubr.bf16.mxu0 0
    %3114 = vmatmul.mubr.bf16.gmra.mxu0 %v2986
    %v3115 = vpop.f32.mrf.mxu0
    %v3116 = vadd.f32 0.0, %v3115
    %v3117 = vpop.f32.mrf.mxu0
    %v3118 = vadd.f32 0.0, %v3117
    %v3119 = vpop.f32.mrf.mxu0
    %v3120 = vadd.f32 0.0, %v3119
    %v3121 = vpop.f32.mrf.mxu0
    %v3122 = vadd.f32 0.0, %v3121
    %3123 = vmatprep.mubr.bf16.mxu0 0
    %3124 = vmatmul.mubr.bf16.gmra.mxu0 %v2989
    %v3125 = vpop.f32.mrf.mxu0
    %v3126 = vadd.f32 0.0, %v3125
    %v3127 = vpop.f32.mrf.mxu0
    %v3128 = vadd.f32 0.0, %v3127
    %v3129 = vpop.f32.mrf.mxu0
    %v3130 = vadd.f32 0.0, %v3129
    %v3131 = vpop.f32.mrf.mxu0
    %v3132 = vadd.f32 0.0, %v3131
    %3133 = vmatprep.mubr.bf16.mxu0 0
    %3134 = vmatmul.mubr.bf16.gmra.mxu0 %v2992
    %v3135 = vpop.f32.mrf.mxu0
    %v3136 = vadd.f32 0.0, %v3135
    %v3137 = vpop.f32.mrf.mxu0
    %v3138 = vadd.f32 0.0, %v3137
    %v3139 = vpop.f32.mrf.mxu0
    %v3140 = vadd.f32 0.0, %v3139
    %v3141 = vpop.f32.mrf.mxu0
    %v3142 = vadd.f32 0.0, %v3141
    %3143 = vmatprep.mubr.bf16.mxu0 0
    %3144 = vmatmul.mubr.bf16.gmra.mxu0 %v2995
    %v3145 = vpop.f32.mrf.mxu0
    %v3146 = vadd.f32 0.0, %v3145
    %v3147 = vpop.f32.mrf.mxu0
    %v3148 = vadd.f32 0.0, %v3147
    %v3149 = vpop.f32.mrf.mxu0
    %v3150 = vadd.f32 0.0, %v3149
    %v3151 = vpop.f32.mrf.mxu0
    %v3152 = vadd.f32 0.0, %v3151
    %3153 = vmatprep.mubr.bf16.mxu0 0
    %3154 = vmatmul.mubr.bf16.gmra.mxu0 %v2998
    %v3155 = vpop.f32.mrf.mxu0
    %v3156 = vadd.f32 0.0, %v3155
    %v3157 = vpop.f32.mrf.mxu0
    %v3158 = vadd.f32 0.0, %v3157
    %v3159 = vpop.f32.mrf.mxu0
    %v3160 = vadd.f32 0.0, %v3159
    %v3161 = vpop.f32.mrf.mxu0
    %v3162 = vadd.f32 0.0, %v3161
    %3163 = vmatprep.mubr.bf16.mxu0 0
    %3164 = vmatmul.mubr.bf16.gmra.mxu0 %v3001
    %v3165 = vpop.f32.mrf.mxu0
    %v3166 = vadd.f32 0.0, %v3165
    %v3167 = vpop.f32.mrf.mxu0
    %v3168 = vadd.f32 0.0, %v3167
    %v3169 = vpop.f32.mrf.mxu0
    %v3170 = vadd.f32 0.0, %v3169
    %v3171 = vpop.f32.mrf.mxu0
    %v3172 = vadd.f32 0.0, %v3171
    %3173 = vdwg.mxu0
    %3174 = vmatprep.subr.bf16.mxu0 0
    %3175 = vmatpush1.bf16.msra.mxu0 0
    %3176 = vmatprep.subr.bf16.mxu0 0
    %3177 = vmatpush1.bf16.msra.mxu0 0
    %3178 = vmatprep.subr.bf16.mxu0 0
    %3179 = vmatpush1.bf16.msra.mxu0 0
    %3180 = vmatprep.subr.bf16.mxu0 0
    %3181 = vmatpush1.bf16.msra.mxu0 0
    %3182 = vmatprep.subr.bf16.mxu0 0
    %3183 = vmatpush1.bf16.msra.mxu0 0
    %3184 = vmatprep.subr.bf16.mxu0 0
    %3185 = vmatpush1.bf16.msra.mxu0 0
    %3186 = vmatprep.subr.bf16.mxu0 %v3013
    %3187 = vmatpush1.bf16.msra.mxu0 %v3010
    %3188 = vmatprep.subr.bf16.mxu0 %v2952
    %3189 = vmatpush1.bf16.msra.mxu0 %v2951
    %3190 = vmatprep.subr.bf16.mxu0 0
    %3191 = vmatpush2.bf16.msra.mxu0 0
    %3192 = vmatprep.subr.bf16.mxu0 0
    %3193 = vmatpush2.bf16.msra.mxu0 0
    %3194 = vmatprep.subr.bf16.mxu0 0
    %3195 = vmatpush2.bf16.msra.mxu0 0
    %3196 = vmatprep.subr.bf16.mxu0 0
    %3197 = vmatpush2.bf16.msra.mxu0 0
    %3198 = vmatprep.subr.bf16.mxu0 0
    %3199 = vmatpush2.bf16.msra.mxu0 0
    %3200 = vmatprep.subr.bf16.mxu0 0
    %3201 = vmatpush2.bf16.msra.mxu0 0
    %3202 = vmatprep.subr.bf16.mxu0 0
    %3203 = vmatpush2.bf16.msra.mxu0 0
    %3204 = vmatprep.subr.bf16.mxu0 0
    %3205 = vmatpush2.bf16.msra.mxu0 0
    %3206 = vmatprep.mubr.bf16.mxu0 0
    %3207 = vmatmul.mubr.bf16.gmra.mxu0 %v2968
    %v3208 = vpop.f32.mrf.mxu0
    %v3209 = vadd.f32 0.0, %v3208
    %v3210 = vpop.f32.mrf.mxu0
    %v3211 = vadd.f32 0.0, %v3210
    %v3212 = vpop.f32.mrf.mxu0
    %v3213 = vadd.f32 0.0, %v3212
    %v3214 = vpop.f32.mrf.mxu0
    %v3215 = vadd.f32 0.0, %v3214
    %3216 = vmatprep.mubr.bf16.mxu0 0
    %3217 = vmatmul.mubr.bf16.gmra.mxu0 %v2971
    %v3218 = vpop.f32.mrf.mxu0
    %v3219 = vadd.f32 0.0, %v3218
    %v3220 = vpop.f32.mrf.mxu0
    %v3221 = vadd.f32 0.0, %v3220
    %v3222 = vpop.f32.mrf.mxu0
    %v3223 = vadd.f32 0.0, %v3222
    %v3224 = vpop.f32.mrf.mxu0
    %v3225 = vadd.f32 0.0, %v3224
    %3226 = vmatprep.mubr.bf16.mxu0 0
    %3227 = vmatmul.mubr.bf16.gmra.mxu0 %v2974
    %v3228 = vpop.f32.mrf.mxu0
    %v3229 = vadd.f32 0.0, %v3228
    %v3230 = vpop.f32.mrf.mxu0
    %v3231 = vadd.f32 0.0, %v3230
    %v3232 = vpop.f32.mrf.mxu0
    %v3233 = vadd.f32 0.0, %v3232
    %v3234 = vpop.f32.mrf.mxu0
    %v3235 = vadd.f32 0.0, %v3234
    %3236 = vmatprep.mubr.bf16.mxu0 0
    %3237 = vmatmul.mubr.bf16.gmra.mxu0 %v2977
    %v3238 = vpop.f32.mrf.mxu0
    %v3239 = vadd.f32 0.0, %v3238
    %v3240 = vpop.f32.mrf.mxu0
    %v3241 = vadd.f32 0.0, %v3240
    %v3242 = vpop.f32.mrf.mxu0
    %v3243 = vadd.f32 0.0, %v3242
    %v3244 = vpop.f32.mrf.mxu0
    %v3245 = vadd.f32 0.0, %v3244
    %3246 = vmatprep.mubr.bf16.mxu0 0
    %3247 = vmatmul.mubr.bf16.gmra.mxu0 %v2980
    %v3248 = vpop.f32.mrf.mxu0
    %v3249 = vadd.f32 0.0, %v3248
    %v3250 = vpop.f32.mrf.mxu0
    %v3251 = vadd.f32 0.0, %v3250
    %v3252 = vpop.f32.mrf.mxu0
    %v3253 = vadd.f32 0.0, %v3252
    %v3254 = vpop.f32.mrf.mxu0
    %v3255 = vadd.f32 0.0, %v3254
    %3256 = vmatprep.mubr.bf16.mxu0 0
    %3257 = vmatmul.mubr.bf16.gmra.mxu0 %v2983
    %v3258 = vpop.f32.mrf.mxu0
    %v3259 = vadd.f32 0.0, %v3258
    %v3260 = vpop.f32.mrf.mxu0
    %v3261 = vadd.f32 0.0, %v3260
    %v3262 = vpop.f32.mrf.mxu0
    %v3263 = vadd.f32 0.0, %v3262
    %v3264 = vpop.f32.mrf.mxu0
    %v3265 = vadd.f32 0.0, %v3264
    %3266 = vmatprep.mubr.bf16.mxu0 0
    %3267 = vmatmul.mubr.bf16.gmra.mxu0 %v2986
    %v3268 = vpop.f32.mrf.mxu0
    %v3269 = vadd.f32 0.0, %v3268
    %v3270 = vpop.f32.mrf.mxu0
    %v3271 = vadd.f32 0.0, %v3270
    %v3272 = vpop.f32.mrf.mxu0
    %v3273 = vadd.f32 0.0, %v3272
    %v3274 = vpop.f32.mrf.mxu0
    %v3275 = vadd.f32 0.0, %v3274
    %3276 = vmatprep.mubr.bf16.mxu0 0
    %3277 = vmatmul.mubr.bf16.gmra.mxu0 %v2989
    %v3278 = vpop.f32.mrf.mxu0
    %v3279 = vadd.f32 0.0, %v3278
    %v3280 = vpop.f32.mrf.mxu0
    %v3281 = vadd.f32 0.0, %v3280
    %v3282 = vpop.f32.mrf.mxu0
    %v3283 = vadd.f32 0.0, %v3282
    %v3284 = vpop.f32.mrf.mxu0
    %v3285 = vadd.f32 0.0, %v3284
    %3286 = vmatprep.mubr.bf16.mxu0 0
    %3287 = vmatmul.mubr.bf16.gmra.mxu0 %v2992
    %v3288 = vpop.f32.mrf.mxu0
    %v3289 = vadd.f32 0.0, %v3288
    %v3290 = vpop.f32.mrf.mxu0
    %v3291 = vadd.f32 0.0, %v3290
    %v3292 = vpop.f32.mrf.mxu0
    %v3293 = vadd.f32 0.0, %v3292
    %v3294 = vpop.f32.mrf.mxu0
    %v3295 = vadd.f32 0.0, %v3294
    %3296 = vmatprep.mubr.bf16.mxu0 0
    %3297 = vmatmul.mubr.bf16.gmra.mxu0 %v2995
    %v3298 = vpop.f32.mrf.mxu0
    %v3299 = vadd.f32 0.0, %v3298
    %v3300 = vpop.f32.mrf.mxu0
    %v3301 = vadd.f32 0.0, %v3300
    %v3302 = vpop.f32.mrf.mxu0
    %v3303 = vadd.f32 0.0, %v3302
    %v3304 = vpop.f32.mrf.mxu0
    %v3305 = vadd.f32 0.0, %v3304
    %3306 = vmatprep.mubr.bf16.mxu0 0
    %3307 = vmatmul.mubr.bf16.gmra.mxu0 %v2998
    %v3308 = vpop.f32.mrf.mxu0
    %v3309 = vadd.f32 0.0, %v3308
    %v3310 = vpop.f32.mrf.mxu0
    %v3311 = vadd.f32 0.0, %v3310
    %v3312 = vpop.f32.mrf.mxu0
    %v3313 = vadd.f32 0.0, %v3312
    %v3314 = vpop.f32.mrf.mxu0
    %v3315 = vadd.f32 0.0, %v3314
    %3316 = vmatprep.mubr.bf16.mxu0 0
    %3317 = vmatmul.mubr.bf16.gmra.mxu0 %v3001
    %v3318 = vpop.f32.mrf.mxu0
    %v3319 = vadd.f32 0.0, %v3318
    %v3320 = vpop.f32.mrf.mxu0
    %v3321 = vadd.f32 0.0, %v3320
    %v3322 = vpop.f32.mrf.mxu0
    %v3323 = vadd.f32 0.0, %v3322
    %v3324 = vpop.f32.mrf.mxu0
    %v3325 = vadd.f32 0.0, %v3324
    %3326 = vdwg.mxu0
    %3327 = vmatprep.subr.bf16.mxu0 0
    %3328 = vmatpush1.bf16.msra.mxu0 0
    %3329 = vmatprep.subr.bf16.mxu0 0
    %3330 = vmatpush1.bf16.msra.mxu0 0
    %3331 = vmatprep.subr.bf16.mxu0 0
    %3332 = vmatpush1.bf16.msra.mxu0 0
    %3333 = vmatprep.subr.bf16.mxu0 0
    %3334 = vmatpush1.bf16.msra.mxu0 0
    %3335 = vmatprep.subr.bf16.mxu0 0
    %3336 = vmatpush1.bf16.msra.mxu0 0
    %3337 = vmatprep.subr.bf16.mxu0 0
    %3338 = vmatpush1.bf16.msra.mxu0 0
    %3339 = vmatprep.subr.bf16.mxu0 %v3019
    %3340 = vmatpush1.bf16.msra.mxu0 %v3016
    %3341 = vmatprep.subr.bf16.mxu0 %v2954
    %3342 = vmatpush1.bf16.msra.mxu0 %v2953
    %3343 = vmatprep.subr.bf16.mxu0 0
    %3344 = vmatpush2.bf16.msra.mxu0 0
    %3345 = vmatprep.subr.bf16.mxu0 0
    %3346 = vmatpush2.bf16.msra.mxu0 0
    %3347 = vmatprep.subr.bf16.mxu0 0
    %3348 = vmatpush2.bf16.msra.mxu0 0
    %3349 = vmatprep.subr.bf16.mxu0 0
    %3350 = vmatpush2.bf16.msra.mxu0 0
    %3351 = vmatprep.subr.bf16.mxu0 0
    %3352 = vmatpush2.bf16.msra.mxu0 0
    %3353 = vmatprep.subr.bf16.mxu0 0
    %3354 = vmatpush2.bf16.msra.mxu0 0
    %3355 = vmatprep.subr.bf16.mxu0 0
    %3356 = vmatpush2.bf16.msra.mxu0 0
    %3357 = vmatprep.subr.bf16.mxu0 0
    %3358 = vmatpush2.bf16.msra.mxu0 0
    %3359 = vmatprep.mubr.bf16.mxu0 0
    %3360 = vmatmul.mubr.bf16.gmra.mxu0 %v2968
    %v3361 = vpop.f32.mrf.mxu0
    %v3362 = vadd.f32 0.0, %v3361
    %v3363 = vpop.f32.mrf.mxu0
    %v3364 = vadd.f32 0.0, %v3363
    %v3365 = vpop.f32.mrf.mxu0
    %v3366 = vadd.f32 0.0, %v3365
    %v3367 = vpop.f32.mrf.mxu0
    %v3368 = vadd.f32 0.0, %v3367
    %3369 = vmatprep.mubr.bf16.mxu0 0
    %3370 = vmatmul.mubr.bf16.gmra.mxu0 %v2971
    %v3371 = vpop.f32.mrf.mxu0
    %v3372 = vadd.f32 0.0, %v3371
    %v3373 = vpop.f32.mrf.mxu0
    %v3374 = vadd.f32 0.0, %v3373
    %v3375 = vpop.f32.mrf.mxu0
    %v3376 = vadd.f32 0.0, %v3375
    %v3377 = vpop.f32.mrf.mxu0
    %v3378 = vadd.f32 0.0, %v3377
    %3379 = vmatprep.mubr.bf16.mxu0 0
    %3380 = vmatmul.mubr.bf16.gmra.mxu0 %v2974
    %v3381 = vpop.f32.mrf.mxu0
    %v3382 = vadd.f32 0.0, %v3381
    %v3383 = vpop.f32.mrf.mxu0
    %v3384 = vadd.f32 0.0, %v3383
    %v3385 = vpop.f32.mrf.mxu0
    %v3386 = vadd.f32 0.0, %v3385
    %v3387 = vpop.f32.mrf.mxu0
    %v3388 = vadd.f32 0.0, %v3387
    %3389 = vmatprep.mubr.bf16.mxu0 0
    %3390 = vmatmul.mubr.bf16.gmra.mxu0 %v2977
    %v3391 = vpop.f32.mrf.mxu0
    %v3392 = vadd.f32 0.0, %v3391
    %v3393 = vpop.f32.mrf.mxu0
    %v3394 = vadd.f32 0.0, %v3393
    %v3395 = vpop.f32.mrf.mxu0
    %v3396 = vadd.f32 0.0, %v3395
    %v3397 = vpop.f32.mrf.mxu0
    %v3398 = vadd.f32 0.0, %v3397
    %3399 = vmatprep.mubr.bf16.mxu0 0
    %3400 = vmatmul.mubr.bf16.gmra.mxu0 %v2980
    %v3401 = vpop.f32.mrf.mxu0
    %v3402 = vadd.f32 0.0, %v3401
    %v3403 = vpop.f32.mrf.mxu0
    %v3404 = vadd.f32 0.0, %v3403
    %v3405 = vpop.f32.mrf.mxu0
    %v3406 = vadd.f32 0.0, %v3405
    %v3407 = vpop.f32.mrf.mxu0
    %v3408 = vadd.f32 0.0, %v3407
    %3409 = vmatprep.mubr.bf16.mxu0 0
    %3410 = vmatmul.mubr.bf16.gmra.mxu0 %v2983
    %v3411 = vpop.f32.mrf.mxu0
    %v3412 = vadd.f32 0.0, %v3411
    %v3413 = vpop.f32.mrf.mxu0
    %v3414 = vadd.f32 0.0, %v3413
    %v3415 = vpop.f32.mrf.mxu0
    %v3416 = vadd.f32 0.0, %v3415
    %v3417 = vpop.f32.mrf.mxu0
    %v3418 = vadd.f32 0.0, %v3417
    %3419 = vmatprep.mubr.bf16.mxu0 0
    %3420 = vmatmul.mubr.bf16.gmra.mxu0 %v2986
    %v3421 = vpop.f32.mrf.mxu0
    %v3422 = vadd.f32 0.0, %v3421
    %v3423 = vpop.f32.mrf.mxu0
    %v3424 = vadd.f32 0.0, %v3423
    %v3425 = vpop.f32.mrf.mxu0
    %v3426 = vadd.f32 0.0, %v3425
    %v3427 = vpop.f32.mrf.mxu0
    %v3428 = vadd.f32 0.0, %v3427
    %3429 = vmatprep.mubr.bf16.mxu0 0
    %3430 = vmatmul.mubr.bf16.gmra.mxu0 %v2989
    %v3431 = vpop.f32.mrf.mxu0
    %v3432 = vadd.f32 0.0, %v3431
    %v3433 = vpop.f32.mrf.mxu0
    %v3434 = vadd.f32 0.0, %v3433
    %v3435 = vpop.f32.mrf.mxu0
    %v3436 = vadd.f32 0.0, %v3435
    %v3437 = vpop.f32.mrf.mxu0
    %v3438 = vadd.f32 0.0, %v3437
    %3439 = vmatprep.mubr.bf16.mxu0 0
    %3440 = vmatmul.mubr.bf16.gmra.mxu0 %v2992
    %v3441 = vpop.f32.mrf.mxu0
    %v3442 = vadd.f32 0.0, %v3441
    %v3443 = vpop.f32.mrf.mxu0
    %v3444 = vadd.f32 0.0, %v3443
    %v3445 = vpop.f32.mrf.mxu0
    %v3446 = vadd.f32 0.0, %v3445
    %v3447 = vpop.f32.mrf.mxu0
    %v3448 = vadd.f32 0.0, %v3447
    %3449 = vmatprep.mubr.bf16.mxu0 0
    %3450 = vmatmul.mubr.bf16.gmra.mxu0 %v2995
    %v3451 = vpop.f32.mrf.mxu0
    %v3452 = vadd.f32 0.0, %v3451
    %v3453 = vpop.f32.mrf.mxu0
    %v3454 = vadd.f32 0.0, %v3453
    %v3455 = vpop.f32.mrf.mxu0
    %v3456 = vadd.f32 0.0, %v3455
    %v3457 = vpop.f32.mrf.mxu0
    %v3458 = vadd.f32 0.0, %v3457
    %3459 = vmatprep.mubr.bf16.mxu0 0
    %3460 = vmatmul.mubr.bf16.gmra.mxu0 %v2998
    %v3461 = vpop.f32.mrf.mxu0
    %v3462 = vadd.f32 0.0, %v3461
    %v3463 = vpop.f32.mrf.mxu0
    %v3464 = vadd.f32 0.0, %v3463
    %v3465 = vpop.f32.mrf.mxu0
    %v3466 = vadd.f32 0.0, %v3465
    %v3467 = vpop.f32.mrf.mxu0
    %v3468 = vadd.f32 0.0, %v3467
    %3469 = vmatprep.mubr.bf16.mxu0 0
    %3470 = vmatmul.mubr.bf16.gmra.mxu0 %v3001
    %v3471 = vpop.f32.mrf.mxu0
    %v3472 = vadd.f32 0.0, %v3471
    %v3473 = vpop.f32.mrf.mxu0
    %v3474 = vadd.f32 0.0, %v3473
    %v3475 = vpop.f32.mrf.mxu0
    %v3476 = vadd.f32 0.0, %v3475
    %v3477 = vpop.f32.mrf.mxu0
    %v3478 = vadd.f32 0.0, %v3477
    %3479 = vdwg.mxu0
    %v3480 = vadd.f32 %v2720, %v3056
    %v3481 = vadd.f32 %v2721, %v3058
    %v3482 = vadd.f32 %v2722, %v3209
    %v3483 = vadd.f32 %v2723, %v3211
    %v3484 = vadd.f32 %v2724, %v3362
    %v3485 = vadd.f32 %v2725, %v3364
    %v3486 = vadd.f32 %v2726, %v3060
    %v3487 = vadd.f32 %v2727, %v3062
    %v3488 = vadd.f32 %v2728, %v3213
    %v3489 = vadd.f32 %v2729, %v3215
    %v3490 = vadd.f32 %v2730, %v3366
    %v3491 = vadd.f32 %v2731, %v3368
    %v3492 = vadd.f32 %v2732, %v3066
    %v3493 = vadd.f32 %v2733, %v3068
    %v3494 = vadd.f32 %v2734, %v3219
    %v3495 = vadd.f32 %v2735, %v3221
    %v3496 = vadd.f32 %v2736, %v3372
    %v3497 = vadd.f32 %v2737, %v3374
    %v3498 = vadd.f32 %v2738, %v3070
    %v3499 = vadd.f32 %v2739, %v3072
    %v3500 = vadd.f32 %v2740, %v3223
    %v3501 = vadd.f32 %v2741, %v3225
    %v3502 = vadd.f32 %v2742, %v3376
    %v3503 = vadd.f32 %v2743, %v3378
    %v3504 = vadd.f32 %v2744, %v3076
    %v3505 = vadd.f32 %v2745, %v3078
    %v3506 = vadd.f32 %v2746, %v3229
    %v3507 = vadd.f32 %v2747, %v3231
    %v3508 = vadd.f32 %v2748, %v3382
    %v3509 = vadd.f32 %v2749, %v3384
    %v3510 = vadd.f32 %v2750, %v3080
    %v3511 = vadd.f32 %v2751, %v3082
    %v3512 = vadd.f32 %v2752, %v3233
    %v3513 = vadd.f32 %v2753, %v3235
    %v3514 = vadd.f32 %v2754, %v3386
    %v3515 = vadd.f32 %v2755, %v3388
    %v3516 = vadd.f32 %v2756, %v3086
    %v3517 = vadd.f32 %v2757, %v3088
    %v3518 = vadd.f32 %v2758, %v3239
    %v3519 = vadd.f32 %v2759, %v3241
    %v3520 = vadd.f32 %v2760, %v3392
    %v3521 = vadd.f32 %v2761, %v3394
    %v3522 = vadd.f32 %v2762, %v3090
    %v3523 = vadd.f32 %v2763, %v3092
    %v3524 = vadd.f32 %v2764, %v3243
    %v3525 = vadd.f32 %v2765, %v3245
    %v3526 = vadd.f32 %v2766, %v3396
    %v3527 = vadd.f32 %v2767, %v3398
    %v3528 = vadd.f32 %v2768, %v3096
    %v3529 = vadd.f32 %v2769, %v3098
    %v3530 = vadd.f32 %v2770, %v3249
    %v3531 = vadd.f32 %v2771, %v3251
    %v3532 = vadd.f32 %v2772, %v3402
    %v3533 = vadd.f32 %v2773, %v3404
    %v3534 = vadd.f32 %v2774, %v3100
    %v3535 = vadd.f32 %v2775, %v3102
    %v3536 = vadd.f32 %v2776, %v3253
    %v3537 = vadd.f32 %v2777, %v3255
    %v3538 = vadd.f32 %v2778, %v3406
    %v3539 = vadd.f32 %v2779, %v3408
    %v3540 = vadd.f32 %v2780, %v3106
    %v3541 = vadd.f32 %v2781, %v3108
    %v3542 = vadd.f32 %v2782, %v3259
    %v3543 = vadd.f32 %v2783, %v3261
    %v3544 = vadd.f32 %v2784, %v3412
    %v3545 = vadd.f32 %v2785, %v3414
    %v3546 = vadd.f32 %v2786, %v3110
    %v3547 = vadd.f32 %v2787, %v3112
    %v3548 = vadd.f32 %v2788, %v3263
    %v3549 = vadd.f32 %v2789, %v3265
    %v3550 = vadd.f32 %v2790, %v3416
    %v3551 = vadd.f32 %v2791, %v3418
    %v3552 = vadd.f32 %v2792, %v3116
    %v3553 = vadd.f32 %v2793, %v3118
    %v3554 = vadd.f32 %v2794, %v3269
    %v3555 = vadd.f32 %v2795, %v3271
    %v3556 = vadd.f32 %v2796, %v3422
    %v3557 = vadd.f32 %v2797, %v3424
    %v3558 = vadd.f32 %v2798, %v3120
    %v3559 = vadd.f32 %v2799, %v3122
    %v3560 = vadd.f32 %v2800, %v3273
    %v3561 = vadd.f32 %v2801, %v3275
    %v3562 = vadd.f32 %v2802, %v3426
    %v3563 = vadd.f32 %v2803, %v3428
    %v3564 = vadd.f32 %v2804, %v3126
    %v3565 = vadd.f32 %v2805, %v3128
    %v3566 = vadd.f32 %v2806, %v3279
    %v3567 = vadd.f32 %v2807, %v3281
    %v3568 = vadd.f32 %v2808, %v3432
    %v3569 = vadd.f32 %v2809, %v3434
    %v3570 = vadd.f32 %v2810, %v3130
    %v3571 = vadd.f32 %v2811, %v3132
    %v3572 = vadd.f32 %v2812, %v3283
    %v3573 = vadd.f32 %v2813, %v3285
    %v3574 = vadd.f32 %v2814, %v3436
    %v3575 = vadd.f32 %v2815, %v3438
    %v3576 = vadd.f32 %v2816, %v3136
    %v3577 = vadd.f32 %v2817, %v3138
    %v3578 = vadd.f32 %v2818, %v3289
    %v3579 = vadd.f32 %v2819, %v3291
    %v3580 = vadd.f32 %v2820, %v3442
    %v3581 = vadd.f32 %v2821, %v3444
    %v3582 = vadd.f32 %v2822, %v3140
    %v3583 = vadd.f32 %v2823, %v3142
    %v3584 = vadd.f32 %v2824, %v3293
    %v3585 = vadd.f32 %v2825, %v3295
    %v3586 = vadd.f32 %v2826, %v3446
    %v3587 = vadd.f32 %v2827, %v3448
    %v3588 = vadd.f32 %v2828, %v3146
    %v3589 = vadd.f32 %v2829, %v3148
    %v3590 = vadd.f32 %v2830, %v3299
    %v3591 = vadd.f32 %v2831, %v3301
    %v3592 = vadd.f32 %v2832, %v3452
    %v3593 = vadd.f32 %v2833, %v3454
    %v3594 = vadd.f32 %v2834, %v3150
    %v3595 = vadd.f32 %v2835, %v3152
    %v3596 = vadd.f32 %v2836, %v3303
    %v3597 = vadd.f32 %v2837, %v3305
    %v3598 = vadd.f32 %v2838, %v3456
    %v3599 = vadd.f32 %v2839, %v3458
    %v3600 = vadd.f32 %v2840, %v3156
    %v3601 = vadd.f32 %v2841, %v3158
    %v3602 = vadd.f32 %v2842, %v3309
    %v3603 = vadd.f32 %v2843, %v3311
    %v3604 = vadd.f32 %v2844, %v3462
    %v3605 = vadd.f32 %v2845, %v3464
    %v3606 = vadd.f32 %v2846, %v3160
    %v3607 = vadd.f32 %v2847, %v3162
    %v3608 = vadd.f32 %v2848, %v3313
    %v3609 = vadd.f32 %v2849, %v3315
    %v3610 = vadd.f32 %v2850, %v3466
    %v3611 = vadd.f32 %v2851, %v3468
    %v3612 = vadd.f32 %v2852, %v3166
    %v3613 = vadd.f32 %v2853, %v3168
    %v3614 = vadd.f32 %v2854, %v3319
    %v3615 = vadd.f32 %v2855, %v3321
    %v3616 = vadd.f32 %v2856, %v3472
    %v3617 = vadd.f32 %v2857, %v3474
    %v3618 = vadd.f32 %v2858, %v3170
    %v3619 = vadd.f32 %v2859, %v3172
    %v3620 = vadd.f32 %v2860, %v3323
    %v3621 = vadd.f32 %v2861, %v3325
    %v3622 = vadd.f32 %v2862, %v3476
    %v3623 = vadd.f32 %v2863, %v3478
    %v3624 = vld [vmem:[#allocation5] sm:$0x7]
    %v3625 = vmax.f32 %v3480, %v3486
    %v3626 = vmax.f32 %v3481, %v3487
    %v3627 = vmax.f32 %v3482, %v3488
    %v3628 = vmax.f32 %v3483, %v3489
    %v3629 = vmax.f32 %v3484, %v3490
    %v3630 = vmax.f32 %v3485, %v3491
    %v3631 = vmax.f32 %v3625, %v3628
    %v3632 = vmax.f32 %v3626, %v3629
    %v3633 = vmax.f32 %v3627, %v3630
    %v3635 = vlaneseq
    %v3636 = vshrl.u32 %v3635, 7
    %v3637 = vsub.s32 0, %v3636
    %v3638 = vrot.slane %v3624, %v3637
    %v3639 = vlaneseq
    %v3640 = vshrl.u32 %v3639, 7
    %v3641 = vsub.s32 1, %v3640
    %v3642 = vrot.slane %v3624, %v3641
    %v3643 = vlaneseq
    %v3644 = vshrl.u32 %v3643, 7
    %v3645 = vsub.s32 2, %v3644
    %v3646 = vrot.slane %v3624, %v3645
    %v3650 = vadd.f32 %v3631, %v3638
    %v3651 = vadd.f32 %v3632, %v3642
    %v3652 = vadd.f32 %v3633, %v3646
    %v3653 = vmax.f32 %v3650, 0.0
    %v3654 = vmax.f32 %v3651, 0.0
    %v3655 = vmax.f32 %v3652, 0.0
    %3656 = vst [vmem:[#allocation2] sm:$0xff] %v3653
    %3657 = vst [vmem:[#allocation2 + $0x8] sm:$0xff] %v3654
    %3658 = vst [vmem:[#allocation2 + $0x10] sm:$0xff] %v3655
    %v3659 = vmax.f32 %v3492, %v3498
    %v3660 = vmax.f32 %v3493, %v3499
    %v3661 = vmax.f32 %v3494, %v3500
    %v3662 = vmax.f32 %v3495, %v3501
    %v3663 = vmax.f32 %v3496, %v3502
    %v3664 = vmax.f32 %v3497, %v3503
    %v3665 = vmax.f32 %v3659, %v3662
    %v3666 = vmax.f32 %v3660, %v3663
    %v3667 = vmax.f32 %v3661, %v3664
    %v3668 = vadd.f32 %v3665, %v3638
    %v3669 = vadd.f32 %v3666, %v3642
    %v3670 = vadd.f32 %v3667, %v3646
    %v3671 = vmax.f32 %v3668, 0.0
    %v3672 = vmax.f32 %v3669, 0.0
    %v3673 = vmax.f32 %v3670, 0.0
    %3674 = vst [vmem:[#allocation2 + $0x18] sm:$0xff] %v3671
    %3675 = vst [vmem:[#allocation2 + $0x20] sm:$0xff] %v3672
    %3676 = vst [vmem:[#allocation2 + $0x28] sm:$0xff] %v3673
    %v3677 = vmax.f32 %v3504, %v3510
    %v3678 = vmax.f32 %v3505, %v3511
    %v3679 = vmax.f32 %v3506, %v3512
    %v3680 = vmax.f32 %v3507, %v3513
    %v3681 = vmax.f32 %v3508, %v3514
    %v3682 = vmax.f32 %v3509, %v3515
    %v3683 = vmax.f32 %v3677, %v3680
    %v3684 = vmax.f32 %v3678, %v3681
    %v3685 = vmax.f32 %v3679, %v3682
    %v3686 = vadd.f32 %v3683, %v3638
    %v3687 = vadd.f32 %v3684, %v3642
    %v3688 = vadd.f32 %v3685, %v3646
    %v3689 = vmax.f32 %v3686, 0.0
    %v3690 = vmax.f32 %v3687, 0.0
    %v3691 = vmax.f32 %v3688, 0.0
    %3692 = vst [vmem:[#allocation2 + $0x30] sm:$0xff] %v3689
    %3693 = vst [vmem:[#allocation2 + $0x38] sm:$0xff] %v3690
    %3694 = vst [vmem:[#allocation2 + $0x40] sm:$0xff] %v3691
    %v3695 = vmax.f32 %v3516, %v3522
    %v3696 = vmax.f32 %v3517, %v3523
    %v3697 = vmax.f32 %v3518, %v3524
    %v3698 = vmax.f32 %v3519, %v3525
    %v3699 = vmax.f32 %v3520, %v3526
    %v3700 = vmax.f32 %v3521, %v3527
    %v3701 = vmax.f32 %v3695, %v3698
    %v3702 = vmax.f32 %v3696, %v3699
    %v3703 = vmax.f32 %v3697, %v3700
    %v3704 = vadd.f32 %v3701, %v3638
    %v3705 = vadd.f32 %v3702, %v3642
    %v3706 = vadd.f32 %v3703, %v3646
    %v3707 = vmax.f32 %v3704, 0.0
    %v3708 = vmax.f32 %v3705, 0.0
    %v3709 = vmax.f32 %v3706, 0.0
    %3710 = vst [vmem:[#allocation2 + $0x48] sm:$0xff] %v3707
    %3711 = vst [vmem:[#allocation2 + $0x50] sm:$0xff] %v3708
    %3712 = vst [vmem:[#allocation2 + $0x58] sm:$0xff] %v3709
    %v3713 = vmax.f32 %v3528, %v3534
    %v3714 = vmax.f32 %v3529, %v3535
    %v3715 = vmax.f32 %v3530, %v3536
    %v3716 = vmax.f32 %v3531, %v3537
    %v3717 = vmax.f32 %v3532, %v3538
    %v3718 = vmax.f32 %v3533, %v3539
    %v3719 = vmax.f32 %v3713, %v3716
    %v3720 = vmax.f32 %v3714, %v3717
    %v3721 = vmax.f32 %v3715, %v3718
    %v3722 = vadd.f32 %v3719, %v3638
    %v3723 = vadd.f32 %v3720, %v3642
    %v3724 = vadd.f32 %v3721, %v3646
    %v3725 = vmax.f32 %v3722, 0.0
    %v3726 = vmax.f32 %v3723, 0.0
    %v3727 = vmax.f32 %v3724, 0.0
    %3728 = vst [vmem:[#allocation2 + $0x60] sm:$0xff] %v3725
    %3729 = vst [vmem:[#allocation2 + $0x68] sm:$0xff] %v3726
    %3730 = vst [vmem:[#allocation2 + $0x70] sm:$0xff] %v3727
    %v3731 = vmax.f32 %v3540, %v3546
    %v3732 = vmax.f32 %v3541, %v3547
    %v3733 = vmax.f32 %v3542, %v3548
    %v3734 = vmax.f32 %v3543, %v3549
    %v3735 = vmax.f32 %v3544, %v3550
    %v3736 = vmax.f32 %v3545, %v3551
    %v3737 = vmax.f32 %v3731, %v3734
    %v3738 = vmax.f32 %v3732, %v3735
    %v3739 = vmax.f32 %v3733, %v3736
    %v3740 = vadd.f32 %v3737, %v3638
    %v3741 = vadd.f32 %v3738, %v3642
    %v3742 = vadd.f32 %v3739, %v3646
    %v3743 = vmax.f32 %v3740, 0.0
    %v3744 = vmax.f32 %v3741, 0.0
    %v3745 = vmax.f32 %v3742, 0.0
    %3746 = vst [vmem:[#allocation2 + $0x78] sm:$0xff] %v3743
    %3747 = vst [vmem:[#allocation2 + $0x80] sm:$0xff] %v3744
    %3748 = vst [vmem:[#allocation2 + $0x88] sm:$0xff] %v3745
    %v3749 = vmax.f32 %v3552, %v3558
    %v3750 = vmax.f32 %v3553, %v3559
    %v3751 = vmax.f32 %v3554, %v3560
    %v3752 = vmax.f32 %v3555, %v3561
    %v3753 = vmax.f32 %v3556, %v3562
    %v3754 = vmax.f32 %v3557, %v3563
    %v3755 = vmax.f32 %v3749, %v3752
    %v3756 = vmax.f32 %v3750, %v3753
    %v3757 = vmax.f32 %v3751, %v3754
    %v3758 = vadd.f32 %v3755, %v3638
    %v3759 = vadd.f32 %v3756, %v3642
    %v3760 = vadd.f32 %v3757, %v3646
    %v3761 = vmax.f32 %v3758, 0.0
    %v3762 = vmax.f32 %v3759, 0.0
    %v3763 = vmax.f32 %v3760, 0.0
    %3764 = vst [vmem:[#allocation2 + $0x90] sm:$0xff] %v3761
    %3765 = vst [vmem:[#allocation2 + $0x98] sm:$0xff] %v3762
    %3766 = vst [vmem:[#allocation2 + $0xa0] sm:$0xff] %v3763
    %v3767 = vmax.f32 %v3564, %v3570
    %v3768 = vmax.f32 %v3565, %v3571
    %v3769 = vmax.f32 %v3566, %v3572
    %v3770 = vmax.f32 %v3567, %v3573
    %v3771 = vmax.f32 %v3568, %v3574
    %v3772 = vmax.f32 %v3569, %v3575
    %v3773 = vmax.f32 %v3767, %v3770
    %v3774 = vmax.f32 %v3768, %v3771
    %v3775 = vmax.f32 %v3769, %v3772
    %v3776 = vadd.f32 %v3773, %v3638
    %v3777 = vadd.f32 %v3774, %v3642
    %v3778 = vadd.f32 %v3775, %v3646
    %v3779 = vmax.f32 %v3776, 0.0
    %v3780 = vmax.f32 %v3777, 0.0
    %v3781 = vmax.f32 %v3778, 0.0
    %3782 = vst [vmem:[#allocation2 + $0xa8] sm:$0xff] %v3779
    %3783 = vst [vmem:[#allocation2 + $0xb0] sm:$0xff] %v3780
    %3784 = vst [vmem:[#allocation2 + $0xb8] sm:$0xff] %v3781
    %v3785 = vmax.f32 %v3576, %v3582
    %v3786 = vmax.f32 %v3577, %v3583
    %v3787 = vmax.f32 %v3578, %v3584
    %v3788 = vmax.f32 %v3579, %v3585
    %v3789 = vmax.f32 %v3580, %v3586
    %v3790 = vmax.f32 %v3581, %v3587
    %v3791 = vmax.f32 %v3785, %v3788
    %v3792 = vmax.f32 %v3786, %v3789
    %v3793 = vmax.f32 %v3787, %v3790
    %v3794 = vadd.f32 %v3791, %v3638
    %v3795 = vadd.f32 %v3792, %v3642
    %v3796 = vadd.f32 %v3793, %v3646
    %v3797 = vmax.f32 %v3794, 0.0
    %v3798 = vmax.f32 %v3795, 0.0
    %v3799 = vmax.f32 %v3796, 0.0
    %3800 = vst [vmem:[#allocation2 + $0xc0] sm:$0xff] %v3797
    %3801 = vst [vmem:[#allocation2 + $0xc8] sm:$0xff] %v3798
    %3802 = vst [vmem:[#allocation2 + $0xd0] sm:$0xff] %v3799
    %v3803 = vmax.f32 %v3588, %v3594
    %v3804 = vmax.f32 %v3589, %v3595
    %v3805 = vmax.f32 %v3590, %v3596
    %v3806 = vmax.f32 %v3591, %v3597
    %v3807 = vmax.f32 %v3592, %v3598
    %v3808 = vmax.f32 %v3593, %v3599
    %v3809 = vmax.f32 %v3803, %v3806
    %v3810 = vmax.f32 %v3804, %v3807
    %v3811 = vmax.f32 %v3805, %v3808
    %v3812 = vadd.f32 %v3809, %v3638
    %v3813 = vadd.f32 %v3810, %v3642
    %v3814 = vadd.f32 %v3811, %v3646
    %v3815 = vmax.f32 %v3812, 0.0
    %v3816 = vmax.f32 %v3813, 0.0
    %v3817 = vmax.f32 %v3814, 0.0
    %3818 = vst [vmem:[#allocation2 + $0xd8] sm:$0xff] %v3815
    %3819 = vst [vmem:[#allocation2 + $0xe0] sm:$0xff] %v3816
    %3820 = vst [vmem:[#allocation2 + $0xe8] sm:$0xff] %v3817
    %v3821 = vmax.f32 %v3600, %v3606
    %v3822 = vmax.f32 %v3601, %v3607
    %v3823 = vmax.f32 %v3602, %v3608
    %v3824 = vmax.f32 %v3603, %v3609
    %v3825 = vmax.f32 %v3604, %v3610
    %v3826 = vmax.f32 %v3605, %v3611
    %v3827 = vmax.f32 %v3821, %v3824
    %v3828 = vmax.f32 %v3822, %v3825
    %v3829 = vmax.f32 %v3823, %v3826
    %v3830 = vadd.f32 %v3827, %v3638
    %v3831 = vadd.f32 %v3828, %v3642
    %v3832 = vadd.f32 %v3829, %v3646
    %v3833 = vmax.f32 %v3830, 0.0
    %v3834 = vmax.f32 %v3831, 0.0
    %v3835 = vmax.f32 %v3832, 0.0
    %3836 = vst [vmem:[#allocation2 + $0xf0] sm:$0xff] %v3833
    %3837 = vst [vmem:[#allocation2 + $0xf8] sm:$0xff] %v3834
    %3838 = vst [vmem:[#allocation2 + $0x100] sm:$0xff] %v3835
    %v3839 = vmax.f32 %v3612, %v3618
    %v3840 = vmax.f32 %v3613, %v3619
    %v3841 = vmax.f32 %v3614, %v3620
    %v3842 = vmax.f32 %v3615, %v3621
    %v3843 = vmax.f32 %v3616, %v3622
    %v3844 = vmax.f32 %v3617, %v3623
    %v3845 = vmax.f32 %v3839, %v3842
    %v3846 = vmax.f32 %v3840, %v3843
    %v3847 = vmax.f32 %v3841, %v3844
    %v3848 = vadd.f32 %v3845, %v3638
    %v3849 = vadd.f32 %v3846, %v3642
    %v3850 = vadd.f32 %v3847, %v3646
    %v3851 = vmax.f32 %v3848, 0.0
    %v3852 = vmax.f32 %v3849, 0.0
    %v3853 = vmax.f32 %v3850, 0.0
    %3854 = vst [vmem:[#allocation2 + $0x108] sm:$0xff] %v3851
    %3855 = vst [vmem:[#allocation2 + $0x110] sm:$0xff] %v3852
    %3856 = vst [vmem:[#allocation2 + $0x118] sm:$0xff] %v3853
    %v3857 = vld [vmem:[#allocation2] sm:$0xff]
    %v3858 = vld [vmem:[#allocation2 + $0x8] sm:$0xff]
    %v3859 = vld [vmem:[#allocation2 + $0x10] sm:$0xff]
    %v3860 = vld [vmem:[#allocation2 + $0x18] sm:$0xff]
    %v3861 = vld [vmem:[#allocation2 + $0x20] sm:$0xff]
    %v3862 = vld [vmem:[#allocation2 + $0x28] sm:$0xff]
    %v3863 = vld [vmem:[#allocation2 + $0x30] sm:$0xff]
    %v3864 = vld [vmem:[#allocation2 + $0x38] sm:$0xff]
    %v3865 = vld [vmem:[#allocation2 + $0x40] sm:$0xff]
    %v3866 = vld [vmem:[#allocation2 + $0x48] sm:$0xff]
    %v3867 = vld [vmem:[#allocation2 + $0x50] sm:$0xff]
    %v3868 = vld [vmem:[#allocation2 + $0x58] sm:$0xff]
    %v3869 = vld [vmem:[#allocation2 + $0x60] sm:$0xff]
    %v3870 = vld [vmem:[#allocation2 + $0x68] sm:$0xff]
    %v3871 = vld [vmem:[#allocation2 + $0x70] sm:$0xff]
    %v3872 = vld [vmem:[#allocation2 + $0x78] sm:$0xff]
    %v3873 = vld [vmem:[#allocation2 + $0x80] sm:$0xff]
    %v3874 = vld [vmem:[#allocation2 + $0x88] sm:$0xff]
    %v3875 = vld [vmem:[#allocation2 + $0x90] sm:$0xff]
    %v3876 = vld [vmem:[#allocation2 + $0x98] sm:$0xff]
    %v3877 = vld [vmem:[#allocation2 + $0xa0] sm:$0xff]
    %v3878 = vld [vmem:[#allocation2 + $0xa8] sm:$0xff]
    %v3879 = vld [vmem:[#allocation2 + $0xb0] sm:$0xff]
    %v3880 = vld [vmem:[#allocation2 + $0xb8] sm:$0xff]
    %v3881 = vpack.c.bf16 %v3860, %v3857
    %v3882 = vpack.c.bf16 %v3861, %v3858
    %v3883 = vpack.c.bf16 %v3862, %v3859
    %v3884 = vpack.c.bf16 %v3866, %v3863
    %v3885 = vpack.c.bf16 %v3867, %v3864
    %v3886 = vpack.c.bf16 %v3868, %v3865
    %v3887 = vpack.c.bf16 %v3872, %v3869
    %v3888 = vpack.c.bf16 %v3873, %v3870
    %v3889 = vpack.c.bf16 %v3874, %v3871
    %v3890 = vpack.c.bf16 %v3878, %v3875
    %v3891 = vpack.c.bf16 %v3879, %v3876
    %v3892 = vpack.c.bf16 %v3880, %v3877
    %v3893 = vld [vmem:[#allocation7] sm:$0xff]
    %v3894 = vld [vmem:[#allocation7 + $0x8] sm:$0xff]
    %v3895 = vld [vmem:[#allocation7 + $0x10] sm:$0xff]
    %v3896 = vld [vmem:[#allocation7 + $0x18] sm:$0xff]
    %v3897 = vld [vmem:[#allocation7 + $0x20] sm:$0xff]
    %v3898 = vld [vmem:[#allocation7 + $0x28] sm:$0xff]
    %v3899 = vld [vmem:[#allocation7 + $0x30] sm:$0xff]
    %v3900 = vld [vmem:[#allocation7 + $0x38] sm:$0xff]
    %v3901 = vld [vmem:[#allocation7 + $0x40] sm:$0xff]
    %v3902 = vld [vmem:[#allocation7 + $0x48] sm:$0xff]
    %v3903 = vld [vmem:[#allocation7 + $0x50] sm:$0xff]
    %v3904 = vld [vmem:[#allocation7 + $0x58] sm:$0xff]
    %v3905 = vld [vmem:[#allocation7 + $0x60] sm:$0xff]
    %v3906 = vld [vmem:[#allocation7 + $0x68] sm:$0xff]
    %v3907 = vld [vmem:[#allocation7 + $0x70] sm:$0xff]
    %v3908 = vld [vmem:[#allocation7 + $0x78] sm:$0xff]
    %v3909 = vld [vmem:[#allocation7 + $0x80] sm:$0xff]
    %v3910 = vld [vmem:[#allocation7 + $0x88] sm:$0xff]
    %v3911 = vld [vmem:[#allocation7 + $0x90] sm:$0xff]
    %v3912 = vld [vmem:[#allocation7 + $0x98] sm:$0xff]
    %v3913 = vld [vmem:[#allocation7 + $0xa0] sm:$0xff]
    %v3914 = vld [vmem:[#allocation7 + $0xa8] sm:$0xff]
    %v3915 = vld [vmem:[#allocation7 + $0xb0] sm:$0xff]
    %v3916 = vld [vmem:[#allocation7 + $0xb8] sm:$0xff]
    %v3917 = vld [vmem:[#allocation7 + $0xc0] sm:$0xff]
    %v3918 = vld [vmem:[#allocation7 + $0xc8] sm:$0xff]
    %v3919 = vld [vmem:[#allocation7 + $0xd0] sm:$0xff]
    %v3920 = vld [vmem:[#allocation7 + $0xd8] sm:$0xff]
    %v3921 = vld [vmem:[#allocation7 + $0xe0] sm:$0xff]
    %v3922 = vld [vmem:[#allocation7 + $0xe8] sm:$0xff]
    %v3923 = vld [vmem:[#allocation7 + $0xf0] sm:$0xff]
    %v3924 = vld [vmem:[#allocation7 + $0xf8] sm:$0xff]
    %v3925 = vld [vmem:[#allocation7 + $0x100] sm:$0xff]
    %v3926 = vld [vmem:[#allocation7 + $0x108] sm:$0xff]
    %v3927 = vld [vmem:[#allocation7 + $0x110] sm:$0xff]
    %v3928 = vld [vmem:[#allocation7 + $0x118] sm:$0xff]
    %v3929 = vld [vmem:[#allocation7 + $0x120] sm:$0xff]
    %v3930 = vld [vmem:[#allocation7 + $0x128] sm:$0xff]
    %v3931 = vld [vmem:[#allocation7 + $0x130] sm:$0xff]
    %v3932 = vld [vmem:[#allocation7 + $0x138] sm:$0xff]
    %v3933 = vld [vmem:[#allocation7 + $0x140] sm:$0xff]
    %v3934 = vld [vmem:[#allocation7 + $0x148] sm:$0xff]
    %v3935 = vld [vmem:[#allocation7 + $0x150] sm:$0xff]
    %v3936 = vld [vmem:[#allocation7 + $0x158] sm:$0xff]
    %v3937 = vld [vmem:[#allocation7 + $0x160] sm:$0xff]
    %v3938 = vld [vmem:[#allocation7 + $0x168] sm:$0xff]
    %v3939 = vld [vmem:[#allocation7 + $0x170] sm:$0xff]
    %v3940 = vld [vmem:[#allocation7 + $0x178] sm:$0xff]
    %v3941 = vld [vmem:[#allocation7 + $0x180] sm:$0xff]
    %v3942 = vld [vmem:[#allocation7 + $0x188] sm:$0xff]
    %v3943 = vld [vmem:[#allocation7 + $0x190] sm:$0xff]
    %v3944 = vld [vmem:[#allocation7 + $0x198] sm:$0xff]
    %v3945 = vld [vmem:[#allocation7 + $0x1a0] sm:$0xff]
    %v3946 = vld [vmem:[#allocation7 + $0x1a8] sm:$0xff]
    %v3947 = vld [vmem:[#allocation7 + $0x1b0] sm:$0xff]
    %v3948 = vld [vmem:[#allocation7 + $0x1b8] sm:$0xff]
    %v3949 = vld [vmem:[#allocation7 + $0x1c0] sm:$0xff]
    %v3950 = vld [vmem:[#allocation7 + $0x1c8] sm:$0xff]
    %v3951 = vld [vmem:[#allocation7 + $0x1d0] sm:$0xff]
    %v3952 = vld [vmem:[#allocation7 + $0x1d8] sm:$0xff]
    %v3953 = vld [vmem:[#allocation7 + $0x1e0] sm:$0xff]
    %v3954 = vld [vmem:[#allocation7 + $0x1e8] sm:$0xff]
    %v3955 = vld [vmem:[#allocation7 + $0x1f0] sm:$0xff]
    %v3956 = vld [vmem:[#allocation7 + $0x1f8] sm:$0xff]
    %v3957 = vld [vmem:[#allocation7 + $0x200] sm:$0xff]
    %v3958 = vld [vmem:[#allocation7 + $0x208] sm:$0xff]
    %v3959 = vld [vmem:[#allocation7 + $0x210] sm:$0xff]
    %v3960 = vld [vmem:[#allocation7 + $0x218] sm:$0xff]
    %v3961 = vld [vmem:[#allocation7 + $0x220] sm:$0xff]
    %v3962 = vld [vmem:[#allocation7 + $0x228] sm:$0xff]
    %v3963 = vld [vmem:[#allocation7 + $0x230] sm:$0xff]
    %v3964 = vld [vmem:[#allocation7 + $0x238] sm:$0xff]
    %v3965 = vld [vmem:[#allocation7 + $0x240] sm:$0xff]
    %v3966 = vld [vmem:[#allocation7 + $0x248] sm:$0xff]
    %v3967 = vld [vmem:[#allocation7 + $0x250] sm:$0xff]
    %v3968 = vld [vmem:[#allocation7 + $0x258] sm:$0xff]
    %v3969 = vld [vmem:[#allocation7 + $0x260] sm:$0xff]
    %v3970 = vld [vmem:[#allocation7 + $0x268] sm:$0xff]
    %v3971 = vld [vmem:[#allocation7 + $0x270] sm:$0xff]
    %v3972 = vld [vmem:[#allocation7 + $0x278] sm:$0xff]
    %v3973 = vld [vmem:[#allocation7 + $0x280] sm:$0xff]
    %v3974 = vld [vmem:[#allocation7 + $0x288] sm:$0xff]
    %v3975 = vld [vmem:[#allocation7 + $0x290] sm:$0xff]
    %v3976 = vld [vmem:[#allocation7 + $0x298] sm:$0xff]
    %v3977 = vld [vmem:[#allocation7 + $0x2a0] sm:$0xff]
    %v3978 = vld [vmem:[#allocation7 + $0x2a8] sm:$0xff]
    %v3979 = vld [vmem:[#allocation7 + $0x2b0] sm:$0xff]
    %v3980 = vld [vmem:[#allocation7 + $0x2b8] sm:$0xff]
    %v3981 = vld [vmem:[#allocation7 + $0x2c0] sm:$0xff]
    %v3982 = vld [vmem:[#allocation7 + $0x2c8] sm:$0xff]
    %v3983 = vld [vmem:[#allocation7 + $0x2d0] sm:$0xff]
    %v3984 = vld [vmem:[#allocation7 + $0x2d8] sm:$0xff]
    %v3985 = vld [vmem:[#allocation7 + $0x2e0] sm:$0xff]
    %v3986 = vld [vmem:[#allocation7 + $0x2e8] sm:$0xff]
    %v3987 = vld [vmem:[#allocation7 + $0x2f0] sm:$0xff]
    %v3988 = vld [vmem:[#allocation7 + $0x2f8] sm:$0xff]
    %v3989 = vld [vmem:[#allocation2 + $0xc0] sm:$0xff]
    %v3990 = vld [vmem:[#allocation2 + $0xc8] sm:$0xff]
    %v3991 = vld [vmem:[#allocation2 + $0xd0] sm:$0xff]
    %v3992 = vpack.c.bf16 %v3863, %v3860
    %v3993 = vpack.c.bf16 %v3864, %v3861
    %v3994 = vpack.c.bf16 %v3865, %v3862
    %v3995 = vpack.c.bf16 %v3869, %v3866
    %v3996 = vpack.c.bf16 %v3870, %v3867
    %v3997 = vpack.c.bf16 %v3871, %v3868
    %v3998 = vpack.c.bf16 %v3875, %v3872
    %v3999 = vpack.c.bf16 %v3876, %v3873
    %v4000 = vpack.c.bf16 %v3877, %v3874
    %v4001 = vpack.c.bf16 %v3989, %v3878
    %v4002 = vpack.c.bf16 %v3990, %v3879
    %v4003 = vpack.c.bf16 %v3991, %v3880
    %s4004 = scalar_lea.vmem [#allocation7], 768
    %v4005 = vld [vmem:[%s4004] sm:$0xff]
    %v4006 = vld [vmem:[%s4004 + $0x8] sm:$0xff]
    %v4007 = vld [vmem:[%s4004 + $0x10] sm:$0xff]
    %v4008 = vld [vmem:[%s4004 + $0x18] sm:$0xff]
    %v4009 = vld [vmem:[%s4004 + $0x20] sm:$0xff]
    %v4010 = vld [vmem:[%s4004 + $0x28] sm:$0xff]
    %v4011 = vld [vmem:[%s4004 + $0x30] sm:$0xff]
    %v4012 = vld [vmem:[%s4004 + $0x38] sm:$0xff]
    %v4013 = vld [vmem:[%s4004 + $0x40] sm:$0xff]
    %v4014 = vld [vmem:[%s4004 + $0x48] sm:$0xff]
    %v4015 = vld [vmem:[%s4004 + $0x50] sm:$0xff]
    %v4016 = vld [vmem:[%s4004 + $0x58] sm:$0xff]
    %v4017 = vld [vmem:[%s4004 + $0x60] sm:$0xff]
    %v4018 = vld [vmem:[%s4004 + $0x68] sm:$0xff]
    %v4019 = vld [vmem:[%s4004 + $0x70] sm:$0xff]
    %v4020 = vld [vmem:[%s4004 + $0x78] sm:$0xff]
    %v4021 = vld [vmem:[%s4004 + $0x80] sm:$0xff]
    %v4022 = vld [vmem:[%s4004 + $0x88] sm:$0xff]
    %v4023 = vld [vmem:[%s4004 + $0x90] sm:$0xff]
    %v4024 = vld [vmem:[%s4004 + $0x98] sm:$0xff]
    %v4025 = vld [vmem:[%s4004 + $0xa0] sm:$0xff]
    %v4026 = vld [vmem:[%s4004 + $0xa8] sm:$0xff]
    %v4027 = vld [vmem:[%s4004 + $0xb0] sm:$0xff]
    %v4028 = vld [vmem:[%s4004 + $0xb8] sm:$0xff]
    %v4029 = vld [vmem:[%s4004 + $0xc0] sm:$0xff]
    %v4030 = vld [vmem:[%s4004 + $0xc8] sm:$0xff]
    %v4031 = vld [vmem:[%s4004 + $0xd0] sm:$0xff]
    %v4032 = vld [vmem:[%s4004 + $0xd8] sm:$0xff]
    %v4033 = vld [vmem:[%s4004 + $0xe0] sm:$0xff]
    %v4034 = vld [vmem:[%s4004 + $0xe8] sm:$0xff]
    %v4035 = vld [vmem:[%s4004 + $0xf0] sm:$0xff]
    %v4036 = vld [vmem:[%s4004 + $0xf8] sm:$0xff]
    %v4037 = vld [vmem:[%s4004 + $0x100] sm:$0xff]
    %v4038 = vld [vmem:[%s4004 + $0x108] sm:$0xff]
    %v4039 = vld [vmem:[%s4004 + $0x110] sm:$0xff]
    %v4040 = vld [vmem:[%s4004 + $0x118] sm:$0xff]
    %v4041 = vld [vmem:[%s4004 + $0x120] sm:$0xff]
    %v4042 = vld [vmem:[%s4004 + $0x128] sm:$0xff]
    %v4043 = vld [vmem:[%s4004 + $0x130] sm:$0xff]
    %v4044 = vld [vmem:[%s4004 + $0x138] sm:$0xff]
    %v4045 = vld [vmem:[%s4004 + $0x140] sm:$0xff]
    %v4046 = vld [vmem:[%s4004 + $0x148] sm:$0xff]
    %v4047 = vld [vmem:[%s4004 + $0x150] sm:$0xff]
    %v4048 = vld [vmem:[%s4004 + $0x158] sm:$0xff]
    %v4049 = vld [vmem:[%s4004 + $0x160] sm:$0xff]
    %v4050 = vld [vmem:[%s4004 + $0x168] sm:$0xff]
    %v4051 = vld [vmem:[%s4004 + $0x170] sm:$0xff]
    %v4052 = vld [vmem:[%s4004 + $0x178] sm:$0xff]
    %v4053 = vld [vmem:[%s4004 + $0x180] sm:$0xff]
    %v4054 = vld [vmem:[%s4004 + $0x188] sm:$0xff]
    %v4055 = vld [vmem:[%s4004 + $0x190] sm:$0xff]
    %v4056 = vld [vmem:[%s4004 + $0x198] sm:$0xff]
    %v4057 = vld [vmem:[%s4004 + $0x1a0] sm:$0xff]
    %v4058 = vld [vmem:[%s4004 + $0x1a8] sm:$0xff]
    %v4059 = vld [vmem:[%s4004 + $0x1b0] sm:$0xff]
    %v4060 = vld [vmem:[%s4004 + $0x1b8] sm:$0xff]
    %v4061 = vld [vmem:[%s4004 + $0x1c0] sm:$0xff]
    %v4062 = vld [vmem:[%s4004 + $0x1c8] sm:$0xff]
    %v4063 = vld [vmem:[%s4004 + $0x1d0] sm:$0xff]
    %v4064 = vld [vmem:[%s4004 + $0x1d8] sm:$0xff]
    %v4065 = vld [vmem:[%s4004 + $0x1e0] sm:$0xff]
    %v4066 = vld [vmem:[%s4004 + $0x1e8] sm:$0xff]
    %v4067 = vld [vmem:[%s4004 + $0x1f0] sm:$0xff]
    %v4068 = vld [vmem:[%s4004 + $0x1f8] sm:$0xff]
    %v4069 = vld [vmem:[%s4004 + $0x200] sm:$0xff]
    %v4070 = vld [vmem:[%s4004 + $0x208] sm:$0xff]
    %v4071 = vld [vmem:[%s4004 + $0x210] sm:$0xff]
    %v4072 = vld [vmem:[%s4004 + $0x218] sm:$0xff]
    %v4073 = vld [vmem:[%s4004 + $0x220] sm:$0xff]
    %v4074 = vld [vmem:[%s4004 + $0x228] sm:$0xff]
    %v4075 = vld [vmem:[%s4004 + $0x230] sm:$0xff]
    %v4076 = vld [vmem:[%s4004 + $0x238] sm:$0xff]
    %v4077 = vld [vmem:[%s4004 + $0x240] sm:$0xff]
    %v4078 = vld [vmem:[%s4004 + $0x248] sm:$0xff]
    %v4079 = vld [vmem:[%s4004 + $0x250] sm:$0xff]
    %v4080 = vld [vmem:[%s4004 + $0x258] sm:$0xff]
    %v4081 = vld [vmem:[%s4004 + $0x260] sm:$0xff]
    %v4082 = vld [vmem:[%s4004 + $0x268] sm:$0xff]
    %v4083 = vld [vmem:[%s4004 + $0x270] sm:$0xff]
    %v4084 = vld [vmem:[%s4004 + $0x278] sm:$0xff]
    %v4085 = vld [vmem:[%s4004 + $0x280] sm:$0xff]
    %v4086 = vld [vmem:[%s4004 + $0x288] sm:$0xff]
    %v4087 = vld [vmem:[%s4004 + $0x290] sm:$0xff]
    %v4088 = vld [vmem:[%s4004 + $0x298] sm:$0xff]
    %v4089 = vld [vmem:[%s4004 + $0x2a0] sm:$0xff]
    %v4090 = vld [vmem:[%s4004 + $0x2a8] sm:$0xff]
    %v4091 = vld [vmem:[%s4004 + $0x2b0] sm:$0xff]
    %v4092 = vld [vmem:[%s4004 + $0x2b8] sm:$0xff]
    %v4093 = vld [vmem:[%s4004 + $0x2c0] sm:$0xff]
    %v4094 = vld [vmem:[%s4004 + $0x2c8] sm:$0xff]
    %v4095 = vld [vmem:[%s4004 + $0x2d0] sm:$0xff]
    %v4096 = vld [vmem:[%s4004 + $0x2d8] sm:$0xff]
    %v4097 = vld [vmem:[%s4004 + $0x2e0] sm:$0xff]
    %v4098 = vld [vmem:[%s4004 + $0x2e8] sm:$0xff]
    %v4099 = vld [vmem:[%s4004 + $0x2f0] sm:$0xff]
    %v4100 = vld [vmem:[%s4004 + $0x2f8] sm:$0xff]
    %v4197 = vunpack.c.l.b16 %v4005
    %v4198 = vunpack.c.h.b16 %v4005
    %v4199 = vunpack.c.l.b16 %v4006
    %v4200 = vunpack.c.h.b16 %v4006
    %v4201 = vunpack.c.l.b16 %v4007
    %v4202 = vunpack.c.h.b16 %v4007
    %v4203 = vunpack.c.l.b16 %v4008
    %v4204 = vunpack.c.h.b16 %v4008
    %v4205 = vunpack.c.l.b16 %v4009
    %v4206 = vunpack.c.h.b16 %v4009
    %v4207 = vunpack.c.l.b16 %v4010
    %v4208 = vunpack.c.h.b16 %v4010
    %v4209 = vunpack.c.l.b16 %v4011
    %v4210 = vunpack.c.h.b16 %v4011
    %v4211 = vunpack.c.l.b16 %v4012
    %v4212 = vunpack.c.h.b16 %v4012
    %v4213 = vunpack.c.l.b16 %v4013
    %v4214 = vunpack.c.h.b16 %v4013
    %v4215 = vunpack.c.l.b16 %v4014
    %v4216 = vunpack.c.h.b16 %v4014
    %v4217 = vunpack.c.l.b16 %v4015
    %v4218 = vunpack.c.h.b16 %v4015
    %v4219 = vunpack.c.l.b16 %v4016
    %v4220 = vunpack.c.h.b16 %v4016
    %v4221 = vunpack.c.l.b16 %v4017
    %v4222 = vunpack.c.h.b16 %v4017
    %v4223 = vunpack.c.l.b16 %v4018
    %v4224 = vunpack.c.h.b16 %v4018
    %v4225 = vunpack.c.l.b16 %v4019
    %v4226 = vunpack.c.h.b16 %v4019
    %v4227 = vunpack.c.l.b16 %v4020
    %v4228 = vunpack.c.h.b16 %v4020
    %v4229 = vunpack.c.l.b16 %v4021
    %v4230 = vunpack.c.h.b16 %v4021
    %v4231 = vunpack.c.l.b16 %v4022
    %v4232 = vunpack.c.h.b16 %v4022
    %v4233 = vunpack.c.l.b16 %v4023
    %v4234 = vunpack.c.h.b16 %v4023
    %v4235 = vunpack.c.l.b16 %v4024
    %v4236 = vunpack.c.h.b16 %v4024
    %v4237 = vunpack.c.l.b16 %v4025
    %v4238 = vunpack.c.h.b16 %v4025
    %v4239 = vunpack.c.l.b16 %v4026
    %v4240 = vunpack.c.h.b16 %v4026
    %v4241 = vunpack.c.l.b16 %v4027
    %v4242 = vunpack.c.h.b16 %v4027
    %v4243 = vunpack.c.l.b16 %v4028
    %v4244 = vunpack.c.h.b16 %v4028
    %v4245 = vunpack.c.l.b16 %v4029
    %v4246 = vunpack.c.h.b16 %v4029
    %v4247 = vunpack.c.l.b16 %v4030
    %v4248 = vunpack.c.h.b16 %v4030
    %v4249 = vunpack.c.l.b16 %v4031
    %v4250 = vunpack.c.h.b16 %v4031
    %v4251 = vunpack.c.l.b16 %v4032
    %v4252 = vunpack.c.h.b16 %v4032
    %v4253 = vunpack.c.l.b16 %v4033
    %v4254 = vunpack.c.h.b16 %v4033
    %v4255 = vunpack.c.l.b16 %v4034
    %v4256 = vunpack.c.h.b16 %v4034
    %v4257 = vunpack.c.l.b16 %v4035
    %v4258 = vunpack.c.h.b16 %v4035
    %v4259 = vunpack.c.l.b16 %v4036
    %v4260 = vunpack.c.h.b16 %v4036
    %v4261 = vunpack.c.l.b16 %v4037
    %v4262 = vunpack.c.h.b16 %v4037
    %v4263 = vunpack.c.l.b16 %v4038
    %v4264 = vunpack.c.h.b16 %v4038
    %v4265 = vunpack.c.l.b16 %v4039
    %v4266 = vunpack.c.h.b16 %v4039
    %v4267 = vunpack.c.l.b16 %v4040
    %v4268 = vunpack.c.h.b16 %v4040
    %v4269 = vunpack.c.l.b16 %v4041
    %v4270 = vunpack.c.h.b16 %v4041
    %v4271 = vunpack.c.l.b16 %v4042
    %v4272 = vunpack.c.h.b16 %v4042
    %v4273 = vunpack.c.l.b16 %v4043
    %v4274 = vunpack.c.h.b16 %v4043
    %v4275 = vunpack.c.l.b16 %v4044
    %v4276 = vunpack.c.h.b16 %v4044
    %v4277 = vunpack.c.l.b16 %v4045
    %v4278 = vunpack.c.h.b16 %v4045
    %v4279 = vunpack.c.l.b16 %v4046
    %v4280 = vunpack.c.h.b16 %v4046
    %v4281 = vunpack.c.l.b16 %v4047
    %v4282 = vunpack.c.h.b16 %v4047
    %v4283 = vunpack.c.l.b16 %v4048
    %v4284 = vunpack.c.h.b16 %v4048
    %v4285 = vunpack.c.l.b16 %v4049
    %v4286 = vunpack.c.h.b16 %v4049
    %v4287 = vunpack.c.l.b16 %v4050
    %v4288 = vunpack.c.h.b16 %v4050
    %v4289 = vunpack.c.l.b16 %v4051
    %v4290 = vunpack.c.h.b16 %v4051
    %v4291 = vunpack.c.l.b16 %v4052
    %v4292 = vunpack.c.h.b16 %v4052
    %v4293 = vunpack.c.l.b16 %v4053
    %v4294 = vunpack.c.h.b16 %v4053
    %v4295 = vunpack.c.l.b16 %v4054
    %v4296 = vunpack.c.h.b16 %v4054
    %v4297 = vunpack.c.l.b16 %v4055
    %v4298 = vunpack.c.h.b16 %v4055
    %v4299 = vunpack.c.l.b16 %v4056
    %v4300 = vunpack.c.h.b16 %v4056
    %v4301 = vunpack.c.l.b16 %v4057
    %v4302 = vunpack.c.h.b16 %v4057
    %v4303 = vunpack.c.l.b16 %v4058
    %v4304 = vunpack.c.h.b16 %v4058
    %v4305 = vunpack.c.l.b16 %v4059
    %v4306 = vunpack.c.h.b16 %v4059
    %v4307 = vunpack.c.l.b16 %v4060
    %v4308 = vunpack.c.h.b16 %v4060
    %v4309 = vunpack.c.l.b16 %v4061
    %v4310 = vunpack.c.h.b16 %v4061
    %v4311 = vunpack.c.l.b16 %v4062
    %v4312 = vunpack.c.h.b16 %v4062
    %v4313 = vunpack.c.l.b16 %v4063
    %v4314 = vunpack.c.h.b16 %v4063
    %v4315 = vunpack.c.l.b16 %v4064
    %v4316 = vunpack.c.h.b16 %v4064
    %v4317 = vunpack.c.l.b16 %v4065
    %v4318 = vunpack.c.h.b16 %v4065
    %v4319 = vunpack.c.l.b16 %v4066
    %v4320 = vunpack.c.h.b16 %v4066
    %v4321 = vunpack.c.l.b16 %v4067
    %v4322 = vunpack.c.h.b16 %v4067
    %v4323 = vunpack.c.l.b16 %v4068
    %v4324 = vunpack.c.h.b16 %v4068
    %v4325 = vunpack.c.l.b16 %v4069
    %v4326 = vunpack.c.h.b16 %v4069
    %v4327 = vunpack.c.l.b16 %v4070
    %v4328 = vunpack.c.h.b16 %v4070
    %v4329 = vunpack.c.l.b16 %v4071
    %v4330 = vunpack.c.h.b16 %v4071
    %v4331 = vunpack.c.l.b16 %v4072
    %v4332 = vunpack.c.h.b16 %v4072
    %v4333 = vunpack.c.l.b16 %v4073
    %v4334 = vunpack.c.h.b16 %v4073
    %v4335 = vunpack.c.l.b16 %v4074
    %v4336 = vunpack.c.h.b16 %v4074
    %v4337 = vunpack.c.l.b16 %v4075
    %v4338 = vunpack.c.h.b16 %v4075
    %v4339 = vunpack.c.l.b16 %v4076
    %v4340 = vunpack.c.h.b16 %v4076
    %v4341 = vunpack.c.l.b16 %v4077
    %v4342 = vunpack.c.h.b16 %v4077
    %v4343 = vunpack.c.l.b16 %v4078
    %v4344 = vunpack.c.h.b16 %v4078
    %v4345 = vunpack.c.l.b16 %v4079
    %v4346 = vunpack.c.h.b16 %v4079
    %v4347 = vunpack.c.l.b16 %v4080
    %v4348 = vunpack.c.h.b16 %v4080
    %v4349 = vunpack.c.l.b16 %v4081
    %v4350 = vunpack.c.h.b16 %v4081
    %v4351 = vunpack.c.l.b16 %v4082
    %v4352 = vunpack.c.h.b16 %v4082
    %v4353 = vunpack.c.l.b16 %v4083
    %v4354 = vunpack.c.h.b16 %v4083
    %v4355 = vunpack.c.l.b16 %v4084
    %v4356 = vunpack.c.h.b16 %v4084
    %v4357 = vunpack.c.l.b16 %v4085
    %v4358 = vunpack.c.h.b16 %v4085
    %v4359 = vunpack.c.l.b16 %v4086
    %v4360 = vunpack.c.h.b16 %v4086
    %v4361 = vunpack.c.l.b16 %v4087
    %v4362 = vunpack.c.h.b16 %v4087
    %v4363 = vunpack.c.l.b16 %v4088
    %v4364 = vunpack.c.h.b16 %v4088
    %v4365 = vunpack.c.l.b16 %v4089
    %v4366 = vunpack.c.h.b16 %v4089
    %v4367 = vunpack.c.l.b16 %v4090
    %v4368 = vunpack.c.h.b16 %v4090
    %v4369 = vunpack.c.l.b16 %v4091
    %v4370 = vunpack.c.h.b16 %v4091
    %v4371 = vunpack.c.l.b16 %v4092
    %v4372 = vunpack.c.h.b16 %v4092
    %v4373 = vunpack.c.l.b16 %v4093
    %v4374 = vunpack.c.h.b16 %v4093
    %v4375 = vunpack.c.l.b16 %v4094
    %v4376 = vunpack.c.h.b16 %v4094
    %v4377 = vunpack.c.l.b16 %v4095
    %v4378 = vunpack.c.h.b16 %v4095
    %v4379 = vunpack.c.l.b16 %v4096
    %v4380 = vunpack.c.h.b16 %v4096
    %v4381 = vunpack.c.l.b16 %v4097
    %v4382 = vunpack.c.h.b16 %v4097
    %v4383 = vunpack.c.l.b16 %v4098
    %v4384 = vunpack.c.h.b16 %v4098
    %v4385 = vunpack.c.l.b16 %v4099
    %v4386 = vunpack.c.h.b16 %v4099
    %v4387 = vunpack.c.l.b16 %v4100
    %v4388 = vunpack.c.h.b16 %v4100
    %v4389 = vpack.c.b16 %v4201, %v4197
    %v4390 = vpack.c.b16 %v4202, %v4198
    %v4391 = vpack.c.b16 %v4203, %v4199
    %v4392 = vpack.c.b16 %v4204, %v4200
    %v4393 = vpack.c.b16 %v4209, %v4205
    %v4394 = vpack.c.b16 %v4210, %v4206
    %v4395 = vpack.c.b16 %v4211, %v4207
    %v4396 = vpack.c.b16 %v4212, %v4208
    %v4397 = vpack.c.b16 %v4217, %v4213
    %v4398 = vpack.c.b16 %v4218, %v4214
    %v4399 = vpack.c.b16 %v4219, %v4215
    %v4400 = vpack.c.b16 %v4220, %v4216
    %v4401 = vpack.c.b16 %v4225, %v4221
    %v4402 = vpack.c.b16 %v4226, %v4222
    %v4403 = vpack.c.b16 %v4227, %v4223
    %v4404 = vpack.c.b16 %v4228, %v4224
    %v4405 = vpack.c.b16 %v4233, %v4229
    %v4406 = vpack.c.b16 %v4234, %v4230
    %v4407 = vpack.c.b16 %v4235, %v4231
    %v4408 = vpack.c.b16 %v4236, %v4232
    %v4409 = vpack.c.b16 %v4241, %v4237
    %v4410 = vpack.c.b16 %v4242, %v4238
    %v4411 = vpack.c.b16 %v4243, %v4239
    %v4412 = vpack.c.b16 %v4244, %v4240
    %v4413 = vpack.c.b16 %v4249, %v4245
    %v4414 = vpack.c.b16 %v4250, %v4246
    %v4415 = vpack.c.b16 %v4251, %v4247
    %v4416 = vpack.c.b16 %v4252, %v4248
    %v4417 = vpack.c.b16 %v4257, %v4253
    %v4418 = vpack.c.b16 %v4258, %v4254
    %v4419 = vpack.c.b16 %v4259, %v4255
    %v4420 = vpack.c.b16 %v4260, %v4256
    %v4421 = vpack.c.b16 %v4265, %v4261
    %v4422 = vpack.c.b16 %v4266, %v4262
    %v4423 = vpack.c.b16 %v4267, %v4263
    %v4424 = vpack.c.b16 %v4268, %v4264
    %v4425 = vpack.c.b16 %v4273, %v4269
    %v4426 = vpack.c.b16 %v4274, %v4270
    %v4427 = vpack.c.b16 %v4275, %v4271
    %v4428 = vpack.c.b16 %v4276, %v4272
    %v4429 = vpack.c.b16 %v4281, %v4277
    %v4430 = vpack.c.b16 %v4282, %v4278
    %v4431 = vpack.c.b16 %v4283, %v4279
    %v4432 = vpack.c.b16 %v4284, %v4280
    %v4433 = vpack.c.b16 %v4289, %v4285
    %v4434 = vpack.c.b16 %v4290, %v4286
    %v4435 = vpack.c.b16 %v4291, %v4287
    %v4436 = vpack.c.b16 %v4292, %v4288
    %v4437 = vpack.c.b16 %v4297, %v4293
    %v4438 = vpack.c.b16 %v4298, %v4294
    %v4439 = vpack.c.b16 %v4299, %v4295
    %v4440 = vpack.c.b16 %v4300, %v4296
    %v4441 = vpack.c.b16 %v4305, %v4301
    %v4442 = vpack.c.b16 %v4306, %v4302
    %v4443 = vpack.c.b16 %v4307, %v4303
    %v4444 = vpack.c.b16 %v4308, %v4304
    %v4445 = vpack.c.b16 %v4313, %v4309
    %v4446 = vpack.c.b16 %v4314, %v4310
    %v4447 = vpack.c.b16 %v4315, %v4311
    %v4448 = vpack.c.b16 %v4316, %v4312
    %v4449 = vpack.c.b16 %v4321, %v4317
    %v4450 = vpack.c.b16 %v4322, %v4318
    %v4451 = vpack.c.b16 %v4323, %v4319
    %v4452 = vpack.c.b16 %v4324, %v4320
    %v4453 = vpack.c.b16 %v4329, %v4325
    %v4454 = vpack.c.b16 %v4330, %v4326
    %v4455 = vpack.c.b16 %v4331, %v4327
    %v4456 = vpack.c.b16 %v4332, %v4328
    %v4457 = vpack.c.b16 %v4337, %v4333
    %v4458 = vpack.c.b16 %v4338, %v4334
    %v4459 = vpack.c.b16 %v4339, %v4335
    %v4460 = vpack.c.b16 %v4340, %v4336
    %v4461 = vpack.c.b16 %v4345, %v4341
    %v4462 = vpack.c.b16 %v4346, %v4342
    %v4463 = vpack.c.b16 %v4347, %v4343
    %v4464 = vpack.c.b16 %v4348, %v4344
    %v4465 = vpack.c.b16 %v4353, %v4349
    %v4466 = vpack.c.b16 %v4354, %v4350
    %v4467 = vpack.c.b16 %v4355, %v4351
    %v4468 = vpack.c.b16 %v4356, %v4352
    %v4469 = vpack.c.b16 %v4361, %v4357
    %v4470 = vpack.c.b16 %v4362, %v4358
    %v4471 = vpack.c.b16 %v4363, %v4359
    %v4472 = vpack.c.b16 %v4364, %v4360
    %v4473 = vpack.c.b16 %v4369, %v4365
    %v4474 = vpack.c.b16 %v4370, %v4366
    %v4475 = vpack.c.b16 %v4371, %v4367
    %v4476 = vpack.c.b16 %v4372, %v4368
    %v4477 = vpack.c.b16 %v4377, %v4373
    %v4478 = vpack.c.b16 %v4378, %v4374
    %v4479 = vpack.c.b16 %v4379, %v4375
    %v4480 = vpack.c.b16 %v4380, %v4376
    %v4481 = vpack.c.b16 %v4385, %v4381
    %v4482 = vpack.c.b16 %v4386, %v4382
    %v4483 = vpack.c.b16 %v4387, %v4383
    %v4484 = vpack.c.b16 %v4388, %v4384
    %4581 = vmatprep.subr.bf16.mxu0 %v4418
    %4582 = vmatpush1.bf16.msra.mxu0 %v4417
    %4583 = vmatprep.subr.bf16.mxu0 %v4414
    %4584 = vmatpush1.bf16.msra.mxu0 %v4413
    %4585 = vmatprep.subr.bf16.mxu0 %v4410
    %4586 = vmatpush1.bf16.msra.mxu0 %v4409
    %4587 = vmatprep.subr.bf16.mxu0 %v4406
    %4588 = vmatpush1.bf16.msra.mxu0 %v4405
    %4589 = vmatprep.subr.bf16.mxu0 %v4402
    %4590 = vmatpush1.bf16.msra.mxu0 %v4401
    %4591 = vmatprep.subr.bf16.mxu0 %v4398
    %4592 = vmatpush1.bf16.msra.mxu0 %v4397
    %4593 = vmatprep.subr.bf16.mxu0 %v4394
    %4594 = vmatpush1.bf16.msra.mxu0 %v4393
    %4595 = vmatprep.subr.bf16.mxu0 %v4390
    %4596 = vmatpush1.bf16.msra.mxu0 %v4389
    %4597 = vmatprep.subr.bf16.mxu0 %v4450
    %4598 = vmatpush2.bf16.msra.mxu0 %v4449
    %4599 = vmatprep.subr.bf16.mxu0 %v4446
    %4600 = vmatpush2.bf16.msra.mxu0 %v4445
    %4601 = vmatprep.subr.bf16.mxu0 %v4442
    %4602 = vmatpush2.bf16.msra.mxu0 %v4441
    %4603 = vmatprep.subr.bf16.mxu0 %v4438
    %4604 = vmatpush2.bf16.msra.mxu0 %v4437
    %4605 = vmatprep.subr.bf16.mxu0 %v4434
    %4606 = vmatpush2.bf16.msra.mxu0 %v4433
    %4607 = vmatprep.subr.bf16.mxu0 %v4430
    %4608 = vmatpush2.bf16.msra.mxu0 %v4429
    %4609 = vmatprep.subr.bf16.mxu0 %v4426
    %4610 = vmatpush2.bf16.msra.mxu0 %v4425
    %4611 = vmatprep.subr.bf16.mxu0 %v4422
    %4612 = vmatpush2.bf16.msra.mxu0 %v4421
    %4613 = vmatprep.mubr.bf16.mxu0 %v3993
    %4614 = vmatmul.mubr.bf16.gmra.mxu0 %v3992
    %v4615 = vpop.f32.mrf.mxu0
    %v4616 = vadd.f32 0.0, %v4615
    %v4617 = vpop.f32.mrf.mxu0
    %v4618 = vadd.f32 0.0, %v4617
    %v4619 = vpop.f32.mrf.mxu0
    %v4620 = vadd.f32 0.0, %v4619
    %v4621 = vpop.f32.mrf.mxu0
    %v4622 = vadd.f32 0.0, %v4621
    %4623 = vmatprep.mubr.bf16.mxu0 %v3996
    %4624 = vmatmul.mubr.bf16.gmra.mxu0 %v3995
    %v4625 = vpop.f32.mrf.mxu0
    %v4626 = vadd.f32 0.0, %v4625
    %v4627 = vpop.f32.mrf.mxu0
    %v4628 = vadd.f32 0.0, %v4627
    %v4629 = vpop.f32.mrf.mxu0
    %v4630 = vadd.f32 0.0, %v4629
    %v4631 = vpop.f32.mrf.mxu0
    %v4632 = vadd.f32 0.0, %v4631
    %4633 = vmatprep.mubr.bf16.mxu0 %v3999
    %4634 = vmatmul.mubr.bf16.gmra.mxu0 %v3998
    %v4635 = vpop.f32.mrf.mxu0
    %v4636 = vadd.f32 0.0, %v4635
    %v4637 = vpop.f32.mrf.mxu0
    %v4638 = vadd.f32 0.0, %v4637
    %v4639 = vpop.f32.mrf.mxu0
    %v4640 = vadd.f32 0.0, %v4639
    %v4641 = vpop.f32.mrf.mxu0
    %v4642 = vadd.f32 0.0, %v4641
    %4643 = vmatprep.mubr.bf16.mxu0 %v4002
    %4644 = vmatmul.mubr.bf16.gmra.mxu0 %v4001
    %v4645 = vpop.f32.mrf.mxu0
    %v4646 = vadd.f32 0.0, %v4645
    %v4647 = vpop.f32.mrf.mxu0
    %v4648 = vadd.f32 0.0, %v4647
    %v4649 = vpop.f32.mrf.mxu0
    %v4650 = vadd.f32 0.0, %v4649
    %v4651 = vpop.f32.mrf.mxu0
    %v4652 = vadd.f32 0.0, %v4651
    %4653 = vdwg.mxu0
    %4654 = vmatprep.subr.bf16.mxu0 %v4482
    %4655 = vmatpush1.bf16.msra.mxu0 %v4481
    %4656 = vmatprep.subr.bf16.mxu0 %v4478
    %4657 = vmatpush1.bf16.msra.mxu0 %v4477
    %4658 = vmatprep.subr.bf16.mxu0 %v4474
    %4659 = vmatpush1.bf16.msra.mxu0 %v4473
    %4660 = vmatprep.subr.bf16.mxu0 %v4470
    %4661 = vmatpush1.bf16.msra.mxu0 %v4469
    %4662 = vmatprep.subr.bf16.mxu0 %v4466
    %4663 = vmatpush1.bf16.msra.mxu0 %v4465
    %4664 = vmatprep.subr.bf16.mxu0 %v4462
    %4665 = vmatpush1.bf16.msra.mxu0 %v4461
    %4666 = vmatprep.subr.bf16.mxu0 %v4458
    %4667 = vmatpush1.bf16.msra.mxu0 %v4457
    %4668 = vmatprep.subr.bf16.mxu0 %v4454
    %4669 = vmatpush1.bf16.msra.mxu0 %v4453
    %4670 = vmatprep.subr.bf16.mxu0 0
    %4671 = vmatpush2.bf16.msra.mxu0 0
    %4672 = vmatprep.subr.bf16.mxu0 0
    %4673 = vmatpush2.bf16.msra.mxu0 0
    %4674 = vmatprep.subr.bf16.mxu0 0
    %4675 = vmatpush2.bf16.msra.mxu0 0
    %4676 = vmatprep.subr.bf16.mxu0 0
    %4677 = vmatpush2.bf16.msra.mxu0 0
    %4678 = vmatprep.subr.bf16.mxu0 0
    %4679 = vmatpush2.bf16.msra.mxu0 0
    %4680 = vmatprep.subr.bf16.mxu0 0
    %4681 = vmatpush2.bf16.msra.mxu0 0
    %4682 = vmatprep.subr.bf16.mxu0 0
    %4683 = vmatpush2.bf16.msra.mxu0 0
    %4684 = vmatprep.subr.bf16.mxu0 0
    %4685 = vmatpush2.bf16.msra.mxu0 0
    %4686 = vmatprep.mubr.bf16.mxu0 0
    %4687 = vmatmul.mubr.bf16.gmra.mxu0 %v3994
    %v4688 = vpop.f32.mrf.mxu0
    %v4689 = vadd.f32 %v4616, %v4688
    %v4690 = vpop.f32.mrf.mxu0
    %v4691 = vadd.f32 %v4618, %v4690
    %v4692 = vpop.f32.mrf.mxu0
    %v4693 = vadd.f32 %v4620, %v4692
    %v4694 = vpop.f32.mrf.mxu0
    %v4695 = vadd.f32 %v4622, %v4694
    %4696 = vmatprep.mubr.bf16.mxu0 0
    %4697 = vmatmul.mubr.bf16.gmra.mxu0 %v3997
    %v4698 = vpop.f32.mrf.mxu0
    %v4699 = vadd.f32 %v4626, %v4698
    %v4700 = vpop.f32.mrf.mxu0
    %v4701 = vadd.f32 %v4628, %v4700
    %v4702 = vpop.f32.mrf.mxu0
    %v4703 = vadd.f32 %v4630, %v4702
    %v4704 = vpop.f32.mrf.mxu0
    %v4705 = vadd.f32 %v4632, %v4704
    %4706 = vmatprep.mubr.bf16.mxu0 0
    %4707 = vmatmul.mubr.bf16.gmra.mxu0 %v4000
    %v4708 = vpop.f32.mrf.mxu0
    %v4709 = vadd.f32 %v4636, %v4708
    %v4710 = vpop.f32.mrf.mxu0
    %v4711 = vadd.f32 %v4638, %v4710
    %v4712 = vpop.f32.mrf.mxu0
    %v4713 = vadd.f32 %v4640, %v4712
    %v4714 = vpop.f32.mrf.mxu0
    %v4715 = vadd.f32 %v4642, %v4714
    %4716 = vmatprep.mubr.bf16.mxu0 0
    %4717 = vmatmul.mubr.bf16.gmra.mxu0 %v4003
    %v4718 = vpop.f32.mrf.mxu0
    %v4719 = vadd.f32 %v4646, %v4718
    %v4720 = vpop.f32.mrf.mxu0
    %v4721 = vadd.f32 %v4648, %v4720
    %v4722 = vpop.f32.mrf.mxu0
    %v4723 = vadd.f32 %v4650, %v4722
    %v4724 = vpop.f32.mrf.mxu0
    %v4725 = vadd.f32 %v4652, %v4724
    %4726 = vdwg.mxu0
    %4727 = vmatprep.subr.bf16.mxu0 %v4420
    %4728 = vmatpush1.bf16.msra.mxu0 %v4419
    %4729 = vmatprep.subr.bf16.mxu0 %v4416
    %4730 = vmatpush1.bf16.msra.mxu0 %v4415
    %4731 = vmatprep.subr.bf16.mxu0 %v4412
    %4732 = vmatpush1.bf16.msra.mxu0 %v4411
    %4733 = vmatprep.subr.bf16.mxu0 %v4408
    %4734 = vmatpush1.bf16.msra.mxu0 %v4407
    %4735 = vmatprep.subr.bf16.mxu0 %v4404
    %4736 = vmatpush1.bf16.msra.mxu0 %v4403
    %4737 = vmatprep.subr.bf16.mxu0 %v4400
    %4738 = vmatpush1.bf16.msra.mxu0 %v4399
    %4739 = vmatprep.subr.bf16.mxu0 %v4396
    %4740 = vmatpush1.bf16.msra.mxu0 %v4395
    %4741 = vmatprep.subr.bf16.mxu0 %v4392
    %4742 = vmatpush1.bf16.msra.mxu0 %v4391
    %4743 = vmatprep.subr.bf16.mxu0 %v4452
    %4744 = vmatpush2.bf16.msra.mxu0 %v4451
    %4745 = vmatprep.subr.bf16.mxu0 %v4448
    %4746 = vmatpush2.bf16.msra.mxu0 %v4447
    %4747 = vmatprep.subr.bf16.mxu0 %v4444
    %4748 = vmatpush2.bf16.msra.mxu0 %v4443
    %4749 = vmatprep.subr.bf16.mxu0 %v4440
    %4750 = vmatpush2.bf16.msra.mxu0 %v4439
    %4751 = vmatprep.subr.bf16.mxu0 %v4436
    %4752 = vmatpush2.bf16.msra.mxu0 %v4435
    %4753 = vmatprep.subr.bf16.mxu0 %v4432
    %4754 = vmatpush2.bf16.msra.mxu0 %v4431
    %4755 = vmatprep.subr.bf16.mxu0 %v4428
    %4756 = vmatpush2.bf16.msra.mxu0 %v4427
    %4757 = vmatprep.subr.bf16.mxu0 %v4424
    %4758 = vmatpush2.bf16.msra.mxu0 %v4423
    %4759 = vmatprep.mubr.bf16.mxu0 %v3993
    %4760 = vmatmul.mubr.bf16.gmra.mxu0 %v3992
    %v4761 = vpop.f32.mrf.mxu0
    %v4762 = vadd.f32 0.0, %v4761
    %v4763 = vpop.f32.mrf.mxu0
    %v4764 = vadd.f32 0.0, %v4763
    %v4765 = vpop.f32.mrf.mxu0
    %v4766 = vadd.f32 0.0, %v4765
    %v4767 = vpop.f32.mrf.mxu0
    %v4768 = vadd.f32 0.0, %v4767
    %4769 = vmatprep.mubr.bf16.mxu0 %v3996
    %4770 = vmatmul.mubr.bf16.gmra.mxu0 %v3995
    %v4771 = vpop.f32.mrf.mxu0
    %v4772 = vadd.f32 0.0, %v4771
    %v4773 = vpop.f32.mrf.mxu0
    %v4774 = vadd.f32 0.0, %v4773
    %v4775 = vpop.f32.mrf.mxu0
    %v4776 = vadd.f32 0.0, %v4775
    %v4777 = vpop.f32.mrf.mxu0
    %v4778 = vadd.f32 0.0, %v4777
    %4779 = vmatprep.mubr.bf16.mxu0 %v3999
    %4780 = vmatmul.mubr.bf16.gmra.mxu0 %v3998
    %v4781 = vpop.f32.mrf.mxu0
    %v4782 = vadd.f32 0.0, %v4781
    %v4783 = vpop.f32.mrf.mxu0
    %v4784 = vadd.f32 0.0, %v4783
    %v4785 = vpop.f32.mrf.mxu0
    %v4786 = vadd.f32 0.0, %v4785
    %v4787 = vpop.f32.mrf.mxu0
    %v4788 = vadd.f32 0.0, %v4787
    %4789 = vmatprep.mubr.bf16.mxu0 %v4002
    %4790 = vmatmul.mubr.bf16.gmra.mxu0 %v4001
    %v4791 = vpop.f32.mrf.mxu0
    %v4792 = vadd.f32 0.0, %v4791
    %v4793 = vpop.f32.mrf.mxu0
    %v4794 = vadd.f32 0.0, %v4793
    %v4795 = vpop.f32.mrf.mxu0
    %v4796 = vadd.f32 0.0, %v4795
    %v4797 = vpop.f32.mrf.mxu0
    %v4798 = vadd.f32 0.0, %v4797
    %4799 = vdwg.mxu0
    %4800 = vmatprep.subr.bf16.mxu0 %v4484
    %4801 = vmatpush1.bf16.msra.mxu0 %v4483
    %4802 = vmatprep.subr.bf16.mxu0 %v4480
    %4803 = vmatpush1.bf16.msra.mxu0 %v4479
    %4804 = vmatprep.subr.bf16.mxu0 %v4476
    %4805 = vmatpush1.bf16.msra.mxu0 %v4475
    %4806 = vmatprep.subr.bf16.mxu0 %v4472
    %4807 = vmatpush1.bf16.msra.mxu0 %v4471
    %4808 = vmatprep.subr.bf16.mxu0 %v4468
    %4809 = vmatpush1.bf16.msra.mxu0 %v4467
    %4810 = vmatprep.subr.bf16.mxu0 %v4464
    %4811 = vmatpush1.bf16.msra.mxu0 %v4463
    %4812 = vmatprep.subr.bf16.mxu0 %v4460
    %4813 = vmatpush1.bf16.msra.mxu0 %v4459
    %4814 = vmatprep.subr.bf16.mxu0 %v4456
    %4815 = vmatpush1.bf16.msra.mxu0 %v4455
    %4816 = vmatprep.subr.bf16.mxu0 0
    %4817 = vmatpush2.bf16.msra.mxu0 0
    %4818 = vmatprep.subr.bf16.mxu0 0
    %4819 = vmatpush2.bf16.msra.mxu0 0
    %4820 = vmatprep.subr.bf16.mxu0 0
    %4821 = vmatpush2.bf16.msra.mxu0 0
    %4822 = vmatprep.subr.bf16.mxu0 0
    %4823 = vmatpush2.bf16.msra.mxu0 0
    %4824 = vmatprep.subr.bf16.mxu0 0
    %4825 = vmatpush2.bf16.msra.mxu0 0
    %4826 = vmatprep.subr.bf16.mxu0 0
    %4827 = vmatpush2.bf16.msra.mxu0 0
    %4828 = vmatprep.subr.bf16.mxu0 0
    %4829 = vmatpush2.bf16.msra.mxu0 0
    %4830 = vmatprep.subr.bf16.mxu0 0
    %4831 = vmatpush2.bf16.msra.mxu0 0
    %4832 = vmatprep.mubr.bf16.mxu0 0
    %4833 = vmatmul.mubr.bf16.gmra.mxu0 %v3994
    %v4834 = vpop.f32.mrf.mxu0
    %v4835 = vadd.f32 %v4762, %v4834
    %v4836 = vpop.f32.mrf.mxu0
    %v4837 = vadd.f32 %v4764, %v4836
    %v4838 = vpop.f32.mrf.mxu0
    %v4839 = vadd.f32 %v4766, %v4838
    %v4840 = vpop.f32.mrf.mxu0
    %v4841 = vadd.f32 %v4768, %v4840
    %4842 = vmatprep.mubr.bf16.mxu0 0
    %4843 = vmatmul.mubr.bf16.gmra.mxu0 %v3997
    %v4844 = vpop.f32.mrf.mxu0
    %v4845 = vadd.f32 %v4772, %v4844
    %v4846 = vpop.f32.mrf.mxu0
    %v4847 = vadd.f32 %v4774, %v4846
    %v4848 = vpop.f32.mrf.mxu0
    %v4849 = vadd.f32 %v4776, %v4848
    %v4850 = vpop.f32.mrf.mxu0
    %v4851 = vadd.f32 %v4778, %v4850
    %4852 = vmatprep.mubr.bf16.mxu0 0
    %4853 = vmatmul.mubr.bf16.gmra.mxu0 %v4000
    %v4854 = vpop.f32.mrf.mxu0
    %v4855 = vadd.f32 %v4782, %v4854
    %v4856 = vpop.f32.mrf.mxu0
    %v4857 = vadd.f32 %v4784, %v4856
    %v4858 = vpop.f32.mrf.mxu0
    %v4859 = vadd.f32 %v4786, %v4858
    %v4860 = vpop.f32.mrf.mxu0
    %v4861 = vadd.f32 %v4788, %v4860
    %4862 = vmatprep.mubr.bf16.mxu0 0
    %4863 = vmatmul.mubr.bf16.gmra.mxu0 %v4003
    %v4864 = vpop.f32.mrf.mxu0
    %v4865 = vadd.f32 %v4792, %v4864
    %v4866 = vpop.f32.mrf.mxu0
    %v4867 = vadd.f32 %v4794, %v4866
    %v4868 = vpop.f32.mrf.mxu0
    %v4869 = vadd.f32 %v4796, %v4868
    %v4870 = vpop.f32.mrf.mxu0
    %v4871 = vadd.f32 %v4798, %v4870
    %4872 = vdwg.mxu0
    %v4969 = vunpack.c.l.b16 %v3893
    %v4970 = vunpack.c.h.b16 %v3893
    %v4971 = vunpack.c.l.b16 %v3894
    %v4972 = vunpack.c.h.b16 %v3894
    %v4973 = vunpack.c.l.b16 %v3895
    %v4974 = vunpack.c.h.b16 %v3895
    %v4975 = vunpack.c.l.b16 %v3896
    %v4976 = vunpack.c.h.b16 %v3896
    %v4977 = vunpack.c.l.b16 %v3897
    %v4978 = vunpack.c.h.b16 %v3897
    %v4979 = vunpack.c.l.b16 %v3898
    %v4980 = vunpack.c.h.b16 %v3898
    %v4981 = vunpack.c.l.b16 %v3899
    %v4982 = vunpack.c.h.b16 %v3899
    %v4983 = vunpack.c.l.b16 %v3900
    %v4984 = vunpack.c.h.b16 %v3900
    %v4985 = vunpack.c.l.b16 %v3901
    %v4986 = vunpack.c.h.b16 %v3901
    %v4987 = vunpack.c.l.b16 %v3902
    %v4988 = vunpack.c.h.b16 %v3902
    %v4989 = vunpack.c.l.b16 %v3903
    %v4990 = vunpack.c.h.b16 %v3903
    %v4991 = vunpack.c.l.b16 %v3904
    %v4992 = vunpack.c.h.b16 %v3904
    %v4993 = vunpack.c.l.b16 %v3905
    %v4994 = vunpack.c.h.b16 %v3905
    %v4995 = vunpack.c.l.b16 %v3906
    %v4996 = vunpack.c.h.b16 %v3906
    %v4997 = vunpack.c.l.b16 %v3907
    %v4998 = vunpack.c.h.b16 %v3907
    %v4999 = vunpack.c.l.b16 %v3908
    %v5000 = vunpack.c.h.b16 %v3908
    %v5001 = vunpack.c.l.b16 %v3909
    %v5002 = vunpack.c.h.b16 %v3909
    %v5003 = vunpack.c.l.b16 %v3910
    %v5004 = vunpack.c.h.b16 %v3910
    %v5005 = vunpack.c.l.b16 %v3911
    %v5006 = vunpack.c.h.b16 %v3911
    %v5007 = vunpack.c.l.b16 %v3912
    %v5008 = vunpack.c.h.b16 %v3912
    %v5009 = vunpack.c.l.b16 %v3913
    %v5010 = vunpack.c.h.b16 %v3913
    %v5011 = vunpack.c.l.b16 %v3914
    %v5012 = vunpack.c.h.b16 %v3914
    %v5013 = vunpack.c.l.b16 %v3915
    %v5014 = vunpack.c.h.b16 %v3915
    %v5015 = vunpack.c.l.b16 %v3916
    %v5016 = vunpack.c.h.b16 %v3916
    %v5017 = vunpack.c.l.b16 %v3917
    %v5018 = vunpack.c.h.b16 %v3917
    %v5019 = vunpack.c.l.b16 %v3918
    %v5020 = vunpack.c.h.b16 %v3918
    %v5021 = vunpack.c.l.b16 %v3919
    %v5022 = vunpack.c.h.b16 %v3919
    %v5023 = vunpack.c.l.b16 %v3920
    %v5024 = vunpack.c.h.b16 %v3920
    %v5025 = vunpack.c.l.b16 %v3921
    %v5026 = vunpack.c.h.b16 %v3921
    %v5027 = vunpack.c.l.b16 %v3922
    %v5028 = vunpack.c.h.b16 %v3922
    %v5029 = vunpack.c.l.b16 %v3923
    %v5030 = vunpack.c.h.b16 %v3923
    %v5031 = vunpack.c.l.b16 %v3924
    %v5032 = vunpack.c.h.b16 %v3924
    %v5033 = vunpack.c.l.b16 %v3925
    %v5034 = vunpack.c.h.b16 %v3925
    %v5035 = vunpack.c.l.b16 %v3926
    %v5036 = vunpack.c.h.b16 %v3926
    %v5037 = vunpack.c.l.b16 %v3927
    %v5038 = vunpack.c.h.b16 %v3927
    %v5039 = vunpack.c.l.b16 %v3928
    %v5040 = vunpack.c.h.b16 %v3928
    %v5041 = vunpack.c.l.b16 %v3929
    %v5042 = vunpack.c.h.b16 %v3929
    %v5043 = vunpack.c.l.b16 %v3930
    %v5044 = vunpack.c.h.b16 %v3930
    %v5045 = vunpack.c.l.b16 %v3931
    %v5046 = vunpack.c.h.b16 %v3931
    %v5047 = vunpack.c.l.b16 %v3932
    %v5048 = vunpack.c.h.b16 %v3932
    %v5049 = vunpack.c.l.b16 %v3933
    %v5050 = vunpack.c.h.b16 %v3933
    %v5051 = vunpack.c.l.b16 %v3934
    %v5052 = vunpack.c.h.b16 %v3934
    %v5053 = vunpack.c.l.b16 %v3935
    %v5054 = vunpack.c.h.b16 %v3935
    %v5055 = vunpack.c.l.b16 %v3936
    %v5056 = vunpack.c.h.b16 %v3936
    %v5057 = vunpack.c.l.b16 %v3937
    %v5058 = vunpack.c.h.b16 %v3937
    %v5059 = vunpack.c.l.b16 %v3938
    %v5060 = vunpack.c.h.b16 %v3938
    %v5061 = vunpack.c.l.b16 %v3939
    %v5062 = vunpack.c.h.b16 %v3939
    %v5063 = vunpack.c.l.b16 %v3940
    %v5064 = vunpack.c.h.b16 %v3940
    %v5065 = vunpack.c.l.b16 %v3941
    %v5066 = vunpack.c.h.b16 %v3941
    %v5067 = vunpack.c.l.b16 %v3942
    %v5068 = vunpack.c.h.b16 %v3942
    %v5069 = vunpack.c.l.b16 %v3943
    %v5070 = vunpack.c.h.b16 %v3943
    %v5071 = vunpack.c.l.b16 %v3944
    %v5072 = vunpack.c.h.b16 %v3944
    %v5073 = vunpack.c.l.b16 %v3945
    %v5074 = vunpack.c.h.b16 %v3945
    %v5075 = vunpack.c.l.b16 %v3946
    %v5076 = vunpack.c.h.b16 %v3946
    %v5077 = vunpack.c.l.b16 %v3947
    %v5078 = vunpack.c.h.b16 %v3947
    %v5079 = vunpack.c.l.b16 %v3948
    %v5080 = vunpack.c.h.b16 %v3948
    %v5081 = vunpack.c.l.b16 %v3949
    %v5082 = vunpack.c.h.b16 %v3949
    %v5083 = vunpack.c.l.b16 %v3950
    %v5084 = vunpack.c.h.b16 %v3950
    %v5085 = vunpack.c.l.b16 %v3951
    %v5086 = vunpack.c.h.b16 %v3951
    %v5087 = vunpack.c.l.b16 %v3952
    %v5088 = vunpack.c.h.b16 %v3952
    %v5089 = vunpack.c.l.b16 %v3953
    %v5090 = vunpack.c.h.b16 %v3953
    %v5091 = vunpack.c.l.b16 %v3954
    %v5092 = vunpack.c.h.b16 %v3954
    %v5093 = vunpack.c.l.b16 %v3955
    %v5094 = vunpack.c.h.b16 %v3955
    %v5095 = vunpack.c.l.b16 %v3956
    %v5096 = vunpack.c.h.b16 %v3956
    %v5097 = vunpack.c.l.b16 %v3957
    %v5098 = vunpack.c.h.b16 %v3957
    %v5099 = vunpack.c.l.b16 %v3958
    %v5100 = vunpack.c.h.b16 %v3958
    %v5101 = vunpack.c.l.b16 %v3959
    %v5102 = vunpack.c.h.b16 %v3959
    %v5103 = vunpack.c.l.b16 %v3960
    %v5104 = vunpack.c.h.b16 %v3960
    %v5105 = vunpack.c.l.b16 %v3961
    %v5106 = vunpack.c.h.b16 %v3961
    %v5107 = vunpack.c.l.b16 %v3962
    %v5108 = vunpack.c.h.b16 %v3962
    %v5109 = vunpack.c.l.b16 %v3963
    %v5110 = vunpack.c.h.b16 %v3963
    %v5111 = vunpack.c.l.b16 %v3964
    %v5112 = vunpack.c.h.b16 %v3964
    %v5113 = vunpack.c.l.b16 %v3965
    %v5114 = vunpack.c.h.b16 %v3965
    %v5115 = vunpack.c.l.b16 %v3966
    %v5116 = vunpack.c.h.b16 %v3966
    %v5117 = vunpack.c.l.b16 %v3967
    %v5118 = vunpack.c.h.b16 %v3967
    %v5119 = vunpack.c.l.b16 %v3968
    %v5120 = vunpack.c.h.b16 %v3968
    %v5121 = vunpack.c.l.b16 %v3969
    %v5122 = vunpack.c.h.b16 %v3969
    %v5123 = vunpack.c.l.b16 %v3970
    %v5124 = vunpack.c.h.b16 %v3970
    %v5125 = vunpack.c.l.b16 %v3971
    %v5126 = vunpack.c.h.b16 %v3971
    %v5127 = vunpack.c.l.b16 %v3972
    %v5128 = vunpack.c.h.b16 %v3972
    %v5129 = vunpack.c.l.b16 %v3973
    %v5130 = vunpack.c.h.b16 %v3973
    %v5131 = vunpack.c.l.b16 %v3974
    %v5132 = vunpack.c.h.b16 %v3974
    %v5133 = vunpack.c.l.b16 %v3975
    %v5134 = vunpack.c.h.b16 %v3975
    %v5135 = vunpack.c.l.b16 %v3976
    %v5136 = vunpack.c.h.b16 %v3976
    %v5137 = vunpack.c.l.b16 %v3977
    %v5138 = vunpack.c.h.b16 %v3977
    %v5139 = vunpack.c.l.b16 %v3978
    %v5140 = vunpack.c.h.b16 %v3978
    %v5141 = vunpack.c.l.b16 %v3979
    %v5142 = vunpack.c.h.b16 %v3979
    %v5143 = vunpack.c.l.b16 %v3980
    %v5144 = vunpack.c.h.b16 %v3980
    %v5145 = vunpack.c.l.b16 %v3981
    %v5146 = vunpack.c.h.b16 %v3981
    %v5147 = vunpack.c.l.b16 %v3982
    %v5148 = vunpack.c.h.b16 %v3982
    %v5149 = vunpack.c.l.b16 %v3983
    %v5150 = vunpack.c.h.b16 %v3983
    %v5151 = vunpack.c.l.b16 %v3984
    %v5152 = vunpack.c.h.b16 %v3984
    %v5153 = vunpack.c.l.b16 %v3985
    %v5154 = vunpack.c.h.b16 %v3985
    %v5155 = vunpack.c.l.b16 %v3986
    %v5156 = vunpack.c.h.b16 %v3986
    %v5157 = vunpack.c.l.b16 %v3987
    %v5158 = vunpack.c.h.b16 %v3987
    %v5159 = vunpack.c.l.b16 %v3988
    %v5160 = vunpack.c.h.b16 %v3988
    %v5161 = vpack.c.b16 %v4973, %v4969
    %v5162 = vpack.c.b16 %v4974, %v4970
    %v5163 = vpack.c.b16 %v4975, %v4971
    %v5164 = vpack.c.b16 %v4976, %v4972
    %v5165 = vpack.c.b16 %v4981, %v4977
    %v5166 = vpack.c.b16 %v4982, %v4978
    %v5167 = vpack.c.b16 %v4983, %v4979
    %v5168 = vpack.c.b16 %v4984, %v4980
    %v5169 = vpack.c.b16 %v4989, %v4985
    %v5170 = vpack.c.b16 %v4990, %v4986
    %v5171 = vpack.c.b16 %v4991, %v4987
    %v5172 = vpack.c.b16 %v4992, %v4988
    %v5173 = vpack.c.b16 %v4997, %v4993
    %v5174 = vpack.c.b16 %v4998, %v4994
    %v5175 = vpack.c.b16 %v4999, %v4995
    %v5176 = vpack.c.b16 %v5000, %v4996
    %v5177 = vpack.c.b16 %v5005, %v5001
    %v5178 = vpack.c.b16 %v5006, %v5002
    %v5179 = vpack.c.b16 %v5007, %v5003
    %v5180 = vpack.c.b16 %v5008, %v5004
    %v5181 = vpack.c.b16 %v5013, %v5009
    %v5182 = vpack.c.b16 %v5014, %v5010
    %v5183 = vpack.c.b16 %v5015, %v5011
    %v5184 = vpack.c.b16 %v5016, %v5012
    %v5185 = vpack.c.b16 %v5021, %v5017
    %v5186 = vpack.c.b16 %v5022, %v5018
    %v5187 = vpack.c.b16 %v5023, %v5019
    %v5188 = vpack.c.b16 %v5024, %v5020
    %v5189 = vpack.c.b16 %v5029, %v5025
    %v5190 = vpack.c.b16 %v5030, %v5026
    %v5191 = vpack.c.b16 %v5031, %v5027
    %v5192 = vpack.c.b16 %v5032, %v5028
    %v5193 = vpack.c.b16 %v5037, %v5033
    %v5194 = vpack.c.b16 %v5038, %v5034
    %v5195 = vpack.c.b16 %v5039, %v5035
    %v5196 = vpack.c.b16 %v5040, %v5036
    %v5197 = vpack.c.b16 %v5045, %v5041
    %v5198 = vpack.c.b16 %v5046, %v5042
    %v5199 = vpack.c.b16 %v5047, %v5043
    %v5200 = vpack.c.b16 %v5048, %v5044
    %v5201 = vpack.c.b16 %v5053, %v5049
    %v5202 = vpack.c.b16 %v5054, %v5050
    %v5203 = vpack.c.b16 %v5055, %v5051
    %v5204 = vpack.c.b16 %v5056, %v5052
    %v5205 = vpack.c.b16 %v5061, %v5057
    %v5206 = vpack.c.b16 %v5062, %v5058
    %v5207 = vpack.c.b16 %v5063, %v5059
    %v5208 = vpack.c.b16 %v5064, %v5060
    %v5209 = vpack.c.b16 %v5069, %v5065
    %v5210 = vpack.c.b16 %v5070, %v5066
    %v5211 = vpack.c.b16 %v5071, %v5067
    %v5212 = vpack.c.b16 %v5072, %v5068
    %v5213 = vpack.c.b16 %v5077, %v5073
    %v5214 = vpack.c.b16 %v5078, %v5074
    %v5215 = vpack.c.b16 %v5079, %v5075
    %v5216 = vpack.c.b16 %v5080, %v5076
    %v5217 = vpack.c.b16 %v5085, %v5081
    %v5218 = vpack.c.b16 %v5086, %v5082
    %v5219 = vpack.c.b16 %v5087, %v5083
    %v5220 = vpack.c.b16 %v5088, %v5084
    %v5221 = vpack.c.b16 %v5093, %v5089
    %v5222 = vpack.c.b16 %v5094, %v5090
    %v5223 = vpack.c.b16 %v5095, %v5091
    %v5224 = vpack.c.b16 %v5096, %v5092
    %v5225 = vpack.c.b16 %v5101, %v5097
    %v5226 = vpack.c.b16 %v5102, %v5098
    %v5227 = vpack.c.b16 %v5103, %v5099
    %v5228 = vpack.c.b16 %v5104, %v5100
    %v5229 = vpack.c.b16 %v5109, %v5105
    %v5230 = vpack.c.b16 %v5110, %v5106
    %v5231 = vpack.c.b16 %v5111, %v5107
    %v5232 = vpack.c.b16 %v5112, %v5108
    %v5233 = vpack.c.b16 %v5117, %v5113
    %v5234 = vpack.c.b16 %v5118, %v5114
    %v5235 = vpack.c.b16 %v5119, %v5115
    %v5236 = vpack.c.b16 %v5120, %v5116
    %v5237 = vpack.c.b16 %v5125, %v5121
    %v5238 = vpack.c.b16 %v5126, %v5122
    %v5239 = vpack.c.b16 %v5127, %v5123
    %v5240 = vpack.c.b16 %v5128, %v5124
    %v5241 = vpack.c.b16 %v5133, %v5129
    %v5242 = vpack.c.b16 %v5134, %v5130
    %v5243 = vpack.c.b16 %v5135, %v5131
    %v5244 = vpack.c.b16 %v5136, %v5132
    %v5245 = vpack.c.b16 %v5141, %v5137
    %v5246 = vpack.c.b16 %v5142, %v5138
    %v5247 = vpack.c.b16 %v5143, %v5139
    %v5248 = vpack.c.b16 %v5144, %v5140
    %v5249 = vpack.c.b16 %v5149, %v5145
    %v5250 = vpack.c.b16 %v5150, %v5146
    %v5251 = vpack.c.b16 %v5151, %v5147
    %v5252 = vpack.c.b16 %v5152, %v5148
    %v5253 = vpack.c.b16 %v5157, %v5153
    %v5254 = vpack.c.b16 %v5158, %v5154
    %v5255 = vpack.c.b16 %v5159, %v5155
    %v5256 = vpack.c.b16 %v5160, %v5156
    %5353 = vmatprep.subr.bf16.mxu0 %v5190
    %5354 = vmatpush1.bf16.msra.mxu0 %v5189
    %5355 = vmatprep.subr.bf16.mxu0 %v5186
    %5356 = vmatpush1.bf16.msra.mxu0 %v5185
    %5357 = vmatprep.subr.bf16.mxu0 %v5182
    %5358 = vmatpush1.bf16.msra.mxu0 %v5181
    %5359 = vmatprep.subr.bf16.mxu0 %v5178
    %5360 = vmatpush1.bf16.msra.mxu0 %v5177
    %5361 = vmatprep.subr.bf16.mxu0 %v5174
    %5362 = vmatpush1.bf16.msra.mxu0 %v5173
    %5363 = vmatprep.subr.bf16.mxu0 %v5170
    %5364 = vmatpush1.bf16.msra.mxu0 %v5169
    %5365 = vmatprep.subr.bf16.mxu0 %v5166
    %5366 = vmatpush1.bf16.msra.mxu0 %v5165
    %5367 = vmatprep.subr.bf16.mxu0 %v5162
    %5368 = vmatpush1.bf16.msra.mxu0 %v5161
    %5369 = vmatprep.subr.bf16.mxu0 %v5222
    %5370 = vmatpush2.bf16.msra.mxu0 %v5221
    %5371 = vmatprep.subr.bf16.mxu0 %v5218
    %5372 = vmatpush2.bf16.msra.mxu0 %v5217
    %5373 = vmatprep.subr.bf16.mxu0 %v5214
    %5374 = vmatpush2.bf16.msra.mxu0 %v5213
    %5375 = vmatprep.subr.bf16.mxu0 %v5210
    %5376 = vmatpush2.bf16.msra.mxu0 %v5209
    %5377 = vmatprep.subr.bf16.mxu0 %v5206
    %5378 = vmatpush2.bf16.msra.mxu0 %v5205
    %5379 = vmatprep.subr.bf16.mxu0 %v5202
    %5380 = vmatpush2.bf16.msra.mxu0 %v5201
    %5381 = vmatprep.subr.bf16.mxu0 %v5198
    %5382 = vmatpush2.bf16.msra.mxu0 %v5197
    %5383 = vmatprep.subr.bf16.mxu0 %v5194
    %5384 = vmatpush2.bf16.msra.mxu0 %v5193
    %5385 = vmatprep.mubr.bf16.mxu0 %v3882
    %5386 = vmatmul.mubr.bf16.gmra.mxu0 %v3881
    %v5387 = vpop.f32.mrf.mxu0
    %v5388 = vadd.f32 %v4689, %v5387
    %v5389 = vpop.f32.mrf.mxu0
    %v5390 = vadd.f32 %v4691, %v5389
    %v5391 = vpop.f32.mrf.mxu0
    %v5392 = vadd.f32 %v4693, %v5391
    %v5393 = vpop.f32.mrf.mxu0
    %v5394 = vadd.f32 %v4695, %v5393
    %5395 = vmatprep.mubr.bf16.mxu0 %v3885
    %5396 = vmatmul.mubr.bf16.gmra.mxu0 %v3884
    %v5397 = vpop.f32.mrf.mxu0
    %v5398 = vadd.f32 %v4699, %v5397
    %v5399 = vpop.f32.mrf.mxu0
    %v5400 = vadd.f32 %v4701, %v5399
    %v5401 = vpop.f32.mrf.mxu0
    %v5402 = vadd.f32 %v4703, %v5401
    %v5403 = vpop.f32.mrf.mxu0
    %v5404 = vadd.f32 %v4705, %v5403
    %5405 = vmatprep.mubr.bf16.mxu0 %v3888
    %5406 = vmatmul.mubr.bf16.gmra.mxu0 %v3887
    %v5407 = vpop.f32.mrf.mxu0
    %v5408 = vadd.f32 %v4709, %v5407
    %v5409 = vpop.f32.mrf.mxu0
    %v5410 = vadd.f32 %v4711, %v5409
    %v5411 = vpop.f32.mrf.mxu0
    %v5412 = vadd.f32 %v4713, %v5411
    %v5413 = vpop.f32.mrf.mxu0
    %v5414 = vadd.f32 %v4715, %v5413
    %5415 = vmatprep.mubr.bf16.mxu0 %v3891
    %5416 = vmatmul.mubr.bf16.gmra.mxu0 %v3890
    %v5417 = vpop.f32.mrf.mxu0
    %v5418 = vadd.f32 %v4719, %v5417
    %v5419 = vpop.f32.mrf.mxu0
    %v5420 = vadd.f32 %v4721, %v5419
    %v5421 = vpop.f32.mrf.mxu0
    %v5422 = vadd.f32 %v4723, %v5421
    %v5423 = vpop.f32.mrf.mxu0
    %v5424 = vadd.f32 %v4725, %v5423
    %5425 = vdwg.mxu0
    %5426 = vmatprep.subr.bf16.mxu0 %v5254
    %5427 = vmatpush1.bf16.msra.mxu0 %v5253
    %5428 = vmatprep.subr.bf16.mxu0 %v5250
    %5429 = vmatpush1.bf16.msra.mxu0 %v5249
    %5430 = vmatprep.subr.bf16.mxu0 %v5246
    %5431 = vmatpush1.bf16.msra.mxu0 %v5245
    %5432 = vmatprep.subr.bf16.mxu0 %v5242
    %5433 = vmatpush1.bf16.msra.mxu0 %v5241
    %5434 = vmatprep.subr.bf16.mxu0 %v5238
    %5435 = vmatpush1.bf16.msra.mxu0 %v5237
    %5436 = vmatprep.subr.bf16.mxu0 %v5234
    %5437 = vmatpush1.bf16.msra.mxu0 %v5233
    %5438 = vmatprep.subr.bf16.mxu0 %v5230
    %5439 = vmatpush1.bf16.msra.mxu0 %v5229
    %5440 = vmatprep.subr.bf16.mxu0 %v5226
    %5441 = vmatpush1.bf16.msra.mxu0 %v5225
    %5442 = vmatprep.subr.bf16.mxu0 0
    %5443 = vmatpush2.bf16.msra.mxu0 0
    %5444 = vmatprep.subr.bf16.mxu0 0
    %5445 = vmatpush2.bf16.msra.mxu0 0
    %5446 = vmatprep.subr.bf16.mxu0 0
    %5447 = vmatpush2.bf16.msra.mxu0 0
    %5448 = vmatprep.subr.bf16.mxu0 0
    %5449 = vmatpush2.bf16.msra.mxu0 0
    %5450 = vmatprep.subr.bf16.mxu0 0
    %5451 = vmatpush2.bf16.msra.mxu0 0
    %5452 = vmatprep.subr.bf16.mxu0 0
    %5453 = vmatpush2.bf16.msra.mxu0 0
    %5454 = vmatprep.subr.bf16.mxu0 0
    %5455 = vmatpush2.bf16.msra.mxu0 0
    %5456 = vmatprep.subr.bf16.mxu0 0
    %5457 = vmatpush2.bf16.msra.mxu0 0
    %5458 = vmatprep.mubr.bf16.mxu0 0
    %5459 = vmatmul.mubr.bf16.gmra.mxu0 %v3883
    %v5460 = vpop.f32.mrf.mxu0
    %v5461 = vadd.f32 %v5388, %v5460
    %v5462 = vpop.f32.mrf.mxu0
    %v5463 = vadd.f32 %v5390, %v5462
    %v5464 = vpop.f32.mrf.mxu0
    %v5465 = vadd.f32 %v5392, %v5464
    %v5466 = vpop.f32.mrf.mxu0
    %v5467 = vadd.f32 %v5394, %v5466
    %5468 = vmatprep.mubr.bf16.mxu0 0
    %5469 = vmatmul.mubr.bf16.gmra.mxu0 %v3886
    %v5470 = vpop.f32.mrf.mxu0
    %v5471 = vadd.f32 %v5398, %v5470
    %v5472 = vpop.f32.mrf.mxu0
    %v5473 = vadd.f32 %v5400, %v5472
    %v5474 = vpop.f32.mrf.mxu0
    %v5475 = vadd.f32 %v5402, %v5474
    %v5476 = vpop.f32.mrf.mxu0
    %v5477 = vadd.f32 %v5404, %v5476
    %5478 = vmatprep.mubr.bf16.mxu0 0
    %5479 = vmatmul.mubr.bf16.gmra.mxu0 %v3889
    %v5480 = vpop.f32.mrf.mxu0
    %v5481 = vadd.f32 %v5408, %v5480
    %v5482 = vpop.f32.mrf.mxu0
    %v5483 = vadd.f32 %v5410, %v5482
    %v5484 = vpop.f32.mrf.mxu0
    %v5485 = vadd.f32 %v5412, %v5484
    %v5486 = vpop.f32.mrf.mxu0
    %v5487 = vadd.f32 %v5414, %v5486
    %5488 = vmatprep.mubr.bf16.mxu0 0
    %5489 = vmatmul.mubr.bf16.gmra.mxu0 %v3892
    %v5490 = vpop.f32.mrf.mxu0
    %v5491 = vadd.f32 %v5418, %v5490
    %v5492 = vpop.f32.mrf.mxu0
    %v5493 = vadd.f32 %v5420, %v5492
    %v5494 = vpop.f32.mrf.mxu0
    %v5495 = vadd.f32 %v5422, %v5494
    %v5496 = vpop.f32.mrf.mxu0
    %v5497 = vadd.f32 %v5424, %v5496
    %5498 = vdwg.mxu0
    %5499 = vmatprep.subr.bf16.mxu0 %v5192
    %5500 = vmatpush1.bf16.msra.mxu0 %v5191
    %5501 = vmatprep.subr.bf16.mxu0 %v5188
    %5502 = vmatpush1.bf16.msra.mxu0 %v5187
    %5503 = vmatprep.subr.bf16.mxu0 %v5184
    %5504 = vmatpush1.bf16.msra.mxu0 %v5183
    %5505 = vmatprep.subr.bf16.mxu0 %v5180
    %5506 = vmatpush1.bf16.msra.mxu0 %v5179
    %5507 = vmatprep.subr.bf16.mxu0 %v5176
    %5508 = vmatpush1.bf16.msra.mxu0 %v5175
    %5509 = vmatprep.subr.bf16.mxu0 %v5172
    %5510 = vmatpush1.bf16.msra.mxu0 %v5171
    %5511 = vmatprep.subr.bf16.mxu0 %v5168
    %5512 = vmatpush1.bf16.msra.mxu0 %v5167
    %5513 = vmatprep.subr.bf16.mxu0 %v5164
    %5514 = vmatpush1.bf16.msra.mxu0 %v5163
    %5515 = vmatprep.subr.bf16.mxu0 %v5224
    %5516 = vmatpush2.bf16.msra.mxu0 %v5223
    %5517 = vmatprep.subr.bf16.mxu0 %v5220
    %5518 = vmatpush2.bf16.msra.mxu0 %v5219
    %5519 = vmatprep.subr.bf16.mxu0 %v5216
    %5520 = vmatpush2.bf16.msra.mxu0 %v5215
    %5521 = vmatprep.subr.bf16.mxu0 %v5212
    %5522 = vmatpush2.bf16.msra.mxu0 %v5211
    %5523 = vmatprep.subr.bf16.mxu0 %v5208
    %5524 = vmatpush2.bf16.msra.mxu0 %v5207
    %5525 = vmatprep.subr.bf16.mxu0 %v5204
    %5526 = vmatpush2.bf16.msra.mxu0 %v5203
    %5527 = vmatprep.subr.bf16.mxu0 %v5200
    %5528 = vmatpush2.bf16.msra.mxu0 %v5199
    %5529 = vmatprep.subr.bf16.mxu0 %v5196
    %5530 = vmatpush2.bf16.msra.mxu0 %v5195
    %5531 = vmatprep.mubr.bf16.mxu0 %v3882
    %5532 = vmatmul.mubr.bf16.gmra.mxu0 %v3881
    %v5533 = vpop.f32.mrf.mxu0
    %v5534 = vadd.f32 %v4835, %v5533
    %v5535 = vpop.f32.mrf.mxu0
    %v5536 = vadd.f32 %v4837, %v5535
    %v5537 = vpop.f32.mrf.mxu0
    %v5538 = vadd.f32 %v4839, %v5537
    %v5539 = vpop.f32.mrf.mxu0
    %v5540 = vadd.f32 %v4841, %v5539
    %5541 = vmatprep.mubr.bf16.mxu0 %v3885
    %5542 = vmatmul.mubr.bf16.gmra.mxu0 %v3884
    %v5543 = vpop.f32.mrf.mxu0
    %v5544 = vadd.f32 %v4845, %v5543
    %v5545 = vpop.f32.mrf.mxu0
    %v5546 = vadd.f32 %v4847, %v5545
    %v5547 = vpop.f32.mrf.mxu0
    %v5548 = vadd.f32 %v4849, %v5547
    %v5549 = vpop.f32.mrf.mxu0
    %v5550 = vadd.f32 %v4851, %v5549
    %5551 = vmatprep.mubr.bf16.mxu0 %v3888
    %5552 = vmatmul.mubr.bf16.gmra.mxu0 %v3887
    %v5553 = vpop.f32.mrf.mxu0
    %v5554 = vadd.f32 %v4855, %v5553
    %v5555 = vpop.f32.mrf.mxu0
    %v5556 = vadd.f32 %v4857, %v5555
    %v5557 = vpop.f32.mrf.mxu0
    %v5558 = vadd.f32 %v4859, %v5557
    %v5559 = vpop.f32.mrf.mxu0
    %v5560 = vadd.f32 %v4861, %v5559
    %5561 = vmatprep.mubr.bf16.mxu0 %v3891
    %5562 = vmatmul.mubr.bf16.gmra.mxu0 %v3890
    %v5563 = vpop.f32.mrf.mxu0
    %v5564 = vadd.f32 %v4865, %v5563
    %v5565 = vpop.f32.mrf.mxu0
    %v5566 = vadd.f32 %v4867, %v5565
    %v5567 = vpop.f32.mrf.mxu0
    %v5568 = vadd.f32 %v4869, %v5567
    %v5569 = vpop.f32.mrf.mxu0
    %v5570 = vadd.f32 %v4871, %v5569
    %5571 = vdwg.mxu0
    %5572 = vmatprep.subr.bf16.mxu0 %v5256
    %5573 = vmatpush1.bf16.msra.mxu0 %v5255
    %5574 = vmatprep.subr.bf16.mxu0 %v5252
    %5575 = vmatpush1.bf16.msra.mxu0 %v5251
    %5576 = vmatprep.subr.bf16.mxu0 %v5248
    %5577 = vmatpush1.bf16.msra.mxu0 %v5247
    %5578 = vmatprep.subr.bf16.mxu0 %v5244
    %5579 = vmatpush1.bf16.msra.mxu0 %v5243
    %5580 = vmatprep.subr.bf16.mxu0 %v5240
    %5581 = vmatpush1.bf16.msra.mxu0 %v5239
    %5582 = vmatprep.subr.bf16.mxu0 %v5236
    %5583 = vmatpush1.bf16.msra.mxu0 %v5235
    %5584 = vmatprep.subr.bf16.mxu0 %v5232
    %5585 = vmatpush1.bf16.msra.mxu0 %v5231
    %5586 = vmatprep.subr.bf16.mxu0 %v5228
    %5587 = vmatpush1.bf16.msra.mxu0 %v5227
    %5588 = vmatprep.subr.bf16.mxu0 0
    %5589 = vmatpush2.bf16.msra.mxu0 0
    %5590 = vmatprep.subr.bf16.mxu0 0
    %5591 = vmatpush2.bf16.msra.mxu0 0
    %5592 = vmatprep.subr.bf16.mxu0 0
    %5593 = vmatpush2.bf16.msra.mxu0 0
    %5594 = vmatprep.subr.bf16.mxu0 0
    %5595 = vmatpush2.bf16.msra.mxu0 0
    %5596 = vmatprep.subr.bf16.mxu0 0
    %5597 = vmatpush2.bf16.msra.mxu0 0
    %5598 = vmatprep.subr.bf16.mxu0 0
    %5599 = vmatpush2.bf16.msra.mxu0 0
    %5600 = vmatprep.subr.bf16.mxu0 0
    %5601 = vmatpush2.bf16.msra.mxu0 0
    %5602 = vmatprep.subr.bf16.mxu0 0
    %5603 = vmatpush2.bf16.msra.mxu0 0
    %5604 = vmatprep.mubr.bf16.mxu0 0
    %5605 = vmatmul.mubr.bf16.gmra.mxu0 %v3883
    %v5606 = vpop.f32.mrf.mxu0
    %v5607 = vadd.f32 %v5534, %v5606
    %v5608 = vpop.f32.mrf.mxu0
    %v5609 = vadd.f32 %v5536, %v5608
    %v5610 = vpop.f32.mrf.mxu0
    %v5611 = vadd.f32 %v5538, %v5610
    %v5612 = vpop.f32.mrf.mxu0
    %v5613 = vadd.f32 %v5540, %v5612
    %5614 = vmatprep.mubr.bf16.mxu0 0
    %5615 = vmatmul.mubr.bf16.gmra.mxu0 %v3886
    %v5616 = vpop.f32.mrf.mxu0
    %v5617 = vadd.f32 %v5544, %v5616
    %v5618 = vpop.f32.mrf.mxu0
    %v5619 = vadd.f32 %v5546, %v5618
    %v5620 = vpop.f32.mrf.mxu0
    %v5621 = vadd.f32 %v5548, %v5620
    %v5622 = vpop.f32.mrf.mxu0
    %v5623 = vadd.f32 %v5550, %v5622
    %5624 = vmatprep.mubr.bf16.mxu0 0
    %5625 = vmatmul.mubr.bf16.gmra.mxu0 %v3889
    %v5626 = vpop.f32.mrf.mxu0
    %v5627 = vadd.f32 %v5554, %v5626
    %v5628 = vpop.f32.mrf.mxu0
    %v5629 = vadd.f32 %v5556, %v5628
    %v5630 = vpop.f32.mrf.mxu0
    %v5631 = vadd.f32 %v5558, %v5630
    %v5632 = vpop.f32.mrf.mxu0
    %v5633 = vadd.f32 %v5560, %v5632
    %5634 = vmatprep.mubr.bf16.mxu0 0
    %5635 = vmatmul.mubr.bf16.gmra.mxu0 %v3892
    %v5636 = vpop.f32.mrf.mxu0
    %v5637 = vadd.f32 %v5564, %v5636
    %v5638 = vpop.f32.mrf.mxu0
    %v5639 = vadd.f32 %v5566, %v5638
    %v5640 = vpop.f32.mrf.mxu0
    %v5641 = vadd.f32 %v5568, %v5640
    %v5642 = vpop.f32.mrf.mxu0
    %v5643 = vadd.f32 %v5570, %v5642
    %5644 = vdwg.mxu0
    %v5645 = vld [vmem:[#allocation2 + $0x30] sm:$0xff]
    %v5646 = vld [vmem:[#allocation2 + $0x38] sm:$0xff]
    %v5647 = vld [vmem:[#allocation2 + $0x40] sm:$0xff]
    %v5648 = vld [vmem:[#allocation2 + $0x48] sm:$0xff]
    %v5649 = vld [vmem:[#allocation2 + $0x50] sm:$0xff]
    %v5650 = vld [vmem:[#allocation2 + $0x58] sm:$0xff]
    %v5651 = vld [vmem:[#allocation2 + $0x60] sm:$0xff]
    %v5652 = vld [vmem:[#allocation2 + $0x68] sm:$0xff]
    %v5653 = vld [vmem:[#allocation2 + $0x70] sm:$0xff]
    %v5654 = vld [vmem:[#allocation2 + $0x78] sm:$0xff]
    %v5655 = vld [vmem:[#allocation2 + $0x80] sm:$0xff]
    %v5656 = vld [vmem:[#allocation2 + $0x88] sm:$0xff]
    %v5657 = vld [vmem:[#allocation2 + $0x90] sm:$0xff]
    %v5658 = vld [vmem:[#allocation2 + $0x98] sm:$0xff]
    %v5659 = vld [vmem:[#allocation2 + $0xa0] sm:$0xff]
    %v5660 = vld [vmem:[#allocation2 + $0xa8] sm:$0xff]
    %v5661 = vld [vmem:[#allocation2 + $0xb0] sm:$0xff]
    %v5662 = vld [vmem:[#allocation2 + $0xb8] sm:$0xff]
    %v5663 = vld [vmem:[#allocation2 + $0xc0] sm:$0xff]
    %v5664 = vld [vmem:[#allocation2 + $0xc8] sm:$0xff]
    %v5665 = vld [vmem:[#allocation2 + $0xd0] sm:$0xff]
    %v5666 = vld [vmem:[#allocation2 + $0xd8] sm:$0xff]
    %v5667 = vld [vmem:[#allocation2 + $0xe0] sm:$0xff]
    %v5668 = vld [vmem:[#allocation2 + $0xe8] sm:$0xff]
    %v5669 = vpack.c.bf16 %v5648, %v5645
    %v5670 = vpack.c.bf16 %v5649, %v5646
    %v5671 = vpack.c.bf16 %v5650, %v5647
    %v5672 = vpack.c.bf16 %v5654, %v5651
    %v5673 = vpack.c.bf16 %v5655, %v5652
    %v5674 = vpack.c.bf16 %v5656, %v5653
    %v5675 = vpack.c.bf16 %v5660, %v5657
    %v5676 = vpack.c.bf16 %v5661, %v5658
    %v5677 = vpack.c.bf16 %v5662, %v5659
    %v5678 = vpack.c.bf16 %v5666, %v5663
    %v5679 = vpack.c.bf16 %v5667, %v5664
    %v5680 = vpack.c.bf16 %v5668, %v5665
    %s5681 = scalar_lea.vmem [#allocation7], 1536
    %v5682 = vld [vmem:[%s5681] sm:$0xff]
    %v5683 = vld [vmem:[%s5681 + $0x8] sm:$0xff]
    %v5684 = vld [vmem:[%s5681 + $0x10] sm:$0xff]
    %v5685 = vld [vmem:[%s5681 + $0x18] sm:$0xff]
    %v5686 = vld [vmem:[%s5681 + $0x20] sm:$0xff]
    %v5687 = vld [vmem:[%s5681 + $0x28] sm:$0xff]
    %v5688 = vld [vmem:[%s5681 + $0x30] sm:$0xff]
    %v5689 = vld [vmem:[%s5681 + $0x38] sm:$0xff]
    %v5690 = vld [vmem:[%s5681 + $0x40] sm:$0xff]
    %v5691 = vld [vmem:[%s5681 + $0x48] sm:$0xff]
    %v5692 = vld [vmem:[%s5681 + $0x50] sm:$0xff]
    %v5693 = vld [vmem:[%s5681 + $0x58] sm:$0xff]
    %v5694 = vld [vmem:[%s5681 + $0x60] sm:$0xff]
    %v5695 = vld [vmem:[%s5681 + $0x68] sm:$0xff]
    %v5696 = vld [vmem:[%s5681 + $0x70] sm:$0xff]
    %v5697 = vld [vmem:[%s5681 + $0x78] sm:$0xff]
    %v5698 = vld [vmem:[%s5681 + $0x80] sm:$0xff]
    %v5699 = vld [vmem:[%s5681 + $0x88] sm:$0xff]
    %v5700 = vld [vmem:[%s5681 + $0x90] sm:$0xff]
    %v5701 = vld [vmem:[%s5681 + $0x98] sm:$0xff]
    %v5702 = vld [vmem:[%s5681 + $0xa0] sm:$0xff]
    %v5703 = vld [vmem:[%s5681 + $0xa8] sm:$0xff]
    %v5704 = vld [vmem:[%s5681 + $0xb0] sm:$0xff]
    %v5705 = vld [vmem:[%s5681 + $0xb8] sm:$0xff]
    %v5706 = vld [vmem:[%s5681 + $0xc0] sm:$0xff]
    %v5707 = vld [vmem:[%s5681 + $0xc8] sm:$0xff]
    %v5708 = vld [vmem:[%s5681 + $0xd0] sm:$0xff]
    %v5709 = vld [vmem:[%s5681 + $0xd8] sm:$0xff]
    %v5710 = vld [vmem:[%s5681 + $0xe0] sm:$0xff]
    %v5711 = vld [vmem:[%s5681 + $0xe8] sm:$0xff]
    %v5712 = vld [vmem:[%s5681 + $0xf0] sm:$0xff]
    %v5713 = vld [vmem:[%s5681 + $0xf8] sm:$0xff]
    %v5714 = vld [vmem:[%s5681 + $0x100] sm:$0xff]
    %v5715 = vld [vmem:[%s5681 + $0x108] sm:$0xff]
    %v5716 = vld [vmem:[%s5681 + $0x110] sm:$0xff]
    %v5717 = vld [vmem:[%s5681 + $0x118] sm:$0xff]
    %v5718 = vld [vmem:[%s5681 + $0x120] sm:$0xff]
    %v5719 = vld [vmem:[%s5681 + $0x128] sm:$0xff]
    %v5720 = vld [vmem:[%s5681 + $0x130] sm:$0xff]
    %v5721 = vld [vmem:[%s5681 + $0x138] sm:$0xff]
    %v5722 = vld [vmem:[%s5681 + $0x140] sm:$0xff]
    %v5723 = vld [vmem:[%s5681 + $0x148] sm:$0xff]
    %v5724 = vld [vmem:[%s5681 + $0x150] sm:$0xff]
    %v5725 = vld [vmem:[%s5681 + $0x158] sm:$0xff]
    %v5726 = vld [vmem:[%s5681 + $0x160] sm:$0xff]
    %v5727 = vld [vmem:[%s5681 + $0x168] sm:$0xff]
    %v5728 = vld [vmem:[%s5681 + $0x170] sm:$0xff]
    %v5729 = vld [vmem:[%s5681 + $0x178] sm:$0xff]
    %v5730 = vld [vmem:[%s5681 + $0x180] sm:$0xff]
    %v5731 = vld [vmem:[%s5681 + $0x188] sm:$0xff]
    %v5732 = vld [vmem:[%s5681 + $0x190] sm:$0xff]
    %v5733 = vld [vmem:[%s5681 + $0x198] sm:$0xff]
    %v5734 = vld [vmem:[%s5681 + $0x1a0] sm:$0xff]
    %v5735 = vld [vmem:[%s5681 + $0x1a8] sm:$0xff]
    %v5736 = vld [vmem:[%s5681 + $0x1b0] sm:$0xff]
    %v5737 = vld [vmem:[%s5681 + $0x1b8] sm:$0xff]
    %v5738 = vld [vmem:[%s5681 + $0x1c0] sm:$0xff]
    %v5739 = vld [vmem:[%s5681 + $0x1c8] sm:$0xff]
    %v5740 = vld [vmem:[%s5681 + $0x1d0] sm:$0xff]
    %v5741 = vld [vmem:[%s5681 + $0x1d8] sm:$0xff]
    %v5742 = vld [vmem:[%s5681 + $0x1e0] sm:$0xff]
    %v5743 = vld [vmem:[%s5681 + $0x1e8] sm:$0xff]
    %v5744 = vld [vmem:[%s5681 + $0x1f0] sm:$0xff]
    %v5745 = vld [vmem:[%s5681 + $0x1f8] sm:$0xff]
    %v5746 = vld [vmem:[%s5681 + $0x200] sm:$0xff]
    %v5747 = vld [vmem:[%s5681 + $0x208] sm:$0xff]
    %v5748 = vld [vmem:[%s5681 + $0x210] sm:$0xff]
    %v5749 = vld [vmem:[%s5681 + $0x218] sm:$0xff]
    %v5750 = vld [vmem:[%s5681 + $0x220] sm:$0xff]
    %v5751 = vld [vmem:[%s5681 + $0x228] sm:$0xff]
    %v5752 = vld [vmem:[%s5681 + $0x230] sm:$0xff]
    %v5753 = vld [vmem:[%s5681 + $0x238] sm:$0xff]
    %v5754 = vld [vmem:[%s5681 + $0x240] sm:$0xff]
    %v5755 = vld [vmem:[%s5681 + $0x248] sm:$0xff]
    %v5756 = vld [vmem:[%s5681 + $0x250] sm:$0xff]
    %v5757 = vld [vmem:[%s5681 + $0x258] sm:$0xff]
    %v5758 = vld [vmem:[%s5681 + $0x260] sm:$0xff]
    %v5759 = vld [vmem:[%s5681 + $0x268] sm:$0xff]
    %v5760 = vld [vmem:[%s5681 + $0x270] sm:$0xff]
    %v5761 = vld [vmem:[%s5681 + $0x278] sm:$0xff]
    %v5762 = vld [vmem:[%s5681 + $0x280] sm:$0xff]
    %v5763 = vld [vmem:[%s5681 + $0x288] sm:$0xff]
    %v5764 = vld [vmem:[%s5681 + $0x290] sm:$0xff]
    %v5765 = vld [vmem:[%s5681 + $0x298] sm:$0xff]
    %v5766 = vld [vmem:[%s5681 + $0x2a0] sm:$0xff]
    %v5767 = vld [vmem:[%s5681 + $0x2a8] sm:$0xff]
    %v5768 = vld [vmem:[%s5681 + $0x2b0] sm:$0xff]
    %v5769 = vld [vmem:[%s5681 + $0x2b8] sm:$0xff]
    %v5770 = vld [vmem:[%s5681 + $0x2c0] sm:$0xff]
    %v5771 = vld [vmem:[%s5681 + $0x2c8] sm:$0xff]
    %v5772 = vld [vmem:[%s5681 + $0x2d0] sm:$0xff]
    %v5773 = vld [vmem:[%s5681 + $0x2d8] sm:$0xff]
    %v5774 = vld [vmem:[%s5681 + $0x2e0] sm:$0xff]
    %v5775 = vld [vmem:[%s5681 + $0x2e8] sm:$0xff]
    %v5776 = vld [vmem:[%s5681 + $0x2f0] sm:$0xff]
    %v5777 = vld [vmem:[%s5681 + $0x2f8] sm:$0xff]
    %v5874 = vunpack.c.l.b16 %v5682
    %v5875 = vunpack.c.h.b16 %v5682
    %v5876 = vunpack.c.l.b16 %v5683
    %v5877 = vunpack.c.h.b16 %v5683
    %v5878 = vunpack.c.l.b16 %v5684
    %v5879 = vunpack.c.h.b16 %v5684
    %v5880 = vunpack.c.l.b16 %v5685
    %v5881 = vunpack.c.h.b16 %v5685
    %v5882 = vunpack.c.l.b16 %v5686
    %v5883 = vunpack.c.h.b16 %v5686
    %v5884 = vunpack.c.l.b16 %v5687
    %v5885 = vunpack.c.h.b16 %v5687
    %v5886 = vunpack.c.l.b16 %v5688
    %v5887 = vunpack.c.h.b16 %v5688
    %v5888 = vunpack.c.l.b16 %v5689
    %v5889 = vunpack.c.h.b16 %v5689
    %v5890 = vunpack.c.l.b16 %v5690
    %v5891 = vunpack.c.h.b16 %v5690
    %v5892 = vunpack.c.l.b16 %v5691
    %v5893 = vunpack.c.h.b16 %v5691
    %v5894 = vunpack.c.l.b16 %v5692
    %v5895 = vunpack.c.h.b16 %v5692
    %v5896 = vunpack.c.l.b16 %v5693
    %v5897 = vunpack.c.h.b16 %v5693
    %v5898 = vunpack.c.l.b16 %v5694
    %v5899 = vunpack.c.h.b16 %v5694
    %v5900 = vunpack.c.l.b16 %v5695
    %v5901 = vunpack.c.h.b16 %v5695
    %v5902 = vunpack.c.l.b16 %v5696
    %v5903 = vunpack.c.h.b16 %v5696
    %v5904 = vunpack.c.l.b16 %v5697
    %v5905 = vunpack.c.h.b16 %v5697
    %v5906 = vunpack.c.l.b16 %v5698
    %v5907 = vunpack.c.h.b16 %v5698
    %v5908 = vunpack.c.l.b16 %v5699
    %v5909 = vunpack.c.h.b16 %v5699
    %v5910 = vunpack.c.l.b16 %v5700
    %v5911 = vunpack.c.h.b16 %v5700
    %v5912 = vunpack.c.l.b16 %v5701
    %v5913 = vunpack.c.h.b16 %v5701
    %v5914 = vunpack.c.l.b16 %v5702
    %v5915 = vunpack.c.h.b16 %v5702
    %v5916 = vunpack.c.l.b16 %v5703
    %v5917 = vunpack.c.h.b16 %v5703
    %v5918 = vunpack.c.l.b16 %v5704
    %v5919 = vunpack.c.h.b16 %v5704
    %v5920 = vunpack.c.l.b16 %v5705
    %v5921 = vunpack.c.h.b16 %v5705
    %v5922 = vunpack.c.l.b16 %v5706
    %v5923 = vunpack.c.h.b16 %v5706
    %v5924 = vunpack.c.l.b16 %v5707
    %v5925 = vunpack.c.h.b16 %v5707
    %v5926 = vunpack.c.l.b16 %v5708
    %v5927 = vunpack.c.h.b16 %v5708
    %v5928 = vunpack.c.l.b16 %v5709
    %v5929 = vunpack.c.h.b16 %v5709
    %v5930 = vunpack.c.l.b16 %v5710
    %v5931 = vunpack.c.h.b16 %v5710
    %v5932 = vunpack.c.l.b16 %v5711
    %v5933 = vunpack.c.h.b16 %v5711
    %v5934 = vunpack.c.l.b16 %v5712
    %v5935 = vunpack.c.h.b16 %v5712
    %v5936 = vunpack.c.l.b16 %v5713
    %v5937 = vunpack.c.h.b16 %v5713
    %v5938 = vunpack.c.l.b16 %v5714
    %v5939 = vunpack.c.h.b16 %v5714
    %v5940 = vunpack.c.l.b16 %v5715
    %v5941 = vunpack.c.h.b16 %v5715
    %v5942 = vunpack.c.l.b16 %v5716
    %v5943 = vunpack.c.h.b16 %v5716
    %v5944 = vunpack.c.l.b16 %v5717
    %v5945 = vunpack.c.h.b16 %v5717
    %v5946 = vunpack.c.l.b16 %v5718
    %v5947 = vunpack.c.h.b16 %v5718
    %v5948 = vunpack.c.l.b16 %v5719
    %v5949 = vunpack.c.h.b16 %v5719
    %v5950 = vunpack.c.l.b16 %v5720
    %v5951 = vunpack.c.h.b16 %v5720
    %v5952 = vunpack.c.l.b16 %v5721
    %v5953 = vunpack.c.h.b16 %v5721
    %v5954 = vunpack.c.l.b16 %v5722
    %v5955 = vunpack.c.h.b16 %v5722
    %v5956 = vunpack.c.l.b16 %v5723
    %v5957 = vunpack.c.h.b16 %v5723
    %v5958 = vunpack.c.l.b16 %v5724
    %v5959 = vunpack.c.h.b16 %v5724
    %v5960 = vunpack.c.l.b16 %v5725
    %v5961 = vunpack.c.h.b16 %v5725
    %v5962 = vunpack.c.l.b16 %v5726
    %v5963 = vunpack.c.h.b16 %v5726
    %v5964 = vunpack.c.l.b16 %v5727
    %v5965 = vunpack.c.h.b16 %v5727
    %v5966 = vunpack.c.l.b16 %v5728
    %v5967 = vunpack.c.h.b16 %v5728
    %v5968 = vunpack.c.l.b16 %v5729
    %v5969 = vunpack.c.h.b16 %v5729
    %v5970 = vunpack.c.l.b16 %v5730
    %v5971 = vunpack.c.h.b16 %v5730
    %v5972 = vunpack.c.l.b16 %v5731
    %v5973 = vunpack.c.h.b16 %v5731
    %v5974 = vunpack.c.l.b16 %v5732
    %v5975 = vunpack.c.h.b16 %v5732
    %v5976 = vunpack.c.l.b16 %v5733
    %v5977 = vunpack.c.h.b16 %v5733
    %v5978 = vunpack.c.l.b16 %v5734
    %v5979 = vunpack.c.h.b16 %v5734
    %v5980 = vunpack.c.l.b16 %v5735
    %v5981 = vunpack.c.h.b16 %v5735
    %v5982 = vunpack.c.l.b16 %v5736
    %v5983 = vunpack.c.h.b16 %v5736
    %v5984 = vunpack.c.l.b16 %v5737
    %v5985 = vunpack.c.h.b16 %v5737
    %v5986 = vunpack.c.l.b16 %v5738
    %v5987 = vunpack.c.h.b16 %v5738
    %v5988 = vunpack.c.l.b16 %v5739
    %v5989 = vunpack.c.h.b16 %v5739
    %v5990 = vunpack.c.l.b16 %v5740
    %v5991 = vunpack.c.h.b16 %v5740
    %v5992 = vunpack.c.l.b16 %v5741
    %v5993 = vunpack.c.h.b16 %v5741
    %v5994 = vunpack.c.l.b16 %v5742
    %v5995 = vunpack.c.h.b16 %v5742
    %v5996 = vunpack.c.l.b16 %v5743
    %v5997 = vunpack.c.h.b16 %v5743
    %v5998 = vunpack.c.l.b16 %v5744
    %v5999 = vunpack.c.h.b16 %v5744
    %v6000 = vunpack.c.l.b16 %v5745
    %v6001 = vunpack.c.h.b16 %v5745
    %v6002 = vunpack.c.l.b16 %v5746
    %v6003 = vunpack.c.h.b16 %v5746
    %v6004 = vunpack.c.l.b16 %v5747
    %v6005 = vunpack.c.h.b16 %v5747
    %v6006 = vunpack.c.l.b16 %v5748
    %v6007 = vunpack.c.h.b16 %v5748
    %v6008 = vunpack.c.l.b16 %v5749
    %v6009 = vunpack.c.h.b16 %v5749
    %v6010 = vunpack.c.l.b16 %v5750
    %v6011 = vunpack.c.h.b16 %v5750
    %v6012 = vunpack.c.l.b16 %v5751
    %v6013 = vunpack.c.h.b16 %v5751
    %v6014 = vunpack.c.l.b16 %v5752
    %v6015 = vunpack.c.h.b16 %v5752
    %v6016 = vunpack.c.l.b16 %v5753
    %v6017 = vunpack.c.h.b16 %v5753
    %v6018 = vunpack.c.l.b16 %v5754
    %v6019 = vunpack.c.h.b16 %v5754
    %v6020 = vunpack.c.l.b16 %v5755
    %v6021 = vunpack.c.h.b16 %v5755
    %v6022 = vunpack.c.l.b16 %v5756
    %v6023 = vunpack.c.h.b16 %v5756
    %v6024 = vunpack.c.l.b16 %v5757
    %v6025 = vunpack.c.h.b16 %v5757
    %v6026 = vunpack.c.l.b16 %v5758
    %v6027 = vunpack.c.h.b16 %v5758
    %v6028 = vunpack.c.l.b16 %v5759
    %v6029 = vunpack.c.h.b16 %v5759
    %v6030 = vunpack.c.l.b16 %v5760
    %v6031 = vunpack.c.h.b16 %v5760
    %v6032 = vunpack.c.l.b16 %v5761
    %v6033 = vunpack.c.h.b16 %v5761
    %v6034 = vunpack.c.l.b16 %v5762
    %v6035 = vunpack.c.h.b16 %v5762
    %v6036 = vunpack.c.l.b16 %v5763
    %v6037 = vunpack.c.h.b16 %v5763
    %v6038 = vunpack.c.l.b16 %v5764
    %v6039 = vunpack.c.h.b16 %v5764
    %v6040 = vunpack.c.l.b16 %v5765
    %v6041 = vunpack.c.h.b16 %v5765
    %v6042 = vunpack.c.l.b16 %v5766
    %v6043 = vunpack.c.h.b16 %v5766
    %v6044 = vunpack.c.l.b16 %v5767
    %v6045 = vunpack.c.h.b16 %v5767
    %v6046 = vunpack.c.l.b16 %v5768
    %v6047 = vunpack.c.h.b16 %v5768
    %v6048 = vunpack.c.l.b16 %v5769
    %v6049 = vunpack.c.h.b16 %v5769
    %v6050 = vunpack.c.l.b16 %v5770
    %v6051 = vunpack.c.h.b16 %v5770
    %v6052 = vunpack.c.l.b16 %v5771
    %v6053 = vunpack.c.h.b16 %v5771
    %v6054 = vunpack.c.l.b16 %v5772
    %v6055 = vunpack.c.h.b16 %v5772
    %v6056 = vunpack.c.l.b16 %v5773
    %v6057 = vunpack.c.h.b16 %v5773
    %v6058 = vunpack.c.l.b16 %v5774
    %v6059 = vunpack.c.h.b16 %v5774
    %v6060 = vunpack.c.l.b16 %v5775
    %v6061 = vunpack.c.h.b16 %v5775
    %v6062 = vunpack.c.l.b16 %v5776
    %v6063 = vunpack.c.h.b16 %v5776
    %v6064 = vunpack.c.l.b16 %v5777
    %v6065 = vunpack.c.h.b16 %v5777
    %v6066 = vpack.c.b16 %v5878, %v5874
    %v6067 = vpack.c.b16 %v5879, %v5875
    %v6068 = vpack.c.b16 %v5880, %v5876
    %v6069 = vpack.c.b16 %v5881, %v5877
    %v6070 = vpack.c.b16 %v5886, %v5882
    %v6071 = vpack.c.b16 %v5887, %v5883
    %v6072 = vpack.c.b16 %v5888, %v5884
    %v6073 = vpack.c.b16 %v5889, %v5885
    %v6074 = vpack.c.b16 %v5894, %v5890
    %v6075 = vpack.c.b16 %v5895, %v5891
    %v6076 = vpack.c.b16 %v5896, %v5892
    %v6077 = vpack.c.b16 %v5897, %v5893
    %v6078 = vpack.c.b16 %v5902, %v5898
    %v6079 = vpack.c.b16 %v5903, %v5899
    %v6080 = vpack.c.b16 %v5904, %v5900
    %v6081 = vpack.c.b16 %v5905, %v5901
    %v6082 = vpack.c.b16 %v5910, %v5906
    %v6083 = vpack.c.b16 %v5911, %v5907
    %v6084 = vpack.c.b16 %v5912, %v5908
    %v6085 = vpack.c.b16 %v5913, %v5909
    %v6086 = vpack.c.b16 %v5918, %v5914
    %v6087 = vpack.c.b16 %v5919, %v5915
    %v6088 = vpack.c.b16 %v5920, %v5916
    %v6089 = vpack.c.b16 %v5921, %v5917
    %v6090 = vpack.c.b16 %v5926, %v5922
    %v6091 = vpack.c.b16 %v5927, %v5923
    %v6092 = vpack.c.b16 %v5928, %v5924
    %v6093 = vpack.c.b16 %v5929, %v5925
    %v6094 = vpack.c.b16 %v5934, %v5930
    %v6095 = vpack.c.b16 %v5935, %v5931
    %v6096 = vpack.c.b16 %v5936, %v5932
    %v6097 = vpack.c.b16 %v5937, %v5933
    %v6098 = vpack.c.b16 %v5942, %v5938
    %v6099 = vpack.c.b16 %v5943, %v5939
    %v6100 = vpack.c.b16 %v5944, %v5940
    %v6101 = vpack.c.b16 %v5945, %v5941
    %v6102 = vpack.c.b16 %v5950, %v5946
    %v6103 = vpack.c.b16 %v5951, %v5947
    %v6104 = vpack.c.b16 %v5952, %v5948
    %v6105 = vpack.c.b16 %v5953, %v5949
    %v6106 = vpack.c.b16 %v5958, %v5954
    %v6107 = vpack.c.b16 %v5959, %v5955
    %v6108 = vpack.c.b16 %v5960, %v5956
    %v6109 = vpack.c.b16 %v5961, %v5957
    %v6110 = vpack.c.b16 %v5966, %v5962
    %v6111 = vpack.c.b16 %v5967, %v5963
    %v6112 = vpack.c.b16 %v5968, %v5964
    %v6113 = vpack.c.b16 %v5969, %v5965
    %v6114 = vpack.c.b16 %v5974, %v5970
    %v6115 = vpack.c.b16 %v5975, %v5971
    %v6116 = vpack.c.b16 %v5976, %v5972
    %v6117 = vpack.c.b16 %v5977, %v5973
    %v6118 = vpack.c.b16 %v5982, %v5978
    %v6119 = vpack.c.b16 %v5983, %v5979
    %v6120 = vpack.c.b16 %v5984, %v5980
    %v6121 = vpack.c.b16 %v5985, %v5981
    %v6122 = vpack.c.b16 %v5990, %v5986
    %v6123 = vpack.c.b16 %v5991, %v5987
    %v6124 = vpack.c.b16 %v5992, %v5988
    %v6125 = vpack.c.b16 %v5993, %v5989
    %v6126 = vpack.c.b16 %v5998, %v5994
    %v6127 = vpack.c.b16 %v5999, %v5995
    %v6128 = vpack.c.b16 %v6000, %v5996
    %v6129 = vpack.c.b16 %v6001, %v5997
    %v6130 = vpack.c.b16 %v6006, %v6002
    %v6131 = vpack.c.b16 %v6007, %v6003
    %v6132 = vpack.c.b16 %v6008, %v6004
    %v6133 = vpack.c.b16 %v6009, %v6005
    %v6134 = vpack.c.b16 %v6014, %v6010
    %v6135 = vpack.c.b16 %v6015, %v6011
    %v6136 = vpack.c.b16 %v6016, %v6012
    %v6137 = vpack.c.b16 %v6017, %v6013
    %v6138 = vpack.c.b16 %v6022, %v6018
    %v6139 = vpack.c.b16 %v6023, %v6019
    %v6140 = vpack.c.b16 %v6024, %v6020
    %v6141 = vpack.c.b16 %v6025, %v6021
    %v6142 = vpack.c.b16 %v6030, %v6026
    %v6143 = vpack.c.b16 %v6031, %v6027
    %v6144 = vpack.c.b16 %v6032, %v6028
    %v6145 = vpack.c.b16 %v6033, %v6029
    %v6146 = vpack.c.b16 %v6038, %v6034
    %v6147 = vpack.c.b16 %v6039, %v6035
    %v6148 = vpack.c.b16 %v6040, %v6036
    %v6149 = vpack.c.b16 %v6041, %v6037
    %v6150 = vpack.c.b16 %v6046, %v6042
    %v6151 = vpack.c.b16 %v6047, %v6043
    %v6152 = vpack.c.b16 %v6048, %v6044
    %v6153 = vpack.c.b16 %v6049, %v6045
    %v6154 = vpack.c.b16 %v6054, %v6050
    %v6155 = vpack.c.b16 %v6055, %v6051
    %v6156 = vpack.c.b16 %v6056, %v6052
    %v6157 = vpack.c.b16 %v6057, %v6053
    %v6158 = vpack.c.b16 %v6062, %v6058
    %v6159 = vpack.c.b16 %v6063, %v6059
    %v6160 = vpack.c.b16 %v6064, %v6060
    %v6161 = vpack.c.b16 %v6065, %v6061
    %6258 = vmatprep.subr.bf16.mxu0 %v6095
    %6259 = vmatpush1.bf16.msra.mxu0 %v6094
    %6260 = vmatprep.subr.bf16.mxu0 %v6091
    %6261 = vmatpush1.bf16.msra.mxu0 %v6090
    %6262 = vmatprep.subr.bf16.mxu0 %v6087
    %6263 = vmatpush1.bf16.msra.mxu0 %v6086
    %6264 = vmatprep.subr.bf16.mxu0 %v6083
    %6265 = vmatpush1.bf16.msra.mxu0 %v6082
    %6266 = vmatprep.subr.bf16.mxu0 %v6079
    %6267 = vmatpush1.bf16.msra.mxu0 %v6078
    %6268 = vmatprep.subr.bf16.mxu0 %v6075
    %6269 = vmatpush1.bf16.msra.mxu0 %v6074
    %6270 = vmatprep.subr.bf16.mxu0 %v6071
    %6271 = vmatpush1.bf16.msra.mxu0 %v6070
    %6272 = vmatprep.subr.bf16.mxu0 %v6067
    %6273 = vmatpush1.bf16.msra.mxu0 %v6066
    %6274 = vmatprep.subr.bf16.mxu0 %v6127
    %6275 = vmatpush2.bf16.msra.mxu0 %v6126
    %6276 = vmatprep.subr.bf16.mxu0 %v6123
    %6277 = vmatpush2.bf16.msra.mxu0 %v6122
    %6278 = vmatprep.subr.bf16.mxu0 %v6119
    %6279 = vmatpush2.bf16.msra.mxu0 %v6118
    %6280 = vmatprep.subr.bf16.mxu0 %v6115
    %6281 = vmatpush2.bf16.msra.mxu0 %v6114
    %6282 = vmatprep.subr.bf16.mxu0 %v6111
    %6283 = vmatpush2.bf16.msra.mxu0 %v6110
    %6284 = vmatprep.subr.bf16.mxu0 %v6107
    %6285 = vmatpush2.bf16.msra.mxu0 %v6106
    %6286 = vmatprep.subr.bf16.mxu0 %v6103
    %6287 = vmatpush2.bf16.msra.mxu0 %v6102
    %6288 = vmatprep.subr.bf16.mxu0 %v6099
    %6289 = vmatpush2.bf16.msra.mxu0 %v6098
    %6290 = vmatprep.mubr.bf16.mxu0 %v5670
    %6291 = vmatmul.mubr.bf16.gmra.mxu0 %v5669
    %v6292 = vpop.f32.mrf.mxu0
    %v6293 = vadd.f32 0.0, %v6292
    %v6294 = vpop.f32.mrf.mxu0
    %v6295 = vadd.f32 0.0, %v6294
    %v6296 = vpop.f32.mrf.mxu0
    %v6297 = vadd.f32 0.0, %v6296
    %v6298 = vpop.f32.mrf.mxu0
    %v6299 = vadd.f32 0.0, %v6298
    %6300 = vmatprep.mubr.bf16.mxu0 %v5673
    %6301 = vmatmul.mubr.bf16.gmra.mxu0 %v5672
    %v6302 = vpop.f32.mrf.mxu0
    %v6303 = vadd.f32 0.0, %v6302
    %v6304 = vpop.f32.mrf.mxu0
    %v6305 = vadd.f32 0.0, %v6304
    %v6306 = vpop.f32.mrf.mxu0
    %v6307 = vadd.f32 0.0, %v6306
    %v6308 = vpop.f32.mrf.mxu0
    %v6309 = vadd.f32 0.0, %v6308
    %6310 = vmatprep.mubr.bf16.mxu0 %v5676
    %6311 = vmatmul.mubr.bf16.gmra.mxu0 %v5675
    %v6312 = vpop.f32.mrf.mxu0
    %v6313 = vadd.f32 0.0, %v6312
    %v6314 = vpop.f32.mrf.mxu0
    %v6315 = vadd.f32 0.0, %v6314
    %v6316 = vpop.f32.mrf.mxu0
    %v6317 = vadd.f32 0.0, %v6316
    %v6318 = vpop.f32.mrf.mxu0
    %v6319 = vadd.f32 0.0, %v6318
    %6320 = vmatprep.mubr.bf16.mxu0 %v5679
    %6321 = vmatmul.mubr.bf16.gmra.mxu0 %v5678
    %v6322 = vpop.f32.mrf.mxu0
    %v6323 = vadd.f32 0.0, %v6322
    %v6324 = vpop.f32.mrf.mxu0
    %v6325 = vadd.f32 0.0, %v6324
    %v6326 = vpop.f32.mrf.mxu0
    %v6327 = vadd.f32 0.0, %v6326
    %v6328 = vpop.f32.mrf.mxu0
    %v6329 = vadd.f32 0.0, %v6328
    %6330 = vdwg.mxu0
    %6331 = vmatprep.subr.bf16.mxu0 %v6159
    %6332 = vmatpush1.bf16.msra.mxu0 %v6158
    %6333 = vmatprep.subr.bf16.mxu0 %v6155
    %6334 = vmatpush1.bf16.msra.mxu0 %v6154
    %6335 = vmatprep.subr.bf16.mxu0 %v6151
    %6336 = vmatpush1.bf16.msra.mxu0 %v6150
    %6337 = vmatprep.subr.bf16.mxu0 %v6147
    %6338 = vmatpush1.bf16.msra.mxu0 %v6146
    %6339 = vmatprep.subr.bf16.mxu0 %v6143
    %6340 = vmatpush1.bf16.msra.mxu0 %v6142
    %6341 = vmatprep.subr.bf16.mxu0 %v6139
    %6342 = vmatpush1.bf16.msra.mxu0 %v6138
    %6343 = vmatprep.subr.bf16.mxu0 %v6135
    %6344 = vmatpush1.bf16.msra.mxu0 %v6134
    %6345 = vmatprep.subr.bf16.mxu0 %v6131
    %6346 = vmatpush1.bf16.msra.mxu0 %v6130
    %6347 = vmatprep.subr.bf16.mxu0 0
    %6348 = vmatpush2.bf16.msra.mxu0 0
    %6349 = vmatprep.subr.bf16.mxu0 0
    %6350 = vmatpush2.bf16.msra.mxu0 0
    %6351 = vmatprep.subr.bf16.mxu0 0
    %6352 = vmatpush2.bf16.msra.mxu0 0
    %6353 = vmatprep.subr.bf16.mxu0 0
    %6354 = vmatpush2.bf16.msra.mxu0 0
    %6355 = vmatprep.subr.bf16.mxu0 0
    %6356 = vmatpush2.bf16.msra.mxu0 0
    %6357 = vmatprep.subr.bf16.mxu0 0
    %6358 = vmatpush2.bf16.msra.mxu0 0
    %6359 = vmatprep.subr.bf16.mxu0 0
    %6360 = vmatpush2.bf16.msra.mxu0 0
    %6361 = vmatprep.subr.bf16.mxu0 0
    %6362 = vmatpush2.bf16.msra.mxu0 0
    %6363 = vmatprep.mubr.bf16.mxu0 0
    %6364 = vmatmul.mubr.bf16.gmra.mxu0 %v5671
    %v6365 = vpop.f32.mrf.mxu0
    %v6366 = vadd.f32 %v6293, %v6365
    %v6367 = vpop.f32.mrf.mxu0
    %v6368 = vadd.f32 %v6295, %v6367
    %v6369 = vpop.f32.mrf.mxu0
    %v6370 = vadd.f32 %v6297, %v6369
    %v6371 = vpop.f32.mrf.mxu0
    %v6372 = vadd.f32 %v6299, %v6371
    %6373 = vmatprep.mubr.bf16.mxu0 0
    %6374 = vmatmul.mubr.bf16.gmra.mxu0 %v5674
    %v6375 = vpop.f32.mrf.mxu0
    %v6376 = vadd.f32 %v6303, %v6375
    %v6377 = vpop.f32.mrf.mxu0
    %v6378 = vadd.f32 %v6305, %v6377
    %v6379 = vpop.f32.mrf.mxu0
    %v6380 = vadd.f32 %v6307, %v6379
    %v6381 = vpop.f32.mrf.mxu0
    %v6382 = vadd.f32 %v6309, %v6381
    %6383 = vmatprep.mubr.bf16.mxu0 0
    %6384 = vmatmul.mubr.bf16.gmra.mxu0 %v5677
    %v6385 = vpop.f32.mrf.mxu0
    %v6386 = vadd.f32 %v6313, %v6385
    %v6387 = vpop.f32.mrf.mxu0
    %v6388 = vadd.f32 %v6315, %v6387
    %v6389 = vpop.f32.mrf.mxu0
    %v6390 = vadd.f32 %v6317, %v6389
    %v6391 = vpop.f32.mrf.mxu0
    %v6392 = vadd.f32 %v6319, %v6391
    %6393 = vmatprep.mubr.bf16.mxu0 0
    %6394 = vmatmul.mubr.bf16.gmra.mxu0 %v5680
    %v6395 = vpop.f32.mrf.mxu0
    %v6396 = vadd.f32 %v6323, %v6395
    %v6397 = vpop.f32.mrf.mxu0
    %v6398 = vadd.f32 %v6325, %v6397
    %v6399 = vpop.f32.mrf.mxu0
    %v6400 = vadd.f32 %v6327, %v6399
    %v6401 = vpop.f32.mrf.mxu0
    %v6402 = vadd.f32 %v6329, %v6401
    %6403 = vdwg.mxu0
    %6404 = vmatprep.subr.bf16.mxu0 %v6097
    %6405 = vmatpush1.bf16.msra.mxu0 %v6096
    %6406 = vmatprep.subr.bf16.mxu0 %v6093
    %6407 = vmatpush1.bf16.msra.mxu0 %v6092
    %6408 = vmatprep.subr.bf16.mxu0 %v6089
    %6409 = vmatpush1.bf16.msra.mxu0 %v6088
    %6410 = vmatprep.subr.bf16.mxu0 %v6085
    %6411 = vmatpush1.bf16.msra.mxu0 %v6084
    %6412 = vmatprep.subr.bf16.mxu0 %v6081
    %6413 = vmatpush1.bf16.msra.mxu0 %v6080
    %6414 = vmatprep.subr.bf16.mxu0 %v6077
    %6415 = vmatpush1.bf16.msra.mxu0 %v6076
    %6416 = vmatprep.subr.bf16.mxu0 %v6073
    %6417 = vmatpush1.bf16.msra.mxu0 %v6072
    %6418 = vmatprep.subr.bf16.mxu0 %v6069
    %6419 = vmatpush1.bf16.msra.mxu0 %v6068
    %6420 = vmatprep.subr.bf16.mxu0 %v6129
    %6421 = vmatpush2.bf16.msra.mxu0 %v6128
    %6422 = vmatprep.subr.bf16.mxu0 %v6125
    %6423 = vmatpush2.bf16.msra.mxu0 %v6124
    %6424 = vmatprep.subr.bf16.mxu0 %v6121
    %6425 = vmatpush2.bf16.msra.mxu0 %v6120
    %6426 = vmatprep.subr.bf16.mxu0 %v6117
    %6427 = vmatpush2.bf16.msra.mxu0 %v6116
    %6428 = vmatprep.subr.bf16.mxu0 %v6113
    %6429 = vmatpush2.bf16.msra.mxu0 %v6112
    %6430 = vmatprep.subr.bf16.mxu0 %v6109
    %6431 = vmatpush2.bf16.msra.mxu0 %v6108
    %6432 = vmatprep.subr.bf16.mxu0 %v6105
    %6433 = vmatpush2.bf16.msra.mxu0 %v6104
    %6434 = vmatprep.subr.bf16.mxu0 %v6101
    %6435 = vmatpush2.bf16.msra.mxu0 %v6100
    %6436 = vmatprep.mubr.bf16.mxu0 %v5670
    %6437 = vmatmul.mubr.bf16.gmra.mxu0 %v5669
    %v6438 = vpop.f32.mrf.mxu0
    %v6439 = vadd.f32 0.0, %v6438
    %v6440 = vpop.f32.mrf.mxu0
    %v6441 = vadd.f32 0.0, %v6440
    %v6442 = vpop.f32.mrf.mxu0
    %v6443 = vadd.f32 0.0, %v6442
    %v6444 = vpop.f32.mrf.mxu0
    %v6445 = vadd.f32 0.0, %v6444
    %6446 = vmatprep.mubr.bf16.mxu0 %v5673
    %6447 = vmatmul.mubr.bf16.gmra.mxu0 %v5672
    %v6448 = vpop.f32.mrf.mxu0
    %v6449 = vadd.f32 0.0, %v6448
    %v6450 = vpop.f32.mrf.mxu0
    %v6451 = vadd.f32 0.0, %v6450
    %v6452 = vpop.f32.mrf.mxu0
    %v6453 = vadd.f32 0.0, %v6452
    %v6454 = vpop.f32.mrf.mxu0
    %v6455 = vadd.f32 0.0, %v6454
    %6456 = vmatprep.mubr.bf16.mxu0 %v5676
    %6457 = vmatmul.mubr.bf16.gmra.mxu0 %v5675
    %v6458 = vpop.f32.mrf.mxu0
    %v6459 = vadd.f32 0.0, %v6458
    %v6460 = vpop.f32.mrf.mxu0
    %v6461 = vadd.f32 0.0, %v6460
    %v6462 = vpop.f32.mrf.mxu0
    %v6463 = vadd.f32 0.0, %v6462
    %v6464 = vpop.f32.mrf.mxu0
    %v6465 = vadd.f32 0.0, %v6464
    %6466 = vmatprep.mubr.bf16.mxu0 %v5679
    %6467 = vmatmul.mubr.bf16.gmra.mxu0 %v5678
    %v6468 = vpop.f32.mrf.mxu0
    %v6469 = vadd.f32 0.0, %v6468
    %v6470 = vpop.f32.mrf.mxu0
    %v6471 = vadd.f32 0.0, %v6470
    %v6472 = vpop.f32.mrf.mxu0
    %v6473 = vadd.f32 0.0, %v6472
    %v6474 = vpop.f32.mrf.mxu0
    %v6475 = vadd.f32 0.0, %v6474
    %6476 = vdwg.mxu0
    %6477 = vmatprep.subr.bf16.mxu0 %v6161
    %6478 = vmatpush1.bf16.msra.mxu0 %v6160
    %6479 = vmatprep.subr.bf16.mxu0 %v6157
    %6480 = vmatpush1.bf16.msra.mxu0 %v6156
    %6481 = vmatprep.subr.bf16.mxu0 %v6153
    %6482 = vmatpush1.bf16.msra.mxu0 %v6152
    %6483 = vmatprep.subr.bf16.mxu0 %v6149
    %6484 = vmatpush1.bf16.msra.mxu0 %v6148
    %6485 = vmatprep.subr.bf16.mxu0 %v6145
    %6486 = vmatpush1.bf16.msra.mxu0 %v6144
    %6487 = vmatprep.subr.bf16.mxu0 %v6141
    %6488 = vmatpush1.bf16.msra.mxu0 %v6140
    %6489 = vmatprep.subr.bf16.mxu0 %v6137
    %6490 = vmatpush1.bf16.msra.mxu0 %v6136
    %6491 = vmatprep.subr.bf16.mxu0 %v6133
    %6492 = vmatpush1.bf16.msra.mxu0 %v6132
    %6493 = vmatprep.subr.bf16.mxu0 0
    %6494 = vmatpush2.bf16.msra.mxu0 0
    %6495 = vmatprep.subr.bf16.mxu0 0
    %6496 = vmatpush2.bf16.msra.mxu0 0
    %6497 = vmatprep.subr.bf16.mxu0 0
    %6498 = vmatpush2.bf16.msra.mxu0 0
    %6499 = vmatprep.subr.bf16.mxu0 0
    %6500 = vmatpush2.bf16.msra.mxu0 0
    %6501 = vmatprep.subr.bf16.mxu0 0
    %6502 = vmatpush2.bf16.msra.mxu0 0
    %6503 = vmatprep.subr.bf16.mxu0 0
    %6504 = vmatpush2.bf16.msra.mxu0 0
    %6505 = vmatprep.subr.bf16.mxu0 0
    %6506 = vmatpush2.bf16.msra.mxu0 0
    %6507 = vmatprep.subr.bf16.mxu0 0
    %6508 = vmatpush2.bf16.msra.mxu0 0
    %6509 = vmatprep.mubr.bf16.mxu0 0
    %6510 = vmatmul.mubr.bf16.gmra.mxu0 %v5671
    %v6511 = vpop.f32.mrf.mxu0
    %v6512 = vadd.f32 %v6439, %v6511
    %v6513 = vpop.f32.mrf.mxu0
    %v6514 = vadd.f32 %v6441, %v6513
    %v6515 = vpop.f32.mrf.mxu0
    %v6516 = vadd.f32 %v6443, %v6515
    %v6517 = vpop.f32.mrf.mxu0
    %v6518 = vadd.f32 %v6445, %v6517
    %6519 = vmatprep.mubr.bf16.mxu0 0
    %6520 = vmatmul.mubr.bf16.gmra.mxu0 %v5674
    %v6521 = vpop.f32.mrf.mxu0
    %v6522 = vadd.f32 %v6449, %v6521
    %v6523 = vpop.f32.mrf.mxu0
    %v6524 = vadd.f32 %v6451, %v6523
    %v6525 = vpop.f32.mrf.mxu0
    %v6526 = vadd.f32 %v6453, %v6525
    %v6527 = vpop.f32.mrf.mxu0
    %v6528 = vadd.f32 %v6455, %v6527
    %6529 = vmatprep.mubr.bf16.mxu0 0
    %6530 = vmatmul.mubr.bf16.gmra.mxu0 %v5677
    %v6531 = vpop.f32.mrf.mxu0
    %v6532 = vadd.f32 %v6459, %v6531
    %v6533 = vpop.f32.mrf.mxu0
    %v6534 = vadd.f32 %v6461, %v6533
    %v6535 = vpop.f32.mrf.mxu0
    %v6536 = vadd.f32 %v6463, %v6535
    %v6537 = vpop.f32.mrf.mxu0
    %v6538 = vadd.f32 %v6465, %v6537
    %6539 = vmatprep.mubr.bf16.mxu0 0
    %6540 = vmatmul.mubr.bf16.gmra.mxu0 %v5680
    %v6541 = vpop.f32.mrf.mxu0
    %v6542 = vadd.f32 %v6469, %v6541
    %v6543 = vpop.f32.mrf.mxu0
    %v6544 = vadd.f32 %v6471, %v6543
    %v6545 = vpop.f32.mrf.mxu0
    %v6546 = vadd.f32 %v6473, %v6545
    %v6547 = vpop.f32.mrf.mxu0
    %v6548 = vadd.f32 %v6475, %v6547
    %6549 = vdwg.mxu0
    %v6550 = vadd.f32 %v5461, %v6366
    %v6551 = vadd.f32 %v5463, %v6368
    %v6552 = vadd.f32 %v5607, %v6512
    %v6553 = vadd.f32 %v5609, %v6514
    %v6554 = vadd.f32 %v5465, %v6370
    %v6555 = vadd.f32 %v5467, %v6372
    %v6556 = vadd.f32 %v5611, %v6516
    %v6557 = vadd.f32 %v5613, %v6518
    %v6558 = vadd.f32 %v5471, %v6376
    %v6559 = vadd.f32 %v5473, %v6378
    %v6560 = vadd.f32 %v5617, %v6522
    %v6561 = vadd.f32 %v5619, %v6524
    %v6562 = vadd.f32 %v5475, %v6380
    %v6563 = vadd.f32 %v5477, %v6382
    %v6564 = vadd.f32 %v5621, %v6526
    %v6565 = vadd.f32 %v5623, %v6528
    %v6566 = vadd.f32 %v5481, %v6386
    %v6567 = vadd.f32 %v5483, %v6388
    %v6568 = vadd.f32 %v5627, %v6532
    %v6569 = vadd.f32 %v5629, %v6534
    %v6570 = vadd.f32 %v5485, %v6390
    %v6571 = vadd.f32 %v5487, %v6392
    %v6572 = vadd.f32 %v5631, %v6536
    %v6573 = vadd.f32 %v5633, %v6538
    %v6574 = vadd.f32 %v5491, %v6396
    %v6575 = vadd.f32 %v5493, %v6398
    %v6576 = vadd.f32 %v5637, %v6542
    %v6577 = vadd.f32 %v5639, %v6544
    %v6578 = vadd.f32 %v5495, %v6400
    %v6579 = vadd.f32 %v5497, %v6402
    %v6580 = vadd.f32 %v5641, %v6546
    %v6581 = vadd.f32 %v5643, %v6548
    %v6582 = vld [vmem:[#allocation2 + $0x48] sm:$0xff]
    %v6583 = vld [vmem:[#allocation2 + $0x50] sm:$0xff]
    %v6584 = vld [vmem:[#allocation2 + $0x58] sm:$0xff]
    %v6585 = vld [vmem:[#allocation2 + $0x60] sm:$0xff]
    %v6586 = vld [vmem:[#allocation2 + $0x68] sm:$0xff]
    %v6587 = vld [vmem:[#allocation2 + $0x70] sm:$0xff]
    %v6588 = vld [vmem:[#allocation2 + $0x78] sm:$0xff]
    %v6589 = vld [vmem:[#allocation2 + $0x80] sm:$0xff]
    %v6590 = vld [vmem:[#allocation2 + $0x88] sm:$0xff]
    %v6591 = vld [vmem:[#allocation2 + $0x90] sm:$0xff]
    %v6592 = vld [vmem:[#allocation2 + $0x98] sm:$0xff]
    %v6593 = vld [vmem:[#allocation2 + $0xa0] sm:$0xff]
    %v6594 = vld [vmem:[#allocation2 + $0xa8] sm:$0xff]
    %v6595 = vld [vmem:[#allocation2 + $0xb0] sm:$0xff]
    %v6596 = vld [vmem:[#allocation2 + $0xb8] sm:$0xff]
    %v6597 = vld [vmem:[#allocation2 + $0xc0] sm:$0xff]
    %v6598 = vld [vmem:[#allocation2 + $0xc8] sm:$0xff]
    %v6599 = vld [vmem:[#allocation2 + $0xd0] sm:$0xff]
    %v6600 = vld [vmem:[#allocation2 + $0xd8] sm:$0xff]
    %v6601 = vld [vmem:[#allocation2 + $0xe0] sm:$0xff]
    %v6602 = vld [vmem:[#allocation2 + $0xe8] sm:$0xff]
    %v6603 = vld [vmem:[#allocation2 + $0xf0] sm:$0xff]
    %v6604 = vld [vmem:[#allocation2 + $0xf8] sm:$0xff]
    %v6605 = vld [vmem:[#allocation2 + $0x100] sm:$0xff]
    %v6606 = vpack.c.bf16 %v6585, %v6582
    %v6607 = vpack.c.bf16 %v6586, %v6583
    %v6608 = vpack.c.bf16 %v6587, %v6584
    %v6609 = vpack.c.bf16 %v6591, %v6588
    %v6610 = vpack.c.bf16 %v6592, %v6589
    %v6611 = vpack.c.bf16 %v6593, %v6590
    %v6612 = vpack.c.bf16 %v6597, %v6594
    %v6613 = vpack.c.bf16 %v6598, %v6595
    %v6614 = vpack.c.bf16 %v6599, %v6596
    %v6615 = vpack.c.bf16 %v6603, %v6600
    %v6616 = vpack.c.bf16 %v6604, %v6601
    %v6617 = vpack.c.bf16 %v6605, %v6602
    %s6618 = scalar_lea.vmem [#allocation7], 2304
    %v6619 = vld [vmem:[%s6618] sm:$0xff]
    %v6620 = vld [vmem:[%s6618 + $0x8] sm:$0xff]
    %v6621 = vld [vmem:[%s6618 + $0x10] sm:$0xff]
    %v6622 = vld [vmem:[%s6618 + $0x18] sm:$0xff]
    %v6623 = vld [vmem:[%s6618 + $0x20] sm:$0xff]
    %v6624 = vld [vmem:[%s6618 + $0x28] sm:$0xff]
    %v6625 = vld [vmem:[%s6618 + $0x30] sm:$0xff]
    %v6626 = vld [vmem:[%s6618 + $0x38] sm:$0xff]
    %v6627 = vld [vmem:[%s6618 + $0x40] sm:$0xff]
    %v6628 = vld [vmem:[%s6618 + $0x48] sm:$0xff]
    %v6629 = vld [vmem:[%s6618 + $0x50] sm:$0xff]
    %v6630 = vld [vmem:[%s6618 + $0x58] sm:$0xff]
    %v6631 = vld [vmem:[%s6618 + $0x60] sm:$0xff]
    %v6632 = vld [vmem:[%s6618 + $0x68] sm:$0xff]
    %v6633 = vld [vmem:[%s6618 + $0x70] sm:$0xff]
    %v6634 = vld [vmem:[%s6618 + $0x78] sm:$0xff]
    %v6635 = vld [vmem:[%s6618 + $0x80] sm:$0xff]
    %v6636 = vld [vmem:[%s6618 + $0x88] sm:$0xff]
    %v6637 = vld [vmem:[%s6618 + $0x90] sm:$0xff]
    %v6638 = vld [vmem:[%s6618 + $0x98] sm:$0xff]
    %v6639 = vld [vmem:[%s6618 + $0xa0] sm:$0xff]
    %v6640 = vld [vmem:[%s6618 + $0xa8] sm:$0xff]
    %v6641 = vld [vmem:[%s6618 + $0xb0] sm:$0xff]
    %v6642 = vld [vmem:[%s6618 + $0xb8] sm:$0xff]
    %v6643 = vld [vmem:[%s6618 + $0xc0] sm:$0xff]
    %v6644 = vld [vmem:[%s6618 + $0xc8] sm:$0xff]
    %v6645 = vld [vmem:[%s6618 + $0xd0] sm:$0xff]
    %v6646 = vld [vmem:[%s6618 + $0xd8] sm:$0xff]
    %v6647 = vld [vmem:[%s6618 + $0xe0] sm:$0xff]
    %v6648 = vld [vmem:[%s6618 + $0xe8] sm:$0xff]
    %v6649 = vld [vmem:[%s6618 + $0xf0] sm:$0xff]
    %v6650 = vld [vmem:[%s6618 + $0xf8] sm:$0xff]
    %v6651 = vld [vmem:[%s6618 + $0x100] sm:$0xff]
    %v6652 = vld [vmem:[%s6618 + $0x108] sm:$0xff]
    %v6653 = vld [vmem:[%s6618 + $0x110] sm:$0xff]
    %v6654 = vld [vmem:[%s6618 + $0x118] sm:$0xff]
    %v6655 = vld [vmem:[%s6618 + $0x120] sm:$0xff]
    %v6656 = vld [vmem:[%s6618 + $0x128] sm:$0xff]
    %v6657 = vld [vmem:[%s6618 + $0x130] sm:$0xff]
    %v6658 = vld [vmem:[%s6618 + $0x138] sm:$0xff]
    %v6659 = vld [vmem:[%s6618 + $0x140] sm:$0xff]
    %v6660 = vld [vmem:[%s6618 + $0x148] sm:$0xff]
    %v6661 = vld [vmem:[%s6618 + $0x150] sm:$0xff]
    %v6662 = vld [vmem:[%s6618 + $0x158] sm:$0xff]
    %v6663 = vld [vmem:[%s6618 + $0x160] sm:$0xff]
    %v6664 = vld [vmem:[%s6618 + $0x168] sm:$0xff]
    %v6665 = vld [vmem:[%s6618 + $0x170] sm:$0xff]
    %v6666 = vld [vmem:[%s6618 + $0x178] sm:$0xff]
    %v6667 = vld [vmem:[%s6618 + $0x180] sm:$0xff]
    %v6668 = vld [vmem:[%s6618 + $0x188] sm:$0xff]
    %v6669 = vld [vmem:[%s6618 + $0x190] sm:$0xff]
    %v6670 = vld [vmem:[%s6618 + $0x198] sm:$0xff]
    %v6671 = vld [vmem:[%s6618 + $0x1a0] sm:$0xff]
    %v6672 = vld [vmem:[%s6618 + $0x1a8] sm:$0xff]
    %v6673 = vld [vmem:[%s6618 + $0x1b0] sm:$0xff]
    %v6674 = vld [vmem:[%s6618 + $0x1b8] sm:$0xff]
    %v6675 = vld [vmem:[%s6618 + $0x1c0] sm:$0xff]
    %v6676 = vld [vmem:[%s6618 + $0x1c8] sm:$0xff]
    %v6677 = vld [vmem:[%s6618 + $0x1d0] sm:$0xff]
    %v6678 = vld [vmem:[%s6618 + $0x1d8] sm:$0xff]
    %v6679 = vld [vmem:[%s6618 + $0x1e0] sm:$0xff]
    %v6680 = vld [vmem:[%s6618 + $0x1e8] sm:$0xff]
    %v6681 = vld [vmem:[%s6618 + $0x1f0] sm:$0xff]
    %v6682 = vld [vmem:[%s6618 + $0x1f8] sm:$0xff]
    %v6683 = vld [vmem:[%s6618 + $0x200] sm:$0xff]
    %v6684 = vld [vmem:[%s6618 + $0x208] sm:$0xff]
    %v6685 = vld [vmem:[%s6618 + $0x210] sm:$0xff]
    %v6686 = vld [vmem:[%s6618 + $0x218] sm:$0xff]
    %v6687 = vld [vmem:[%s6618 + $0x220] sm:$0xff]
    %v6688 = vld [vmem:[%s6618 + $0x228] sm:$0xff]
    %v6689 = vld [vmem:[%s6618 + $0x230] sm:$0xff]
    %v6690 = vld [vmem:[%s6618 + $0x238] sm:$0xff]
    %v6691 = vld [vmem:[%s6618 + $0x240] sm:$0xff]
    %v6692 = vld [vmem:[%s6618 + $0x248] sm:$0xff]
    %v6693 = vld [vmem:[%s6618 + $0x250] sm:$0xff]
    %v6694 = vld [vmem:[%s6618 + $0x258] sm:$0xff]
    %v6695 = vld [vmem:[%s6618 + $0x260] sm:$0xff]
    %v6696 = vld [vmem:[%s6618 + $0x268] sm:$0xff]
    %v6697 = vld [vmem:[%s6618 + $0x270] sm:$0xff]
    %v6698 = vld [vmem:[%s6618 + $0x278] sm:$0xff]
    %v6699 = vld [vmem:[%s6618 + $0x280] sm:$0xff]
    %v6700 = vld [vmem:[%s6618 + $0x288] sm:$0xff]
    %v6701 = vld [vmem:[%s6618 + $0x290] sm:$0xff]
    %v6702 = vld [vmem:[%s6618 + $0x298] sm:$0xff]
    %v6703 = vld [vmem:[%s6618 + $0x2a0] sm:$0xff]
    %v6704 = vld [vmem:[%s6618 + $0x2a8] sm:$0xff]
    %v6705 = vld [vmem:[%s6618 + $0x2b0] sm:$0xff]
    %v6706 = vld [vmem:[%s6618 + $0x2b8] sm:$0xff]
    %v6707 = vld [vmem:[%s6618 + $0x2c0] sm:$0xff]
    %v6708 = vld [vmem:[%s6618 + $0x2c8] sm:$0xff]
    %v6709 = vld [vmem:[%s6618 + $0x2d0] sm:$0xff]
    %v6710 = vld [vmem:[%s6618 + $0x2d8] sm:$0xff]
    %v6711 = vld [vmem:[%s6618 + $0x2e0] sm:$0xff]
    %v6712 = vld [vmem:[%s6618 + $0x2e8] sm:$0xff]
    %v6713 = vld [vmem:[%s6618 + $0x2f0] sm:$0xff]
    %v6714 = vld [vmem:[%s6618 + $0x2f8] sm:$0xff]
    %v6811 = vunpack.c.l.b16 %v6619
    %v6812 = vunpack.c.h.b16 %v6619
    %v6813 = vunpack.c.l.b16 %v6620
    %v6814 = vunpack.c.h.b16 %v6620
    %v6815 = vunpack.c.l.b16 %v6621
    %v6816 = vunpack.c.h.b16 %v6621
    %v6817 = vunpack.c.l.b16 %v6622
    %v6818 = vunpack.c.h.b16 %v6622
    %v6819 = vunpack.c.l.b16 %v6623
    %v6820 = vunpack.c.h.b16 %v6623
    %v6821 = vunpack.c.l.b16 %v6624
    %v6822 = vunpack.c.h.b16 %v6624
    %v6823 = vunpack.c.l.b16 %v6625
    %v6824 = vunpack.c.h.b16 %v6625
    %v6825 = vunpack.c.l.b16 %v6626
    %v6826 = vunpack.c.h.b16 %v6626
    %v6827 = vunpack.c.l.b16 %v6627
    %v6828 = vunpack.c.h.b16 %v6627
    %v6829 = vunpack.c.l.b16 %v6628
    %v6830 = vunpack.c.h.b16 %v6628
    %v6831 = vunpack.c.l.b16 %v6629
    %v6832 = vunpack.c.h.b16 %v6629
    %v6833 = vunpack.c.l.b16 %v6630
    %v6834 = vunpack.c.h.b16 %v6630
    %v6835 = vunpack.c.l.b16 %v6631
    %v6836 = vunpack.c.h.b16 %v6631
    %v6837 = vunpack.c.l.b16 %v6632
    %v6838 = vunpack.c.h.b16 %v6632
    %v6839 = vunpack.c.l.b16 %v6633
    %v6840 = vunpack.c.h.b16 %v6633
    %v6841 = vunpack.c.l.b16 %v6634
    %v6842 = vunpack.c.h.b16 %v6634
    %v6843 = vunpack.c.l.b16 %v6635
    %v6844 = vunpack.c.h.b16 %v6635
    %v6845 = vunpack.c.l.b16 %v6636
    %v6846 = vunpack.c.h.b16 %v6636
    %v6847 = vunpack.c.l.b16 %v6637
    %v6848 = vunpack.c.h.b16 %v6637
    %v6849 = vunpack.c.l.b16 %v6638
    %v6850 = vunpack.c.h.b16 %v6638
    %v6851 = vunpack.c.l.b16 %v6639
    %v6852 = vunpack.c.h.b16 %v6639
    %v6853 = vunpack.c.l.b16 %v6640
    %v6854 = vunpack.c.h.b16 %v6640
    %v6855 = vunpack.c.l.b16 %v6641
    %v6856 = vunpack.c.h.b16 %v6641
    %v6857 = vunpack.c.l.b16 %v6642
    %v6858 = vunpack.c.h.b16 %v6642
    %v6859 = vunpack.c.l.b16 %v6643
    %v6860 = vunpack.c.h.b16 %v6643
    %v6861 = vunpack.c.l.b16 %v6644
    %v6862 = vunpack.c.h.b16 %v6644
    %v6863 = vunpack.c.l.b16 %v6645
    %v6864 = vunpack.c.h.b16 %v6645
    %v6865 = vunpack.c.l.b16 %v6646
    %v6866 = vunpack.c.h.b16 %v6646
    %v6867 = vunpack.c.l.b16 %v6647
    %v6868 = vunpack.c.h.b16 %v6647
    %v6869 = vunpack.c.l.b16 %v6648
    %v6870 = vunpack.c.h.b16 %v6648
    %v6871 = vunpack.c.l.b16 %v6649
    %v6872 = vunpack.c.h.b16 %v6649
    %v6873 = vunpack.c.l.b16 %v6650
    %v6874 = vunpack.c.h.b16 %v6650
    %v6875 = vunpack.c.l.b16 %v6651
    %v6876 = vunpack.c.h.b16 %v6651
    %v6877 = vunpack.c.l.b16 %v6652
    %v6878 = vunpack.c.h.b16 %v6652
    %v6879 = vunpack.c.l.b16 %v6653
    %v6880 = vunpack.c.h.b16 %v6653
    %v6881 = vunpack.c.l.b16 %v6654
    %v6882 = vunpack.c.h.b16 %v6654
    %v6883 = vunpack.c.l.b16 %v6655
    %v6884 = vunpack.c.h.b16 %v6655
    %v6885 = vunpack.c.l.b16 %v6656
    %v6886 = vunpack.c.h.b16 %v6656
    %v6887 = vunpack.c.l.b16 %v6657
    %v6888 = vunpack.c.h.b16 %v6657
    %v6889 = vunpack.c.l.b16 %v6658
    %v6890 = vunpack.c.h.b16 %v6658
    %v6891 = vunpack.c.l.b16 %v6659
    %v6892 = vunpack.c.h.b16 %v6659
    %v6893 = vunpack.c.l.b16 %v6660
    %v6894 = vunpack.c.h.b16 %v6660
    %v6895 = vunpack.c.l.b16 %v6661
    %v6896 = vunpack.c.h.b16 %v6661
    %v6897 = vunpack.c.l.b16 %v6662
    %v6898 = vunpack.c.h.b16 %v6662
    %v6899 = vunpack.c.l.b16 %v6663
    %v6900 = vunpack.c.h.b16 %v6663
    %v6901 = vunpack.c.l.b16 %v6664
    %v6902 = vunpack.c.h.b16 %v6664
    %v6903 = vunpack.c.l.b16 %v6665
    %v6904 = vunpack.c.h.b16 %v6665
    %v6905 = vunpack.c.l.b16 %v6666
    %v6906 = vunpack.c.h.b16 %v6666
    %v6907 = vunpack.c.l.b16 %v6667
    %v6908 = vunpack.c.h.b16 %v6667
    %v6909 = vunpack.c.l.b16 %v6668
    %v6910 = vunpack.c.h.b16 %v6668
    %v6911 = vunpack.c.l.b16 %v6669
    %v6912 = vunpack.c.h.b16 %v6669
    %v6913 = vunpack.c.l.b16 %v6670
    %v6914 = vunpack.c.h.b16 %v6670
    %v6915 = vunpack.c.l.b16 %v6671
    %v6916 = vunpack.c.h.b16 %v6671
    %v6917 = vunpack.c.l.b16 %v6672
    %v6918 = vunpack.c.h.b16 %v6672
    %v6919 = vunpack.c.l.b16 %v6673
    %v6920 = vunpack.c.h.b16 %v6673
    %v6921 = vunpack.c.l.b16 %v6674
    %v6922 = vunpack.c.h.b16 %v6674
    %v6923 = vunpack.c.l.b16 %v6675
    %v6924 = vunpack.c.h.b16 %v6675
    %v6925 = vunpack.c.l.b16 %v6676
    %v6926 = vunpack.c.h.b16 %v6676
    %v6927 = vunpack.c.l.b16 %v6677
    %v6928 = vunpack.c.h.b16 %v6677
    %v6929 = vunpack.c.l.b16 %v6678
    %v6930 = vunpack.c.h.b16 %v6678
    %v6931 = vunpack.c.l.b16 %v6679
    %v6932 = vunpack.c.h.b16 %v6679
    %v6933 = vunpack.c.l.b16 %v6680
    %v6934 = vunpack.c.h.b16 %v6680
    %v6935 = vunpack.c.l.b16 %v6681
    %v6936 = vunpack.c.h.b16 %v6681
    %v6937 = vunpack.c.l.b16 %v6682
    %v6938 = vunpack.c.h.b16 %v6682
    %v6939 = vunpack.c.l.b16 %v6683
    %v6940 = vunpack.c.h.b16 %v6683
    %v6941 = vunpack.c.l.b16 %v6684
    %v6942 = vunpack.c.h.b16 %v6684
    %v6943 = vunpack.c.l.b16 %v6685
    %v6944 = vunpack.c.h.b16 %v6685
    %v6945 = vunpack.c.l.b16 %v6686
    %v6946 = vunpack.c.h.b16 %v6686
    %v6947 = vunpack.c.l.b16 %v6687
    %v6948 = vunpack.c.h.b16 %v6687
    %v6949 = vunpack.c.l.b16 %v6688
    %v6950 = vunpack.c.h.b16 %v6688
    %v6951 = vunpack.c.l.b16 %v6689
    %v6952 = vunpack.c.h.b16 %v6689
    %v6953 = vunpack.c.l.b16 %v6690
    %v6954 = vunpack.c.h.b16 %v6690
    %v6955 = vunpack.c.l.b16 %v6691
    %v6956 = vunpack.c.h.b16 %v6691
    %v6957 = vunpack.c.l.b16 %v6692
    %v6958 = vunpack.c.h.b16 %v6692
    %v6959 = vunpack.c.l.b16 %v6693
    %v6960 = vunpack.c.h.b16 %v6693
    %v6961 = vunpack.c.l.b16 %v6694
    %v6962 = vunpack.c.h.b16 %v6694
    %v6963 = vunpack.c.l.b16 %v6695
    %v6964 = vunpack.c.h.b16 %v6695
    %v6965 = vunpack.c.l.b16 %v6696
    %v6966 = vunpack.c.h.b16 %v6696
    %v6967 = vunpack.c.l.b16 %v6697
    %v6968 = vunpack.c.h.b16 %v6697
    %v6969 = vunpack.c.l.b16 %v6698
    %v6970 = vunpack.c.h.b16 %v6698
    %v6971 = vunpack.c.l.b16 %v6699
    %v6972 = vunpack.c.h.b16 %v6699
    %v6973 = vunpack.c.l.b16 %v6700
    %v6974 = vunpack.c.h.b16 %v6700
    %v6975 = vunpack.c.l.b16 %v6701
    %v6976 = vunpack.c.h.b16 %v6701
    %v6977 = vunpack.c.l.b16 %v6702
    %v6978 = vunpack.c.h.b16 %v6702
    %v6979 = vunpack.c.l.b16 %v6703
    %v6980 = vunpack.c.h.b16 %v6703
    %v6981 = vunpack.c.l.b16 %v6704
    %v6982 = vunpack.c.h.b16 %v6704
    %v6983 = vunpack.c.l.b16 %v6705
    %v6984 = vunpack.c.h.b16 %v6705
    %v6985 = vunpack.c.l.b16 %v6706
    %v6986 = vunpack.c.h.b16 %v6706
    %v6987 = vunpack.c.l.b16 %v6707
    %v6988 = vunpack.c.h.b16 %v6707
    %v6989 = vunpack.c.l.b16 %v6708
    %v6990 = vunpack.c.h.b16 %v6708
    %v6991 = vunpack.c.l.b16 %v6709
    %v6992 = vunpack.c.h.b16 %v6709
    %v6993 = vunpack.c.l.b16 %v6710
    %v6994 = vunpack.c.h.b16 %v6710
    %v6995 = vunpack.c.l.b16 %v6711
    %v6996 = vunpack.c.h.b16 %v6711
    %v6997 = vunpack.c.l.b16 %v6712
    %v6998 = vunpack.c.h.b16 %v6712
    %v6999 = vunpack.c.l.b16 %v6713
    %v7000 = vunpack.c.h.b16 %v6713
    %v7001 = vunpack.c.l.b16 %v6714
    %v7002 = vunpack.c.h.b16 %v6714
    %v7003 = vpack.c.b16 %v6815, %v6811
    %v7004 = vpack.c.b16 %v6816, %v6812
    %v7005 = vpack.c.b16 %v6817, %v6813
    %v7006 = vpack.c.b16 %v6818, %v6814
    %v7007 = vpack.c.b16 %v6823, %v6819
    %v7008 = vpack.c.b16 %v6824, %v6820
    %v7009 = vpack.c.b16 %v6825, %v6821
    %v7010 = vpack.c.b16 %v6826, %v6822
    %v7011 = vpack.c.b16 %v6831, %v6827
    %v7012 = vpack.c.b16 %v6832, %v6828
    %v7013 = vpack.c.b16 %v6833, %v6829
    %v7014 = vpack.c.b16 %v6834, %v6830
    %v7015 = vpack.c.b16 %v6839, %v6835
    %v7016 = vpack.c.b16 %v6840, %v6836
    %v7017 = vpack.c.b16 %v6841, %v6837
    %v7018 = vpack.c.b16 %v6842, %v6838
    %v7019 = vpack.c.b16 %v6847, %v6843
    %v7020 = vpack.c.b16 %v6848, %v6844
    %v7021 = vpack.c.b16 %v6849, %v6845
    %v7022 = vpack.c.b16 %v6850, %v6846
    %v7023 = vpack.c.b16 %v6855, %v6851
    %v7024 = vpack.c.b16 %v6856, %v6852
    %v7025 = vpack.c.b16 %v6857, %v6853
    %v7026 = vpack.c.b16 %v6858, %v6854
    %v7027 = vpack.c.b16 %v6863, %v6859
    %v7028 = vpack.c.b16 %v6864, %v6860
    %v7029 = vpack.c.b16 %v6865, %v6861
    %v7030 = vpack.c.b16 %v6866, %v6862
    %v7031 = vpack.c.b16 %v6871, %v6867
    %v7032 = vpack.c.b16 %v6872, %v6868
    %v7033 = vpack.c.b16 %v6873, %v6869
    %v7034 = vpack.c.b16 %v6874, %v6870
    %v7035 = vpack.c.b16 %v6879, %v6875
    %v7036 = vpack.c.b16 %v6880, %v6876
    %v7037 = vpack.c.b16 %v6881, %v6877
    %v7038 = vpack.c.b16 %v6882, %v6878
    %v7039 = vpack.c.b16 %v6887, %v6883
    %v7040 = vpack.c.b16 %v6888, %v6884
    %v7041 = vpack.c.b16 %v6889, %v6885
    %v7042 = vpack.c.b16 %v6890, %v6886
    %v7043 = vpack.c.b16 %v6895, %v6891
    %v7044 = vpack.c.b16 %v6896, %v6892
    %v7045 = vpack.c.b16 %v6897, %v6893
    %v7046 = vpack.c.b16 %v6898, %v6894
    %v7047 = vpack.c.b16 %v6903, %v6899
    %v7048 = vpack.c.b16 %v6904, %v6900
    %v7049 = vpack.c.b16 %v6905, %v6901
    %v7050 = vpack.c.b16 %v6906, %v6902
    %v7051 = vpack.c.b16 %v6911, %v6907
    %v7052 = vpack.c.b16 %v6912, %v6908
    %v7053 = vpack.c.b16 %v6913, %v6909
    %v7054 = vpack.c.b16 %v6914, %v6910
    %v7055 = vpack.c.b16 %v6919, %v6915
    %v7056 = vpack.c.b16 %v6920, %v6916
    %v7057 = vpack.c.b16 %v6921, %v6917
    %v7058 = vpack.c.b16 %v6922, %v6918
    %v7059 = vpack.c.b16 %v6927, %v6923
    %v7060 = vpack.c.b16 %v6928, %v6924
    %v7061 = vpack.c.b16 %v6929, %v6925
    %v7062 = vpack.c.b16 %v6930, %v6926
    %v7063 = vpack.c.b16 %v6935, %v6931
    %v7064 = vpack.c.b16 %v6936, %v6932
    %v7065 = vpack.c.b16 %v6937, %v6933
    %v7066 = vpack.c.b16 %v6938, %v6934
    %v7067 = vpack.c.b16 %v6943, %v6939
    %v7068 = vpack.c.b16 %v6944, %v6940
    %v7069 = vpack.c.b16 %v6945, %v6941
    %v7070 = vpack.c.b16 %v6946, %v6942
    %v7071 = vpack.c.b16 %v6951, %v6947
    %v7072 = vpack.c.b16 %v6952, %v6948
    %v7073 = vpack.c.b16 %v6953, %v6949
    %v7074 = vpack.c.b16 %v6954, %v6950
    %v7075 = vpack.c.b16 %v6959, %v6955
    %v7076 = vpack.c.b16 %v6960, %v6956
    %v7077 = vpack.c.b16 %v6961, %v6957
    %v7078 = vpack.c.b16 %v6962, %v6958
    %v7079 = vpack.c.b16 %v6967, %v6963
    %v7080 = vpack.c.b16 %v6968, %v6964
    %v7081 = vpack.c.b16 %v6969, %v6965
    %v7082 = vpack.c.b16 %v6970, %v6966
    %v7083 = vpack.c.b16 %v6975, %v6971
    %v7084 = vpack.c.b16 %v6976, %v6972
    %v7085 = vpack.c.b16 %v6977, %v6973
    %v7086 = vpack.c.b16 %v6978, %v6974
    %v7087 = vpack.c.b16 %v6983, %v6979
    %v7088 = vpack.c.b16 %v6984, %v6980
    %v7089 = vpack.c.b16 %v6985, %v6981
    %v7090 = vpack.c.b16 %v6986, %v6982
    %v7091 = vpack.c.b16 %v6991, %v6987
    %v7092 = vpack.c.b16 %v6992, %v6988
    %v7093 = vpack.c.b16 %v6993, %v6989
    %v7094 = vpack.c.b16 %v6994, %v6990
    %v7095 = vpack.c.b16 %v6999, %v6995
    %v7096 = vpack.c.b16 %v7000, %v6996
    %v7097 = vpack.c.b16 %v7001, %v6997
    %v7098 = vpack.c.b16 %v7002, %v6998
    %7195 = vmatprep.subr.bf16.mxu0 %v7032
    %7196 = vmatpush1.bf16.msra.mxu0 %v7031
    %7197 = vmatprep.subr.bf16.mxu0 %v7028
    %7198 = vmatpush1.bf16.msra.mxu0 %v7027
    %7199 = vmatprep.subr.bf16.mxu0 %v7024
    %7200 = vmatpush1.bf16.msra.mxu0 %v7023
    %7201 = vmatprep.subr.bf16.mxu0 %v7020
    %7202 = vmatpush1.bf16.msra.mxu0 %v7019
    %7203 = vmatprep.subr.bf16.mxu0 %v7016
    %7204 = vmatpush1.bf16.msra.mxu0 %v7015
    %7205 = vmatprep.subr.bf16.mxu0 %v7012
    %7206 = vmatpush1.bf16.msra.mxu0 %v7011
    %7207 = vmatprep.subr.bf16.mxu0 %v7008
    %7208 = vmatpush1.bf16.msra.mxu0 %v7007
    %7209 = vmatprep.subr.bf16.mxu0 %v7004
    %7210 = vmatpush1.bf16.msra.mxu0 %v7003
    %7211 = vmatprep.subr.bf16.mxu0 %v7064
    %7212 = vmatpush2.bf16.msra.mxu0 %v7063
    %7213 = vmatprep.subr.bf16.mxu0 %v7060
    %7214 = vmatpush2.bf16.msra.mxu0 %v7059
    %7215 = vmatprep.subr.bf16.mxu0 %v7056
    %7216 = vmatpush2.bf16.msra.mxu0 %v7055
    %7217 = vmatprep.subr.bf16.mxu0 %v7052
    %7218 = vmatpush2.bf16.msra.mxu0 %v7051
    %7219 = vmatprep.subr.bf16.mxu0 %v7048
    %7220 = vmatpush2.bf16.msra.mxu0 %v7047
    %7221 = vmatprep.subr.bf16.mxu0 %v7044
    %7222 = vmatpush2.bf16.msra.mxu0 %v7043
    %7223 = vmatprep.subr.bf16.mxu0 %v7040
    %7224 = vmatpush2.bf16.msra.mxu0 %v7039
    %7225 = vmatprep.subr.bf16.mxu0 %v7036
    %7226 = vmatpush2.bf16.msra.mxu0 %v7035
    %7227 = vmatprep.mubr.bf16.mxu0 %v6607
    %7228 = vmatmul.mubr.bf16.gmra.mxu0 %v6606
    %v7229 = vpop.f32.mrf.mxu0
    %v7230 = vadd.f32 0.0, %v7229
    %v7231 = vpop.f32.mrf.mxu0
    %v7232 = vadd.f32 0.0, %v7231
    %v7233 = vpop.f32.mrf.mxu0
    %v7234 = vadd.f32 0.0, %v7233
    %v7235 = vpop.f32.mrf.mxu0
    %v7236 = vadd.f32 0.0, %v7235
    %7237 = vmatprep.mubr.bf16.mxu0 %v6610
    %7238 = vmatmul.mubr.bf16.gmra.mxu0 %v6609
    %v7239 = vpop.f32.mrf.mxu0
    %v7240 = vadd.f32 0.0, %v7239
    %v7241 = vpop.f32.mrf.mxu0
    %v7242 = vadd.f32 0.0, %v7241
    %v7243 = vpop.f32.mrf.mxu0
    %v7244 = vadd.f32 0.0, %v7243
    %v7245 = vpop.f32.mrf.mxu0
    %v7246 = vadd.f32 0.0, %v7245
    %7247 = vmatprep.mubr.bf16.mxu0 %v6613
    %7248 = vmatmul.mubr.bf16.gmra.mxu0 %v6612
    %v7249 = vpop.f32.mrf.mxu0
    %v7250 = vadd.f32 0.0, %v7249
    %v7251 = vpop.f32.mrf.mxu0
    %v7252 = vadd.f32 0.0, %v7251
    %v7253 = vpop.f32.mrf.mxu0
    %v7254 = vadd.f32 0.0, %v7253
    %v7255 = vpop.f32.mrf.mxu0
    %v7256 = vadd.f32 0.0, %v7255
    %7257 = vmatprep.mubr.bf16.mxu0 %v6616
    %7258 = vmatmul.mubr.bf16.gmra.mxu0 %v6615
    %v7259 = vpop.f32.mrf.mxu0
    %v7260 = vadd.f32 0.0, %v7259
    %v7261 = vpop.f32.mrf.mxu0
    %v7262 = vadd.f32 0.0, %v7261
    %v7263 = vpop.f32.mrf.mxu0
    %v7264 = vadd.f32 0.0, %v7263
    %v7265 = vpop.f32.mrf.mxu0
    %v7266 = vadd.f32 0.0, %v7265
    %7267 = vdwg.mxu0
    %7268 = vmatprep.subr.bf16.mxu0 %v7096
    %7269 = vmatpush1.bf16.msra.mxu0 %v7095
    %7270 = vmatprep.subr.bf16.mxu0 %v7092
    %7271 = vmatpush1.bf16.msra.mxu0 %v7091
    %7272 = vmatprep.subr.bf16.mxu0 %v7088
    %7273 = vmatpush1.bf16.msra.mxu0 %v7087
    %7274 = vmatprep.subr.bf16.mxu0 %v7084
    %7275 = vmatpush1.bf16.msra.mxu0 %v7083
    %7276 = vmatprep.subr.bf16.mxu0 %v7080
    %7277 = vmatpush1.bf16.msra.mxu0 %v7079
    %7278 = vmatprep.subr.bf16.mxu0 %v7076
    %7279 = vmatpush1.bf16.msra.mxu0 %v7075
    %7280 = vmatprep.subr.bf16.mxu0 %v7072
    %7281 = vmatpush1.bf16.msra.mxu0 %v7071
    %7282 = vmatprep.subr.bf16.mxu0 %v7068
    %7283 = vmatpush1.bf16.msra.mxu0 %v7067
    %7284 = vmatprep.subr.bf16.mxu0 0
    %7285 = vmatpush2.bf16.msra.mxu0 0
    %7286 = vmatprep.subr.bf16.mxu0 0
    %7287 = vmatpush2.bf16.msra.mxu0 0
    %7288 = vmatprep.subr.bf16.mxu0 0
    %7289 = vmatpush2.bf16.msra.mxu0 0
    %7290 = vmatprep.subr.bf16.mxu0 0
    %7291 = vmatpush2.bf16.msra.mxu0 0
    %7292 = vmatprep.subr.bf16.mxu0 0
    %7293 = vmatpush2.bf16.msra.mxu0 0
    %7294 = vmatprep.subr.bf16.mxu0 0
    %7295 = vmatpush2.bf16.msra.mxu0 0
    %7296 = vmatprep.subr.bf16.mxu0 0
    %7297 = vmatpush2.bf16.msra.mxu0 0
    %7298 = vmatprep.subr.bf16.mxu0 0
    %7299 = vmatpush2.bf16.msra.mxu0 0
    %7300 = vmatprep.mubr.bf16.mxu0 0
    %7301 = vmatmul.mubr.bf16.gmra.mxu0 %v6608
    %v7302 = vpop.f32.mrf.mxu0
    %v7303 = vadd.f32 %v7230, %v7302
    %v7304 = vpop.f32.mrf.mxu0
    %v7305 = vadd.f32 %v7232, %v7304
    %v7306 = vpop.f32.mrf.mxu0
    %v7307 = vadd.f32 %v7234, %v7306
    %v7308 = vpop.f32.mrf.mxu0
    %v7309 = vadd.f32 %v7236, %v7308
    %7310 = vmatprep.mubr.bf16.mxu0 0
    %7311 = vmatmul.mubr.bf16.gmra.mxu0 %v6611
    %v7312 = vpop.f32.mrf.mxu0
    %v7313 = vadd.f32 %v7240, %v7312
    %v7314 = vpop.f32.mrf.mxu0
    %v7315 = vadd.f32 %v7242, %v7314
    %v7316 = vpop.f32.mrf.mxu0
    %v7317 = vadd.f32 %v7244, %v7316
    %v7318 = vpop.f32.mrf.mxu0
    %v7319 = vadd.f32 %v7246, %v7318
    %7320 = vmatprep.mubr.bf16.mxu0 0
    %7321 = vmatmul.mubr.bf16.gmra.mxu0 %v6614
    %v7322 = vpop.f32.mrf.mxu0
    %v7323 = vadd.f32 %v7250, %v7322
    %v7324 = vpop.f32.mrf.mxu0
    %v7325 = vadd.f32 %v7252, %v7324
    %v7326 = vpop.f32.mrf.mxu0
    %v7327 = vadd.f32 %v7254, %v7326
    %v7328 = vpop.f32.mrf.mxu0
    %v7329 = vadd.f32 %v7256, %v7328
    %7330 = vmatprep.mubr.bf16.mxu0 0
    %7331 = vmatmul.mubr.bf16.gmra.mxu0 %v6617
    %v7332 = vpop.f32.mrf.mxu0
    %v7333 = vadd.f32 %v7260, %v7332
    %v7334 = vpop.f32.mrf.mxu0
    %v7335 = vadd.f32 %v7262, %v7334
    %v7336 = vpop.f32.mrf.mxu0
    %v7337 = vadd.f32 %v7264, %v7336
    %v7338 = vpop.f32.mrf.mxu0
    %v7339 = vadd.f32 %v7266, %v7338
    %7340 = vdwg.mxu0
    %7341 = vmatprep.subr.bf16.mxu0 %v7034
    %7342 = vmatpush1.bf16.msra.mxu0 %v7033
    %7343 = vmatprep.subr.bf16.mxu0 %v7030
    %7344 = vmatpush1.bf16.msra.mxu0 %v7029
    %7345 = vmatprep.subr.bf16.mxu0 %v7026
    %7346 = vmatpush1.bf16.msra.mxu0 %v7025
    %7347 = vmatprep.subr.bf16.mxu0 %v7022
    %7348 = vmatpush1.bf16.msra.mxu0 %v7021
    %7349 = vmatprep.subr.bf16.mxu0 %v7018
    %7350 = vmatpush1.bf16.msra.mxu0 %v7017
    %7351 = vmatprep.subr.bf16.mxu0 %v7014
    %7352 = vmatpush1.bf16.msra.mxu0 %v7013
    %7353 = vmatprep.subr.bf16.mxu0 %v7010
    %7354 = vmatpush1.bf16.msra.mxu0 %v7009
    %7355 = vmatprep.subr.bf16.mxu0 %v7006
    %7356 = vmatpush1.bf16.msra.mxu0 %v7005
    %7357 = vmatprep.subr.bf16.mxu0 %v7066
    %7358 = vmatpush2.bf16.msra.mxu0 %v7065
    %7359 = vmatprep.subr.bf16.mxu0 %v7062
    %7360 = vmatpush2.bf16.msra.mxu0 %v7061
    %7361 = vmatprep.subr.bf16.mxu0 %v7058
    %7362 = vmatpush2.bf16.msra.mxu0 %v7057
    %7363 = vmatprep.subr.bf16.mxu0 %v7054
    %7364 = vmatpush2.bf16.msra.mxu0 %v7053
    %7365 = vmatprep.subr.bf16.mxu0 %v7050
    %7366 = vmatpush2.bf16.msra.mxu0 %v7049
    %7367 = vmatprep.subr.bf16.mxu0 %v7046
    %7368 = vmatpush2.bf16.msra.mxu0 %v7045
    %7369 = vmatprep.subr.bf16.mxu0 %v7042
    %7370 = vmatpush2.bf16.msra.mxu0 %v7041
    %7371 = vmatprep.subr.bf16.mxu0 %v7038
    %7372 = vmatpush2.bf16.msra.mxu0 %v7037
    %7373 = vmatprep.mubr.bf16.mxu0 %v6607
    %7374 = vmatmul.mubr.bf16.gmra.mxu0 %v6606
    %v7375 = vpop.f32.mrf.mxu0
    %v7376 = vadd.f32 0.0, %v7375
    %v7377 = vpop.f32.mrf.mxu0
    %v7378 = vadd.f32 0.0, %v7377
    %v7379 = vpop.f32.mrf.mxu0
    %v7380 = vadd.f32 0.0, %v7379
    %v7381 = vpop.f32.mrf.mxu0
    %v7382 = vadd.f32 0.0, %v7381
    %7383 = vmatprep.mubr.bf16.mxu0 %v6610
    %7384 = vmatmul.mubr.bf16.gmra.mxu0 %v6609
    %v7385 = vpop.f32.mrf.mxu0
    %v7386 = vadd.f32 0.0, %v7385
    %v7387 = vpop.f32.mrf.mxu0
    %v7388 = vadd.f32 0.0, %v7387
    %v7389 = vpop.f32.mrf.mxu0
    %v7390 = vadd.f32 0.0, %v7389
    %v7391 = vpop.f32.mrf.mxu0
    %v7392 = vadd.f32 0.0, %v7391
    %7393 = vmatprep.mubr.bf16.mxu0 %v6613
    %7394 = vmatmul.mubr.bf16.gmra.mxu0 %v6612
    %v7395 = vpop.f32.mrf.mxu0
    %v7396 = vadd.f32 0.0, %v7395
    %v7397 = vpop.f32.mrf.mxu0
    %v7398 = vadd.f32 0.0, %v7397
    %v7399 = vpop.f32.mrf.mxu0
    %v7400 = vadd.f32 0.0, %v7399
    %v7401 = vpop.f32.mrf.mxu0
    %v7402 = vadd.f32 0.0, %v7401
    %7403 = vmatprep.mubr.bf16.mxu0 %v6616
    %7404 = vmatmul.mubr.bf16.gmra.mxu0 %v6615
    %v7405 = vpop.f32.mrf.mxu0
    %v7406 = vadd.f32 0.0, %v7405
    %v7407 = vpop.f32.mrf.mxu0
    %v7408 = vadd.f32 0.0, %v7407
    %v7409 = vpop.f32.mrf.mxu0
    %v7410 = vadd.f32 0.0, %v7409
    %v7411 = vpop.f32.mrf.mxu0
    %v7412 = vadd.f32 0.0, %v7411
    %7413 = vdwg.mxu0
    %7414 = vmatprep.subr.bf16.mxu0 %v7098
    %7415 = vmatpush1.bf16.msra.mxu0 %v7097
    %7416 = vmatprep.subr.bf16.mxu0 %v7094
    %7417 = vmatpush1.bf16.msra.mxu0 %v7093
    %7418 = vmatprep.subr.bf16.mxu0 %v7090
    %7419 = vmatpush1.bf16.msra.mxu0 %v7089
    %7420 = vmatprep.subr.bf16.mxu0 %v7086
    %7421 = vmatpush1.bf16.msra.mxu0 %v7085
    %7422 = vmatprep.subr.bf16.mxu0 %v7082
    %7423 = vmatpush1.bf16.msra.mxu0 %v7081
    %7424 = vmatprep.subr.bf16.mxu0 %v7078
    %7425 = vmatpush1.bf16.msra.mxu0 %v7077
    %7426 = vmatprep.subr.bf16.mxu0 %v7074
    %7427 = vmatpush1.bf16.msra.mxu0 %v7073
    %7428 = vmatprep.subr.bf16.mxu0 %v7070
    %7429 = vmatpush1.bf16.msra.mxu0 %v7069
    %7430 = vmatprep.subr.bf16.mxu0 0
    %7431 = vmatpush2.bf16.msra.mxu0 0
    %7432 = vmatprep.subr.bf16.mxu0 0
    %7433 = vmatpush2.bf16.msra.mxu0 0
    %7434 = vmatprep.subr.bf16.mxu0 0
    %7435 = vmatpush2.bf16.msra.mxu0 0
    %7436 = vmatprep.subr.bf16.mxu0 0
    %7437 = vmatpush2.bf16.msra.mxu0 0
    %7438 = vmatprep.subr.bf16.mxu0 0
    %7439 = vmatpush2.bf16.msra.mxu0 0
    %7440 = vmatprep.subr.bf16.mxu0 0
    %7441 = vmatpush2.bf16.msra.mxu0 0
    %7442 = vmatprep.subr.bf16.mxu0 0
    %7443 = vmatpush2.bf16.msra.mxu0 0
    %7444 = vmatprep.subr.bf16.mxu0 0
    %7445 = vmatpush2.bf16.msra.mxu0 0
    %7446 = vmatprep.mubr.bf16.mxu0 0
    %7447 = vmatmul.mubr.bf16.gmra.mxu0 %v6608
    %v7448 = vpop.f32.mrf.mxu0
    %v7449 = vadd.f32 %v7376, %v7448
    %v7450 = vpop.f32.mrf.mxu0
    %v7451 = vadd.f32 %v7378, %v7450
    %v7452 = vpop.f32.mrf.mxu0
    %v7453 = vadd.f32 %v7380, %v7452
    %v7454 = vpop.f32.mrf.mxu0
    %v7455 = vadd.f32 %v7382, %v7454
    %7456 = vmatprep.mubr.bf16.mxu0 0
    %7457 = vmatmul.mubr.bf16.gmra.mxu0 %v6611
    %v7458 = vpop.f32.mrf.mxu0
    %v7459 = vadd.f32 %v7386, %v7458
    %v7460 = vpop.f32.mrf.mxu0
    %v7461 = vadd.f32 %v7388, %v7460
    %v7462 = vpop.f32.mrf.mxu0
    %v7463 = vadd.f32 %v7390, %v7462
    %v7464 = vpop.f32.mrf.mxu0
    %v7465 = vadd.f32 %v7392, %v7464
    %7466 = vmatprep.mubr.bf16.mxu0 0
    %7467 = vmatmul.mubr.bf16.gmra.mxu0 %v6614
    %v7468 = vpop.f32.mrf.mxu0
    %v7469 = vadd.f32 %v7396, %v7468
    %v7470 = vpop.f32.mrf.mxu0
    %v7471 = vadd.f32 %v7398, %v7470
    %v7472 = vpop.f32.mrf.mxu0
    %v7473 = vadd.f32 %v7400, %v7472
    %v7474 = vpop.f32.mrf.mxu0
    %v7475 = vadd.f32 %v7402, %v7474
    %7476 = vmatprep.mubr.bf16.mxu0 0
    %7477 = vmatmul.mubr.bf16.gmra.mxu0 %v6617
    %v7478 = vpop.f32.mrf.mxu0
    %v7479 = vadd.f32 %v7406, %v7478
    %v7480 = vpop.f32.mrf.mxu0
    %v7481 = vadd.f32 %v7408, %v7480
    %v7482 = vpop.f32.mrf.mxu0
    %v7483 = vadd.f32 %v7410, %v7482
    %v7484 = vpop.f32.mrf.mxu0
    %v7485 = vadd.f32 %v7412, %v7484
    %7486 = vdwg.mxu0
    %v7487 = vadd.f32 %v6550, %v7303
    %v7488 = vadd.f32 %v6551, %v7305
    %v7489 = vadd.f32 %v6552, %v7449
    %v7490 = vadd.f32 %v6553, %v7451
    %v7491 = vadd.f32 %v6554, %v7307
    %v7492 = vadd.f32 %v6555, %v7309
    %v7493 = vadd.f32 %v6556, %v7453
    %v7494 = vadd.f32 %v6557, %v7455
    %v7495 = vadd.f32 %v6558, %v7313
    %v7496 = vadd.f32 %v6559, %v7315
    %v7497 = vadd.f32 %v6560, %v7459
    %v7498 = vadd.f32 %v6561, %v7461
    %v7499 = vadd.f32 %v6562, %v7317
    %v7500 = vadd.f32 %v6563, %v7319
    %v7501 = vadd.f32 %v6564, %v7463
    %v7502 = vadd.f32 %v6565, %v7465
    %v7503 = vadd.f32 %v6566, %v7323
    %v7504 = vadd.f32 %v6567, %v7325
    %v7505 = vadd.f32 %v6568, %v7469
    %v7506 = vadd.f32 %v6569, %v7471
    %v7507 = vadd.f32 %v6570, %v7327
    %v7508 = vadd.f32 %v6571, %v7329
    %v7509 = vadd.f32 %v6572, %v7473
    %v7510 = vadd.f32 %v6573, %v7475
    %v7511 = vadd.f32 %v6574, %v7333
    %v7512 = vadd.f32 %v6575, %v7335
    %v7513 = vadd.f32 %v6576, %v7479
    %v7514 = vadd.f32 %v6577, %v7481
    %v7515 = vadd.f32 %v6578, %v7337
    %v7516 = vadd.f32 %v6579, %v7339
    %v7517 = vadd.f32 %v6580, %v7483
    %v7518 = vadd.f32 %v6581, %v7485
    %v7519 = vld [vmem:[#allocation2 + $0x60] sm:$0xff]
    %v7520 = vld [vmem:[#allocation2 + $0x68] sm:$0xff]
    %v7521 = vld [vmem:[#allocation2 + $0x70] sm:$0xff]
    %v7522 = vld [vmem:[#allocation2 + $0x78] sm:$0xff]
    %v7523 = vld [vmem:[#allocation2 + $0x80] sm:$0xff]
    %v7524 = vld [vmem:[#allocation2 + $0x88] sm:$0xff]
    %v7525 = vld [vmem:[#allocation2 + $0x90] sm:$0xff]
    %v7526 = vld [vmem:[#allocation2 + $0x98] sm:$0xff]
    %v7527 = vld [vmem:[#allocation2 + $0xa0] sm:$0xff]
    %v7528 = vld [vmem:[#allocation2 + $0xa8] sm:$0xff]
    %v7529 = vld [vmem:[#allocation2 + $0xb0] sm:$0xff]
    %v7530 = vld [vmem:[#allocation2 + $0xb8] sm:$0xff]
    %v7531 = vld [vmem:[#allocation2 + $0xc0] sm:$0xff]
    %v7532 = vld [vmem:[#allocation2 + $0xc8] sm:$0xff]
    %v7533 = vld [vmem:[#allocation2 + $0xd0] sm:$0xff]
    %v7534 = vld [vmem:[#allocation2 + $0xd8] sm:$0xff]
    %v7535 = vld [vmem:[#allocation2 + $0xe0] sm:$0xff]
    %v7536 = vld [vmem:[#allocation2 + $0xe8] sm:$0xff]
    %v7537 = vld [vmem:[#allocation2 + $0xf0] sm:$0xff]
    %v7538 = vld [vmem:[#allocation2 + $0xf8] sm:$0xff]
    %v7539 = vld [vmem:[#allocation2 + $0x100] sm:$0xff]
    %v7540 = vld [vmem:[#allocation2 + $0x108] sm:$0xff]
    %v7541 = vld [vmem:[#allocation2 + $0x110] sm:$0xff]
    %v7542 = vld [vmem:[#allocation2 + $0x118] sm:$0xff]
    %v7543 = vpack.c.bf16 %v7522, %v7519
    %v7544 = vpack.c.bf16 %v7523, %v7520
    %v7545 = vpack.c.bf16 %v7524, %v7521
    %v7546 = vpack.c.bf16 %v7528, %v7525
    %v7547 = vpack.c.bf16 %v7529, %v7526
    %v7548 = vpack.c.bf16 %v7530, %v7527
    %v7549 = vpack.c.bf16 %v7534, %v7531
    %v7550 = vpack.c.bf16 %v7535, %v7532
    %v7551 = vpack.c.bf16 %v7536, %v7533
    %v7552 = vpack.c.bf16 %v7540, %v7537
    %v7553 = vpack.c.bf16 %v7541, %v7538
    %v7554 = vpack.c.bf16 %v7542, %v7539
    %s7555 = scalar_lea.vmem [#allocation7], 3072
    %v7556 = vld [vmem:[%s7555] sm:$0xff]
    %v7557 = vld [vmem:[%s7555 + $0x8] sm:$0xff]
    %v7558 = vld [vmem:[%s7555 + $0x10] sm:$0xff]
    %v7559 = vld [vmem:[%s7555 + $0x18] sm:$0xff]
    %v7560 = vld [vmem:[%s7555 + $0x20] sm:$0xff]
    %v7561 = vld [vmem:[%s7555 + $0x28] sm:$0xff]
    %v7562 = vld [vmem:[%s7555 + $0x30] sm:$0xff]
    %v7563 = vld [vmem:[%s7555 + $0x38] sm:$0xff]
    %v7564 = vld [vmem:[%s7555 + $0x40] sm:$0xff]
    %v7565 = vld [vmem:[%s7555 + $0x48] sm:$0xff]
    %v7566 = vld [vmem:[%s7555 + $0x50] sm:$0xff]
    %v7567 = vld [vmem:[%s7555 + $0x58] sm:$0xff]
    %v7568 = vld [vmem:[%s7555 + $0x60] sm:$0xff]
    %v7569 = vld [vmem:[%s7555 + $0x68] sm:$0xff]
    %v7570 = vld [vmem:[%s7555 + $0x70] sm:$0xff]
    %v7571 = vld [vmem:[%s7555 + $0x78] sm:$0xff]
    %v7572 = vld [vmem:[%s7555 + $0x80] sm:$0xff]
    %v7573 = vld [vmem:[%s7555 + $0x88] sm:$0xff]
    %v7574 = vld [vmem:[%s7555 + $0x90] sm:$0xff]
    %v7575 = vld [vmem:[%s7555 + $0x98] sm:$0xff]
    %v7576 = vld [vmem:[%s7555 + $0xa0] sm:$0xff]
    %v7577 = vld [vmem:[%s7555 + $0xa8] sm:$0xff]
    %v7578 = vld [vmem:[%s7555 + $0xb0] sm:$0xff]
    %v7579 = vld [vmem:[%s7555 + $0xb8] sm:$0xff]
    %v7580 = vld [vmem:[%s7555 + $0xc0] sm:$0xff]
    %v7581 = vld [vmem:[%s7555 + $0xc8] sm:$0xff]
    %v7582 = vld [vmem:[%s7555 + $0xd0] sm:$0xff]
    %v7583 = vld [vmem:[%s7555 + $0xd8] sm:$0xff]
    %v7584 = vld [vmem:[%s7555 + $0xe0] sm:$0xff]
    %v7585 = vld [vmem:[%s7555 + $0xe8] sm:$0xff]
    %v7586 = vld [vmem:[%s7555 + $0xf0] sm:$0xff]
    %v7587 = vld [vmem:[%s7555 + $0xf8] sm:$0xff]
    %v7588 = vld [vmem:[%s7555 + $0x100] sm:$0xff]
    %v7589 = vld [vmem:[%s7555 + $0x108] sm:$0xff]
    %v7590 = vld [vmem:[%s7555 + $0x110] sm:$0xff]
    %v7591 = vld [vmem:[%s7555 + $0x118] sm:$0xff]
    %v7592 = vld [vmem:[%s7555 + $0x120] sm:$0xff]
    %v7593 = vld [vmem:[%s7555 + $0x128] sm:$0xff]
    %v7594 = vld [vmem:[%s7555 + $0x130] sm:$0xff]
    %v7595 = vld [vmem:[%s7555 + $0x138] sm:$0xff]
    %v7596 = vld [vmem:[%s7555 + $0x140] sm:$0xff]
    %v7597 = vld [vmem:[%s7555 + $0x148] sm:$0xff]
    %v7598 = vld [vmem:[%s7555 + $0x150] sm:$0xff]
    %v7599 = vld [vmem:[%s7555 + $0x158] sm:$0xff]
    %v7600 = vld [vmem:[%s7555 + $0x160] sm:$0xff]
    %v7601 = vld [vmem:[%s7555 + $0x168] sm:$0xff]
    %v7602 = vld [vmem:[%s7555 + $0x170] sm:$0xff]
    %v7603 = vld [vmem:[%s7555 + $0x178] sm:$0xff]
    %v7604 = vld [vmem:[%s7555 + $0x180] sm:$0xff]
    %v7605 = vld [vmem:[%s7555 + $0x188] sm:$0xff]
    %v7606 = vld [vmem:[%s7555 + $0x190] sm:$0xff]
    %v7607 = vld [vmem:[%s7555 + $0x198] sm:$0xff]
    %v7608 = vld [vmem:[%s7555 + $0x1a0] sm:$0xff]
    %v7609 = vld [vmem:[%s7555 + $0x1a8] sm:$0xff]
    %v7610 = vld [vmem:[%s7555 + $0x1b0] sm:$0xff]
    %v7611 = vld [vmem:[%s7555 + $0x1b8] sm:$0xff]
    %v7612 = vld [vmem:[%s7555 + $0x1c0] sm:$0xff]
    %v7613 = vld [vmem:[%s7555 + $0x1c8] sm:$0xff]
    %v7614 = vld [vmem:[%s7555 + $0x1d0] sm:$0xff]
    %v7615 = vld [vmem:[%s7555 + $0x1d8] sm:$0xff]
    %v7616 = vld [vmem:[%s7555 + $0x1e0] sm:$0xff]
    %v7617 = vld [vmem:[%s7555 + $0x1e8] sm:$0xff]
    %v7618 = vld [vmem:[%s7555 + $0x1f0] sm:$0xff]
    %v7619 = vld [vmem:[%s7555 + $0x1f8] sm:$0xff]
    %v7620 = vld [vmem:[%s7555 + $0x200] sm:$0xff]
    %v7621 = vld [vmem:[%s7555 + $0x208] sm:$0xff]
    %v7622 = vld [vmem:[%s7555 + $0x210] sm:$0xff]
    %v7623 = vld [vmem:[%s7555 + $0x218] sm:$0xff]
    %v7624 = vld [vmem:[%s7555 + $0x220] sm:$0xff]
    %v7625 = vld [vmem:[%s7555 + $0x228] sm:$0xff]
    %v7626 = vld [vmem:[%s7555 + $0x230] sm:$0xff]
    %v7627 = vld [vmem:[%s7555 + $0x238] sm:$0xff]
    %v7628 = vld [vmem:[%s7555 + $0x240] sm:$0xff]
    %v7629 = vld [vmem:[%s7555 + $0x248] sm:$0xff]
    %v7630 = vld [vmem:[%s7555 + $0x250] sm:$0xff]
    %v7631 = vld [vmem:[%s7555 + $0x258] sm:$0xff]
    %v7632 = vld [vmem:[%s7555 + $0x260] sm:$0xff]
    %v7633 = vld [vmem:[%s7555 + $0x268] sm:$0xff]
    %v7634 = vld [vmem:[%s7555 + $0x270] sm:$0xff]
    %v7635 = vld [vmem:[%s7555 + $0x278] sm:$0xff]
    %v7636 = vld [vmem:[%s7555 + $0x280] sm:$0xff]
    %v7637 = vld [vmem:[%s7555 + $0x288] sm:$0xff]
    %v7638 = vld [vmem:[%s7555 + $0x290] sm:$0xff]
    %v7639 = vld [vmem:[%s7555 + $0x298] sm:$0xff]
    %v7640 = vld [vmem:[%s7555 + $0x2a0] sm:$0xff]
    %v7641 = vld [vmem:[%s7555 + $0x2a8] sm:$0xff]
    %v7642 = vld [vmem:[%s7555 + $0x2b0] sm:$0xff]
    %v7643 = vld [vmem:[%s7555 + $0x2b8] sm:$0xff]
    %v7644 = vld [vmem:[%s7555 + $0x2c0] sm:$0xff]
    %v7645 = vld [vmem:[%s7555 + $0x2c8] sm:$0xff]
    %v7646 = vld [vmem:[%s7555 + $0x2d0] sm:$0xff]
    %v7647 = vld [vmem:[%s7555 + $0x2d8] sm:$0xff]
    %v7648 = vld [vmem:[%s7555 + $0x2e0] sm:$0xff]
    %v7649 = vld [vmem:[%s7555 + $0x2e8] sm:$0xff]
    %v7650 = vld [vmem:[%s7555 + $0x2f0] sm:$0xff]
    %v7651 = vld [vmem:[%s7555 + $0x2f8] sm:$0xff]
    %v7748 = vunpack.c.l.b16 %v7556
    %v7749 = vunpack.c.h.b16 %v7556
    %v7750 = vunpack.c.l.b16 %v7557
    %v7751 = vunpack.c.h.b16 %v7557
    %v7752 = vunpack.c.l.b16 %v7558
    %v7753 = vunpack.c.h.b16 %v7558
    %v7754 = vunpack.c.l.b16 %v7559
    %v7755 = vunpack.c.h.b16 %v7559
    %v7756 = vunpack.c.l.b16 %v7560
    %v7757 = vunpack.c.h.b16 %v7560
    %v7758 = vunpack.c.l.b16 %v7561
    %v7759 = vunpack.c.h.b16 %v7561
    %v7760 = vunpack.c.l.b16 %v7562
    %v7761 = vunpack.c.h.b16 %v7562
    %v7762 = vunpack.c.l.b16 %v7563
    %v7763 = vunpack.c.h.b16 %v7563
    %v7764 = vunpack.c.l.b16 %v7564
    %v7765 = vunpack.c.h.b16 %v7564
    %v7766 = vunpack.c.l.b16 %v7565
    %v7767 = vunpack.c.h.b16 %v7565
    %v7768 = vunpack.c.l.b16 %v7566
    %v7769 = vunpack.c.h.b16 %v7566
    %v7770 = vunpack.c.l.b16 %v7567
    %v7771 = vunpack.c.h.b16 %v7567
    %v7772 = vunpack.c.l.b16 %v7568
    %v7773 = vunpack.c.h.b16 %v7568
    %v7774 = vunpack.c.l.b16 %v7569
    %v7775 = vunpack.c.h.b16 %v7569
    %v7776 = vunpack.c.l.b16 %v7570
    %v7777 = vunpack.c.h.b16 %v7570
    %v7778 = vunpack.c.l.b16 %v7571
    %v7779 = vunpack.c.h.b16 %v7571
    %v7780 = vunpack.c.l.b16 %v7572
    %v7781 = vunpack.c.h.b16 %v7572
    %v7782 = vunpack.c.l.b16 %v7573
    %v7783 = vunpack.c.h.b16 %v7573
    %v7784 = vunpack.c.l.b16 %v7574
    %v7785 = vunpack.c.h.b16 %v7574
    %v7786 = vunpack.c.l.b16 %v7575
    %v7787 = vunpack.c.h.b16 %v7575
    %v7788 = vunpack.c.l.b16 %v7576
    %v7789 = vunpack.c.h.b16 %v7576
    %v7790 = vunpack.c.l.b16 %v7577
    %v7791 = vunpack.c.h.b16 %v7577
    %v7792 = vunpack.c.l.b16 %v7578
    %v7793 = vunpack.c.h.b16 %v7578
    %v7794 = vunpack.c.l.b16 %v7579
    %v7795 = vunpack.c.h.b16 %v7579
    %v7796 = vunpack.c.l.b16 %v7580
    %v7797 = vunpack.c.h.b16 %v7580
    %v7798 = vunpack.c.l.b16 %v7581
    %v7799 = vunpack.c.h.b16 %v7581
    %v7800 = vunpack.c.l.b16 %v7582
    %v7801 = vunpack.c.h.b16 %v7582
    %v7802 = vunpack.c.l.b16 %v7583
    %v7803 = vunpack.c.h.b16 %v7583
    %v7804 = vunpack.c.l.b16 %v7584
    %v7805 = vunpack.c.h.b16 %v7584
    %v7806 = vunpack.c.l.b16 %v7585
    %v7807 = vunpack.c.h.b16 %v7585
    %v7808 = vunpack.c.l.b16 %v7586
    %v7809 = vunpack.c.h.b16 %v7586
    %v7810 = vunpack.c.l.b16 %v7587
    %v7811 = vunpack.c.h.b16 %v7587
    %v7812 = vunpack.c.l.b16 %v7588
    %v7813 = vunpack.c.h.b16 %v7588
    %v7814 = vunpack.c.l.b16 %v7589
    %v7815 = vunpack.c.h.b16 %v7589
    %v7816 = vunpack.c.l.b16 %v7590
    %v7817 = vunpack.c.h.b16 %v7590
    %v7818 = vunpack.c.l.b16 %v7591
    %v7819 = vunpack.c.h.b16 %v7591
    %v7820 = vunpack.c.l.b16 %v7592
    %v7821 = vunpack.c.h.b16 %v7592
    %v7822 = vunpack.c.l.b16 %v7593
    %v7823 = vunpack.c.h.b16 %v7593
    %v7824 = vunpack.c.l.b16 %v7594
    %v7825 = vunpack.c.h.b16 %v7594
    %v7826 = vunpack.c.l.b16 %v7595
    %v7827 = vunpack.c.h.b16 %v7595
    %v7828 = vunpack.c.l.b16 %v7596
    %v7829 = vunpack.c.h.b16 %v7596
    %v7830 = vunpack.c.l.b16 %v7597
    %v7831 = vunpack.c.h.b16 %v7597
    %v7832 = vunpack.c.l.b16 %v7598
    %v7833 = vunpack.c.h.b16 %v7598
    %v7834 = vunpack.c.l.b16 %v7599
    %v7835 = vunpack.c.h.b16 %v7599
    %v7836 = vunpack.c.l.b16 %v7600
    %v7837 = vunpack.c.h.b16 %v7600
    %v7838 = vunpack.c.l.b16 %v7601
    %v7839 = vunpack.c.h.b16 %v7601
    %v7840 = vunpack.c.l.b16 %v7602
    %v7841 = vunpack.c.h.b16 %v7602
    %v7842 = vunpack.c.l.b16 %v7603
    %v7843 = vunpack.c.h.b16 %v7603
    %v7844 = vunpack.c.l.b16 %v7604
    %v7845 = vunpack.c.h.b16 %v7604
    %v7846 = vunpack.c.l.b16 %v7605
    %v7847 = vunpack.c.h.b16 %v7605
    %v7848 = vunpack.c.l.b16 %v7606
    %v7849 = vunpack.c.h.b16 %v7606
    %v7850 = vunpack.c.l.b16 %v7607
    %v7851 = vunpack.c.h.b16 %v7607
    %v7852 = vunpack.c.l.b16 %v7608
    %v7853 = vunpack.c.h.b16 %v7608
    %v7854 = vunpack.c.l.b16 %v7609
    %v7855 = vunpack.c.h.b16 %v7609
    %v7856 = vunpack.c.l.b16 %v7610
    %v7857 = vunpack.c.h.b16 %v7610
    %v7858 = vunpack.c.l.b16 %v7611
    %v7859 = vunpack.c.h.b16 %v7611
    %v7860 = vunpack.c.l.b16 %v7612
    %v7861 = vunpack.c.h.b16 %v7612
    %v7862 = vunpack.c.l.b16 %v7613
    %v7863 = vunpack.c.h.b16 %v7613
    %v7864 = vunpack.c.l.b16 %v7614
    %v7865 = vunpack.c.h.b16 %v7614
    %v7866 = vunpack.c.l.b16 %v7615
    %v7867 = vunpack.c.h.b16 %v7615
    %v7868 = vunpack.c.l.b16 %v7616
    %v7869 = vunpack.c.h.b16 %v7616
    %v7870 = vunpack.c.l.b16 %v7617
    %v7871 = vunpack.c.h.b16 %v7617
    %v7872 = vunpack.c.l.b16 %v7618
    %v7873 = vunpack.c.h.b16 %v7618
    %v7874 = vunpack.c.l.b16 %v7619
    %v7875 = vunpack.c.h.b16 %v7619
    %v7876 = vunpack.c.l.b16 %v7620
    %v7877 = vunpack.c.h.b16 %v7620
    %v7878 = vunpack.c.l.b16 %v7621
    %v7879 = vunpack.c.h.b16 %v7621
    %v7880 = vunpack.c.l.b16 %v7622
    %v7881 = vunpack.c.h.b16 %v7622
    %v7882 = vunpack.c.l.b16 %v7623
    %v7883 = vunpack.c.h.b16 %v7623
    %v7884 = vunpack.c.l.b16 %v7624
    %v7885 = vunpack.c.h.b16 %v7624
    %v7886 = vunpack.c.l.b16 %v7625
    %v7887 = vunpack.c.h.b16 %v7625
    %v7888 = vunpack.c.l.b16 %v7626
    %v7889 = vunpack.c.h.b16 %v7626
    %v7890 = vunpack.c.l.b16 %v7627
    %v7891 = vunpack.c.h.b16 %v7627
    %v7892 = vunpack.c.l.b16 %v7628
    %v7893 = vunpack.c.h.b16 %v7628
    %v7894 = vunpack.c.l.b16 %v7629
    %v7895 = vunpack.c.h.b16 %v7629
    %v7896 = vunpack.c.l.b16 %v7630
    %v7897 = vunpack.c.h.b16 %v7630
    %v7898 = vunpack.c.l.b16 %v7631
    %v7899 = vunpack.c.h.b16 %v7631
    %v7900 = vunpack.c.l.b16 %v7632
    %v7901 = vunpack.c.h.b16 %v7632
    %v7902 = vunpack.c.l.b16 %v7633
    %v7903 = vunpack.c.h.b16 %v7633
    %v7904 = vunpack.c.l.b16 %v7634
    %v7905 = vunpack.c.h.b16 %v7634
    %v7906 = vunpack.c.l.b16 %v7635
    %v7907 = vunpack.c.h.b16 %v7635
    %v7908 = vunpack.c.l.b16 %v7636
    %v7909 = vunpack.c.h.b16 %v7636
    %v7910 = vunpack.c.l.b16 %v7637
    %v7911 = vunpack.c.h.b16 %v7637
    %v7912 = vunpack.c.l.b16 %v7638
    %v7913 = vunpack.c.h.b16 %v7638
    %v7914 = vunpack.c.l.b16 %v7639
    %v7915 = vunpack.c.h.b16 %v7639
    %v7916 = vunpack.c.l.b16 %v7640
    %v7917 = vunpack.c.h.b16 %v7640
    %v7918 = vunpack.c.l.b16 %v7641
    %v7919 = vunpack.c.h.b16 %v7641
    %v7920 = vunpack.c.l.b16 %v7642
    %v7921 = vunpack.c.h.b16 %v7642
    %v7922 = vunpack.c.l.b16 %v7643
    %v7923 = vunpack.c.h.b16 %v7643
    %v7924 = vunpack.c.l.b16 %v7644
    %v7925 = vunpack.c.h.b16 %v7644
    %v7926 = vunpack.c.l.b16 %v7645
    %v7927 = vunpack.c.h.b16 %v7645
    %v7928 = vunpack.c.l.b16 %v7646
    %v7929 = vunpack.c.h.b16 %v7646
    %v7930 = vunpack.c.l.b16 %v7647
    %v7931 = vunpack.c.h.b16 %v7647
    %v7932 = vunpack.c.l.b16 %v7648
    %v7933 = vunpack.c.h.b16 %v7648
    %v7934 = vunpack.c.l.b16 %v7649
    %v7935 = vunpack.c.h.b16 %v7649
    %v7936 = vunpack.c.l.b16 %v7650
    %v7937 = vunpack.c.h.b16 %v7650
    %v7938 = vunpack.c.l.b16 %v7651
    %v7939 = vunpack.c.h.b16 %v7651
    %v7940 = vpack.c.b16 %v7752, %v7748
    %v7941 = vpack.c.b16 %v7753, %v7749
    %v7942 = vpack.c.b16 %v7754, %v7750
    %v7943 = vpack.c.b16 %v7755, %v7751
    %v7944 = vpack.c.b16 %v7760, %v7756
    %v7945 = vpack.c.b16 %v7761, %v7757
    %v7946 = vpack.c.b16 %v7762, %v7758
    %v7947 = vpack.c.b16 %v7763, %v7759
    %v7948 = vpack.c.b16 %v7768, %v7764
    %v7949 = vpack.c.b16 %v7769, %v7765
    %v7950 = vpack.c.b16 %v7770, %v7766
    %v7951 = vpack.c.b16 %v7771, %v7767
    %v7952 = vpack.c.b16 %v7776, %v7772
    %v7953 = vpack.c.b16 %v7777, %v7773
    %v7954 = vpack.c.b16 %v7778, %v7774
    %v7955 = vpack.c.b16 %v7779, %v7775
    %v7956 = vpack.c.b16 %v7784, %v7780
    %v7957 = vpack.c.b16 %v7785, %v7781
    %v7958 = vpack.c.b16 %v7786, %v7782
    %v7959 = vpack.c.b16 %v7787, %v7783
    %v7960 = vpack.c.b16 %v7792, %v7788
    %v7961 = vpack.c.b16 %v7793, %v7789
    %v7962 = vpack.c.b16 %v7794, %v7790
    %v7963 = vpack.c.b16 %v7795, %v7791
    %v7964 = vpack.c.b16 %v7800, %v7796
    %v7965 = vpack.c.b16 %v7801, %v7797
    %v7966 = vpack.c.b16 %v7802, %v7798
    %v7967 = vpack.c.b16 %v7803, %v7799
    %v7968 = vpack.c.b16 %v7808, %v7804
    %v7969 = vpack.c.b16 %v7809, %v7805
    %v7970 = vpack.c.b16 %v7810, %v7806
    %v7971 = vpack.c.b16 %v7811, %v7807
    %v7972 = vpack.c.b16 %v7816, %v7812
    %v7973 = vpack.c.b16 %v7817, %v7813
    %v7974 = vpack.c.b16 %v7818, %v7814
    %v7975 = vpack.c.b16 %v7819, %v7815
    %v7976 = vpack.c.b16 %v7824, %v7820
    %v7977 = vpack.c.b16 %v7825, %v7821
    %v7978 = vpack.c.b16 %v7826, %v7822
    %v7979 = vpack.c.b16 %v7827, %v7823
    %v7980 = vpack.c.b16 %v7832, %v7828
    %v7981 = vpack.c.b16 %v7833, %v7829
    %v7982 = vpack.c.b16 %v7834, %v7830
    %v7983 = vpack.c.b16 %v7835, %v7831
    %v7984 = vpack.c.b16 %v7840, %v7836
    %v7985 = vpack.c.b16 %v7841, %v7837
    %v7986 = vpack.c.b16 %v7842, %v7838
    %v7987 = vpack.c.b16 %v7843, %v7839
    %v7988 = vpack.c.b16 %v7848, %v7844
    %v7989 = vpack.c.b16 %v7849, %v7845
    %v7990 = vpack.c.b16 %v7850, %v7846
    %v7991 = vpack.c.b16 %v7851, %v7847
    %v7992 = vpack.c.b16 %v7856, %v7852
    %v7993 = vpack.c.b16 %v7857, %v7853
    %v7994 = vpack.c.b16 %v7858, %v7854
    %v7995 = vpack.c.b16 %v7859, %v7855
    %v7996 = vpack.c.b16 %v7864, %v7860
    %v7997 = vpack.c.b16 %v7865, %v7861
    %v7998 = vpack.c.b16 %v7866, %v7862
    %v7999 = vpack.c.b16 %v7867, %v7863
    %v8000 = vpack.c.b16 %v7872, %v7868
    %v8001 = vpack.c.b16 %v7873, %v7869
    %v8002 = vpack.c.b16 %v7874, %v7870
    %v8003 = vpack.c.b16 %v7875, %v7871
    %v8004 = vpack.c.b16 %v7880, %v7876
    %v8005 = vpack.c.b16 %v7881, %v7877
    %v8006 = vpack.c.b16 %v7882, %v7878
    %v8007 = vpack.c.b16 %v7883, %v7879
    %v8008 = vpack.c.b16 %v7888, %v7884
    %v8009 = vpack.c.b16 %v7889, %v7885
    %v8010 = vpack.c.b16 %v7890, %v7886
    %v8011 = vpack.c.b16 %v7891, %v7887
    %v8012 = vpack.c.b16 %v7896, %v7892
    %v8013 = vpack.c.b16 %v7897, %v7893
    %v8014 = vpack.c.b16 %v7898, %v7894
    %v8015 = vpack.c.b16 %v7899, %v7895
    %v8016 = vpack.c.b16 %v7904, %v7900
    %v8017 = vpack.c.b16 %v7905, %v7901
    %v8018 = vpack.c.b16 %v7906, %v7902
    %v8019 = vpack.c.b16 %v7907, %v7903
    %v8020 = vpack.c.b16 %v7912, %v7908
    %v8021 = vpack.c.b16 %v7913, %v7909
    %v8022 = vpack.c.b16 %v7914, %v7910
    %v8023 = vpack.c.b16 %v7915, %v7911
    %v8024 = vpack.c.b16 %v7920, %v7916
    %v8025 = vpack.c.b16 %v7921, %v7917
    %v8026 = vpack.c.b16 %v7922, %v7918
    %v8027 = vpack.c.b16 %v7923, %v7919
    %v8028 = vpack.c.b16 %v7928, %v7924
    %v8029 = vpack.c.b16 %v7929, %v7925
    %v8030 = vpack.c.b16 %v7930, %v7926
    %v8031 = vpack.c.b16 %v7931, %v7927
    %v8032 = vpack.c.b16 %v7936, %v7932
    %v8033 = vpack.c.b16 %v7937, %v7933
    %v8034 = vpack.c.b16 %v7938, %v7934
    %v8035 = vpack.c.b16 %v7939, %v7935
    %8132 = vmatprep.subr.bf16.mxu0 %v7969
    %8133 = vmatpush1.bf16.msra.mxu0 %v7968
    %8134 = vmatprep.subr.bf16.mxu0 %v7965
    %8135 = vmatpush1.bf16.msra.mxu0 %v7964
    %8136 = vmatprep.subr.bf16.mxu0 %v7961
    %8137 = vmatpush1.bf16.msra.mxu0 %v7960
    %8138 = vmatprep.subr.bf16.mxu0 %v7957
    %8139 = vmatpush1.bf16.msra.mxu0 %v7956
    %8140 = vmatprep.subr.bf16.mxu0 %v7953
    %8141 = vmatpush1.bf16.msra.mxu0 %v7952
    %8142 = vmatprep.subr.bf16.mxu0 %v7949
    %8143 = vmatpush1.bf16.msra.mxu0 %v7948
    %8144 = vmatprep.subr.bf16.mxu0 %v7945
    %8145 = vmatpush1.bf16.msra.mxu0 %v7944
    %8146 = vmatprep.subr.bf16.mxu0 %v7941
    %8147 = vmatpush1.bf16.msra.mxu0 %v7940
    %8148 = vmatprep.subr.bf16.mxu0 %v8001
    %8149 = vmatpush2.bf16.msra.mxu0 %v8000
    %8150 = vmatprep.subr.bf16.mxu0 %v7997
    %8151 = vmatpush2.bf16.msra.mxu0 %v7996
    %8152 = vmatprep.subr.bf16.mxu0 %v7993
    %8153 = vmatpush2.bf16.msra.mxu0 %v7992
    %8154 = vmatprep.subr.bf16.mxu0 %v7989
    %8155 = vmatpush2.bf16.msra.mxu0 %v7988
    %8156 = vmatprep.subr.bf16.mxu0 %v7985
    %8157 = vmatpush2.bf16.msra.mxu0 %v7984
    %8158 = vmatprep.subr.bf16.mxu0 %v7981
    %8159 = vmatpush2.bf16.msra.mxu0 %v7980
    %8160 = vmatprep.subr.bf16.mxu0 %v7977
    %8161 = vmatpush2.bf16.msra.mxu0 %v7976
    %8162 = vmatprep.subr.bf16.mxu0 %v7973
    %8163 = vmatpush2.bf16.msra.mxu0 %v7972
    %8164 = vmatprep.mubr.bf16.mxu0 %v7544
    %8165 = vmatmul.mubr.bf16.gmra.mxu0 %v7543
    %v8166 = vpop.f32.mrf.mxu0
    %v8167 = vadd.f32 0.0, %v8166
    %v8168 = vpop.f32.mrf.mxu0
    %v8169 = vadd.f32 0.0, %v8168
    %v8170 = vpop.f32.mrf.mxu0
    %v8171 = vadd.f32 0.0, %v8170
    %v8172 = vpop.f32.mrf.mxu0
    %v8173 = vadd.f32 0.0, %v8172
    %8174 = vmatprep.mubr.bf16.mxu0 %v7547
    %8175 = vmatmul.mubr.bf16.gmra.mxu0 %v7546
    %v8176 = vpop.f32.mrf.mxu0
    %v8177 = vadd.f32 0.0, %v8176
    %v8178 = vpop.f32.mrf.mxu0
    %v8179 = vadd.f32 0.0, %v8178
    %v8180 = vpop.f32.mrf.mxu0
    %v8181 = vadd.f32 0.0, %v8180
    %v8182 = vpop.f32.mrf.mxu0
    %v8183 = vadd.f32 0.0, %v8182
    %8184 = vmatprep.mubr.bf16.mxu0 %v7550
    %8185 = vmatmul.mubr.bf16.gmra.mxu0 %v7549
    %v8186 = vpop.f32.mrf.mxu0
    %v8187 = vadd.f32 0.0, %v8186
    %v8188 = vpop.f32.mrf.mxu0
    %v8189 = vadd.f32 0.0, %v8188
    %v8190 = vpop.f32.mrf.mxu0
    %v8191 = vadd.f32 0.0, %v8190
    %v8192 = vpop.f32.mrf.mxu0
    %v8193 = vadd.f32 0.0, %v8192
    %8194 = vmatprep.mubr.bf16.mxu0 %v7553
    %8195 = vmatmul.mubr.bf16.gmra.mxu0 %v7552
    %v8196 = vpop.f32.mrf.mxu0
    %v8197 = vadd.f32 0.0, %v8196
    %v8198 = vpop.f32.mrf.mxu0
    %v8199 = vadd.f32 0.0, %v8198
    %v8200 = vpop.f32.mrf.mxu0
    %v8201 = vadd.f32 0.0, %v8200
    %v8202 = vpop.f32.mrf.mxu0
    %v8203 = vadd.f32 0.0, %v8202
    %8204 = vdwg.mxu0
    %8205 = vmatprep.subr.bf16.mxu0 %v8033
    %8206 = vmatpush1.bf16.msra.mxu0 %v8032
    %8207 = vmatprep.subr.bf16.mxu0 %v8029
    %8208 = vmatpush1.bf16.msra.mxu0 %v8028
    %8209 = vmatprep.subr.bf16.mxu0 %v8025
    %8210 = vmatpush1.bf16.msra.mxu0 %v8024
    %8211 = vmatprep.subr.bf16.mxu0 %v8021
    %8212 = vmatpush1.bf16.msra.mxu0 %v8020
    %8213 = vmatprep.subr.bf16.mxu0 %v8017
    %8214 = vmatpush1.bf16.msra.mxu0 %v8016
    %8215 = vmatprep.subr.bf16.mxu0 %v8013
    %8216 = vmatpush1.bf16.msra.mxu0 %v8012
    %8217 = vmatprep.subr.bf16.mxu0 %v8009
    %8218 = vmatpush1.bf16.msra.mxu0 %v8008
    %8219 = vmatprep.subr.bf16.mxu0 %v8005
    %8220 = vmatpush1.bf16.msra.mxu0 %v8004
    %8221 = vmatprep.subr.bf16.mxu0 0
    %8222 = vmatpush2.bf16.msra.mxu0 0
    %8223 = vmatprep.subr.bf16.mxu0 0
    %8224 = vmatpush2.bf16.msra.mxu0 0
    %8225 = vmatprep.subr.bf16.mxu0 0
    %8226 = vmatpush2.bf16.msra.mxu0 0
    %8227 = vmatprep.subr.bf16.mxu0 0
    %8228 = vmatpush2.bf16.msra.mxu0 0
    %8229 = vmatprep.subr.bf16.mxu0 0
    %8230 = vmatpush2.bf16.msra.mxu0 0
    %8231 = vmatprep.subr.bf16.mxu0 0
    %8232 = vmatpush2.bf16.msra.mxu0 0
    %8233 = vmatprep.subr.bf16.mxu0 0
    %8234 = vmatpush2.bf16.msra.mxu0 0
    %8235 = vmatprep.subr.bf16.mxu0 0
    %8236 = vmatpush2.bf16.msra.mxu0 0
    %8237 = vmatprep.mubr.bf16.mxu0 0
    %8238 = vmatmul.mubr.bf16.gmra.mxu0 %v7545
    %v8239 = vpop.f32.mrf.mxu0
    %v8240 = vadd.f32 %v8167, %v8239
    %v8241 = vpop.f32.mrf.mxu0
    %v8242 = vadd.f32 %v8169, %v8241
    %v8243 = vpop.f32.mrf.mxu0
    %v8244 = vadd.f32 %v8171, %v8243
    %v8245 = vpop.f32.mrf.mxu0
    %v8246 = vadd.f32 %v8173, %v8245
    %8247 = vmatprep.mubr.bf16.mxu0 0
    %8248 = vmatmul.mubr.bf16.gmra.mxu0 %v7548
    %v8249 = vpop.f32.mrf.mxu0
    %v8250 = vadd.f32 %v8177, %v8249
    %v8251 = vpop.f32.mrf.mxu0
    %v8252 = vadd.f32 %v8179, %v8251
    %v8253 = vpop.f32.mrf.mxu0
    %v8254 = vadd.f32 %v8181, %v8253
    %v8255 = vpop.f32.mrf.mxu0
    %v8256 = vadd.f32 %v8183, %v8255
    %8257 = vmatprep.mubr.bf16.mxu0 0
    %8258 = vmatmul.mubr.bf16.gmra.mxu0 %v7551
    %v8259 = vpop.f32.mrf.mxu0
    %v8260 = vadd.f32 %v8187, %v8259
    %v8261 = vpop.f32.mrf.mxu0
    %v8262 = vadd.f32 %v8189, %v8261
    %v8263 = vpop.f32.mrf.mxu0
    %v8264 = vadd.f32 %v8191, %v8263
    %v8265 = vpop.f32.mrf.mxu0
    %v8266 = vadd.f32 %v8193, %v8265
    %8267 = vmatprep.mubr.bf16.mxu0 0
    %8268 = vmatmul.mubr.bf16.gmra.mxu0 %v7554
    %v8269 = vpop.f32.mrf.mxu0
    %v8270 = vadd.f32 %v8197, %v8269
    %v8271 = vpop.f32.mrf.mxu0
    %v8272 = vadd.f32 %v8199, %v8271
    %v8273 = vpop.f32.mrf.mxu0
    %v8274 = vadd.f32 %v8201, %v8273
    %v8275 = vpop.f32.mrf.mxu0
    %v8276 = vadd.f32 %v8203, %v8275
    %8277 = vdwg.mxu0
    %8278 = vmatprep.subr.bf16.mxu0 %v7971
    %8279 = vmatpush1.bf16.msra.mxu0 %v7970
    %8280 = vmatprep.subr.bf16.mxu0 %v7967
    %8281 = vmatpush1.bf16.msra.mxu0 %v7966
    %8282 = vmatprep.subr.bf16.mxu0 %v7963
    %8283 = vmatpush1.bf16.msra.mxu0 %v7962
    %8284 = vmatprep.subr.bf16.mxu0 %v7959
    %8285 = vmatpush1.bf16.msra.mxu0 %v7958
    %8286 = vmatprep.subr.bf16.mxu0 %v7955
    %8287 = vmatpush1.bf16.msra.mxu0 %v7954
    %8288 = vmatprep.subr.bf16.mxu0 %v7951
    %8289 = vmatpush1.bf16.msra.mxu0 %v7950
    %8290 = vmatprep.subr.bf16.mxu0 %v7947
    %8291 = vmatpush1.bf16.msra.mxu0 %v7946
    %8292 = vmatprep.subr.bf16.mxu0 %v7943
    %8293 = vmatpush1.bf16.msra.mxu0 %v7942
    %8294 = vmatprep.subr.bf16.mxu0 %v8003
    %8295 = vmatpush2.bf16.msra.mxu0 %v8002
    %8296 = vmatprep.subr.bf16.mxu0 %v7999
    %8297 = vmatpush2.bf16.msra.mxu0 %v7998
    %8298 = vmatprep.subr.bf16.mxu0 %v7995
    %8299 = vmatpush2.bf16.msra.mxu0 %v7994
    %8300 = vmatprep.subr.bf16.mxu0 %v7991
    %8301 = vmatpush2.bf16.msra.mxu0 %v7990
    %8302 = vmatprep.subr.bf16.mxu0 %v7987
    %8303 = vmatpush2.bf16.msra.mxu0 %v7986
    %8304 = vmatprep.subr.bf16.mxu0 %v7983
    %8305 = vmatpush2.bf16.msra.mxu0 %v7982
    %8306 = vmatprep.subr.bf16.mxu0 %v7979
    %8307 = vmatpush2.bf16.msra.mxu0 %v7978
    %8308 = vmatprep.subr.bf16.mxu0 %v7975
    %8309 = vmatpush2.bf16.msra.mxu0 %v7974
    %8310 = vmatprep.mubr.bf16.mxu0 %v7544
    %8311 = vmatmul.mubr.bf16.gmra.mxu0 %v7543
    %v8312 = vpop.f32.mrf.mxu0
    %v8313 = vadd.f32 0.0, %v8312
    %v8314 = vpop.f32.mrf.mxu0
    %v8315 = vadd.f32 0.0, %v8314
    %v8316 = vpop.f32.mrf.mxu0
    %v8317 = vadd.f32 0.0, %v8316
    %v8318 = vpop.f32.mrf.mxu0
    %v8319 = vadd.f32 0.0, %v8318
    %8320 = vmatprep.mubr.bf16.mxu0 %v7547
    %8321 = vmatmul.mubr.bf16.gmra.mxu0 %v7546
    %v8322 = vpop.f32.mrf.mxu0
    %v8323 = vadd.f32 0.0, %v8322
    %v8324 = vpop.f32.mrf.mxu0
    %v8325 = vadd.f32 0.0, %v8324
    %v8326 = vpop.f32.mrf.mxu0
    %v8327 = vadd.f32 0.0, %v8326
    %v8328 = vpop.f32.mrf.mxu0
    %v8329 = vadd.f32 0.0, %v8328
    %8330 = vmatprep.mubr.bf16.mxu0 %v7550
    %8331 = vmatmul.mubr.bf16.gmra.mxu0 %v7549
    %v8332 = vpop.f32.mrf.mxu0
    %v8333 = vadd.f32 0.0, %v8332
    %v8334 = vpop.f32.mrf.mxu0
    %v8335 = vadd.f32 0.0, %v8334
    %v8336 = vpop.f32.mrf.mxu0
    %v8337 = vadd.f32 0.0, %v8336
    %v8338 = vpop.f32.mrf.mxu0
    %v8339 = vadd.f32 0.0, %v8338
    %8340 = vmatprep.mubr.bf16.mxu0 %v7553
    %8341 = vmatmul.mubr.bf16.gmra.mxu0 %v7552
    %v8342 = vpop.f32.mrf.mxu0
    %v8343 = vadd.f32 0.0, %v8342
    %v8344 = vpop.f32.mrf.mxu0
    %v8345 = vadd.f32 0.0, %v8344
    %v8346 = vpop.f32.mrf.mxu0
    %v8347 = vadd.f32 0.0, %v8346
    %v8348 = vpop.f32.mrf.mxu0
    %v8349 = vadd.f32 0.0, %v8348
    %8350 = vdwg.mxu0
    %8351 = vmatprep.subr.bf16.mxu0 %v8035
    %8352 = vmatpush1.bf16.msra.mxu0 %v8034
    %8353 = vmatprep.subr.bf16.mxu0 %v8031
    %8354 = vmatpush1.bf16.msra.mxu0 %v8030
    %8355 = vmatprep.subr.bf16.mxu0 %v8027
    %8356 = vmatpush1.bf16.msra.mxu0 %v8026
    %8357 = vmatprep.subr.bf16.mxu0 %v8023
    %8358 = vmatpush1.bf16.msra.mxu0 %v8022
    %8359 = vmatprep.subr.bf16.mxu0 %v8019
    %8360 = vmatpush1.bf16.msra.mxu0 %v8018
    %8361 = vmatprep.subr.bf16.mxu0 %v8015
    %8362 = vmatpush1.bf16.msra.mxu0 %v8014
    %8363 = vmatprep.subr.bf16.mxu0 %v8011
    %8364 = vmatpush1.bf16.msra.mxu0 %v8010
    %8365 = vmatprep.subr.bf16.mxu0 %v8007
    %8366 = vmatpush1.bf16.msra.mxu0 %v8006
    %8367 = vmatprep.subr.bf16.mxu0 0
    %8368 = vmatpush2.bf16.msra.mxu0 0
    %8369 = vmatprep.subr.bf16.mxu0 0
    %8370 = vmatpush2.bf16.msra.mxu0 0
    %8371 = vmatprep.subr.bf16.mxu0 0
    %8372 = vmatpush2.bf16.msra.mxu0 0
    %8373 = vmatprep.subr.bf16.mxu0 0
    %8374 = vmatpush2.bf16.msra.mxu0 0
    %8375 = vmatprep.subr.bf16.mxu0 0
    %8376 = vmatpush2.bf16.msra.mxu0 0
    %8377 = vmatprep.subr.bf16.mxu0 0
    %8378 = vmatpush2.bf16.msra.mxu0 0
    %8379 = vmatprep.subr.bf16.mxu0 0
    %8380 = vmatpush2.bf16.msra.mxu0 0
    %8381 = vmatprep.subr.bf16.mxu0 0
    %8382 = vmatpush2.bf16.msra.mxu0 0
    %8383 = vmatprep.mubr.bf16.mxu0 0
    %8384 = vmatmul.mubr.bf16.gmra.mxu0 %v7545
    %v8385 = vpop.f32.mrf.mxu0
    %v8386 = vadd.f32 %v8313, %v8385
    %v8387 = vpop.f32.mrf.mxu0
    %v8388 = vadd.f32 %v8315, %v8387
    %v8389 = vpop.f32.mrf.mxu0
    %v8390 = vadd.f32 %v8317, %v8389
    %v8391 = vpop.f32.mrf.mxu0
    %v8392 = vadd.f32 %v8319, %v8391
    %8393 = vmatprep.mubr.bf16.mxu0 0
    %8394 = vmatmul.mubr.bf16.gmra.mxu0 %v7548
    %v8395 = vpop.f32.mrf.mxu0
    %v8396 = vadd.f32 %v8323, %v8395
    %v8397 = vpop.f32.mrf.mxu0
    %v8398 = vadd.f32 %v8325, %v8397
    %v8399 = vpop.f32.mrf.mxu0
    %v8400 = vadd.f32 %v8327, %v8399
    %v8401 = vpop.f32.mrf.mxu0
    %v8402 = vadd.f32 %v8329, %v8401
    %8403 = vmatprep.mubr.bf16.mxu0 0
    %8404 = vmatmul.mubr.bf16.gmra.mxu0 %v7551
    %v8405 = vpop.f32.mrf.mxu0
    %v8406 = vadd.f32 %v8333, %v8405
    %v8407 = vpop.f32.mrf.mxu0
    %v8408 = vadd.f32 %v8335, %v8407
    %v8409 = vpop.f32.mrf.mxu0
    %v8410 = vadd.f32 %v8337, %v8409
    %v8411 = vpop.f32.mrf.mxu0
    %v8412 = vadd.f32 %v8339, %v8411
    %8413 = vmatprep.mubr.bf16.mxu0 0
    %8414 = vmatmul.mubr.bf16.gmra.mxu0 %v7554
    %v8415 = vpop.f32.mrf.mxu0
    %v8416 = vadd.f32 %v8343, %v8415
    %v8417 = vpop.f32.mrf.mxu0
    %v8418 = vadd.f32 %v8345, %v8417
    %v8419 = vpop.f32.mrf.mxu0
    %v8420 = vadd.f32 %v8347, %v8419
    %v8421 = vpop.f32.mrf.mxu0
    %v8422 = vadd.f32 %v8349, %v8421
    %8423 = vdwg.mxu0
    %v8424 = vadd.f32 %v7487, %v8240
    %v8425 = vadd.f32 %v7488, %v8242
    %v8426 = vadd.f32 %v7489, %v8386
    %v8427 = vadd.f32 %v7490, %v8388
    %v8428 = vadd.f32 %v7491, %v8244
    %v8429 = vadd.f32 %v7492, %v8246
    %v8430 = vadd.f32 %v7493, %v8390
    %v8431 = vadd.f32 %v7494, %v8392
    %v8432 = vadd.f32 %v7495, %v8250
    %v8433 = vadd.f32 %v7496, %v8252
    %v8434 = vadd.f32 %v7497, %v8396
    %v8435 = vadd.f32 %v7498, %v8398
    %v8436 = vadd.f32 %v7499, %v8254
    %v8437 = vadd.f32 %v7500, %v8256
    %v8438 = vadd.f32 %v7501, %v8400
    %v8439 = vadd.f32 %v7502, %v8402
    %v8440 = vadd.f32 %v7503, %v8260
    %v8441 = vadd.f32 %v7504, %v8262
    %v8442 = vadd.f32 %v7505, %v8406
    %v8443 = vadd.f32 %v7506, %v8408
    %v8444 = vadd.f32 %v7507, %v8264
    %v8445 = vadd.f32 %v7508, %v8266
    %v8446 = vadd.f32 %v7509, %v8410
    %v8447 = vadd.f32 %v7510, %v8412
    %v8448 = vadd.f32 %v7511, %v8270
    %v8449 = vadd.f32 %v7512, %v8272
    %v8450 = vadd.f32 %v7513, %v8416
    %v8451 = vadd.f32 %v7514, %v8418
    %v8452 = vadd.f32 %v7515, %v8274
    %v8453 = vadd.f32 %v7516, %v8276
    %v8454 = vadd.f32 %v7517, %v8420
    %v8455 = vadd.f32 %v7518, %v8422
    %v8456 = vld [vmem:[#allocation8] sm:$0x3]
    %v8457 = vmax.f32 %v8424, %v8428
    %v8458 = vmax.f32 %v8425, %v8429
    %v8459 = vmax.f32 %v8426, %v8430
    %v8460 = vmax.f32 %v8427, %v8431
    %v8461 = vmax.f32 %v8457, %v8459
    %v8462 = vmax.f32 %v8458, %v8460
    %v8464 = vlaneseq
    %v8465 = vshrl.u32 %v8464, 7
    %v8466 = vsub.s32 0, %v8465
    %v8467 = vrot.slane %v8456, %v8466
    %v8468 = vlaneseq
    %v8469 = vshrl.u32 %v8468, 7
    %v8470 = vsub.s32 1, %v8469
    %v8471 = vrot.slane %v8456, %v8470
    %v8474 = vadd.f32 %v8461, %v8467
    %v8475 = vadd.f32 %v8462, %v8471
    %v8476 = vmax.f32 %v8474, 0.0
    %v8477 = vmax.f32 %v8475, 0.0
    %v8478 = vpack.c.bf16 %v8476, %v8476
    %v8479 = vpack.c.bf16 %v8477, %v8477
    %v8480 = vld [vmem:[#allocation10] sm:$0xff]
    %v8481 = vld [vmem:[#allocation10 + $0x8] sm:$0xff]
    %v8482 = vld [vmem:[#allocation10 + $0x10] sm:$0xff]
    %v8483 = vld [vmem:[#allocation10 + $0x18] sm:$0xff]
    %v8484 = vld [vmem:[#allocation10 + $0x20] sm:$0xff]
    %v8485 = vld [vmem:[#allocation10 + $0x28] sm:$0xff]
    %v8486 = vld [vmem:[#allocation10 + $0x30] sm:$0xff]
    %v8487 = vld [vmem:[#allocation10 + $0x38] sm:$0xff]
    %v8488 = vld [vmem:[#allocation10 + $0x40] sm:$0xff]
    %v8489 = vld [vmem:[#allocation10 + $0x48] sm:$0xff]
    %v8490 = vld [vmem:[#allocation10 + $0x50] sm:$0xff]
    %v8491 = vld [vmem:[#allocation10 + $0x58] sm:$0xff]
    %v8492 = vld [vmem:[#allocation10 + $0x60] sm:$0xff]
    %v8493 = vld [vmem:[#allocation10 + $0x68] sm:$0xff]
    %v8494 = vld [vmem:[#allocation10 + $0x70] sm:$0xff]
    %v8495 = vld [vmem:[#allocation10 + $0x78] sm:$0xff]
    %v8496 = vld [vmem:[#allocation10 + $0x80] sm:$0xff]
    %v8497 = vld [vmem:[#allocation10 + $0x88] sm:$0xff]
    %v8498 = vld [vmem:[#allocation10 + $0x90] sm:$0xff]
    %v8499 = vld [vmem:[#allocation10 + $0x98] sm:$0xff]
    %v8500 = vld [vmem:[#allocation10 + $0xa0] sm:$0xff]
    %v8501 = vld [vmem:[#allocation10 + $0xa8] sm:$0xff]
    %v8502 = vld [vmem:[#allocation10 + $0xb0] sm:$0xff]
    %v8503 = vld [vmem:[#allocation10 + $0xb8] sm:$0xff]
    %v8504 = vld [vmem:[#allocation10 + $0xc0] sm:$0xff]
    %v8505 = vld [vmem:[#allocation10 + $0xc8] sm:$0xff]
    %v8506 = vld [vmem:[#allocation10 + $0xd0] sm:$0xff]
    %v8507 = vld [vmem:[#allocation10 + $0xd8] sm:$0xff]
    %v8508 = vld [vmem:[#allocation10 + $0xe0] sm:$0xff]
    %v8509 = vld [vmem:[#allocation10 + $0xe8] sm:$0xff]
    %v8510 = vld [vmem:[#allocation10 + $0xf0] sm:$0xff]
    %v8511 = vld [vmem:[#allocation10 + $0xf8] sm:$0xff]
    %v8512 = vld [vmem:[#allocation10 + $0x100] sm:$0xff]
    %v8513 = vld [vmem:[#allocation10 + $0x108] sm:$0xff]
    %v8514 = vld [vmem:[#allocation10 + $0x110] sm:$0xff]
    %v8515 = vld [vmem:[#allocation10 + $0x118] sm:$0xff]
    %v8516 = vld [vmem:[#allocation10 + $0x120] sm:$0xff]
    %v8517 = vld [vmem:[#allocation10 + $0x128] sm:$0xff]
    %v8518 = vld [vmem:[#allocation10 + $0x130] sm:$0xff]
    %v8519 = vld [vmem:[#allocation10 + $0x138] sm:$0xff]
    %v8520 = vld [vmem:[#allocation10 + $0x140] sm:$0xff]
    %v8521 = vld [vmem:[#allocation10 + $0x148] sm:$0xff]
    %v8522 = vld [vmem:[#allocation10 + $0x150] sm:$0xff]
    %v8523 = vld [vmem:[#allocation10 + $0x158] sm:$0xff]
    %v8524 = vld [vmem:[#allocation10 + $0x160] sm:$0xff]
    %v8525 = vld [vmem:[#allocation10 + $0x168] sm:$0xff]
    %v8526 = vld [vmem:[#allocation10 + $0x170] sm:$0xff]
    %v8527 = vld [vmem:[#allocation10 + $0x178] sm:$0xff]
    %v8528 = vld [vmem:[#allocation10 + $0x180] sm:$0xff]
    %v8529 = vld [vmem:[#allocation10 + $0x188] sm:$0xff]
    %v8530 = vld [vmem:[#allocation10 + $0x190] sm:$0xff]
    %v8531 = vld [vmem:[#allocation10 + $0x198] sm:$0xff]
    %v8532 = vld [vmem:[#allocation10 + $0x1a0] sm:$0xff]
    %v8533 = vld [vmem:[#allocation10 + $0x1a8] sm:$0xff]
    %v8534 = vld [vmem:[#allocation10 + $0x1b0] sm:$0xff]
    %v8535 = vld [vmem:[#allocation10 + $0x1b8] sm:$0xff]
    %v8536 = vld [vmem:[#allocation10 + $0x1c0] sm:$0xff]
    %v8537 = vld [vmem:[#allocation10 + $0x1c8] sm:$0xff]
    %v8538 = vld [vmem:[#allocation10 + $0x1d0] sm:$0xff]
    %v8539 = vld [vmem:[#allocation10 + $0x1d8] sm:$0xff]
    %v8540 = vld [vmem:[#allocation10 + $0x1e0] sm:$0xff]
    %v8541 = vld [vmem:[#allocation10 + $0x1e8] sm:$0xff]
    %v8542 = vld [vmem:[#allocation10 + $0x1f0] sm:$0xff]
    %v8543 = vld [vmem:[#allocation10 + $0x1f8] sm:$0xff]
    %v8544 = vmax.f32 %v8432, %v8436
    %v8545 = vmax.f32 %v8433, %v8437
    %v8546 = vmax.f32 %v8434, %v8438
    %v8547 = vmax.f32 %v8435, %v8439
    %v8548 = vmax.f32 %v8544, %v8546
    %v8549 = vmax.f32 %v8545, %v8547
    %v8550 = vadd.f32 %v8548, %v8467
    %v8551 = vadd.f32 %v8549, %v8471
    %v8552 = vmax.f32 %v8550, 0.0
    %v8553 = vmax.f32 %v8551, 0.0
    %v8554 = vpack.c.bf16 %v8552, %v8552
    %v8555 = vpack.c.bf16 %v8553, %v8553
    %s8556 = scalar_lea.vmem [#allocation10], 512
    %v8557 = vld [vmem:[%s8556] sm:$0xff]
    %v8558 = vld [vmem:[%s8556 + $0x8] sm:$0xff]
    %v8559 = vld [vmem:[%s8556 + $0x10] sm:$0xff]
    %v8560 = vld [vmem:[%s8556 + $0x18] sm:$0xff]
    %v8561 = vld [vmem:[%s8556 + $0x20] sm:$0xff]
    %v8562 = vld [vmem:[%s8556 + $0x28] sm:$0xff]
    %v8563 = vld [vmem:[%s8556 + $0x30] sm:$0xff]
    %v8564 = vld [vmem:[%s8556 + $0x38] sm:$0xff]
    %v8565 = vld [vmem:[%s8556 + $0x40] sm:$0xff]
    %v8566 = vld [vmem:[%s8556 + $0x48] sm:$0xff]
    %v8567 = vld [vmem:[%s8556 + $0x50] sm:$0xff]
    %v8568 = vld [vmem:[%s8556 + $0x58] sm:$0xff]
    %v8569 = vld [vmem:[%s8556 + $0x60] sm:$0xff]
    %v8570 = vld [vmem:[%s8556 + $0x68] sm:$0xff]
    %v8571 = vld [vmem:[%s8556 + $0x70] sm:$0xff]
    %v8572 = vld [vmem:[%s8556 + $0x78] sm:$0xff]
    %v8573 = vld [vmem:[%s8556 + $0x80] sm:$0xff]
    %v8574 = vld [vmem:[%s8556 + $0x88] sm:$0xff]
    %v8575 = vld [vmem:[%s8556 + $0x90] sm:$0xff]
    %v8576 = vld [vmem:[%s8556 + $0x98] sm:$0xff]
    %v8577 = vld [vmem:[%s8556 + $0xa0] sm:$0xff]
    %v8578 = vld [vmem:[%s8556 + $0xa8] sm:$0xff]
    %v8579 = vld [vmem:[%s8556 + $0xb0] sm:$0xff]
    %v8580 = vld [vmem:[%s8556 + $0xb8] sm:$0xff]
    %v8581 = vld [vmem:[%s8556 + $0xc0] sm:$0xff]
    %v8582 = vld [vmem:[%s8556 + $0xc8] sm:$0xff]
    %v8583 = vld [vmem:[%s8556 + $0xd0] sm:$0xff]
    %v8584 = vld [vmem:[%s8556 + $0xd8] sm:$0xff]
    %v8585 = vld [vmem:[%s8556 + $0xe0] sm:$0xff]
    %v8586 = vld [vmem:[%s8556 + $0xe8] sm:$0xff]
    %v8587 = vld [vmem:[%s8556 + $0xf0] sm:$0xff]
    %v8588 = vld [vmem:[%s8556 + $0xf8] sm:$0xff]
    %v8589 = vld [vmem:[%s8556 + $0x100] sm:$0xff]
    %v8590 = vld [vmem:[%s8556 + $0x108] sm:$0xff]
    %v8591 = vld [vmem:[%s8556 + $0x110] sm:$0xff]
    %v8592 = vld [vmem:[%s8556 + $0x118] sm:$0xff]
    %v8593 = vld [vmem:[%s8556 + $0x120] sm:$0xff]
    %v8594 = vld [vmem:[%s8556 + $0x128] sm:$0xff]
    %v8595 = vld [vmem:[%s8556 + $0x130] sm:$0xff]
    %v8596 = vld [vmem:[%s8556 + $0x138] sm:$0xff]
    %v8597 = vld [vmem:[%s8556 + $0x140] sm:$0xff]
    %v8598 = vld [vmem:[%s8556 + $0x148] sm:$0xff]
    %v8599 = vld [vmem:[%s8556 + $0x150] sm:$0xff]
    %v8600 = vld [vmem:[%s8556 + $0x158] sm:$0xff]
    %v8601 = vld [vmem:[%s8556 + $0x160] sm:$0xff]
    %v8602 = vld [vmem:[%s8556 + $0x168] sm:$0xff]
    %v8603 = vld [vmem:[%s8556 + $0x170] sm:$0xff]
    %v8604 = vld [vmem:[%s8556 + $0x178] sm:$0xff]
    %v8605 = vld [vmem:[%s8556 + $0x180] sm:$0xff]
    %v8606 = vld [vmem:[%s8556 + $0x188] sm:$0xff]
    %v8607 = vld [vmem:[%s8556 + $0x190] sm:$0xff]
    %v8608 = vld [vmem:[%s8556 + $0x198] sm:$0xff]
    %v8609 = vld [vmem:[%s8556 + $0x1a0] sm:$0xff]
    %v8610 = vld [vmem:[%s8556 + $0x1a8] sm:$0xff]
    %v8611 = vld [vmem:[%s8556 + $0x1b0] sm:$0xff]
    %v8612 = vld [vmem:[%s8556 + $0x1b8] sm:$0xff]
    %v8613 = vld [vmem:[%s8556 + $0x1c0] sm:$0xff]
    %v8614 = vld [vmem:[%s8556 + $0x1c8] sm:$0xff]
    %v8615 = vld [vmem:[%s8556 + $0x1d0] sm:$0xff]
    %v8616 = vld [vmem:[%s8556 + $0x1d8] sm:$0xff]
    %v8617 = vld [vmem:[%s8556 + $0x1e0] sm:$0xff]
    %v8618 = vld [vmem:[%s8556 + $0x1e8] sm:$0xff]
    %v8619 = vld [vmem:[%s8556 + $0x1f0] sm:$0xff]
    %v8620 = vld [vmem:[%s8556 + $0x1f8] sm:$0xff]
    %v8685 = vunpack.c.l.b16 %v8557
    %v8686 = vunpack.c.h.b16 %v8557
    %v8687 = vunpack.c.l.b16 %v8558
    %v8688 = vunpack.c.h.b16 %v8558
    %v8689 = vunpack.c.l.b16 %v8559
    %v8690 = vunpack.c.h.b16 %v8559
    %v8691 = vunpack.c.l.b16 %v8560
    %v8692 = vunpack.c.h.b16 %v8560
    %v8693 = vunpack.c.l.b16 %v8561
    %v8694 = vunpack.c.h.b16 %v8561
    %v8695 = vunpack.c.l.b16 %v8562
    %v8696 = vunpack.c.h.b16 %v8562
    %v8697 = vunpack.c.l.b16 %v8563
    %v8698 = vunpack.c.h.b16 %v8563
    %v8699 = vunpack.c.l.b16 %v8564
    %v8700 = vunpack.c.h.b16 %v8564
    %v8701 = vunpack.c.l.b16 %v8565
    %v8702 = vunpack.c.h.b16 %v8565
    %v8703 = vunpack.c.l.b16 %v8566
    %v8704 = vunpack.c.h.b16 %v8566
    %v8705 = vunpack.c.l.b16 %v8567
    %v8706 = vunpack.c.h.b16 %v8567
    %v8707 = vunpack.c.l.b16 %v8568
    %v8708 = vunpack.c.h.b16 %v8568
    %v8709 = vunpack.c.l.b16 %v8569
    %v8710 = vunpack.c.h.b16 %v8569
    %v8711 = vunpack.c.l.b16 %v8570
    %v8712 = vunpack.c.h.b16 %v8570
    %v8713 = vunpack.c.l.b16 %v8571
    %v8714 = vunpack.c.h.b16 %v8571
    %v8715 = vunpack.c.l.b16 %v8572
    %v8716 = vunpack.c.h.b16 %v8572
    %v8717 = vunpack.c.l.b16 %v8573
    %v8718 = vunpack.c.h.b16 %v8573
    %v8719 = vunpack.c.l.b16 %v8574
    %v8720 = vunpack.c.h.b16 %v8574
    %v8721 = vunpack.c.l.b16 %v8575
    %v8722 = vunpack.c.h.b16 %v8575
    %v8723 = vunpack.c.l.b16 %v8576
    %v8724 = vunpack.c.h.b16 %v8576
    %v8725 = vunpack.c.l.b16 %v8577
    %v8726 = vunpack.c.h.b16 %v8577
    %v8727 = vunpack.c.l.b16 %v8578
    %v8728 = vunpack.c.h.b16 %v8578
    %v8729 = vunpack.c.l.b16 %v8579
    %v8730 = vunpack.c.h.b16 %v8579
    %v8731 = vunpack.c.l.b16 %v8580
    %v8732 = vunpack.c.h.b16 %v8580
    %v8733 = vunpack.c.l.b16 %v8581
    %v8734 = vunpack.c.h.b16 %v8581
    %v8735 = vunpack.c.l.b16 %v8582
    %v8736 = vunpack.c.h.b16 %v8582
    %v8737 = vunpack.c.l.b16 %v8583
    %v8738 = vunpack.c.h.b16 %v8583
    %v8739 = vunpack.c.l.b16 %v8584
    %v8740 = vunpack.c.h.b16 %v8584
    %v8741 = vunpack.c.l.b16 %v8585
    %v8742 = vunpack.c.h.b16 %v8585
    %v8743 = vunpack.c.l.b16 %v8586
    %v8744 = vunpack.c.h.b16 %v8586
    %v8745 = vunpack.c.l.b16 %v8587
    %v8746 = vunpack.c.h.b16 %v8587
    %v8747 = vunpack.c.l.b16 %v8588
    %v8748 = vunpack.c.h.b16 %v8588
    %v8749 = vunpack.c.l.b16 %v8589
    %v8750 = vunpack.c.h.b16 %v8589
    %v8751 = vunpack.c.l.b16 %v8590
    %v8752 = vunpack.c.h.b16 %v8590
    %v8753 = vunpack.c.l.b16 %v8591
    %v8754 = vunpack.c.h.b16 %v8591
    %v8755 = vunpack.c.l.b16 %v8592
    %v8756 = vunpack.c.h.b16 %v8592
    %v8757 = vunpack.c.l.b16 %v8593
    %v8758 = vunpack.c.h.b16 %v8593
    %v8759 = vunpack.c.l.b16 %v8594
    %v8760 = vunpack.c.h.b16 %v8594
    %v8761 = vunpack.c.l.b16 %v8595
    %v8762 = vunpack.c.h.b16 %v8595
    %v8763 = vunpack.c.l.b16 %v8596
    %v8764 = vunpack.c.h.b16 %v8596
    %v8765 = vunpack.c.l.b16 %v8597
    %v8766 = vunpack.c.h.b16 %v8597
    %v8767 = vunpack.c.l.b16 %v8598
    %v8768 = vunpack.c.h.b16 %v8598
    %v8769 = vunpack.c.l.b16 %v8599
    %v8770 = vunpack.c.h.b16 %v8599
    %v8771 = vunpack.c.l.b16 %v8600
    %v8772 = vunpack.c.h.b16 %v8600
    %v8773 = vunpack.c.l.b16 %v8601
    %v8774 = vunpack.c.h.b16 %v8601
    %v8775 = vunpack.c.l.b16 %v8602
    %v8776 = vunpack.c.h.b16 %v8602
    %v8777 = vunpack.c.l.b16 %v8603
    %v8778 = vunpack.c.h.b16 %v8603
    %v8779 = vunpack.c.l.b16 %v8604
    %v8780 = vunpack.c.h.b16 %v8604
    %v8781 = vunpack.c.l.b16 %v8605
    %v8782 = vunpack.c.h.b16 %v8605
    %v8783 = vunpack.c.l.b16 %v8606
    %v8784 = vunpack.c.h.b16 %v8606
    %v8785 = vunpack.c.l.b16 %v8607
    %v8786 = vunpack.c.h.b16 %v8607
    %v8787 = vunpack.c.l.b16 %v8608
    %v8788 = vunpack.c.h.b16 %v8608
    %v8789 = vunpack.c.l.b16 %v8609
    %v8790 = vunpack.c.h.b16 %v8609
    %v8791 = vunpack.c.l.b16 %v8610
    %v8792 = vunpack.c.h.b16 %v8610
    %v8793 = vunpack.c.l.b16 %v8611
    %v8794 = vunpack.c.h.b16 %v8611
    %v8795 = vunpack.c.l.b16 %v8612
    %v8796 = vunpack.c.h.b16 %v8612
    %v8797 = vunpack.c.l.b16 %v8613
    %v8798 = vunpack.c.h.b16 %v8613
    %v8799 = vunpack.c.l.b16 %v8614
    %v8800 = vunpack.c.h.b16 %v8614
    %v8801 = vunpack.c.l.b16 %v8615
    %v8802 = vunpack.c.h.b16 %v8615
    %v8803 = vunpack.c.l.b16 %v8616
    %v8804 = vunpack.c.h.b16 %v8616
    %v8805 = vunpack.c.l.b16 %v8617
    %v8806 = vunpack.c.h.b16 %v8617
    %v8807 = vunpack.c.l.b16 %v8618
    %v8808 = vunpack.c.h.b16 %v8618
    %v8809 = vunpack.c.l.b16 %v8619
    %v8810 = vunpack.c.h.b16 %v8619
    %v8811 = vunpack.c.l.b16 %v8620
    %v8812 = vunpack.c.h.b16 %v8620
    %v8813 = vpack.c.b16 %v8689, %v8685
    %v8814 = vpack.c.b16 %v8690, %v8686
    %v8815 = vpack.c.b16 %v8691, %v8687
    %v8816 = vpack.c.b16 %v8692, %v8688
    %v8817 = vpack.c.b16 %v8697, %v8693
    %v8818 = vpack.c.b16 %v8698, %v8694
    %v8819 = vpack.c.b16 %v8699, %v8695
    %v8820 = vpack.c.b16 %v8700, %v8696
    %v8821 = vpack.c.b16 %v8705, %v8701
    %v8822 = vpack.c.b16 %v8706, %v8702
    %v8823 = vpack.c.b16 %v8707, %v8703
    %v8824 = vpack.c.b16 %v8708, %v8704
    %v8825 = vpack.c.b16 %v8713, %v8709
    %v8826 = vpack.c.b16 %v8714, %v8710
    %v8827 = vpack.c.b16 %v8715, %v8711
    %v8828 = vpack.c.b16 %v8716, %v8712
    %v8829 = vpack.c.b16 %v8721, %v8717
    %v8830 = vpack.c.b16 %v8722, %v8718
    %v8831 = vpack.c.b16 %v8723, %v8719
    %v8832 = vpack.c.b16 %v8724, %v8720
    %v8833 = vpack.c.b16 %v8729, %v8725
    %v8834 = vpack.c.b16 %v8730, %v8726
    %v8835 = vpack.c.b16 %v8731, %v8727
    %v8836 = vpack.c.b16 %v8732, %v8728
    %v8837 = vpack.c.b16 %v8737, %v8733
    %v8838 = vpack.c.b16 %v8738, %v8734
    %v8839 = vpack.c.b16 %v8739, %v8735
    %v8840 = vpack.c.b16 %v8740, %v8736
    %v8841 = vpack.c.b16 %v8745, %v8741
    %v8842 = vpack.c.b16 %v8746, %v8742
    %v8843 = vpack.c.b16 %v8747, %v8743
    %v8844 = vpack.c.b16 %v8748, %v8744
    %v8845 = vpack.c.b16 %v8753, %v8749
    %v8846 = vpack.c.b16 %v8754, %v8750
    %v8847 = vpack.c.b16 %v8755, %v8751
    %v8848 = vpack.c.b16 %v8756, %v8752
    %v8849 = vpack.c.b16 %v8761, %v8757
    %v8850 = vpack.c.b16 %v8762, %v8758
    %v8851 = vpack.c.b16 %v8763, %v8759
    %v8852 = vpack.c.b16 %v8764, %v8760
    %v8853 = vpack.c.b16 %v8769, %v8765
    %v8854 = vpack.c.b16 %v8770, %v8766
    %v8855 = vpack.c.b16 %v8771, %v8767
    %v8856 = vpack.c.b16 %v8772, %v8768
    %v8857 = vpack.c.b16 %v8777, %v8773
    %v8858 = vpack.c.b16 %v8778, %v8774
    %v8859 = vpack.c.b16 %v8779, %v8775
    %v8860 = vpack.c.b16 %v8780, %v8776
    %v8861 = vpack.c.b16 %v8785, %v8781
    %v8862 = vpack.c.b16 %v8786, %v8782
    %v8863 = vpack.c.b16 %v8787, %v8783
    %v8864 = vpack.c.b16 %v8788, %v8784
    %v8865 = vpack.c.b16 %v8793, %v8789
    %v8866 = vpack.c.b16 %v8794, %v8790
    %v8867 = vpack.c.b16 %v8795, %v8791
    %v8868 = vpack.c.b16 %v8796, %v8792
    %v8869 = vpack.c.b16 %v8801, %v8797
    %v8870 = vpack.c.b16 %v8802, %v8798
    %v8871 = vpack.c.b16 %v8803, %v8799
    %v8872 = vpack.c.b16 %v8804, %v8800
    %v8873 = vpack.c.b16 %v8809, %v8805
    %v8874 = vpack.c.b16 %v8810, %v8806
    %v8875 = vpack.c.b16 %v8811, %v8807
    %v8876 = vpack.c.b16 %v8812, %v8808
    %8941 = vmatprep.subr.bf16.mxu0 %v8842
    %8942 = vmatpush1.bf16.msra.mxu0 %v8841
    %8943 = vmatprep.subr.bf16.mxu0 %v8838
    %8944 = vmatpush1.bf16.msra.mxu0 %v8837
    %8945 = vmatprep.subr.bf16.mxu0 %v8834
    %8946 = vmatpush1.bf16.msra.mxu0 %v8833
    %8947 = vmatprep.subr.bf16.mxu0 %v8830
    %8948 = vmatpush1.bf16.msra.mxu0 %v8829
    %8949 = vmatprep.subr.bf16.mxu0 %v8826
    %8950 = vmatpush1.bf16.msra.mxu0 %v8825
    %8951 = vmatprep.subr.bf16.mxu0 %v8822
    %8952 = vmatpush1.bf16.msra.mxu0 %v8821
    %8953 = vmatprep.subr.bf16.mxu0 %v8818
    %8954 = vmatpush1.bf16.msra.mxu0 %v8817
    %8955 = vmatprep.subr.bf16.mxu0 %v8814
    %8956 = vmatpush1.bf16.msra.mxu0 %v8813
    %8957 = vmatprep.subr.bf16.mxu0 %v8874
    %8958 = vmatpush2.bf16.msra.mxu0 %v8873
    %8959 = vmatprep.subr.bf16.mxu0 %v8870
    %8960 = vmatpush2.bf16.msra.mxu0 %v8869
    %8961 = vmatprep.subr.bf16.mxu0 %v8866
    %8962 = vmatpush2.bf16.msra.mxu0 %v8865
    %8963 = vmatprep.subr.bf16.mxu0 %v8862
    %8964 = vmatpush2.bf16.msra.mxu0 %v8861
    %8965 = vmatprep.subr.bf16.mxu0 %v8858
    %8966 = vmatpush2.bf16.msra.mxu0 %v8857
    %8967 = vmatprep.subr.bf16.mxu0 %v8854
    %8968 = vmatpush2.bf16.msra.mxu0 %v8853
    %8969 = vmatprep.subr.bf16.mxu0 %v8850
    %8970 = vmatpush2.bf16.msra.mxu0 %v8849
    %8971 = vmatprep.subr.bf16.mxu0 %v8846
    %8972 = vmatpush2.bf16.msra.mxu0 %v8845
    %8973 = vmatprep.mubr.bf16.mxu0 %v8555
    %8974 = vmatmul.mubr.bf16.gmra.mxu0 %v8554
    %v8975 = vpop.f32.mrf.mxu0
    %v8976 = vadd.f32 0.0, %v8975
    %v8977 = vpop.f32.mrf.mxu0
    %v8978 = vadd.f32 0.0, %v8977
    %v8979 = vpop.f32.mrf.mxu0
    %v8980 = vpop.f32.mrf.mxu0
    %8981 = vdwg.mxu0
    %8982 = vmatprep.subr.bf16.mxu0 %v8844
    %8983 = vmatpush1.bf16.msra.mxu0 %v8843
    %8984 = vmatprep.subr.bf16.mxu0 %v8840
    %8985 = vmatpush1.bf16.msra.mxu0 %v8839
    %8986 = vmatprep.subr.bf16.mxu0 %v8836
    %8987 = vmatpush1.bf16.msra.mxu0 %v8835
    %8988 = vmatprep.subr.bf16.mxu0 %v8832
    %8989 = vmatpush1.bf16.msra.mxu0 %v8831
    %8990 = vmatprep.subr.bf16.mxu0 %v8828
    %8991 = vmatpush1.bf16.msra.mxu0 %v8827
    %8992 = vmatprep.subr.bf16.mxu0 %v8824
    %8993 = vmatpush1.bf16.msra.mxu0 %v8823
    %8994 = vmatprep.subr.bf16.mxu0 %v8820
    %8995 = vmatpush1.bf16.msra.mxu0 %v8819
    %8996 = vmatprep.subr.bf16.mxu0 %v8816
    %8997 = vmatpush1.bf16.msra.mxu0 %v8815
    %8998 = vmatprep.subr.bf16.mxu0 %v8876
    %8999 = vmatpush2.bf16.msra.mxu0 %v8875
    %9000 = vmatprep.subr.bf16.mxu0 %v8872
    %9001 = vmatpush2.bf16.msra.mxu0 %v8871
    %9002 = vmatprep.subr.bf16.mxu0 %v8868
    %9003 = vmatpush2.bf16.msra.mxu0 %v8867
    %9004 = vmatprep.subr.bf16.mxu0 %v8864
    %9005 = vmatpush2.bf16.msra.mxu0 %v8863
    %9006 = vmatprep.subr.bf16.mxu0 %v8860
    %9007 = vmatpush2.bf16.msra.mxu0 %v8859
    %9008 = vmatprep.subr.bf16.mxu0 %v8856
    %9009 = vmatpush2.bf16.msra.mxu0 %v8855
    %9010 = vmatprep.subr.bf16.mxu0 %v8852
    %9011 = vmatpush2.bf16.msra.mxu0 %v8851
    %9012 = vmatprep.subr.bf16.mxu0 %v8848
    %9013 = vmatpush2.bf16.msra.mxu0 %v8847
    %9014 = vmatprep.mubr.bf16.mxu0 %v8555
    %9015 = vmatmul.mubr.bf16.gmra.mxu0 %v8554
    %v9016 = vpop.f32.mrf.mxu0
    %v9017 = vadd.f32 0.0, %v9016
    %v9018 = vpop.f32.mrf.mxu0
    %v9019 = vadd.f32 0.0, %v9018
    %v9020 = vpop.f32.mrf.mxu0
    %v9021 = vpop.f32.mrf.mxu0
    %9022 = vdwg.mxu0
    %v9087 = vunpack.c.l.b16 %v8480
    %v9088 = vunpack.c.h.b16 %v8480
    %v9089 = vunpack.c.l.b16 %v8481
    %v9090 = vunpack.c.h.b16 %v8481
    %v9091 = vunpack.c.l.b16 %v8482
    %v9092 = vunpack.c.h.b16 %v8482
    %v9093 = vunpack.c.l.b16 %v8483
    %v9094 = vunpack.c.h.b16 %v8483
    %v9095 = vunpack.c.l.b16 %v8484
    %v9096 = vunpack.c.h.b16 %v8484
    %v9097 = vunpack.c.l.b16 %v8485
    %v9098 = vunpack.c.h.b16 %v8485
    %v9099 = vunpack.c.l.b16 %v8486
    %v9100 = vunpack.c.h.b16 %v8486
    %v9101 = vunpack.c.l.b16 %v8487
    %v9102 = vunpack.c.h.b16 %v8487
    %v9103 = vunpack.c.l.b16 %v8488
    %v9104 = vunpack.c.h.b16 %v8488
    %v9105 = vunpack.c.l.b16 %v8489
    %v9106 = vunpack.c.h.b16 %v8489
    %v9107 = vunpack.c.l.b16 %v8490
    %v9108 = vunpack.c.h.b16 %v8490
    %v9109 = vunpack.c.l.b16 %v8491
    %v9110 = vunpack.c.h.b16 %v8491
    %v9111 = vunpack.c.l.b16 %v8492
    %v9112 = vunpack.c.h.b16 %v8492
    %v9113 = vunpack.c.l.b16 %v8493
    %v9114 = vunpack.c.h.b16 %v8493
    %v9115 = vunpack.c.l.b16 %v8494
    %v9116 = vunpack.c.h.b16 %v8494
    %v9117 = vunpack.c.l.b16 %v8495
    %v9118 = vunpack.c.h.b16 %v8495
    %v9119 = vunpack.c.l.b16 %v8496
    %v9120 = vunpack.c.h.b16 %v8496
    %v9121 = vunpack.c.l.b16 %v8497
    %v9122 = vunpack.c.h.b16 %v8497
    %v9123 = vunpack.c.l.b16 %v8498
    %v9124 = vunpack.c.h.b16 %v8498
    %v9125 = vunpack.c.l.b16 %v8499
    %v9126 = vunpack.c.h.b16 %v8499
    %v9127 = vunpack.c.l.b16 %v8500
    %v9128 = vunpack.c.h.b16 %v8500
    %v9129 = vunpack.c.l.b16 %v8501
    %v9130 = vunpack.c.h.b16 %v8501
    %v9131 = vunpack.c.l.b16 %v8502
    %v9132 = vunpack.c.h.b16 %v8502
    %v9133 = vunpack.c.l.b16 %v8503
    %v9134 = vunpack.c.h.b16 %v8503
    %v9135 = vunpack.c.l.b16 %v8504
    %v9136 = vunpack.c.h.b16 %v8504
    %v9137 = vunpack.c.l.b16 %v8505
    %v9138 = vunpack.c.h.b16 %v8505
    %v9139 = vunpack.c.l.b16 %v8506
    %v9140 = vunpack.c.h.b16 %v8506
    %v9141 = vunpack.c.l.b16 %v8507
    %v9142 = vunpack.c.h.b16 %v8507
    %v9143 = vunpack.c.l.b16 %v8508
    %v9144 = vunpack.c.h.b16 %v8508
    %v9145 = vunpack.c.l.b16 %v8509
    %v9146 = vunpack.c.h.b16 %v8509
    %v9147 = vunpack.c.l.b16 %v8510
    %v9148 = vunpack.c.h.b16 %v8510
    %v9149 = vunpack.c.l.b16 %v8511
    %v9150 = vunpack.c.h.b16 %v8511
    %v9151 = vunpack.c.l.b16 %v8512
    %v9152 = vunpack.c.h.b16 %v8512
    %v9153 = vunpack.c.l.b16 %v8513
    %v9154 = vunpack.c.h.b16 %v8513
    %v9155 = vunpack.c.l.b16 %v8514
    %v9156 = vunpack.c.h.b16 %v8514
    %v9157 = vunpack.c.l.b16 %v8515
    %v9158 = vunpack.c.h.b16 %v8515
    %v9159 = vunpack.c.l.b16 %v8516
    %v9160 = vunpack.c.h.b16 %v8516
    %v9161 = vunpack.c.l.b16 %v8517
    %v9162 = vunpack.c.h.b16 %v8517
    %v9163 = vunpack.c.l.b16 %v8518
    %v9164 = vunpack.c.h.b16 %v8518
    %v9165 = vunpack.c.l.b16 %v8519
    %v9166 = vunpack.c.h.b16 %v8519
    %v9167 = vunpack.c.l.b16 %v8520
    %v9168 = vunpack.c.h.b16 %v8520
    %v9169 = vunpack.c.l.b16 %v8521
    %v9170 = vunpack.c.h.b16 %v8521
    %v9171 = vunpack.c.l.b16 %v8522
    %v9172 = vunpack.c.h.b16 %v8522
    %v9173 = vunpack.c.l.b16 %v8523
    %v9174 = vunpack.c.h.b16 %v8523
    %v9175 = vunpack.c.l.b16 %v8524
    %v9176 = vunpack.c.h.b16 %v8524
    %v9177 = vunpack.c.l.b16 %v8525
    %v9178 = vunpack.c.h.b16 %v8525
    %v9179 = vunpack.c.l.b16 %v8526
    %v9180 = vunpack.c.h.b16 %v8526
    %v9181 = vunpack.c.l.b16 %v8527
    %v9182 = vunpack.c.h.b16 %v8527
    %v9183 = vunpack.c.l.b16 %v8528
    %v9184 = vunpack.c.h.b16 %v8528
    %v9185 = vunpack.c.l.b16 %v8529
    %v9186 = vunpack.c.h.b16 %v8529
    %v9187 = vunpack.c.l.b16 %v8530
    %v9188 = vunpack.c.h.b16 %v8530
    %v9189 = vunpack.c.l.b16 %v8531
    %v9190 = vunpack.c.h.b16 %v8531
    %v9191 = vunpack.c.l.b16 %v8532
    %v9192 = vunpack.c.h.b16 %v8532
    %v9193 = vunpack.c.l.b16 %v8533
    %v9194 = vunpack.c.h.b16 %v8533
    %v9195 = vunpack.c.l.b16 %v8534
    %v9196 = vunpack.c.h.b16 %v8534
    %v9197 = vunpack.c.l.b16 %v8535
    %v9198 = vunpack.c.h.b16 %v8535
    %v9199 = vunpack.c.l.b16 %v8536
    %v9200 = vunpack.c.h.b16 %v8536
    %v9201 = vunpack.c.l.b16 %v8537
    %v9202 = vunpack.c.h.b16 %v8537
    %v9203 = vunpack.c.l.b16 %v8538
    %v9204 = vunpack.c.h.b16 %v8538
    %v9205 = vunpack.c.l.b16 %v8539
    %v9206 = vunpack.c.h.b16 %v8539
    %v9207 = vunpack.c.l.b16 %v8540
    %v9208 = vunpack.c.h.b16 %v8540
    %v9209 = vunpack.c.l.b16 %v8541
    %v9210 = vunpack.c.h.b16 %v8541
    %v9211 = vunpack.c.l.b16 %v8542
    %v9212 = vunpack.c.h.b16 %v8542
    %v9213 = vunpack.c.l.b16 %v8543
    %v9214 = vunpack.c.h.b16 %v8543
    %v9215 = vpack.c.b16 %v9091, %v9087
    %v9216 = vpack.c.b16 %v9092, %v9088
    %v9217 = vpack.c.b16 %v9093, %v9089
    %v9218 = vpack.c.b16 %v9094, %v9090
    %v9219 = vpack.c.b16 %v9099, %v9095
    %v9220 = vpack.c.b16 %v9100, %v9096
    %v9221 = vpack.c.b16 %v9101, %v9097
    %v9222 = vpack.c.b16 %v9102, %v9098
    %v9223 = vpack.c.b16 %v9107, %v9103
    %v9224 = vpack.c.b16 %v9108, %v9104
    %v9225 = vpack.c.b16 %v9109, %v9105
    %v9226 = vpack.c.b16 %v9110, %v9106
    %v9227 = vpack.c.b16 %v9115, %v9111
    %v9228 = vpack.c.b16 %v9116, %v9112
    %v9229 = vpack.c.b16 %v9117, %v9113
    %v9230 = vpack.c.b16 %v9118, %v9114
    %v9231 = vpack.c.b16 %v9123, %v9119
    %v9232 = vpack.c.b16 %v9124, %v9120
    %v9233 = vpack.c.b16 %v9125, %v9121
    %v9234 = vpack.c.b16 %v9126, %v9122
    %v9235 = vpack.c.b16 %v9131, %v9127
    %v9236 = vpack.c.b16 %v9132, %v9128
    %v9237 = vpack.c.b16 %v9133, %v9129
    %v9238 = vpack.c.b16 %v9134, %v9130
    %v9239 = vpack.c.b16 %v9139, %v9135
    %v9240 = vpack.c.b16 %v9140, %v9136
    %v9241 = vpack.c.b16 %v9141, %v9137
    %v9242 = vpack.c.b16 %v9142, %v9138
    %v9243 = vpack.c.b16 %v9147, %v9143
    %v9244 = vpack.c.b16 %v9148, %v9144
    %v9245 = vpack.c.b16 %v9149, %v9145
    %v9246 = vpack.c.b16 %v9150, %v9146
    %v9247 = vpack.c.b16 %v9155, %v9151
    %v9248 = vpack.c.b16 %v9156, %v9152
    %v9249 = vpack.c.b16 %v9157, %v9153
    %v9250 = vpack.c.b16 %v9158, %v9154
    %v9251 = vpack.c.b16 %v9163, %v9159
    %v9252 = vpack.c.b16 %v9164, %v9160
    %v9253 = vpack.c.b16 %v9165, %v9161
    %v9254 = vpack.c.b16 %v9166, %v9162
    %v9255 = vpack.c.b16 %v9171, %v9167
    %v9256 = vpack.c.b16 %v9172, %v9168
    %v9257 = vpack.c.b16 %v9173, %v9169
    %v9258 = vpack.c.b16 %v9174, %v9170
    %v9259 = vpack.c.b16 %v9179, %v9175
    %v9260 = vpack.c.b16 %v9180, %v9176
    %v9261 = vpack.c.b16 %v9181, %v9177
    %v9262 = vpack.c.b16 %v9182, %v9178
    %v9263 = vpack.c.b16 %v9187, %v9183
    %v9264 = vpack.c.b16 %v9188, %v9184
    %v9265 = vpack.c.b16 %v9189, %v9185
    %v9266 = vpack.c.b16 %v9190, %v9186
    %v9267 = vpack.c.b16 %v9195, %v9191
    %v9268 = vpack.c.b16 %v9196, %v9192
    %v9269 = vpack.c.b16 %v9197, %v9193
    %v9270 = vpack.c.b16 %v9198, %v9194
    %v9271 = vpack.c.b16 %v9203, %v9199
    %v9272 = vpack.c.b16 %v9204, %v9200
    %v9273 = vpack.c.b16 %v9205, %v9201
    %v9274 = vpack.c.b16 %v9206, %v9202
    %v9275 = vpack.c.b16 %v9211, %v9207
    %v9276 = vpack.c.b16 %v9212, %v9208
    %v9277 = vpack.c.b16 %v9213, %v9209
    %v9278 = vpack.c.b16 %v9214, %v9210
    %9343 = vmatprep.subr.bf16.mxu0 %v9244
    %9344 = vmatpush1.bf16.msra.mxu0 %v9243
    %9345 = vmatprep.subr.bf16.mxu0 %v9240
    %9346 = vmatpush1.bf16.msra.mxu0 %v9239
    %9347 = vmatprep.subr.bf16.mxu0 %v9236
    %9348 = vmatpush1.bf16.msra.mxu0 %v9235
    %9349 = vmatprep.subr.bf16.mxu0 %v9232
    %9350 = vmatpush1.bf16.msra.mxu0 %v9231
    %9351 = vmatprep.subr.bf16.mxu0 %v9228
    %9352 = vmatpush1.bf16.msra.mxu0 %v9227
    %9353 = vmatprep.subr.bf16.mxu0 %v9224
    %9354 = vmatpush1.bf16.msra.mxu0 %v9223
    %9355 = vmatprep.subr.bf16.mxu0 %v9220
    %9356 = vmatpush1.bf16.msra.mxu0 %v9219
    %9357 = vmatprep.subr.bf16.mxu0 %v9216
    %9358 = vmatpush1.bf16.msra.mxu0 %v9215
    %9359 = vmatprep.subr.bf16.mxu0 %v9276
    %9360 = vmatpush2.bf16.msra.mxu0 %v9275
    %9361 = vmatprep.subr.bf16.mxu0 %v9272
    %9362 = vmatpush2.bf16.msra.mxu0 %v9271
    %9363 = vmatprep.subr.bf16.mxu0 %v9268
    %9364 = vmatpush2.bf16.msra.mxu0 %v9267
    %9365 = vmatprep.subr.bf16.mxu0 %v9264
    %9366 = vmatpush2.bf16.msra.mxu0 %v9263
    %9367 = vmatprep.subr.bf16.mxu0 %v9260
    %9368 = vmatpush2.bf16.msra.mxu0 %v9259
    %9369 = vmatprep.subr.bf16.mxu0 %v9256
    %9370 = vmatpush2.bf16.msra.mxu0 %v9255
    %9371 = vmatprep.subr.bf16.mxu0 %v9252
    %9372 = vmatpush2.bf16.msra.mxu0 %v9251
    %9373 = vmatprep.subr.bf16.mxu0 %v9248
    %9374 = vmatpush2.bf16.msra.mxu0 %v9247
    %9375 = vmatprep.mubr.bf16.mxu0 %v8479
    %9376 = vmatmul.mubr.bf16.gmra.mxu0 %v8478
    %v9377 = vpop.f32.mrf.mxu0
    %v9378 = vadd.f32 %v8976, %v9377
    %v9379 = vpop.f32.mrf.mxu0
    %v9380 = vadd.f32 %v8978, %v9379
    %v9381 = vpop.f32.mrf.mxu0
    %v9382 = vpop.f32.mrf.mxu0
    %9383 = vdwg.mxu0
    %9384 = vmatprep.subr.bf16.mxu0 %v9246
    %9385 = vmatpush1.bf16.msra.mxu0 %v9245
    %9386 = vmatprep.subr.bf16.mxu0 %v9242
    %9387 = vmatpush1.bf16.msra.mxu0 %v9241
    %9388 = vmatprep.subr.bf16.mxu0 %v9238
    %9389 = vmatpush1.bf16.msra.mxu0 %v9237
    %9390 = vmatprep.subr.bf16.mxu0 %v9234
    %9391 = vmatpush1.bf16.msra.mxu0 %v9233
    %9392 = vmatprep.subr.bf16.mxu0 %v9230
    %9393 = vmatpush1.bf16.msra.mxu0 %v9229
    %9394 = vmatprep.subr.bf16.mxu0 %v9226
    %9395 = vmatpush1.bf16.msra.mxu0 %v9225
    %9396 = vmatprep.subr.bf16.mxu0 %v9222
    %9397 = vmatpush1.bf16.msra.mxu0 %v9221
    %9398 = vmatprep.subr.bf16.mxu0 %v9218
    %9399 = vmatpush1.bf16.msra.mxu0 %v9217
    %9400 = vmatprep.subr.bf16.mxu0 %v9278
    %9401 = vmatpush2.bf16.msra.mxu0 %v9277
    %9402 = vmatprep.subr.bf16.mxu0 %v9274
    %9403 = vmatpush2.bf16.msra.mxu0 %v9273
    %9404 = vmatprep.subr.bf16.mxu0 %v9270
    %9405 = vmatpush2.bf16.msra.mxu0 %v9269
    %9406 = vmatprep.subr.bf16.mxu0 %v9266
    %9407 = vmatpush2.bf16.msra.mxu0 %v9265
    %9408 = vmatprep.subr.bf16.mxu0 %v9262
    %9409 = vmatpush2.bf16.msra.mxu0 %v9261
    %9410 = vmatprep.subr.bf16.mxu0 %v9258
    %9411 = vmatpush2.bf16.msra.mxu0 %v9257
    %9412 = vmatprep.subr.bf16.mxu0 %v9254
    %9413 = vmatpush2.bf16.msra.mxu0 %v9253
    %9414 = vmatprep.subr.bf16.mxu0 %v9250
    %9415 = vmatpush2.bf16.msra.mxu0 %v9249
    %9416 = vmatprep.mubr.bf16.mxu0 %v8479
    %9417 = vmatmul.mubr.bf16.gmra.mxu0 %v8478
    %v9418 = vpop.f32.mrf.mxu0
    %v9419 = vadd.f32 %v9017, %v9418
    %v9420 = vpop.f32.mrf.mxu0
    %v9421 = vadd.f32 %v9019, %v9420
    %v9422 = vpop.f32.mrf.mxu0
    %v9423 = vpop.f32.mrf.mxu0
    %9424 = vdwg.mxu0
    %v9425 = vmax.f32 %v8440, %v8444
    %v9426 = vmax.f32 %v8441, %v8445
    %v9427 = vmax.f32 %v8442, %v8446
    %v9428 = vmax.f32 %v8443, %v8447
    %v9429 = vmax.f32 %v9425, %v9427
    %v9430 = vmax.f32 %v9426, %v9428
    %v9431 = vadd.f32 %v9429, %v8467
    %v9432 = vadd.f32 %v9430, %v8471
    %v9433 = vmax.f32 %v9431, 0.0
    %v9434 = vmax.f32 %v9432, 0.0
    %v9435 = vpack.c.bf16 %v9433, %v9433
    %v9436 = vpack.c.bf16 %v9434, %v9434
    %s9437 = scalar_lea.vmem [#allocation10], 1024
    %v9438 = vld [vmem:[%s9437] sm:$0xff]
    %v9439 = vld [vmem:[%s9437 + $0x8] sm:$0xff]
    %v9440 = vld [vmem:[%s9437 + $0x10] sm:$0xff]
    %v9441 = vld [vmem:[%s9437 + $0x18] sm:$0xff]
    %v9442 = vld [vmem:[%s9437 + $0x20] sm:$0xff]
    %v9443 = vld [vmem:[%s9437 + $0x28] sm:$0xff]
    %v9444 = vld [vmem:[%s9437 + $0x30] sm:$0xff]
    %v9445 = vld [vmem:[%s9437 + $0x38] sm:$0xff]
    %v9446 = vld [vmem:[%s9437 + $0x40] sm:$0xff]
    %v9447 = vld [vmem:[%s9437 + $0x48] sm:$0xff]
    %v9448 = vld [vmem:[%s9437 + $0x50] sm:$0xff]
    %v9449 = vld [vmem:[%s9437 + $0x58] sm:$0xff]
    %v9450 = vld [vmem:[%s9437 + $0x60] sm:$0xff]
    %v9451 = vld [vmem:[%s9437 + $0x68] sm:$0xff]
    %v9452 = vld [vmem:[%s9437 + $0x70] sm:$0xff]
    %v9453 = vld [vmem:[%s9437 + $0x78] sm:$0xff]
    %v9454 = vld [vmem:[%s9437 + $0x80] sm:$0xff]
    %v9455 = vld [vmem:[%s9437 + $0x88] sm:$0xff]
    %v9456 = vld [vmem:[%s9437 + $0x90] sm:$0xff]
    %v9457 = vld [vmem:[%s9437 + $0x98] sm:$0xff]
    %v9458 = vld [vmem:[%s9437 + $0xa0] sm:$0xff]
    %v9459 = vld [vmem:[%s9437 + $0xa8] sm:$0xff]
    %v9460 = vld [vmem:[%s9437 + $0xb0] sm:$0xff]
    %v9461 = vld [vmem:[%s9437 + $0xb8] sm:$0xff]
    %v9462 = vld [vmem:[%s9437 + $0xc0] sm:$0xff]
    %v9463 = vld [vmem:[%s9437 + $0xc8] sm:$0xff]
    %v9464 = vld [vmem:[%s9437 + $0xd0] sm:$0xff]
    %v9465 = vld [vmem:[%s9437 + $0xd8] sm:$0xff]
    %v9466 = vld [vmem:[%s9437 + $0xe0] sm:$0xff]
    %v9467 = vld [vmem:[%s9437 + $0xe8] sm:$0xff]
    %v9468 = vld [vmem:[%s9437 + $0xf0] sm:$0xff]
    %v9469 = vld [vmem:[%s9437 + $0xf8] sm:$0xff]
    %v9470 = vld [vmem:[%s9437 + $0x100] sm:$0xff]
    %v9471 = vld [vmem:[%s9437 + $0x108] sm:$0xff]
    %v9472 = vld [vmem:[%s9437 + $0x110] sm:$0xff]
    %v9473 = vld [vmem:[%s9437 + $0x118] sm:$0xff]
    %v9474 = vld [vmem:[%s9437 + $0x120] sm:$0xff]
    %v9475 = vld [vmem:[%s9437 + $0x128] sm:$0xff]
    %v9476 = vld [vmem:[%s9437 + $0x130] sm:$0xff]
    %v9477 = vld [vmem:[%s9437 + $0x138] sm:$0xff]
    %v9478 = vld [vmem:[%s9437 + $0x140] sm:$0xff]
    %v9479 = vld [vmem:[%s9437 + $0x148] sm:$0xff]
    %v9480 = vld [vmem:[%s9437 + $0x150] sm:$0xff]
    %v9481 = vld [vmem:[%s9437 + $0x158] sm:$0xff]
    %v9482 = vld [vmem:[%s9437 + $0x160] sm:$0xff]
    %v9483 = vld [vmem:[%s9437 + $0x168] sm:$0xff]
    %v9484 = vld [vmem:[%s9437 + $0x170] sm:$0xff]
    %v9485 = vld [vmem:[%s9437 + $0x178] sm:$0xff]
    %v9486 = vld [vmem:[%s9437 + $0x180] sm:$0xff]
    %v9487 = vld [vmem:[%s9437 + $0x188] sm:$0xff]
    %v9488 = vld [vmem:[%s9437 + $0x190] sm:$0xff]
    %v9489 = vld [vmem:[%s9437 + $0x198] sm:$0xff]
    %v9490 = vld [vmem:[%s9437 + $0x1a0] sm:$0xff]
    %v9491 = vld [vmem:[%s9437 + $0x1a8] sm:$0xff]
    %v9492 = vld [vmem:[%s9437 + $0x1b0] sm:$0xff]
    %v9493 = vld [vmem:[%s9437 + $0x1b8] sm:$0xff]
    %v9494 = vld [vmem:[%s9437 + $0x1c0] sm:$0xff]
    %v9495 = vld [vmem:[%s9437 + $0x1c8] sm:$0xff]
    %v9496 = vld [vmem:[%s9437 + $0x1d0] sm:$0xff]
    %v9497 = vld [vmem:[%s9437 + $0x1d8] sm:$0xff]
    %v9498 = vld [vmem:[%s9437 + $0x1e0] sm:$0xff]
    %v9499 = vld [vmem:[%s9437 + $0x1e8] sm:$0xff]
    %v9500 = vld [vmem:[%s9437 + $0x1f0] sm:$0xff]
    %v9501 = vld [vmem:[%s9437 + $0x1f8] sm:$0xff]
    %v9566 = vunpack.c.l.b16 %v9438
    %v9567 = vunpack.c.h.b16 %v9438
    %v9568 = vunpack.c.l.b16 %v9439
    %v9569 = vunpack.c.h.b16 %v9439
    %v9570 = vunpack.c.l.b16 %v9440
    %v9571 = vunpack.c.h.b16 %v9440
    %v9572 = vunpack.c.l.b16 %v9441
    %v9573 = vunpack.c.h.b16 %v9441
    %v9574 = vunpack.c.l.b16 %v9442
    %v9575 = vunpack.c.h.b16 %v9442
    %v9576 = vunpack.c.l.b16 %v9443
    %v9577 = vunpack.c.h.b16 %v9443
    %v9578 = vunpack.c.l.b16 %v9444
    %v9579 = vunpack.c.h.b16 %v9444
    %v9580 = vunpack.c.l.b16 %v9445
    %v9581 = vunpack.c.h.b16 %v9445
    %v9582 = vunpack.c.l.b16 %v9446
    %v9583 = vunpack.c.h.b16 %v9446
    %v9584 = vunpack.c.l.b16 %v9447
    %v9585 = vunpack.c.h.b16 %v9447
    %v9586 = vunpack.c.l.b16 %v9448
    %v9587 = vunpack.c.h.b16 %v9448
    %v9588 = vunpack.c.l.b16 %v9449
    %v9589 = vunpack.c.h.b16 %v9449
    %v9590 = vunpack.c.l.b16 %v9450
    %v9591 = vunpack.c.h.b16 %v9450
    %v9592 = vunpack.c.l.b16 %v9451
    %v9593 = vunpack.c.h.b16 %v9451
    %v9594 = vunpack.c.l.b16 %v9452
    %v9595 = vunpack.c.h.b16 %v9452
    %v9596 = vunpack.c.l.b16 %v9453
    %v9597 = vunpack.c.h.b16 %v9453
    %v9598 = vunpack.c.l.b16 %v9454
    %v9599 = vunpack.c.h.b16 %v9454
    %v9600 = vunpack.c.l.b16 %v9455
    %v9601 = vunpack.c.h.b16 %v9455
    %v9602 = vunpack.c.l.b16 %v9456
    %v9603 = vunpack.c.h.b16 %v9456
    %v9604 = vunpack.c.l.b16 %v9457
    %v9605 = vunpack.c.h.b16 %v9457
    %v9606 = vunpack.c.l.b16 %v9458
    %v9607 = vunpack.c.h.b16 %v9458
    %v9608 = vunpack.c.l.b16 %v9459
    %v9609 = vunpack.c.h.b16 %v9459
    %v9610 = vunpack.c.l.b16 %v9460
    %v9611 = vunpack.c.h.b16 %v9460
    %v9612 = vunpack.c.l.b16 %v9461
    %v9613 = vunpack.c.h.b16 %v9461
    %v9614 = vunpack.c.l.b16 %v9462
    %v9615 = vunpack.c.h.b16 %v9462
    %v9616 = vunpack.c.l.b16 %v9463
    %v9617 = vunpack.c.h.b16 %v9463
    %v9618 = vunpack.c.l.b16 %v9464
    %v9619 = vunpack.c.h.b16 %v9464
    %v9620 = vunpack.c.l.b16 %v9465
    %v9621 = vunpack.c.h.b16 %v9465
    %v9622 = vunpack.c.l.b16 %v9466
    %v9623 = vunpack.c.h.b16 %v9466
    %v9624 = vunpack.c.l.b16 %v9467
    %v9625 = vunpack.c.h.b16 %v9467
    %v9626 = vunpack.c.l.b16 %v9468
    %v9627 = vunpack.c.h.b16 %v9468
    %v9628 = vunpack.c.l.b16 %v9469
    %v9629 = vunpack.c.h.b16 %v9469
    %v9630 = vunpack.c.l.b16 %v9470
    %v9631 = vunpack.c.h.b16 %v9470
    %v9632 = vunpack.c.l.b16 %v9471
    %v9633 = vunpack.c.h.b16 %v9471
    %v9634 = vunpack.c.l.b16 %v9472
    %v9635 = vunpack.c.h.b16 %v9472
    %v9636 = vunpack.c.l.b16 %v9473
    %v9637 = vunpack.c.h.b16 %v9473
    %v9638 = vunpack.c.l.b16 %v9474
    %v9639 = vunpack.c.h.b16 %v9474
    %v9640 = vunpack.c.l.b16 %v9475
    %v9641 = vunpack.c.h.b16 %v9475
    %v9642 = vunpack.c.l.b16 %v9476
    %v9643 = vunpack.c.h.b16 %v9476
    %v9644 = vunpack.c.l.b16 %v9477
    %v9645 = vunpack.c.h.b16 %v9477
    %v9646 = vunpack.c.l.b16 %v9478
    %v9647 = vunpack.c.h.b16 %v9478
    %v9648 = vunpack.c.l.b16 %v9479
    %v9649 = vunpack.c.h.b16 %v9479
    %v9650 = vunpack.c.l.b16 %v9480
    %v9651 = vunpack.c.h.b16 %v9480
    %v9652 = vunpack.c.l.b16 %v9481
    %v9653 = vunpack.c.h.b16 %v9481
    %v9654 = vunpack.c.l.b16 %v9482
    %v9655 = vunpack.c.h.b16 %v9482
    %v9656 = vunpack.c.l.b16 %v9483
    %v9657 = vunpack.c.h.b16 %v9483
    %v9658 = vunpack.c.l.b16 %v9484
    %v9659 = vunpack.c.h.b16 %v9484
    %v9660 = vunpack.c.l.b16 %v9485
    %v9661 = vunpack.c.h.b16 %v9485
    %v9662 = vunpack.c.l.b16 %v9486
    %v9663 = vunpack.c.h.b16 %v9486
    %v9664 = vunpack.c.l.b16 %v9487
    %v9665 = vunpack.c.h.b16 %v9487
    %v9666 = vunpack.c.l.b16 %v9488
    %v9667 = vunpack.c.h.b16 %v9488
    %v9668 = vunpack.c.l.b16 %v9489
    %v9669 = vunpack.c.h.b16 %v9489
    %v9670 = vunpack.c.l.b16 %v9490
    %v9671 = vunpack.c.h.b16 %v9490
    %v9672 = vunpack.c.l.b16 %v9491
    %v9673 = vunpack.c.h.b16 %v9491
    %v9674 = vunpack.c.l.b16 %v9492
    %v9675 = vunpack.c.h.b16 %v9492
    %v9676 = vunpack.c.l.b16 %v9493
    %v9677 = vunpack.c.h.b16 %v9493
    %v9678 = vunpack.c.l.b16 %v9494
    %v9679 = vunpack.c.h.b16 %v9494
    %v9680 = vunpack.c.l.b16 %v9495
    %v9681 = vunpack.c.h.b16 %v9495
    %v9682 = vunpack.c.l.b16 %v9496
    %v9683 = vunpack.c.h.b16 %v9496
    %v9684 = vunpack.c.l.b16 %v9497
    %v9685 = vunpack.c.h.b16 %v9497
    %v9686 = vunpack.c.l.b16 %v9498
    %v9687 = vunpack.c.h.b16 %v9498
    %v9688 = vunpack.c.l.b16 %v9499
    %v9689 = vunpack.c.h.b16 %v9499
    %v9690 = vunpack.c.l.b16 %v9500
    %v9691 = vunpack.c.h.b16 %v9500
    %v9692 = vunpack.c.l.b16 %v9501
    %v9693 = vunpack.c.h.b16 %v9501
    %v9694 = vpack.c.b16 %v9570, %v9566
    %v9695 = vpack.c.b16 %v9571, %v9567
    %v9696 = vpack.c.b16 %v9572, %v9568
    %v9697 = vpack.c.b16 %v9573, %v9569
    %v9698 = vpack.c.b16 %v9578, %v9574
    %v9699 = vpack.c.b16 %v9579, %v9575
    %v9700 = vpack.c.b16 %v9580, %v9576
    %v9701 = vpack.c.b16 %v9581, %v9577
    %v9702 = vpack.c.b16 %v9586, %v9582
    %v9703 = vpack.c.b16 %v9587, %v9583
    %v9704 = vpack.c.b16 %v9588, %v9584
    %v9705 = vpack.c.b16 %v9589, %v9585
    %v9706 = vpack.c.b16 %v9594, %v9590
    %v9707 = vpack.c.b16 %v9595, %v9591
    %v9708 = vpack.c.b16 %v9596, %v9592
    %v9709 = vpack.c.b16 %v9597, %v9593
    %v9710 = vpack.c.b16 %v9602, %v9598
    %v9711 = vpack.c.b16 %v9603, %v9599
    %v9712 = vpack.c.b16 %v9604, %v9600
    %v9713 = vpack.c.b16 %v9605, %v9601
    %v9714 = vpack.c.b16 %v9610, %v9606
    %v9715 = vpack.c.b16 %v9611, %v9607
    %v9716 = vpack.c.b16 %v9612, %v9608
    %v9717 = vpack.c.b16 %v9613, %v9609
    %v9718 = vpack.c.b16 %v9618, %v9614
    %v9719 = vpack.c.b16 %v9619, %v9615
    %v9720 = vpack.c.b16 %v9620, %v9616
    %v9721 = vpack.c.b16 %v9621, %v9617
    %v9722 = vpack.c.b16 %v9626, %v9622
    %v9723 = vpack.c.b16 %v9627, %v9623
    %v9724 = vpack.c.b16 %v9628, %v9624
    %v9725 = vpack.c.b16 %v9629, %v9625
    %v9726 = vpack.c.b16 %v9634, %v9630
    %v9727 = vpack.c.b16 %v9635, %v9631
    %v9728 = vpack.c.b16 %v9636, %v9632
    %v9729 = vpack.c.b16 %v9637, %v9633
    %v9730 = vpack.c.b16 %v9642, %v9638
    %v9731 = vpack.c.b16 %v9643, %v9639
    %v9732 = vpack.c.b16 %v9644, %v9640
    %v9733 = vpack.c.b16 %v9645, %v9641
    %v9734 = vpack.c.b16 %v9650, %v9646
    %v9735 = vpack.c.b16 %v9651, %v9647
    %v9736 = vpack.c.b16 %v9652, %v9648
    %v9737 = vpack.c.b16 %v9653, %v9649
    %v9738 = vpack.c.b16 %v9658, %v9654
    %v9739 = vpack.c.b16 %v9659, %v9655
    %v9740 = vpack.c.b16 %v9660, %v9656
    %v9741 = vpack.c.b16 %v9661, %v9657
    %v9742 = vpack.c.b16 %v9666, %v9662
    %v9743 = vpack.c.b16 %v9667, %v9663
    %v9744 = vpack.c.b16 %v9668, %v9664
    %v9745 = vpack.c.b16 %v9669, %v9665
    %v9746 = vpack.c.b16 %v9674, %v9670
    %v9747 = vpack.c.b16 %v9675, %v9671
    %v9748 = vpack.c.b16 %v9676, %v9672
    %v9749 = vpack.c.b16 %v9677, %v9673
    %v9750 = vpack.c.b16 %v9682, %v9678
    %v9751 = vpack.c.b16 %v9683, %v9679
    %v9752 = vpack.c.b16 %v9684, %v9680
    %v9753 = vpack.c.b16 %v9685, %v9681
    %v9754 = vpack.c.b16 %v9690, %v9686
    %v9755 = vpack.c.b16 %v9691, %v9687
    %v9756 = vpack.c.b16 %v9692, %v9688
    %v9757 = vpack.c.b16 %v9693, %v9689
    %9822 = vmatprep.subr.bf16.mxu0 %v9723
    %9823 = vmatpush1.bf16.msra.mxu0 %v9722
    %9824 = vmatprep.subr.bf16.mxu0 %v9719
    %9825 = vmatpush1.bf16.msra.mxu0 %v9718
    %9826 = vmatprep.subr.bf16.mxu0 %v9715
    %9827 = vmatpush1.bf16.msra.mxu0 %v9714
    %9828 = vmatprep.subr.bf16.mxu0 %v9711
    %9829 = vmatpush1.bf16.msra.mxu0 %v9710
    %9830 = vmatprep.subr.bf16.mxu0 %v9707
    %9831 = vmatpush1.bf16.msra.mxu0 %v9706
    %9832 = vmatprep.subr.bf16.mxu0 %v9703
    %9833 = vmatpush1.bf16.msra.mxu0 %v9702
    %9834 = vmatprep.subr.bf16.mxu0 %v9699
    %9835 = vmatpush1.bf16.msra.mxu0 %v9698
    %9836 = vmatprep.subr.bf16.mxu0 %v9695
    %9837 = vmatpush1.bf16.msra.mxu0 %v9694
    %9838 = vmatprep.subr.bf16.mxu0 %v9755
    %9839 = vmatpush2.bf16.msra.mxu0 %v9754
    %9840 = vmatprep.subr.bf16.mxu0 %v9751
    %9841 = vmatpush2.bf16.msra.mxu0 %v9750
    %9842 = vmatprep.subr.bf16.mxu0 %v9747
    %9843 = vmatpush2.bf16.msra.mxu0 %v9746
    %9844 = vmatprep.subr.bf16.mxu0 %v9743
    %9845 = vmatpush2.bf16.msra.mxu0 %v9742
    %9846 = vmatprep.subr.bf16.mxu0 %v9739
    %9847 = vmatpush2.bf16.msra.mxu0 %v9738
    %9848 = vmatprep.subr.bf16.mxu0 %v9735
    %9849 = vmatpush2.bf16.msra.mxu0 %v9734
    %9850 = vmatprep.subr.bf16.mxu0 %v9731
    %9851 = vmatpush2.bf16.msra.mxu0 %v9730
    %9852 = vmatprep.subr.bf16.mxu0 %v9727
    %9853 = vmatpush2.bf16.msra.mxu0 %v9726
    %9854 = vmatprep.mubr.bf16.mxu0 %v9436
    %9855 = vmatmul.mubr.bf16.gmra.mxu0 %v9435
    %v9856 = vpop.f32.mrf.mxu0
    %v9857 = vadd.f32 0.0, %v9856
    %v9858 = vpop.f32.mrf.mxu0
    %v9859 = vadd.f32 0.0, %v9858
    %v9860 = vpop.f32.mrf.mxu0
    %v9861 = vpop.f32.mrf.mxu0
    %9862 = vdwg.mxu0
    %9863 = vmatprep.subr.bf16.mxu0 %v9725
    %9864 = vmatpush1.bf16.msra.mxu0 %v9724
    %9865 = vmatprep.subr.bf16.mxu0 %v9721
    %9866 = vmatpush1.bf16.msra.mxu0 %v9720
    %9867 = vmatprep.subr.bf16.mxu0 %v9717
    %9868 = vmatpush1.bf16.msra.mxu0 %v9716
    %9869 = vmatprep.subr.bf16.mxu0 %v9713
    %9870 = vmatpush1.bf16.msra.mxu0 %v9712
    %9871 = vmatprep.subr.bf16.mxu0 %v9709
    %9872 = vmatpush1.bf16.msra.mxu0 %v9708
    %9873 = vmatprep.subr.bf16.mxu0 %v9705
    %9874 = vmatpush1.bf16.msra.mxu0 %v9704
    %9875 = vmatprep.subr.bf16.mxu0 %v9701
    %9876 = vmatpush1.bf16.msra.mxu0 %v9700
    %9877 = vmatprep.subr.bf16.mxu0 %v9697
    %9878 = vmatpush1.bf16.msra.mxu0 %v9696
    %9879 = vmatprep.subr.bf16.mxu0 %v9757
    %9880 = vmatpush2.bf16.msra.mxu0 %v9756
    %9881 = vmatprep.subr.bf16.mxu0 %v9753
    %9882 = vmatpush2.bf16.msra.mxu0 %v9752
    %9883 = vmatprep.subr.bf16.mxu0 %v9749
    %9884 = vmatpush2.bf16.msra.mxu0 %v9748
    %9885 = vmatprep.subr.bf16.mxu0 %v9745
    %9886 = vmatpush2.bf16.msra.mxu0 %v9744
    %9887 = vmatprep.subr.bf16.mxu0 %v9741
    %9888 = vmatpush2.bf16.msra.mxu0 %v9740
    %9889 = vmatprep.subr.bf16.mxu0 %v9737
    %9890 = vmatpush2.bf16.msra.mxu0 %v9736
    %9891 = vmatprep.subr.bf16.mxu0 %v9733
    %9892 = vmatpush2.bf16.msra.mxu0 %v9732
    %9893 = vmatprep.subr.bf16.mxu0 %v9729
    %9894 = vmatpush2.bf16.msra.mxu0 %v9728
    %9895 = vmatprep.mubr.bf16.mxu0 %v9436
    %9896 = vmatmul.mubr.bf16.gmra.mxu0 %v9435
    %v9897 = vpop.f32.mrf.mxu0
    %v9898 = vadd.f32 0.0, %v9897
    %v9899 = vpop.f32.mrf.mxu0
    %v9900 = vadd.f32 0.0, %v9899
    %v9901 = vpop.f32.mrf.mxu0
    %v9902 = vpop.f32.mrf.mxu0
    %9903 = vdwg.mxu0
    %v9904 = vadd.f32 %v9378, %v9857
    %v9905 = vadd.f32 %v9380, %v9859
    %v9906 = vadd.f32 %v9419, %v9898
    %v9907 = vadd.f32 %v9421, %v9900
    %v9908 = vmax.f32 %v8448, %v8452
    %v9909 = vmax.f32 %v8449, %v8453
    %v9910 = vmax.f32 %v8450, %v8454
    %v9911 = vmax.f32 %v8451, %v8455
    %v9912 = vmax.f32 %v9908, %v9910
    %v9913 = vmax.f32 %v9909, %v9911
    %v9914 = vadd.f32 %v9912, %v8467
    %v9915 = vadd.f32 %v9913, %v8471
    %v9916 = vmax.f32 %v9914, 0.0
    %v9917 = vmax.f32 %v9915, 0.0
    %v9918 = vpack.c.bf16 %v9916, %v9916
    %v9919 = vpack.c.bf16 %v9917, %v9917
    %s9920 = scalar_lea.vmem [#allocation10], 1536
    %v9921 = vld [vmem:[%s9920] sm:$0xff]
    %v9922 = vld [vmem:[%s9920 + $0x8] sm:$0xff]
    %v9923 = vld [vmem:[%s9920 + $0x10] sm:$0xff]
    %v9924 = vld [vmem:[%s9920 + $0x18] sm:$0xff]
    %v9925 = vld [vmem:[%s9920 + $0x20] sm:$0xff]
    %v9926 = vld [vmem:[%s9920 + $0x28] sm:$0xff]
    %v9927 = vld [vmem:[%s9920 + $0x30] sm:$0xff]
    %v9928 = vld [vmem:[%s9920 + $0x38] sm:$0xff]
    %v9929 = vld [vmem:[%s9920 + $0x40] sm:$0xff]
    %v9930 = vld [vmem:[%s9920 + $0x48] sm:$0xff]
    %v9931 = vld [vmem:[%s9920 + $0x50] sm:$0xff]
    %v9932 = vld [vmem:[%s9920 + $0x58] sm:$0xff]
    %v9933 = vld [vmem:[%s9920 + $0x60] sm:$0xff]
    %v9934 = vld [vmem:[%s9920 + $0x68] sm:$0xff]
    %v9935 = vld [vmem:[%s9920 + $0x70] sm:$0xff]
    %v9936 = vld [vmem:[%s9920 + $0x78] sm:$0xff]
    %v9937 = vld [vmem:[%s9920 + $0x80] sm:$0xff]
    %v9938 = vld [vmem:[%s9920 + $0x88] sm:$0xff]
    %v9939 = vld [vmem:[%s9920 + $0x90] sm:$0xff]
    %v9940 = vld [vmem:[%s9920 + $0x98] sm:$0xff]
    %v9941 = vld [vmem:[%s9920 + $0xa0] sm:$0xff]
    %v9942 = vld [vmem:[%s9920 + $0xa8] sm:$0xff]
    %v9943 = vld [vmem:[%s9920 + $0xb0] sm:$0xff]
    %v9944 = vld [vmem:[%s9920 + $0xb8] sm:$0xff]
    %v9945 = vld [vmem:[%s9920 + $0xc0] sm:$0xff]
    %v9946 = vld [vmem:[%s9920 + $0xc8] sm:$0xff]
    %v9947 = vld [vmem:[%s9920 + $0xd0] sm:$0xff]
    %v9948 = vld [vmem:[%s9920 + $0xd8] sm:$0xff]
    %v9949 = vld [vmem:[%s9920 + $0xe0] sm:$0xff]
    %v9950 = vld [vmem:[%s9920 + $0xe8] sm:$0xff]
    %v9951 = vld [vmem:[%s9920 + $0xf0] sm:$0xff]
    %v9952 = vld [vmem:[%s9920 + $0xf8] sm:$0xff]
    %v9953 = vld [vmem:[%s9920 + $0x100] sm:$0xff]
    %v9954 = vld [vmem:[%s9920 + $0x108] sm:$0xff]
    %v9955 = vld [vmem:[%s9920 + $0x110] sm:$0xff]
    %v9956 = vld [vmem:[%s9920 + $0x118] sm:$0xff]
    %v9957 = vld [vmem:[%s9920 + $0x120] sm:$0xff]
    %v9958 = vld [vmem:[%s9920 + $0x128] sm:$0xff]
    %v9959 = vld [vmem:[%s9920 + $0x130] sm:$0xff]
    %v9960 = vld [vmem:[%s9920 + $0x138] sm:$0xff]
    %v9961 = vld [vmem:[%s9920 + $0x140] sm:$0xff]
    %v9962 = vld [vmem:[%s9920 + $0x148] sm:$0xff]
    %v9963 = vld [vmem:[%s9920 + $0x150] sm:$0xff]
    %v9964 = vld [vmem:[%s9920 + $0x158] sm:$0xff]
    %v9965 = vld [vmem:[%s9920 + $0x160] sm:$0xff]
    %v9966 = vld [vmem:[%s9920 + $0x168] sm:$0xff]
    %v9967 = vld [vmem:[%s9920 + $0x170] sm:$0xff]
    %v9968 = vld [vmem:[%s9920 + $0x178] sm:$0xff]
    %v9969 = vld [vmem:[%s9920 + $0x180] sm:$0xff]
    %v9970 = vld [vmem:[%s9920 + $0x188] sm:$0xff]
    %v9971 = vld [vmem:[%s9920 + $0x190] sm:$0xff]
    %v9972 = vld [vmem:[%s9920 + $0x198] sm:$0xff]
    %v9973 = vld [vmem:[%s9920 + $0x1a0] sm:$0xff]
    %v9974 = vld [vmem:[%s9920 + $0x1a8] sm:$0xff]
    %v9975 = vld [vmem:[%s9920 + $0x1b0] sm:$0xff]
    %v9976 = vld [vmem:[%s9920 + $0x1b8] sm:$0xff]
    %v9977 = vld [vmem:[%s9920 + $0x1c0] sm:$0xff]
    %v9978 = vld [vmem:[%s9920 + $0x1c8] sm:$0xff]
    %v9979 = vld [vmem:[%s9920 + $0x1d0] sm:$0xff]
    %v9980 = vld [vmem:[%s9920 + $0x1d8] sm:$0xff]
    %v9981 = vld [vmem:[%s9920 + $0x1e0] sm:$0xff]
    %v9982 = vld [vmem:[%s9920 + $0x1e8] sm:$0xff]
    %v9983 = vld [vmem:[%s9920 + $0x1f0] sm:$0xff]
    %v9984 = vld [vmem:[%s9920 + $0x1f8] sm:$0xff]
    %v10049 = vunpack.c.l.b16 %v9921
    %v10050 = vunpack.c.h.b16 %v9921
    %v10051 = vunpack.c.l.b16 %v9922
    %v10052 = vunpack.c.h.b16 %v9922
    %v10053 = vunpack.c.l.b16 %v9923
    %v10054 = vunpack.c.h.b16 %v9923
    %v10055 = vunpack.c.l.b16 %v9924
    %v10056 = vunpack.c.h.b16 %v9924
    %v10057 = vunpack.c.l.b16 %v9925
    %v10058 = vunpack.c.h.b16 %v9925
    %v10059 = vunpack.c.l.b16 %v9926
    %v10060 = vunpack.c.h.b16 %v9926
    %v10061 = vunpack.c.l.b16 %v9927
    %v10062 = vunpack.c.h.b16 %v9927
    %v10063 = vunpack.c.l.b16 %v9928
    %v10064 = vunpack.c.h.b16 %v9928
    %v10065 = vunpack.c.l.b16 %v9929
    %v10066 = vunpack.c.h.b16 %v9929
    %v10067 = vunpack.c.l.b16 %v9930
    %v10068 = vunpack.c.h.b16 %v9930
    %v10069 = vunpack.c.l.b16 %v9931
    %v10070 = vunpack.c.h.b16 %v9931
    %v10071 = vunpack.c.l.b16 %v9932
    %v10072 = vunpack.c.h.b16 %v9932
    %v10073 = vunpack.c.l.b16 %v9933
    %v10074 = vunpack.c.h.b16 %v9933
    %v10075 = vunpack.c.l.b16 %v9934
    %v10076 = vunpack.c.h.b16 %v9934
    %v10077 = vunpack.c.l.b16 %v9935
    %v10078 = vunpack.c.h.b16 %v9935
    %v10079 = vunpack.c.l.b16 %v9936
    %v10080 = vunpack.c.h.b16 %v9936
    %v10081 = vunpack.c.l.b16 %v9937
    %v10082 = vunpack.c.h.b16 %v9937
    %v10083 = vunpack.c.l.b16 %v9938
    %v10084 = vunpack.c.h.b16 %v9938
    %v10085 = vunpack.c.l.b16 %v9939
    %v10086 = vunpack.c.h.b16 %v9939
    %v10087 = vunpack.c.l.b16 %v9940
    %v10088 = vunpack.c.h.b16 %v9940
    %v10089 = vunpack.c.l.b16 %v9941
    %v10090 = vunpack.c.h.b16 %v9941
    %v10091 = vunpack.c.l.b16 %v9942
    %v10092 = vunpack.c.h.b16 %v9942
    %v10093 = vunpack.c.l.b16 %v9943
    %v10094 = vunpack.c.h.b16 %v9943
    %v10095 = vunpack.c.l.b16 %v9944
    %v10096 = vunpack.c.h.b16 %v9944
    %v10097 = vunpack.c.l.b16 %v9945
    %v10098 = vunpack.c.h.b16 %v9945
    %v10099 = vunpack.c.l.b16 %v9946
    %v10100 = vunpack.c.h.b16 %v9946
    %v10101 = vunpack.c.l.b16 %v9947
    %v10102 = vunpack.c.h.b16 %v9947
    %v10103 = vunpack.c.l.b16 %v9948
    %v10104 = vunpack.c.h.b16 %v9948
    %v10105 = vunpack.c.l.b16 %v9949
    %v10106 = vunpack.c.h.b16 %v9949
    %v10107 = vunpack.c.l.b16 %v9950
    %v10108 = vunpack.c.h.b16 %v9950
    %v10109 = vunpack.c.l.b16 %v9951
    %v10110 = vunpack.c.h.b16 %v9951
    %v10111 = vunpack.c.l.b16 %v9952
    %v10112 = vunpack.c.h.b16 %v9952
    %v10113 = vunpack.c.l.b16 %v9953
    %v10114 = vunpack.c.h.b16 %v9953
    %v10115 = vunpack.c.l.b16 %v9954
    %v10116 = vunpack.c.h.b16 %v9954
    %v10117 = vunpack.c.l.b16 %v9955
    %v10118 = vunpack.c.h.b16 %v9955
    %v10119 = vunpack.c.l.b16 %v9956
    %v10120 = vunpack.c.h.b16 %v9956
    %v10121 = vunpack.c.l.b16 %v9957
    %v10122 = vunpack.c.h.b16 %v9957
    %v10123 = vunpack.c.l.b16 %v9958
    %v10124 = vunpack.c.h.b16 %v9958
    %v10125 = vunpack.c.l.b16 %v9959
    %v10126 = vunpack.c.h.b16 %v9959
    %v10127 = vunpack.c.l.b16 %v9960
    %v10128 = vunpack.c.h.b16 %v9960
    %v10129 = vunpack.c.l.b16 %v9961
    %v10130 = vunpack.c.h.b16 %v9961
    %v10131 = vunpack.c.l.b16 %v9962
    %v10132 = vunpack.c.h.b16 %v9962
    %v10133 = vunpack.c.l.b16 %v9963
    %v10134 = vunpack.c.h.b16 %v9963
    %v10135 = vunpack.c.l.b16 %v9964
    %v10136 = vunpack.c.h.b16 %v9964
    %v10137 = vunpack.c.l.b16 %v9965
    %v10138 = vunpack.c.h.b16 %v9965
    %v10139 = vunpack.c.l.b16 %v9966
    %v10140 = vunpack.c.h.b16 %v9966
    %v10141 = vunpack.c.l.b16 %v9967
    %v10142 = vunpack.c.h.b16 %v9967
    %v10143 = vunpack.c.l.b16 %v9968
    %v10144 = vunpack.c.h.b16 %v9968
    %v10145 = vunpack.c.l.b16 %v9969
    %v10146 = vunpack.c.h.b16 %v9969
    %v10147 = vunpack.c.l.b16 %v9970
    %v10148 = vunpack.c.h.b16 %v9970
    %v10149 = vunpack.c.l.b16 %v9971
    %v10150 = vunpack.c.h.b16 %v9971
    %v10151 = vunpack.c.l.b16 %v9972
    %v10152 = vunpack.c.h.b16 %v9972
    %v10153 = vunpack.c.l.b16 %v9973
    %v10154 = vunpack.c.h.b16 %v9973
    %v10155 = vunpack.c.l.b16 %v9974
    %v10156 = vunpack.c.h.b16 %v9974
    %v10157 = vunpack.c.l.b16 %v9975
    %v10158 = vunpack.c.h.b16 %v9975
    %v10159 = vunpack.c.l.b16 %v9976
    %v10160 = vunpack.c.h.b16 %v9976
    %v10161 = vunpack.c.l.b16 %v9977
    %v10162 = vunpack.c.h.b16 %v9977
    %v10163 = vunpack.c.l.b16 %v9978
    %v10164 = vunpack.c.h.b16 %v9978
    %v10165 = vunpack.c.l.b16 %v9979
    %v10166 = vunpack.c.h.b16 %v9979
    %v10167 = vunpack.c.l.b16 %v9980
    %v10168 = vunpack.c.h.b16 %v9980
    %v10169 = vunpack.c.l.b16 %v9981
    %v10170 = vunpack.c.h.b16 %v9981
    %v10171 = vunpack.c.l.b16 %v9982
    %v10172 = vunpack.c.h.b16 %v9982
    %v10173 = vunpack.c.l.b16 %v9983
    %v10174 = vunpack.c.h.b16 %v9983
    %v10175 = vunpack.c.l.b16 %v9984
    %v10176 = vunpack.c.h.b16 %v9984
    %v10177 = vpack.c.b16 %v10053, %v10049
    %v10178 = vpack.c.b16 %v10054, %v10050
    %v10179 = vpack.c.b16 %v10055, %v10051
    %v10180 = vpack.c.b16 %v10056, %v10052
    %v10181 = vpack.c.b16 %v10061, %v10057
    %v10182 = vpack.c.b16 %v10062, %v10058
    %v10183 = vpack.c.b16 %v10063, %v10059
    %v10184 = vpack.c.b16 %v10064, %v10060
    %v10185 = vpack.c.b16 %v10069, %v10065
    %v10186 = vpack.c.b16 %v10070, %v10066
    %v10187 = vpack.c.b16 %v10071, %v10067
    %v10188 = vpack.c.b16 %v10072, %v10068
    %v10189 = vpack.c.b16 %v10077, %v10073
    %v10190 = vpack.c.b16 %v10078, %v10074
    %v10191 = vpack.c.b16 %v10079, %v10075
    %v10192 = vpack.c.b16 %v10080, %v10076
    %v10193 = vpack.c.b16 %v10085, %v10081
    %v10194 = vpack.c.b16 %v10086, %v10082
    %v10195 = vpack.c.b16 %v10087, %v10083
    %v10196 = vpack.c.b16 %v10088, %v10084
    %v10197 = vpack.c.b16 %v10093, %v10089
    %v10198 = vpack.c.b16 %v10094, %v10090
    %v10199 = vpack.c.b16 %v10095, %v10091
    %v10200 = vpack.c.b16 %v10096, %v10092
    %v10201 = vpack.c.b16 %v10101, %v10097
    %v10202 = vpack.c.b16 %v10102, %v10098
    %v10203 = vpack.c.b16 %v10103, %v10099
    %v10204 = vpack.c.b16 %v10104, %v10100
    %v10205 = vpack.c.b16 %v10109, %v10105
    %v10206 = vpack.c.b16 %v10110, %v10106
    %v10207 = vpack.c.b16 %v10111, %v10107
    %v10208 = vpack.c.b16 %v10112, %v10108
    %v10209 = vpack.c.b16 %v10117, %v10113
    %v10210 = vpack.c.b16 %v10118, %v10114
    %v10211 = vpack.c.b16 %v10119, %v10115
    %v10212 = vpack.c.b16 %v10120, %v10116
    %v10213 = vpack.c.b16 %v10125, %v10121
    %v10214 = vpack.c.b16 %v10126, %v10122
    %v10215 = vpack.c.b16 %v10127, %v10123
    %v10216 = vpack.c.b16 %v10128, %v10124
    %v10217 = vpack.c.b16 %v10133, %v10129
    %v10218 = vpack.c.b16 %v10134, %v10130
    %v10219 = vpack.c.b16 %v10135, %v10131
    %v10220 = vpack.c.b16 %v10136, %v10132
    %v10221 = vpack.c.b16 %v10141, %v10137
    %v10222 = vpack.c.b16 %v10142, %v10138
    %v10223 = vpack.c.b16 %v10143, %v10139
    %v10224 = vpack.c.b16 %v10144, %v10140
    %v10225 = vpack.c.b16 %v10149, %v10145
    %v10226 = vpack.c.b16 %v10150, %v10146
    %v10227 = vpack.c.b16 %v10151, %v10147
    %v10228 = vpack.c.b16 %v10152, %v10148
    %v10229 = vpack.c.b16 %v10157, %v10153
    %v10230 = vpack.c.b16 %v10158, %v10154
    %v10231 = vpack.c.b16 %v10159, %v10155
    %v10232 = vpack.c.b16 %v10160, %v10156
    %v10233 = vpack.c.b16 %v10165, %v10161
    %v10234 = vpack.c.b16 %v10166, %v10162
    %v10235 = vpack.c.b16 %v10167, %v10163
    %v10236 = vpack.c.b16 %v10168, %v10164
    %v10237 = vpack.c.b16 %v10173, %v10169
    %v10238 = vpack.c.b16 %v10174, %v10170
    %v10239 = vpack.c.b16 %v10175, %v10171
    %v10240 = vpack.c.b16 %v10176, %v10172
    %10305 = vmatprep.subr.bf16.mxu0 %v10206
    %10306 = vmatpush1.bf16.msra.mxu0 %v10205
    %10307 = vmatprep.subr.bf16.mxu0 %v10202
    %10308 = vmatpush1.bf16.msra.mxu0 %v10201
    %10309 = vmatprep.subr.bf16.mxu0 %v10198
    %10310 = vmatpush1.bf16.msra.mxu0 %v10197
    %10311 = vmatprep.subr.bf16.mxu0 %v10194
    %10312 = vmatpush1.bf16.msra.mxu0 %v10193
    %10313 = vmatprep.subr.bf16.mxu0 %v10190
    %10314 = vmatpush1.bf16.msra.mxu0 %v10189
    %10315 = vmatprep.subr.bf16.mxu0 %v10186
    %10316 = vmatpush1.bf16.msra.mxu0 %v10185
    %10317 = vmatprep.subr.bf16.mxu0 %v10182
    %10318 = vmatpush1.bf16.msra.mxu0 %v10181
    %10319 = vmatprep.subr.bf16.mxu0 %v10178
    %10320 = vmatpush1.bf16.msra.mxu0 %v10177
    %10321 = vmatprep.subr.bf16.mxu0 %v10238
    %10322 = vmatpush2.bf16.msra.mxu0 %v10237
    %10323 = vmatprep.subr.bf16.mxu0 %v10234
    %10324 = vmatpush2.bf16.msra.mxu0 %v10233
    %10325 = vmatprep.subr.bf16.mxu0 %v10230
    %10326 = vmatpush2.bf16.msra.mxu0 %v10229
    %10327 = vmatprep.subr.bf16.mxu0 %v10226
    %10328 = vmatpush2.bf16.msra.mxu0 %v10225
    %10329 = vmatprep.subr.bf16.mxu0 %v10222
    %10330 = vmatpush2.bf16.msra.mxu0 %v10221
    %10331 = vmatprep.subr.bf16.mxu0 %v10218
    %10332 = vmatpush2.bf16.msra.mxu0 %v10217
    %10333 = vmatprep.subr.bf16.mxu0 %v10214
    %10334 = vmatpush2.bf16.msra.mxu0 %v10213
    %10335 = vmatprep.subr.bf16.mxu0 %v10210
    %10336 = vmatpush2.bf16.msra.mxu0 %v10209
    %10337 = vmatprep.mubr.bf16.mxu0 %v9919
    %10338 = vmatmul.mubr.bf16.gmra.mxu0 %v9918
    %v10339 = vpop.f32.mrf.mxu0
    %v10340 = vadd.f32 0.0, %v10339
    %v10341 = vpop.f32.mrf.mxu0
    %v10342 = vadd.f32 0.0, %v10341
    %v10343 = vpop.f32.mrf.mxu0
    %v10344 = vpop.f32.mrf.mxu0
    %10345 = vdwg.mxu0
    %10346 = vmatprep.subr.bf16.mxu0 %v10208
    %10347 = vmatpush1.bf16.msra.mxu0 %v10207
    %10348 = vmatprep.subr.bf16.mxu0 %v10204
    %10349 = vmatpush1.bf16.msra.mxu0 %v10203
    %10350 = vmatprep.subr.bf16.mxu0 %v10200
    %10351 = vmatpush1.bf16.msra.mxu0 %v10199
    %10352 = vmatprep.subr.bf16.mxu0 %v10196
    %10353 = vmatpush1.bf16.msra.mxu0 %v10195
    %10354 = vmatprep.subr.bf16.mxu0 %v10192
    %10355 = vmatpush1.bf16.msra.mxu0 %v10191
    %10356 = vmatprep.subr.bf16.mxu0 %v10188
    %10357 = vmatpush1.bf16.msra.mxu0 %v10187
    %10358 = vmatprep.subr.bf16.mxu0 %v10184
    %10359 = vmatpush1.bf16.msra.mxu0 %v10183
    %10360 = vmatprep.subr.bf16.mxu0 %v10180
    %10361 = vmatpush1.bf16.msra.mxu0 %v10179
    %10362 = vmatprep.subr.bf16.mxu0 %v10240
    %10363 = vmatpush2.bf16.msra.mxu0 %v10239
    %10364 = vmatprep.subr.bf16.mxu0 %v10236
    %10365 = vmatpush2.bf16.msra.mxu0 %v10235
    %10366 = vmatprep.subr.bf16.mxu0 %v10232
    %10367 = vmatpush2.bf16.msra.mxu0 %v10231
    %10368 = vmatprep.subr.bf16.mxu0 %v10228
    %10369 = vmatpush2.bf16.msra.mxu0 %v10227
    %10370 = vmatprep.subr.bf16.mxu0 %v10224
    %10371 = vmatpush2.bf16.msra.mxu0 %v10223
    %10372 = vmatprep.subr.bf16.mxu0 %v10220
    %10373 = vmatpush2.bf16.msra.mxu0 %v10219
    %10374 = vmatprep.subr.bf16.mxu0 %v10216
    %10375 = vmatpush2.bf16.msra.mxu0 %v10215
    %10376 = vmatprep.subr.bf16.mxu0 %v10212
    %10377 = vmatpush2.bf16.msra.mxu0 %v10211
    %10378 = vmatprep.mubr.bf16.mxu0 %v9919
    %10379 = vmatmul.mubr.bf16.gmra.mxu0 %v9918
    %v10380 = vpop.f32.mrf.mxu0
    %v10381 = vadd.f32 0.0, %v10380
    %v10382 = vpop.f32.mrf.mxu0
    %v10383 = vadd.f32 0.0, %v10382
    %v10384 = vpop.f32.mrf.mxu0
    %v10385 = vpop.f32.mrf.mxu0
    %10386 = vdwg.mxu0
    %v10387 = vadd.f32 %v9904, %v10340
    %v10388 = vadd.f32 %v9905, %v10342
    %v10389 = vadd.f32 %v9906, %v10381
    %v10390 = vadd.f32 %v9907, %v10383
    %v10391 = vld [vmem:[#allocation11] sm:$0xf]
    %v10393 = vlaneseq
    %v10394 = vshrl.u32 %v10393, 7
    %v10395 = vsub.s32 0, %v10394
    %v10396 = vrot.slane %v10391, %v10395
    %v10397 = vlaneseq
    %v10398 = vshrl.u32 %v10397, 7
    %v10399 = vsub.s32 1, %v10398
    %v10400 = vrot.slane %v10391, %v10399
    %v10401 = vlaneseq
    %v10402 = vshrl.u32 %v10401, 7
    %v10403 = vsub.s32 2, %v10402
    %v10404 = vrot.slane %v10391, %v10403
    %v10405 = vlaneseq
    %v10406 = vshrl.u32 %v10405, 7
    %v10407 = vsub.s32 3, %v10406
    %v10408 = vrot.slane %v10391, %v10407
    %v10413 = vadd.f32 %v10387, %v10396
    %v10414 = vadd.f32 %v10388, %v10400
    %v10415 = vadd.f32 %v10389, %v10404
    %v10416 = vadd.f32 %v10390, %v10408
    %v10417 = vmax.f32 %v10413, 0.0
    %v10418 = vmax.f32 %v10414, 0.0
    %v10419 = vmax.f32 %v10415, 0.0
    %v10420 = vmax.f32 %v10416, 0.0
    %v10421 = vpack.c.bf16 %v10417, %v10417
    %v10422 = vpack.c.bf16 %v10418, %v10418
    %v10423 = vpack.c.bf16 %v10419, %v10419
    %v10424 = vpack.c.bf16 %v10420, %v10420
    %v10425 = vld [vmem:[#allocation13] sm:$0xf]
    %v10426 = vld [vmem:[#allocation13 + $0x4] sm:$0xf]
    %v10427 = vld [vmem:[#allocation13 + $0x8] sm:$0xf]
    %v10428 = vld [vmem:[#allocation13 + $0xc] sm:$0xf]
    %v10429 = vld [vmem:[#allocation13 + $0x10] sm:$0xf]
    %v10430 = vld [vmem:[#allocation13 + $0x14] sm:$0xf]
    %v10431 = vld [vmem:[#allocation13 + $0x18] sm:$0xf]
    %v10432 = vld [vmem:[#allocation13 + $0x1c] sm:$0xf]
    %v10433 = vld [vmem:[#allocation13 + $0x20] sm:$0xf]
    %v10434 = vld [vmem:[#allocation13 + $0x24] sm:$0xf]
    %v10435 = vld [vmem:[#allocation13 + $0x28] sm:$0xf]
    %v10436 = vld [vmem:[#allocation13 + $0x2c] sm:$0xf]
    %v10437 = vld [vmem:[#allocation13 + $0x30] sm:$0xf]
    %v10438 = vld [vmem:[#allocation13 + $0x34] sm:$0xf]
    %v10439 = vld [vmem:[#allocation13 + $0x38] sm:$0xf]
    %v10440 = vld [vmem:[#allocation13 + $0x3c] sm:$0xf]
    %v10441 = vld [vmem:[#allocation13 + $0x40] sm:$0xf]
    %v10442 = vld [vmem:[#allocation13 + $0x44] sm:$0xf]
    %v10443 = vld [vmem:[#allocation13 + $0x48] sm:$0xf]
    %v10444 = vld [vmem:[#allocation13 + $0x4c] sm:$0xf]
    %v10445 = vld [vmem:[#allocation13 + $0x50] sm:$0xf]
    %v10446 = vld [vmem:[#allocation13 + $0x54] sm:$0xf]
    %v10447 = vld [vmem:[#allocation13 + $0x58] sm:$0xf]
    %v10448 = vld [vmem:[#allocation13 + $0x5c] sm:$0xf]
    %v10449 = vld [vmem:[#allocation13 + $0x60] sm:$0xf]
    %v10450 = vld [vmem:[#allocation13 + $0x64] sm:$0xf]
    %v10451 = vld [vmem:[#allocation13 + $0x68] sm:$0xf]
    %v10452 = vld [vmem:[#allocation13 + $0x6c] sm:$0xf]
    %v10453 = vld [vmem:[#allocation13 + $0x70] sm:$0xf]
    %v10454 = vld [vmem:[#allocation13 + $0x74] sm:$0xf]
    %v10455 = vld [vmem:[#allocation13 + $0x78] sm:$0xf]
    %v10456 = vld [vmem:[#allocation13 + $0x7c] sm:$0xf]
    %v10457 = vld [vmem:[#allocation13 + $0x80] sm:$0xf]
    %v10458 = vld [vmem:[#allocation13 + $0x84] sm:$0xf]
    %v10459 = vld [vmem:[#allocation13 + $0x88] sm:$0xf]
    %v10460 = vld [vmem:[#allocation13 + $0x8c] sm:$0xf]
    %v10461 = vld [vmem:[#allocation13 + $0x90] sm:$0xf]
    %v10462 = vld [vmem:[#allocation13 + $0x94] sm:$0xf]
    %v10463 = vld [vmem:[#allocation13 + $0x98] sm:$0xf]
    %v10464 = vld [vmem:[#allocation13 + $0x9c] sm:$0xf]
    %v10465 = vld [vmem:[#allocation13 + $0xa0] sm:$0xf]
    %v10466 = vld [vmem:[#allocation13 + $0xa4] sm:$0xf]
    %v10467 = vld [vmem:[#allocation13 + $0xa8] sm:$0xf]
    %v10468 = vld [vmem:[#allocation13 + $0xac] sm:$0xf]
    %v10469 = vld [vmem:[#allocation13 + $0xb0] sm:$0xf]
    %v10470 = vld [vmem:[#allocation13 + $0xb4] sm:$0xf]
    %v10471 = vld [vmem:[#allocation13 + $0xb8] sm:$0xf]
    %v10472 = vld [vmem:[#allocation13 + $0xbc] sm:$0xf]
    %v10473 = vld [vmem:[#allocation13 + $0xc0] sm:$0xf]
    %v10474 = vld [vmem:[#allocation13 + $0xc4] sm:$0xf]
    %v10475 = vld [vmem:[#allocation13 + $0xc8] sm:$0xf]
    %v10476 = vld [vmem:[#allocation13 + $0xcc] sm:$0xf]
    %v10477 = vld [vmem:[#allocation13 + $0xd0] sm:$0xf]
    %v10478 = vld [vmem:[#allocation13 + $0xd4] sm:$0xf]
    %v10479 = vld [vmem:[#allocation13 + $0xd8] sm:$0xf]
    %v10480 = vld [vmem:[#allocation13 + $0xdc] sm:$0xf]
    %v10481 = vld [vmem:[#allocation13 + $0xe0] sm:$0xf]
    %v10482 = vld [vmem:[#allocation13 + $0xe4] sm:$0xf]
    %v10483 = vld [vmem:[#allocation13 + $0xe8] sm:$0xf]
    %v10484 = vld [vmem:[#allocation13 + $0xec] sm:$0xf]
    %v10485 = vld [vmem:[#allocation13 + $0xf0] sm:$0xf]
    %v10486 = vld [vmem:[#allocation13 + $0xf4] sm:$0xf]
    %v10487 = vld [vmem:[#allocation13 + $0xf8] sm:$0xf]
    %v10488 = vld [vmem:[#allocation13 + $0xfc] sm:$0xf]
    %v10489 = vld [vmem:[#allocation14] sm:$0x1]
    %v10491 = vlaneseq
    %v10492 = vshrl.u32 %v10491, 7
    %v10493 = vsub.s32 0, %v10492
    %v10494 = vrot.slane %v10489, %v10493
    %v10560 = vunpack.c.l.b16 %v10425
    %v10561 = vunpack.c.l.b16 %v10426
    %v10562 = vunpack.c.l.b16 %v10427
    %v10563 = vunpack.c.l.b16 %v10428
    %v10564 = vunpack.c.l.b16 %v10429
    %v10565 = vunpack.c.l.b16 %v10430
    %v10566 = vunpack.c.l.b16 %v10431
    %v10567 = vunpack.c.l.b16 %v10432
    %v10568 = vunpack.c.l.b16 %v10433
    %v10569 = vunpack.c.l.b16 %v10434
    %v10570 = vunpack.c.l.b16 %v10435
    %v10571 = vunpack.c.l.b16 %v10436
    %v10572 = vunpack.c.l.b16 %v10437
    %v10573 = vunpack.c.l.b16 %v10438
    %v10574 = vunpack.c.l.b16 %v10439
    %v10575 = vunpack.c.l.b16 %v10440
    %v10576 = vunpack.c.l.b16 %v10441
    %v10577 = vunpack.c.l.b16 %v10442
    %v10578 = vunpack.c.l.b16 %v10443
    %v10579 = vunpack.c.l.b16 %v10444
    %v10580 = vunpack.c.l.b16 %v10445
    %v10581 = vunpack.c.l.b16 %v10446
    %v10582 = vunpack.c.l.b16 %v10447
    %v10583 = vunpack.c.l.b16 %v10448
    %v10584 = vunpack.c.l.b16 %v10449
    %v10585 = vunpack.c.l.b16 %v10450
    %v10586 = vunpack.c.l.b16 %v10451
    %v10587 = vunpack.c.l.b16 %v10452
    %v10588 = vunpack.c.l.b16 %v10453
    %v10589 = vunpack.c.l.b16 %v10454
    %v10590 = vunpack.c.l.b16 %v10455
    %v10591 = vunpack.c.l.b16 %v10456
    %v10592 = vunpack.c.l.b16 %v10457
    %v10593 = vunpack.c.l.b16 %v10458
    %v10594 = vunpack.c.l.b16 %v10459
    %v10595 = vunpack.c.l.b16 %v10460
    %v10596 = vunpack.c.l.b16 %v10461
    %v10597 = vunpack.c.l.b16 %v10462
    %v10598 = vunpack.c.l.b16 %v10463
    %v10599 = vunpack.c.l.b16 %v10464
    %v10600 = vunpack.c.l.b16 %v10465
    %v10601 = vunpack.c.l.b16 %v10466
    %v10602 = vunpack.c.l.b16 %v10467
    %v10603 = vunpack.c.l.b16 %v10468
    %v10604 = vunpack.c.l.b16 %v10469
    %v10605 = vunpack.c.l.b16 %v10470
    %v10606 = vunpack.c.l.b16 %v10471
    %v10607 = vunpack.c.l.b16 %v10472
    %v10608 = vunpack.c.l.b16 %v10473
    %v10609 = vunpack.c.l.b16 %v10474
    %v10610 = vunpack.c.l.b16 %v10475
    %v10611 = vunpack.c.l.b16 %v10476
    %v10612 = vunpack.c.l.b16 %v10477
    %v10613 = vunpack.c.l.b16 %v10478
    %v10614 = vunpack.c.l.b16 %v10479
    %v10615 = vunpack.c.l.b16 %v10480
    %v10616 = vunpack.c.l.b16 %v10481
    %v10617 = vunpack.c.l.b16 %v10482
    %v10618 = vunpack.c.l.b16 %v10483
    %v10619 = vunpack.c.l.b16 %v10484
    %v10620 = vunpack.c.l.b16 %v10485
    %v10621 = vunpack.c.l.b16 %v10486
    %v10622 = vunpack.c.l.b16 %v10487
    %v10623 = vunpack.c.l.b16 %v10488
    %v10624 = vpack.c.b16 %v10561, %v10560
    %v10625 = vpack.c.b16 %v10563, %v10562
    %v10626 = vpack.c.b16 %v10565, %v10564
    %v10627 = vpack.c.b16 %v10567, %v10566
    %v10628 = vpack.c.b16 %v10569, %v10568
    %v10629 = vpack.c.b16 %v10571, %v10570
    %v10630 = vpack.c.b16 %v10573, %v10572
    %v10631 = vpack.c.b16 %v10575, %v10574
    %v10632 = vpack.c.b16 %v10577, %v10576
    %v10633 = vpack.c.b16 %v10579, %v10578
    %v10634 = vpack.c.b16 %v10581, %v10580
    %v10635 = vpack.c.b16 %v10583, %v10582
    %v10636 = vpack.c.b16 %v10585, %v10584
    %v10637 = vpack.c.b16 %v10587, %v10586
    %v10638 = vpack.c.b16 %v10589, %v10588
    %v10639 = vpack.c.b16 %v10591, %v10590
    %v10640 = vpack.c.b16 %v10593, %v10592
    %v10641 = vpack.c.b16 %v10595, %v10594
    %v10642 = vpack.c.b16 %v10597, %v10596
    %v10643 = vpack.c.b16 %v10599, %v10598
    %v10644 = vpack.c.b16 %v10601, %v10600
    %v10645 = vpack.c.b16 %v10603, %v10602
    %v10646 = vpack.c.b16 %v10605, %v10604
    %v10647 = vpack.c.b16 %v10607, %v10606
    %v10648 = vpack.c.b16 %v10609, %v10608
    %v10649 = vpack.c.b16 %v10611, %v10610
    %v10650 = vpack.c.b16 %v10613, %v10612
    %v10651 = vpack.c.b16 %v10615, %v10614
    %v10652 = vpack.c.b16 %v10617, %v10616
    %v10653 = vpack.c.b16 %v10619, %v10618
    %v10654 = vpack.c.b16 %v10621, %v10620
    %v10655 = vpack.c.b16 %v10623, %v10622
    %10688 = vmatprep.subr.bf16.mxu0 0
    %10689 = vmatpush1.bf16.msra.mxu0 %v10631
    %10690 = vmatprep.subr.bf16.mxu0 0
    %10691 = vmatpush1.bf16.msra.mxu0 %v10630
    %10692 = vmatprep.subr.bf16.mxu0 0
    %10693 = vmatpush1.bf16.msra.mxu0 %v10629
    %10694 = vmatprep.subr.bf16.mxu0 0
    %10695 = vmatpush1.bf16.msra.mxu0 %v10628
    %10696 = vmatprep.subr.bf16.mxu0 0
    %10697 = vmatpush1.bf16.msra.mxu0 %v10627
    %10698 = vmatprep.subr.bf16.mxu0 0
    %10699 = vmatpush1.bf16.msra.mxu0 %v10626
    %10700 = vmatprep.subr.bf16.mxu0 0
    %10701 = vmatpush1.bf16.msra.mxu0 %v10625
    %10702 = vmatprep.subr.bf16.mxu0 0
    %10703 = vmatpush1.bf16.msra.mxu0 %v10624
    %10704 = vmatprep.subr.bf16.mxu0 0
    %10705 = vmatpush2.bf16.msra.mxu0 %v10639
    %10706 = vmatprep.subr.bf16.mxu0 0
    %10707 = vmatpush2.bf16.msra.mxu0 %v10638
    %10708 = vmatprep.subr.bf16.mxu0 0
    %10709 = vmatpush2.bf16.msra.mxu0 %v10637
    %10710 = vmatprep.subr.bf16.mxu0 0
    %10711 = vmatpush2.bf16.msra.mxu0 %v10636
    %10712 = vmatprep.subr.bf16.mxu0 0
    %10713 = vmatpush2.bf16.msra.mxu0 %v10635
    %10714 = vmatprep.subr.bf16.mxu0 0
    %10715 = vmatpush2.bf16.msra.mxu0 %v10634
    %10716 = vmatprep.subr.bf16.mxu0 0
    %10717 = vmatpush2.bf16.msra.mxu0 %v10633
    %10718 = vmatprep.subr.bf16.mxu0 0
    %10719 = vmatpush2.bf16.msra.mxu0 %v10632
    %10720 = vmatprep.mubr.bf16.mxu0 %v10422
    %10721 = vmatmul.mubr.bf16.gmra.mxu0 %v10421
    %v10722 = vpop.f32.mrf.mxu0
    %v10723 = vadd.f32 %v10494, %v10722
    %v10724 = vpop.f32.mrf.mxu0
    %v10725 = vpop.f32.mrf.mxu0
    %v10726 = vpop.f32.mrf.mxu0
    %10727 = vdwg.mxu0
    %10728 = vmatprep.subr.bf16.mxu0 0
    %10729 = vmatpush1.bf16.msra.mxu0 %v10647
    %10730 = vmatprep.subr.bf16.mxu0 0
    %10731 = vmatpush1.bf16.msra.mxu0 %v10646
    %10732 = vmatprep.subr.bf16.mxu0 0
    %10733 = vmatpush1.bf16.msra.mxu0 %v10645
    %10734 = vmatprep.subr.bf16.mxu0 0
    %10735 = vmatpush1.bf16.msra.mxu0 %v10644
    %10736 = vmatprep.subr.bf16.mxu0 0
    %10737 = vmatpush1.bf16.msra.mxu0 %v10643
    %10738 = vmatprep.subr.bf16.mxu0 0
    %10739 = vmatpush1.bf16.msra.mxu0 %v10642
    %10740 = vmatprep.subr.bf16.mxu0 0
    %10741 = vmatpush1.bf16.msra.mxu0 %v10641
    %10742 = vmatprep.subr.bf16.mxu0 0
    %10743 = vmatpush1.bf16.msra.mxu0 %v10640
    %10744 = vmatprep.subr.bf16.mxu0 0
    %10745 = vmatpush2.bf16.msra.mxu0 %v10655
    %10746 = vmatprep.subr.bf16.mxu0 0
    %10747 = vmatpush2.bf16.msra.mxu0 %v10654
    %10748 = vmatprep.subr.bf16.mxu0 0
    %10749 = vmatpush2.bf16.msra.mxu0 %v10653
    %10750 = vmatprep.subr.bf16.mxu0 0
    %10751 = vmatpush2.bf16.msra.mxu0 %v10652
    %10752 = vmatprep.subr.bf16.mxu0 0
    %10753 = vmatpush2.bf16.msra.mxu0 %v10651
    %10754 = vmatprep.subr.bf16.mxu0 0
    %10755 = vmatpush2.bf16.msra.mxu0 %v10650
    %10756 = vmatprep.subr.bf16.mxu0 0
    %10757 = vmatpush2.bf16.msra.mxu0 %v10649
    %10758 = vmatprep.subr.bf16.mxu0 0
    %10759 = vmatpush2.bf16.msra.mxu0 %v10648
    %10760 = vmatprep.mubr.bf16.mxu0 %v10424
    %10761 = vmatmul.mubr.bf16.gmra.mxu0 %v10423
    %v10762 = vpop.f32.mrf.mxu0
    %v10763 = vadd.f32 %v10723, %v10762
    %v10764 = vpop.f32.mrf.mxu0
    %v10765 = vpop.f32.mrf.mxu0
    %v10766 = vpop.f32.mrf.mxu0
    %10767 = vdwg.mxu0
    %10768 = vst [vmem:[%s9] sm:$0xff] %v10763
    // Predicated region
    $region70: #{cnn_forward.1} parent=1 // pred_check
      _
    $region71: #{cnn_forward.1} parent=1 // pred_check_branch
      %10770 = sbr.rel (0) target = $region73
    $region72: #{cnn_forward.1} parent=1 // pred_region
      _
    $region73: #{cnn_forward.1} parent=1 // pred_fallthru
      _
    // Predicated region
    $region74: #{cnn_forward.1} parent=1 // pred_check
      _
    $region75: #{cnn_forward.1} parent=1 // pred_check_branch
      %10772 = sbr.rel (0) target = $region77
    $region76: #{cnn_forward.1} parent=1 // pred_region
      _
    $region77: #{cnn_forward.1} parent=1 // pred_fallthru
      _
    %10773 = vsyncpa [#allocation4], 1
    %10774 = vsyncpa [#allocation6], 1
    %10775 = vsyncpa [#allocation9], 1
    %10776 = vsyncpa [#allocation12], 1
    %10777 = vsyncpa [#allocation15], 1

</llo_original>
